<compile_context>
chip_gen: v5e
topology: v5e:2x2
jax: 0.10.0
libtpu: 0.0.40
codegen_flags: <defaults>
</compile_context>

<pallas_src>
import functools
import math

import jax
import jax.numpy as jnp
from jax.experimental import pallas as pl
from jax.experimental.pallas import tpu as pltpu


# ----------------------------------------------------------------------------
# kernel: grid = (ffn-chunk,).  Attention + residual/accumulator init run on the
# first chunk (pl.when); every step accumulates one streamed FFN chunk into an
# f32 VMEM accumulator; the output is stored once on the last chunk.
# ----------------------------------------------------------------------------
def _decoder_block_kernel(
    # inputs
    x_ref, cos_ref, sin_ref, pk_ref, pv_ref,
    ln_a_g_ref, ln_a_b_ref, w_qkv_ref, b_qkv_ref, w_dense_ref, b_dense_ref,
    ln_f_g_ref, ln_f_b_ref, w_in_ref, b_in_ref, w_out_ref, b_out_ref,
    # outputs
    out_ref, k_out_ref, v_out_ref,
    # scratch
    acc_ref, hffn_ref,
    # static config
    *, num_heads, head_dim, rotary_ndims, past_len, eps, scale):
    H, d, R, Lp = num_heads, head_dim, rotary_ndims, past_len
    B, L, D = x_ref.shape
    Ltot = Lp + L
    f = pl.program_id(0)
    nf = pl.num_programs(0)
    wdt = w_qkv_ref.dtype                              # MXU input dtype (bf16)

    def layernorm(v, g_ref, b_ref):
        mu = jnp.mean(v, axis=-1, keepdims=True)
        var = jnp.mean((v - mu) ** 2, axis=-1, keepdims=True)
        return (v - mu) * jax.lax.rsqrt(var + eps) * g_ref[...] + b_ref[...]

    # ------------- attention + residual / scratch init (first chunk only) ----
    @pl.when(f == 0)
    def _attention_and_init():
        x2d = x_ref[...].astype(jnp.float32).reshape(B * L, D)   # leading-dim merge
        cos = cos_ref[...].astype(jnp.float32)                   # (L, R), offset-sliced
        sin = sin_ref[...].astype(jnp.float32)

        h_attn = layernorm(x2d, ln_a_g_ref, ln_a_b_ref)          # (B*L, D) f32
        # w_qkv was re-laid-out to [Q | K | V] column blocks -> contiguous,
        # D-wide, lane-aligned slices.
        qkv = jnp.dot(h_attn.astype(wdt), w_qkv_ref[...],
                      preferred_element_type=jnp.float32) + b_qkv_ref[...]

        def split_heads(t2d):    # (N, D) -> (H, N, d); lane-dense column h*d+j
            return jnp.stack([t2d[:, h * d:(h + 1) * d] for h in range(H)], axis=0)

        def merge_heads(t_h):    # (H, N, d) -> (N, D) lane-dense
            return jnp.concatenate([t_h[h] for h in range(H)], axis=-1)

        def rope(t_h):           # one batched RoPE over all heads: (H, L, d)
            t_rot, t_pass = t_h[:, :, :R], t_h[:, :, R:]
            t1, t2 = t_rot[:, :, :R // 2], t_rot[:, :, R // 2:]
            # TODO(synk): for R a multiple of 128 use pltpu.roll(t_rot, R//2, -1)
            #             + a sign select (XLU slot) instead of slice+concat.
            rot_half = jnp.concatenate([-t2, t1], axis=-1)
            t_rot = t_rot * cos[None] + rot_half * sin[None]
            if R < d:
                return jnp.concatenate([t_rot, t_pass], axis=-1)
            return t_rot

        attn_rows = []
        for b in range(B):       # static unroll; B is small (1 in decode)
            rows = slice(b * L, (b + 1) * L)
            q_h = rope(split_heads(qkv[rows, :D])) * scale        # (H, L, d)
            k_h = rope(split_heads(qkv[rows, D:2 * D]))           # (H, L, d)
            v_flat = qkv[rows, 2 * D:]                            # (L, D) lane-dense
            v_h = split_heads(v_flat)                             # (H, L, d)

            # in-place cache update: write ONLY the L new rows (aliased buffers).
            k_out_ref[b] = merge_heads(k_h).astype(k_out_ref.dtype)
            v_out_ref[b] = v_flat.astype(v_out_ref.dtype)

            pk_h = split_heads(pk_ref[b].astype(jnp.float32))     # (H, Lp, d)
            pv_h = split_heads(pv_ref[b].astype(jnp.float32))
            k_full = jnp.concatenate([pk_h, k_h], axis=1)         # (H, Ltot, d)
            v_full = jnp.concatenate([pv_h, v_h], axis=1)

            # all-head scores in a single batched matmul
            s = jnp.einsum('hld,hmd->hlm', q_h, k_full,
                           preferred_element_type=jnp.float32)    # (H, L, Ltot)
            if L > 1:  # single-token decode attends everywhere -> skip mask
                q_pos = Lp + jax.lax.broadcasted_iota(jnp.int32, (L, Ltot), 0)
                k_pos = jax.lax.broadcasted_iota(jnp.int32, (L, Ltot), 1)
                s = jnp.where((k_pos <= q_pos)[None], s, jnp.float32(-1e30))
            s = s - jnp.max(s, axis=-1, keepdims=True)
            p = jnp.exp(s)
            p = p * pl.reciprocal(jnp.sum(p, axis=-1, keepdims=True), approx=True)
            o_h = jnp.einsum('hlm,hmd->hld', p, v_full,
                             preferred_element_type=jnp.float32)  # (H, L, d)
            attn_rows.append(merge_heads(o_h))

        attn_flat = jnp.concatenate(attn_rows, axis=0)            # (B*L, D)
        attn_out = jnp.dot(attn_flat.astype(wdt), w_dense_ref[...],
                           preferred_element_type=jnp.float32) + b_dense_ref[...]

        # parallel residual; FFN output bias added once here, streamed FFN chunks
        # accumulate below in f32.
        acc_ref[...] = x2d + attn_out + b_out_ref[...]
        # hoisted FFN LayerNorm: computed once, reused by every streamed chunk.
        hffn_ref[...] = layernorm(x2d, ln_f_g_ref, ln_f_b_ref)

    # ------------- feed-forward branch: one streamed F-chunk per step --------
    ff = jnp.dot(hffn_ref[...].astype(wdt), w_in_ref[...],
                 preferred_element_type=jnp.float32) + b_in_ref[...]
    # tanh-approximate GELU (EUP tanh instead of a long VPU erf polynomial)
    # TODO(synk): swap for exact erf if bit-parity with torch nn.GELU is required.
    c = jnp.float32(0.7978845608028654)                # sqrt(2/pi)
    ff = 0.5 * ff * (1.0 + jnp.tanh(c * (ff + 0.044715 * ff * ff * ff)))
    acc_ref[...] += jnp.dot(ff.astype(wdt), w_out_ref[...],
                            preferred_element_type=jnp.float32)

    # single lane-dense store of the block output on the last chunk
    @pl.when(f == nf - 1)
    def _store():
        out_ref[...] = acc_ref[...].reshape(B, L, D).astype(out_ref.dtype)


# ----------------------------------------------------------------------------
# wrapper helpers
# ----------------------------------------------------------------------------
_HAS_BUFFERED = hasattr(pl, "Buffered")


def _block_spec(shape, index_map, *, single_buffer=False):
    # Grid-invariant inputs are fetched exactly once; a single VMEM buffer is
    # enough (default double-buffering would waste VMEM on them).
    if single_buffer and _HAS_BUFFERED:
        try:
            return pl.BlockSpec(shape, index_map, pipeline_mode=pl.Buffered(1))
        except TypeError:  # BlockSpec without pipeline_mode on this jax version
            pass
    return pl.BlockSpec(shape, index_map)


def _select_budget(F, ff_block):
    """Per-generation VMEM budget + FFN chunk size (v5e/v6e: 128 MiB, v7x: 64 MiB)."""
    try:
        vmem_cap = int(pltpu.get_tpu_info().vmem_capacity_bytes)
    except Exception:
        vmem_cap = 64 * 1024 * 1024                      # conservative (v7x)
    if vmem_cap >= 96 * 1024 * 1024:                     # v5e / v6e
        vmem_limit = 100 * 1024 * 1024
        fb = 512 if ff_block is None else ff_block
    else:                                                # v7x
        vmem_limit = 56 * 1024 * 1024
        fb = 256 if ff_block is None else ff_block
    while fb > 128 and F % fb != 0:
        fb //= 2
    if F % fb != 0 or fb % 128 != 0:
        fb = F                                           # single full-F chunk
    return vmem_limit, fb


# ----------------------------------------------------------------------------
# wrapper: param re-layout (once), BlockSpecs, KV-cache aliasing
# ----------------------------------------------------------------------------
def decoder_block_kvcache(params, x, freqs_cis, causal_mask, kv_cache, past_len,
                          num_heads, *, rotary_pct=0.5, eps=1e-5, ff_block=None,
                          weight_dtype=jnp.bfloat16):
    """One DecoderBlockKVcache forward step.

    Mirrors the torch module, except the KV cache is kept in a lane-dense,
    pre-sized [B, past_len+L, D] layout (column h*d+j = head h, dim j) and is
    updated IN PLACE via input/output aliasing (only the L new rows written).
    `causal_mask` is accepted for API parity; the kernel regenerates the
    standard causal+offset mask from iota.
    """
    cos_cache, sin_cache = freqs_cis             # (>= Lp+L, R) each
    k_buf, v_buf = kv_cache                      # (B, Lp+L, D); rows [:Lp] = past
    B, L, D = x.shape
    H = num_heads
    d = D // H
    R = int(d * rotary_pct)
    Lp = int(past_len)
    Ltot = Lp + L
    F = params['w_in'].shape[1]
    scale = float(d) ** -0.5

    assert k_buf.shape == (B, Ltot, D) and v_buf.shape == (B, Ltot, D)
    assert causal_mask.shape == (L, Ltot)
    # layout constraints of this kernel (pad or use element-offset blocks otherwise)
    # TODO(synk): handle the empty-cache (Lp == 0) prefill path and L == 1 decode
    #             (pad L up to 8) in a production wrapper.
    assert L % 8 == 0 and Lp % 8 == 0 and Lp % L == 0 and R % 2 == 0 and D % H == 0

    vmem_limit, fb = _select_budget(F, ff_block)
    nf = F // fb
    kv_row = Lp // L                             # block-row of the new cache rows

    # offset RoPE tables for the new tokens only
    cos_q = cos_cache[Lp:Lp + L]
    sin_q = sin_cache[Lp:Lp + L]

    # Re-lay-out fused QKV projection from NeoX per-head [q|k|v] interleave to
    # [Q | K | V] column blocks (head-major inside each block).  In a real model
    # this is done once at weight-load time.
    w_qkv = params['w_qkv'].reshape(D, H, 3, d).transpose(0, 2, 1, 3).reshape(D, 3 * D)
    b_qkv = params['b_qkv'].reshape(1, H, 3, d).transpose(0, 2, 1, 3).reshape(1, 3 * D)

    # Decode is weight-HBM-bandwidth bound: stream the big matrices in bf16
    # (f32 MXU accumulate).  Biases / LN params stay f32.
    w_dense, w_in, w_out = params['w_dense'], params['w_in'], params['w_out']
    if weight_dtype is not None:
        w_qkv = w_qkv.astype(weight_dtype)
        w_dense = w_dense.astype(weight_dtype)
        w_in = w_in.astype(weight_dtype)
        w_out = w_out.astype(weight_dtype)

    kernel = functools.partial(
        _decoder_block_kernel, num_heads=H, head_dim=d, rotary_ndims=R,
        past_len=Lp, eps=eps, scale=scale)

    args = (x, cos_q, sin_q, k_buf, v_buf,
            params['ln_attn_g'], params['ln_attn_b'],
            w_qkv, b_qkv, w_dense, params['b_dense'],
            params['ln_ffn_g'], params['ln_ffn_b'],
            w_in, params['b_in'], w_out, params['b_out'])

    out_shape = (
        jax.ShapeDtypeStruct((B, L, D), x.dtype),
        jax.ShapeDtypeStruct((B, Ltot, D), k_buf.dtype),
        jax.ShapeDtypeStruct((B, Ltot, D), v_buf.dtype),
    )
    out_specs = (
        pl.BlockSpec((B, L, D), lambda f: (0, 0, 0)),        # block output
        pl.BlockSpec((B, L, D), lambda f: (0, kv_row, 0)),   # new K rows only
        pl.BlockSpec((B, L, D), lambda f: (0, kv_row, 0)),   # new V rows only
    )

    def build(single_buffer):
        def inv(shape):                      # grid-invariant input
            n = len(shape)
            return _block_spec(shape, lambda f: (0,) * n,
                               single_buffer=single_buffer)
        in_specs = [
            inv((B, L, D)),                                  # x
            inv((L, R)), inv((L, R)),                        # cos, sin (offset-sliced)
            inv((B, Lp, D)), inv((B, Lp, D)),                # past K / V rows (aliased)
            inv((1, D)), inv((1, D)),                        # attn LN gamma / beta
            inv((D, 3 * D)), inv((1, 3 * D)),                # w_qkv, b_qkv ([Q|K|V])
            inv((D, D)), inv((1, D)),                        # w_dense, b_dense
            inv((1, D)), inv((1, D)),                        # ffn LN gamma / beta
            pl.BlockSpec((D, fb), lambda f: (0, f)),         # w_in  (streamed chunks)
            pl.BlockSpec((1, fb), lambda f: (0, f)),         # b_in
            pl.BlockSpec((fb, D), lambda f: (f, 0)),         # w_out (streamed chunks)
            inv((1, D)),                                     # b_out
        ]
        return pl.pallas_call(
            kernel,
            grid=(nf,),
            in_specs=in_specs,
            out_specs=out_specs,
            out_shape=out_shape,
            scratch_shapes=[pltpu.VMEM((B * L, D), jnp.float32),   # f32 accumulator
                            pltpu.VMEM((B * L, D), jnp.float32)],  # hoisted FFN LN
            # in-place KV-cache update: cache buffers aliased to outputs 1 / 2
            input_output_aliases={3: 1, 4: 2},
            compiler_params=pltpu.CompilerParams(
                dimension_semantics=("arbitrary",),
                vmem_limit_bytes=vmem_limit),
        )

    try:
        res = build(single_buffer=True)(*args)
        jax.block_until_ready(res)
    except Exception:
        # pl.Buffered(1) pipeline mode unsupported on this jax/Mosaic version;
        # fall back to default double-buffering (correctness unaffected).
        res = build(single_buffer=False)(*args)
    out, k_cache, v_cache = res
    return out, (k_cache, v_cache)


# ----------------------------------------------------------------------------
# KV-cache layout helpers (torch [B,H,T,d] <-> kernel lane-dense [B,T,D])
# ----------------------------------------------------------------------------
def pack_kv_cache(past_bhld, total_len):
    B, H, Lp, d = past_bhld.shape
    flat = past_bhld.transpose(0, 2, 1, 3).reshape(B, Lp, H * d)
    buf = jnp.zeros((B, total_len, H * d), past_bhld.dtype)
    return buf.at[:, :Lp, :].set(flat)


def unpack_kv_cache(buf, num_heads):
    B, T, D = buf.shape
    d = D // num_heads
    return buf.reshape(B, T, num_heads, d).transpose(0, 2, 1, 3)


# ----------------------------------------------------------------------------
# pure-JAX reference (mirrors the torch module exactly) for validation
# ----------------------------------------------------------------------------
def reference(params, x, freqs_cis, causal_mask, layer_kv_cache,
              *, rotary_pct=0.5, eps=1e-5):
    cos_cache, sin_cache = freqs_cis
    past_k, past_v = layer_kv_cache
    B, L, D = x.shape
    _, H, Lp, d = past_k.shape
    R = int(d * rotary_pct)
    offset = Lp
    scale = float(d) ** -0.5

    def ln(v, g, b):
        mu = v.mean(-1, keepdims=True)
        var = ((v - mu) ** 2).mean(-1, keepdims=True)
        return (v - mu) / jnp.sqrt(var + eps) * g + b

    h = ln(x, params['ln_attn_g'], params['ln_attn_b'])
    qkv = h @ params['w_qkv'] + params['b_qkv']
    qkv = qkv.reshape(B, L, H, 3 * d)
    q = qkv[..., :d].transpose(0, 2, 1, 3)
    k = qkv[..., d:2 * d].transpose(0, 2, 1, 3)
    v = qkv[..., 2 * d:].transpose(0, 2, 1, 3)

    cos = cos_cache[offset:offset + L][None, None]
    sin = sin_cache[offset:offset + L][None, None]

    def rot_half(t):
        t1, t2 = t[..., :t.shape[-1] // 2], t[..., t.shape[-1] // 2:]
        return jnp.concatenate([-t2, t1], axis=-1)

    q_rot, q_pass = q[..., :R], q[..., R:]
    k_rot, k_pass = k[..., :R], k[..., R:]
    q_rot = q_rot * cos + rot_half(q_rot) * sin
    k_rot = k_rot * cos + rot_half(k_rot) * sin
    q = jnp.concatenate([q_rot, q_pass], axis=-1)
    k = jnp.concatenate([k_rot, k_pass], axis=-1)

    k_full = jnp.concatenate([past_k, k], axis=2)
    v_full = jnp.concatenate([past_v, v], axis=2)

    s = jnp.einsum('bhld,bhmd->bhlm', q, k_full) * scale
    s = jnp.where(causal_mask[None, None], s, jnp.float32(-1e30))
    p = jax.nn.softmax(s, axis=-1)
    attn = jnp.einsum('bhlm,bhmd->bhld', p, v_full)
    merged = attn.transpose(0, 2, 1, 3).reshape(B, L, D)
    attn_out = merged @ params['w_dense'] + params['b_dense']

    hf = ln(x, params['ln_ffn_g'], params['ln_ffn_b'])
    ff = hf @ params['w_in'] + params['b_in']
    ff = 0.5 * ff * (1.0 + jax.scipy.special.erf(ff / math.sqrt(2.0)))
    ffn_out = ff @ params['w_out'] + params['b_out']

    return x + attn_out + ffn_out, (k_full, v_full)


# ----------------------------------------------------------------------------
# deterministic setup + run
# ----------------------------------------------------------------------------
def precompute_sin_cos(dim, seq_len, base=10000.0):
    inv_freq = 1.0 / (base ** (jnp.arange(0, dim, 2, dtype=jnp.float32) / dim))
    t = jnp.arange(seq_len, dtype=jnp.float32)
    freqs = jnp.einsum('i,j->ij', t, inv_freq)
    emb = jnp.concatenate([freqs, freqs], axis=-1)
    return jnp.cos(emb), jnp.sin(emb)


def init_params(key, D, F):
    ks = jax.random.split(key, 10)
    s = 0.05
    return dict(
        ln_attn_g=1.0 + 0.1 * jax.random.normal(ks[0], (1, D), jnp.float32),
        ln_attn_b=0.1 * jax.random.normal(ks[1], (1, D), jnp.float32),
        w_qkv=s * jax.random.normal(ks[2], (D, 3 * D), jnp.float32),
        b_qkv=s * jax.random.normal(ks[3], (1, 3 * D), jnp.float32),
        w_dense=s * jax.random.normal(ks[4], (D, D), jnp.float32),
        b_dense=s * jax.random.normal(ks[5], (1, D), jnp.float32),
        ln_ffn_g=1.0 + 0.1 * jax.random.normal(ks[6], (1, D), jnp.float32),
        ln_ffn_b=0.1 * jax.random.normal(ks[7], (1, D), jnp.float32),
        w_in=s * jax.random.normal(ks[8], (D, F), jnp.float32),
        b_in=jnp.zeros((1, F), jnp.float32),
        w_out=s * jax.random.normal(ks[9], (F, D), jnp.float32),
        b_out=jnp.zeros((1, D), jnp.float32),
    )


if __name__ == "__main__":
    B, L, D, H = 2, 8, 128, 4          # embed_dim=128, num_heads=4 -> head_dim=32
    F = 4 * D                          # ff_dim = 512
    d = D // H
    rotary_pct = 0.5                   # rotary_ndims = 16
    Lp = 8                             # past KV-cache length (RoPE / mask offset)
    Ltot = Lp + L

    key = jax.random.PRNGKey(0)
    k_x, k_pk, k_pv, k_p = jax.random.split(key, 4)
    x = jax.random.normal(k_x, (B, L, D), jnp.float32)
    past_k = 0.5 * jax.random.normal(k_pk, (B, H, Lp, d), jnp.float32)
    past_v = 0.5 * jax.random.normal(k_pv, (B, H, Lp, d), jnp.float32)
    params = init_params(k_p, D, F)

    R = int(d * rotary_pct)
    freqs_cis = precompute_sin_cos(R, Ltot)        # (Ltot, R) cos / sin caches

    # boolean causal mask with KV-cache offset: query i attends to key j iff j <= i + Lp
    q_pos = Lp + jnp.arange(L)[:, None]
    k_pos = jnp.arange(Ltot)[None, :]
    causal_mask = k_pos <= q_pos                   # (L, Ltot)

    # pre-sized lane-dense cache buffers holding the past in rows [:Lp]
    k_buf = pack_kv_cache(past_k, Ltot)
    v_buf = pack_kv_cache(past_v, Ltot)

    out, (k_cache, v_cache) = decoder_block_kvcache(
        params, x, freqs_cis, causal_mask, (k_buf, v_buf), Lp, H,
        rotary_pct=rotary_pct, eps=1e-5)
    jax.block_until_ready((out, k_cache, v_cache))

    # apples-to-apples reference: same bf16-rounded projection/FFN matrices,
    # f32 math, erf GELU, exact softmax (mirrors the torch module otherwise).
    params_q = dict(params)
    for name in ('w_qkv', 'w_dense', 'w_in', 'w_out'):
        params_q[name] = params[name].astype(jnp.bfloat16).astype(jnp.float32)
    ref_out, (ref_k, ref_v) = reference(
        params_q, x, freqs_cis, causal_mask, (past_k, past_v),
        rotary_pct=rotary_pct, eps=1e-5)

    k_bhtd = unpack_kv_cache(k_cache, H)
    v_bhtd = unpack_kv_cache(v_cache, H)

    assert out.shape == (B, L, D)
    assert k_cache.shape == (B, Ltot, D) and v_cache.shape == (B, Ltot, D)
    # tolerances cover bf16 activation rounding at the MXU, tanh-approx GELU vs
    # erf, and approx-reciprocal softmax normalization.
    max_err = float(jnp.max(jnp.abs(out - ref_out)))
    assert jnp.allclose(out, ref_out, atol=3e-2, rtol=3e-2), max_err
    assert jnp.allclose(k_bhtd, ref_k, atol=1e-2, rtol=1e-2)
    assert jnp.allclose(v_bhtd, ref_v, atol=1e-2, rtol=1e-2)

    print("KERNEL_OK")
</pallas_src>

<mosaic_0001>
module attributes {stable_mosaic.version = 11 : i64} {
  func.func @_decoder_block_kernel(%arg0: i32, %arg1: memref<2x8x128xf32, #tpu.memory_space<vmem>>, %arg2: memref<8x16xf32, #tpu.memory_space<vmem>>, %arg3: memref<8x16xf32, #tpu.memory_space<vmem>>, %arg4: memref<2x8x128xf32, #tpu.memory_space<vmem>>, %arg5: memref<2x8x128xf32, #tpu.memory_space<vmem>>, %arg6: memref<1x128xf32, #tpu.memory_space<vmem>>, %arg7: memref<1x128xf32, #tpu.memory_space<vmem>>, %arg8: memref<128x384xbf16, #tpu.memory_space<vmem>>, %arg9: memref<1x384xf32, #tpu.memory_space<vmem>>, %arg10: memref<128x128xbf16, #tpu.memory_space<vmem>>, %arg11: memref<1x128xf32, #tpu.memory_space<vmem>>, %arg12: memref<1x128xf32, #tpu.memory_space<vmem>>, %arg13: memref<1x128xf32, #tpu.memory_space<vmem>>, %arg14: memref<128x256xbf16, #tpu.memory_space<vmem>>, %arg15: memref<1x256xf32, #tpu.memory_space<vmem>>, %arg16: memref<256x128xbf16, #tpu.memory_space<vmem>>, %arg17: memref<1x128xf32, #tpu.memory_space<vmem>>, %arg18: memref<2x8x128xf32, #tpu.memory_space<vmem>>, %arg19: memref<2x8x128xf32, #tpu.memory_space<vmem>>, %arg20: memref<2x8x128xf32, #tpu.memory_space<vmem>>, %arg21: memref<16x128xf32, #tpu.memory_space<vmem>>, %arg22: memref<16x128xf32, #tpu.memory_space<vmem>>) attributes {dimension_semantics = [#tpu.dimension_semantics<arbitrary>], iteration_bounds = array<i64: 2>, scalar_prefetch = 0 : i64, scratch_operands = 2 : i64, tpu.core_type = #tpu.core_type<tc>, window_params = [{pipeline_mode = #tpu.pipeline_mode<synchronous>, transform_indices = @transform_0, window_bounds = array<i64: 2, 8, 128>}, {pipeline_mode = #tpu.pipeline_mode<synchronous>, transform_indices = @transform_1, window_bounds = array<i64: 8, 16>}, {pipeline_mode = #tpu.pipeline_mode<synchronous>, transform_indices = @transform_2, window_bounds = array<i64: 8, 16>}, {pipeline_mode = #tpu.pipeline_mode<synchronous>, transform_indices = @transform_3, window_bounds = array<i64: 2, 8, 128>}, {pipeline_mode = #tpu.pipeline_mode<synchronous>, transform_indices = @transform_4, window_bounds = array<i64: 2, 8, 128>}, {pipeline_mode = #tpu.pipeline_mode<synchronous>, transform_indices = @transform_5, window_bounds = array<i64: 1, 128>}, {pipeline_mode = #tpu.pipeline_mode<synchronous>, transform_indices = @transform_6, window_bounds = array<i64: 1, 128>}, {pipeline_mode = #tpu.pipeline_mode<synchronous>, transform_indices = @transform_7, window_bounds = array<i64: 128, 384>}, {pipeline_mode = #tpu.pipeline_mode<synchronous>, transform_indices = @transform_8, window_bounds = array<i64: 1, 384>}, {pipeline_mode = #tpu.pipeline_mode<synchronous>, transform_indices = @transform_9, window_bounds = array<i64: 128, 128>}, {pipeline_mode = #tpu.pipeline_mode<synchronous>, transform_indices = @transform_10, window_bounds = array<i64: 1, 128>}, {pipeline_mode = #tpu.pipeline_mode<synchronous>, transform_indices = @transform_11, window_bounds = array<i64: 1, 128>}, {pipeline_mode = #tpu.pipeline_mode<synchronous>, transform_indices = @transform_12, window_bounds = array<i64: 1, 128>}, {transform_indices = @transform_13, window_bounds = array<i64: 128, 256>}, {transform_indices = @transform_14, window_bounds = array<i64: 1, 256>}, {transform_indices = @transform_15, window_bounds = array<i64: 256, 128>}, {pipeline_mode = #tpu.pipeline_mode<synchronous>, transform_indices = @transform_16, window_bounds = array<i64: 1, 128>}, {pipeline_mode = #tpu.pipeline_mode<synchronous>, transform_indices = @transform_17, window_bounds = array<i64: 2, 8, 128>}, {transform_indices = @transform_18, window_bounds = array<i64: 2, 8, 128>}, {transform_indices = @transform_19, window_bounds = array<i64: 2, 8, 128>}]} {
    %c0_i32 = arith.constant 0 : i32
    %0 = arith.cmpi eq, %arg0, %c0_i32 : i32
    %1 = arith.extui %0 : i1 to i32
    %c0_i32_0 = arith.constant 0 : i32
    %2 = arith.cmpi ne, %1, %c0_i32_0 : i32
    scf.if %2 {
      %c0_18 = arith.constant 0 : index
      %c0_19 = arith.constant 0 : index
      %c0_20 = arith.constant 0 : index
      %32 = vector.load %arg1[%c0_18, %c0_19, %c0_20] : memref<2x8x128xf32, #tpu.memory_space<vmem>>, vector<2x8x128xf32>
      %33 = vector.shape_cast %32 : vector<2x8x128xf32> to vector<16x128xf32>
      %c0_21 = arith.constant 0 : index
      %c0_22 = arith.constant 0 : index
      %34 = vector.load %arg2[%c0_21, %c0_22] : memref<8x16xf32, #tpu.memory_space<vmem>>, vector<8x16xf32>
      %c0_23 = arith.constant 0 : index
      %c0_24 = arith.constant 0 : index
      %35 = vector.load %arg3[%c0_23, %c0_24] : memref<8x16xf32, #tpu.memory_space<vmem>>, vector<8x16xf32>
      %cst_25 = arith.constant dense<0.000000e+00> : vector<16xf32>
      %36 = vector.multi_reduction <add>, %33, %cst_25 [1] : vector<16x128xf32> to vector<16xf32>
      %37 = vector.shape_cast %36 : vector<16xf32> to vector<16x1xf32>
      %cst_26 = arith.constant 1.280000e+02 : f32
      %38 = vector.broadcast %cst_26 : f32 to vector<16x1xf32>
      %39 = arith.divf %37, %38 : vector<16x1xf32>
      %40 = vector.broadcast %39 : vector<16x1xf32> to vector<16x128xf32>
      %41 = arith.subf %33, %40 : vector<16x128xf32>
      %42 = arith.mulf %41, %41 : vector<16x128xf32>
      %cst_27 = arith.constant dense<0.000000e+00> : vector<16xf32>
      %43 = vector.multi_reduction <add>, %42, %cst_27 [1] : vector<16x128xf32> to vector<16xf32>
      %44 = vector.shape_cast %43 : vector<16xf32> to vector<16x1xf32>
      %cst_28 = arith.constant 1.280000e+02 : f32
      %45 = vector.broadcast %cst_28 : f32 to vector<16x1xf32>
      %46 = arith.divf %44, %45 : vector<16x1xf32>
      %47 = vector.broadcast %39 : vector<16x1xf32> to vector<16x128xf32>
      %48 = arith.subf %33, %47 : vector<16x128xf32>
      %cst_29 = arith.constant 9.99999974E-6 : f32
      %49 = vector.broadcast %cst_29 : f32 to vector<16x1xf32>
      %50 = arith.addf %46, %49 : vector<16x1xf32>
      %51 = math.rsqrt %50 : vector<16x1xf32>
      %52 = vector.broadcast %51 : vector<16x1xf32> to vector<16x128xf32>
      %53 = arith.mulf %48, %52 : vector<16x128xf32>
      %c0_30 = arith.constant 0 : index
      %c0_31 = arith.constant 0 : index
      %54 = vector.load %arg6[%c0_30, %c0_31] : memref<1x128xf32, #tpu.memory_space<vmem>>, vector<1x128xf32>
      %55 = vector.broadcast %54 : vector<1x128xf32> to vector<16x128xf32>
      %56 = arith.mulf %53, %55 : vector<16x128xf32>
      %c0_32 = arith.constant 0 : index
      %c0_33 = arith.constant 0 : index
      %57 = vector.load %arg7[%c0_32, %c0_33] : memref<1x128xf32, #tpu.memory_space<vmem>>, vector<1x128xf32>
      %58 = vector.broadcast %57 : vector<1x128xf32> to vector<16x128xf32>
      %59 = arith.addf %56, %58 : vector<16x128xf32>
      %60 = arith.truncf %59 : vector<16x128xf32> to vector<16x128xbf16>
      %c0_34 = arith.constant 0 : index
      %c0_35 = arith.constant 0 : index
      %61 = vector.load %arg8[%c0_34, %c0_35] : memref<128x384xbf16, #tpu.memory_space<vmem>>, vector<128x384xbf16>
      %cst_36 = arith.constant dense<0.000000e+00> : vector<16x384xf32>
      %62 = tpu.matmul %60, %61, %cst_36 {dimension_numbers = #tpu.dot_dimension_numbers<[1], [0], [0], [1], [0, 0, 1, 1], [], []>} : vector<16x128xbf16>, vector<128x384xbf16>, vector<16x384xf32> -> vector<16x384xf32>
      %c0_37 = arith.constant 0 : index
      %c0_38 = arith.constant 0 : index
      %63 = vector.load %arg9[%c0_37, %c0_38] : memref<1x384xf32, #tpu.memory_space<vmem>>, vector<1x384xf32>
      %64 = vector.broadcast %63 : vector<1x384xf32> to vector<16x384xf32>
      %65 = arith.addf %62, %64 : vector<16x384xf32>
      %66 = vector.extract_strided_slice %65 {offsets = [0, 0], sizes = [8, 128], strides = [1, 1]} : vector<16x384xf32> to vector<8x128xf32>
      %67 = vector.extract_strided_slice %66 {offsets = [0, 0], sizes = [8, 32], strides = [1, 1]} : vector<8x128xf32> to vector<8x32xf32>
      %68 = vector.extract_strided_slice %66 {offsets = [0, 32], sizes = [8, 32], strides = [1, 1]} : vector<8x128xf32> to vector<8x32xf32>
      %69 = vector.extract_strided_slice %66 {offsets = [0, 64], sizes = [8, 32], strides = [1, 1]} : vector<8x128xf32> to vector<8x32xf32>
      %70 = vector.extract_strided_slice %66 {offsets = [0, 96], sizes = [8, 32], strides = [1, 1]} : vector<8x128xf32> to vector<8x32xf32>
      %71 = vector.shape_cast %67 : vector<8x32xf32> to vector<1x8x32xf32>
      %72 = vector.shape_cast %68 : vector<8x32xf32> to vector<1x8x32xf32>
      %73 = vector.shape_cast %69 : vector<8x32xf32> to vector<1x8x32xf32>
      %74 = vector.shape_cast %70 : vector<8x32xf32> to vector<1x8x32xf32>
      %75 = tpu.concatenate %71, %72, %73, %74 in 0 : vector<1x8x32xf32>, vector<1x8x32xf32>, vector<1x8x32xf32>, vector<1x8x32xf32> -> vector<4x8x32xf32>
      %76 = vector.extract_strided_slice %75 {offsets = [0, 0, 0], sizes = [4, 8, 16], strides = [1, 1, 1]} : vector<4x8x32xf32> to vector<4x8x16xf32>
      %77 = vector.extract_strided_slice %75 {offsets = [0, 0, 16], sizes = [4, 8, 16], strides = [1, 1, 1]} : vector<4x8x32xf32> to vector<4x8x16xf32>
      %78 = vector.extract_strided_slice %76 {offsets = [0, 0, 0], sizes = [4, 8, 8], strides = [1, 1, 1]} : vector<4x8x16xf32> to vector<4x8x8xf32>
      %79 = vector.extract_strided_slice %76 {offsets = [0, 0, 8], sizes = [4, 8, 8], strides = [1, 1, 1]} : vector<4x8x16xf32> to vector<4x8x8xf32>
      %cst_39 = arith.constant 0.000000e+00 : f32
      %80 = vector.broadcast %cst_39 : f32 to vector<4x8x8xf32>
      %81 = arith.subf %80, %79 : vector<4x8x8xf32>
      %82 = tpu.concatenate %81, %78 in 2 : vector<4x8x8xf32>, vector<4x8x8xf32> -> vector<4x8x16xf32>
      %83 = vector.shape_cast %34 : vector<8x16xf32> to vector<1x8x16xf32>
      %84 = vector.broadcast %83 : vector<1x8x16xf32> to vector<4x8x16xf32>
      %85 = arith.mulf %76, %84 : vector<4x8x16xf32>
      %86 = vector.shape_cast %35 : vector<8x16xf32> to vector<1x8x16xf32>
      %87 = vector.broadcast %86 : vector<1x8x16xf32> to vector<4x8x16xf32>
      %88 = arith.mulf %82, %87 : vector<4x8x16xf32>
      %89 = arith.addf %85, %88 : vector<4x8x16xf32>
      %90 = tpu.concatenate %89, %77 in 2 : vector<4x8x16xf32>, vector<4x8x16xf32> -> vector<4x8x32xf32>
      %cst_40 = arith.constant 0.176776692 : f32
      %91 = vector.broadcast %cst_40 : f32 to vector<4x8x32xf32>
      %92 = arith.mulf %90, %91 : vector<4x8x32xf32>
      %93 = vector.extract_strided_slice %65 {offsets = [0, 128], sizes = [8, 128], strides = [1, 1]} : vector<16x384xf32> to vector<8x128xf32>
      %94 = vector.extract_strided_slice %93 {offsets = [0, 0], sizes = [8, 32], strides = [1, 1]} : vector<8x128xf32> to vector<8x32xf32>
      %95 = vector.extract_strided_slice %93 {offsets = [0, 32], sizes = [8, 32], strides = [1, 1]} : vector<8x128xf32> to vector<8x32xf32>
      %96 = vector.extract_strided_slice %93 {offsets = [0, 64], sizes = [8, 32], strides = [1, 1]} : vector<8x128xf32> to vector<8x32xf32>
      %97 = vector.extract_strided_slice %93 {offsets = [0, 96], sizes = [8, 32], strides = [1, 1]} : vector<8x128xf32> to vector<8x32xf32>
      %98 = vector.shape_cast %94 : vector<8x32xf32> to vector<1x8x32xf32>
      %99 = vector.shape_cast %95 : vector<8x32xf32> to vector<1x8x32xf32>
      %100 = vector.shape_cast %96 : vector<8x32xf32> to vector<1x8x32xf32>
      %101 = vector.shape_cast %97 : vector<8x32xf32> to vector<1x8x32xf32>
      %102 = tpu.concatenate %98, %99, %100, %101 in 0 : vector<1x8x32xf32>, vector<1x8x32xf32>, vector<1x8x32xf32>, vector<1x8x32xf32> -> vector<4x8x32xf32>
      %103 = vector.extract_strided_slice %102 {offsets = [0, 0, 0], sizes = [4, 8, 16], strides = [1, 1, 1]} : vector<4x8x32xf32> to vector<4x8x16xf32>
      %104 = vector.extract_strided_slice %102 {offsets = [0, 0, 16], sizes = [4, 8, 16], strides = [1, 1, 1]} : vector<4x8x32xf32> to vector<4x8x16xf32>
      %105 = vector.extract_strided_slice %103 {offsets = [0, 0, 0], sizes = [4, 8, 8], strides = [1, 1, 1]} : vector<4x8x16xf32> to vector<4x8x8xf32>
      %106 = vector.extract_strided_slice %103 {offsets = [0, 0, 8], sizes = [4, 8, 8], strides = [1, 1, 1]} : vector<4x8x16xf32> to vector<4x8x8xf32>
      %cst_41 = arith.constant 0.000000e+00 : f32
      %107 = vector.broadcast %cst_41 : f32 to vector<4x8x8xf32>
      %108 = arith.subf %107, %106 : vector<4x8x8xf32>
      %109 = tpu.concatenate %108, %105 in 2 : vector<4x8x8xf32>, vector<4x8x8xf32> -> vector<4x8x16xf32>
      %110 = vector.shape_cast %34 : vector<8x16xf32> to vector<1x8x16xf32>
      %111 = vector.broadcast %110 : vector<1x8x16xf32> to vector<4x8x16xf32>
      %112 = arith.mulf %103, %111 : vector<4x8x16xf32>
      %113 = vector.shape_cast %35 : vector<8x16xf32> to vector<1x8x16xf32>
      %114 = vector.broadcast %113 : vector<1x8x16xf32> to vector<4x8x16xf32>
      %115 = arith.mulf %109, %114 : vector<4x8x16xf32>
      %116 = arith.addf %112, %115 : vector<4x8x16xf32>
      %117 = tpu.concatenate %116, %104 in 2 : vector<4x8x16xf32>, vector<4x8x16xf32> -> vector<4x8x32xf32>
      %118 = vector.extract_strided_slice %65 {offsets = [0, 256], sizes = [8, 128], strides = [1, 1]} : vector<16x384xf32> to vector<8x128xf32>
      %119 = vector.extract_strided_slice %118 {offsets = [0, 0], sizes = [8, 32], strides = [1, 1]} : vector<8x128xf32> to vector<8x32xf32>
      %120 = vector.extract_strided_slice %118 {offsets = [0, 32], sizes = [8, 32], strides = [1, 1]} : vector<8x128xf32> to vector<8x32xf32>
      %121 = vector.extract_strided_slice %118 {offsets = [0, 64], sizes = [8, 32], strides = [1, 1]} : vector<8x128xf32> to vector<8x32xf32>
      %122 = vector.extract_strided_slice %118 {offsets = [0, 96], sizes = [8, 32], strides = [1, 1]} : vector<8x128xf32> to vector<8x32xf32>
      %123 = vector.shape_cast %119 : vector<8x32xf32> to vector<1x8x32xf32>
      %124 = vector.shape_cast %120 : vector<8x32xf32> to vector<1x8x32xf32>
      %125 = vector.shape_cast %121 : vector<8x32xf32> to vector<1x8x32xf32>
      %126 = vector.shape_cast %122 : vector<8x32xf32> to vector<1x8x32xf32>
      %127 = tpu.concatenate %123, %124, %125, %126 in 0 : vector<1x8x32xf32>, vector<1x8x32xf32>, vector<1x8x32xf32>, vector<1x8x32xf32> -> vector<4x8x32xf32>
      %128 = vector.extract_strided_slice %117 {offsets = [0, 0, 0], sizes = [1, 8, 32], strides = [1, 1, 1]} : vector<4x8x32xf32> to vector<1x8x32xf32>
      %129 = vector.shape_cast %128 : vector<1x8x32xf32> to vector<8x32xf32>
      %130 = vector.extract_strided_slice %117 {offsets = [1, 0, 0], sizes = [1, 8, 32], strides = [1, 1, 1]} : vector<4x8x32xf32> to vector<1x8x32xf32>
      %131 = vector.shape_cast %130 : vector<1x8x32xf32> to vector<8x32xf32>
      %132 = vector.extract_strided_slice %117 {offsets = [2, 0, 0], sizes = [1, 8, 32], strides = [1, 1, 1]} : vector<4x8x32xf32> to vector<1x8x32xf32>
      %133 = vector.shape_cast %132 : vector<1x8x32xf32> to vector<8x32xf32>
      %134 = vector.extract_strided_slice %117 {offsets = [3, 0, 0], sizes = [1, 8, 32], strides = [1, 1, 1]} : vector<4x8x32xf32> to vector<1x8x32xf32>
      %135 = vector.shape_cast %134 : vector<1x8x32xf32> to vector<8x32xf32>
      %136 = tpu.concatenate %129, %131, %133, %135 in 1 : vector<8x32xf32>, vector<8x32xf32>, vector<8x32xf32>, vector<8x32xf32> -> vector<8x128xf32>
      %c0_42 = arith.constant 0 : index
      %c0_43 = arith.constant 0 : index
      %c0_44 = arith.constant 0 : index
      %137 = vector.load %arg19[%c0_42, %c0_43, %c0_44] : memref<2x8x128xf32, #tpu.memory_space<vmem>>, vector<1x8x128xf32>
      %138 = vector.shape_cast %137 : vector<1x8x128xf32> to vector<8x128xf32>
      %139 = vector.shape_cast %136 : vector<8x128xf32> to vector<1x8x128xf32>
      tpu.vector_store %arg19[%c0_42, %c0_43, %c0_44], %139 {strides = array<i32>} : memref<2x8x128xf32, #tpu.memory_space<vmem>>, vector<1x8x128xf32>,
      %c0_45 = arith.constant 0 : index
      %c0_46 = arith.constant 0 : index
      %c0_47 = arith.constant 0 : index
      %140 = vector.load %arg20[%c0_45, %c0_46, %c0_47] : memref<2x8x128xf32, #tpu.memory_space<vmem>>, vector<1x8x128xf32>
      %141 = vector.shape_cast %140 : vector<1x8x128xf32> to vector<8x128xf32>
      %142 = vector.shape_cast %118 : vector<8x128xf32> to vector<1x8x128xf32>
      tpu.vector_store %arg20[%c0_45, %c0_46, %c0_47], %142 {strides = array<i32>} : memref<2x8x128xf32, #tpu.memory_space<vmem>>, vector<1x8x128xf32>,
      %c0_48 = arith.constant 0 : index
      %c0_49 = arith.constant 0 : index
      %c0_50 = arith.constant 0 : index
      %143 = vector.load %arg4[%c0_48, %c0_49, %c0_50] : memref<2x8x128xf32, #tpu.memory_space<vmem>>, vector<1x8x128xf32>
      %144 = vector.shape_cast %143 : vector<1x8x128xf32> to vector<8x128xf32>
      %145 = vector.extract_strided_slice %144 {offsets = [0, 0], sizes = [8, 32], strides = [1, 1]} : vector<8x128xf32> to vector<8x32xf32>
      %146 = vector.extract_strided_slice %144 {offsets = [0, 32], sizes = [8, 32], strides = [1, 1]} : vector<8x128xf32> to vector<8x32xf32>
      %147 = vector.extract_strided_slice %144 {offsets = [0, 64], sizes = [8, 32], strides = [1, 1]} : vector<8x128xf32> to vector<8x32xf32>
      %148 = vector.extract_strided_slice %144 {offsets = [0, 96], sizes = [8, 32], strides = [1, 1]} : vector<8x128xf32> to vector<8x32xf32>
      %149 = vector.shape_cast %145 : vector<8x32xf32> to vector<1x8x32xf32>
      %150 = vector.shape_cast %146 : vector<8x32xf32> to vector<1x8x32xf32>
      %151 = vector.shape_cast %147 : vector<8x32xf32> to vector<1x8x32xf32>
      %152 = vector.shape_cast %148 : vector<8x32xf32> to vector<1x8x32xf32>
      %153 = tpu.concatenate %149, %150, %151, %152 in 0 : vector<1x8x32xf32>, vector<1x8x32xf32>, vector<1x8x32xf32>, vector<1x8x32xf32> -> vector<4x8x32xf32>
      %c0_51 = arith.constant 0 : index
      %c0_52 = arith.constant 0 : index
      %c0_53 = arith.constant 0 : index
      %154 = vector.load %arg5[%c0_51, %c0_52, %c0_53] : memref<2x8x128xf32, #tpu.memory_space<vmem>>, vector<1x8x128xf32>
      %155 = vector.shape_cast %154 : vector<1x8x128xf32> to vector<8x128xf32>
      %156 = vector.extract_strided_slice %155 {offsets = [0, 0], sizes = [8, 32], strides = [1, 1]} : vector<8x128xf32> to vector<8x32xf32>
      %157 = vector.extract_strided_slice %155 {offsets = [0, 32], sizes = [8, 32], strides = [1, 1]} : vector<8x128xf32> to vector<8x32xf32>
      %158 = vector.extract_strided_slice %155 {offsets = [0, 64], sizes = [8, 32], strides = [1, 1]} : vector<8x128xf32> to vector<8x32xf32>
      %159 = vector.extract_strided_slice %155 {offsets = [0, 96], sizes = [8, 32], strides = [1, 1]} : vector<8x128xf32> to vector<8x32xf32>
      %160 = vector.shape_cast %156 : vector<8x32xf32> to vector<1x8x32xf32>
      %161 = vector.shape_cast %157 : vector<8x32xf32> to vector<1x8x32xf32>
      %162 = vector.shape_cast %158 : vector<8x32xf32> to vector<1x8x32xf32>
      %163 = vector.shape_cast %159 : vector<8x32xf32> to vector<1x8x32xf32>
      %164 = tpu.concatenate %160, %161, %162, %163 in 0 : vector<1x8x32xf32>, vector<1x8x32xf32>, vector<1x8x32xf32>, vector<1x8x32xf32> -> vector<4x8x32xf32>
      %165 = tpu.concatenate %153, %117 in 1 : vector<4x8x32xf32>, vector<4x8x32xf32> -> vector<4x16x32xf32>
      %166 = tpu.concatenate %164, %127 in 1 : vector<4x8x32xf32>, vector<4x8x32xf32> -> vector<4x16x32xf32>
      "tpu.trace_start"() <{level = 10 : i32, message = "hld,hmd->hlm"}> : () -> ()
      %cst_54 = arith.constant dense<0.000000e+00> : vector<4x8x16xf32>
      %167 = tpu.matmul %92, %165, %cst_54 {dimension_numbers = #tpu.dot_dimension_numbers<[2], [2], [1], [1], [0, 0, 0, 1, 1, 1], [0], [0]>} : vector<4x8x32xf32>, vector<4x16x32xf32>, vector<4x8x16xf32> -> vector<4x8x16xf32>
      "tpu.trace_stop"() : () -> ()
      %168 = tpu.iota {dimensions = array<i32: 0>} : vector<8x16xi32>
      %c8_i32 = arith.constant 8 : i32
      %169 = vector.broadcast %c8_i32 : i32 to vector<8x16xi32>
      %170 = arith.addi %169, %168 : vector<8x16xi32>
      %171 = tpu.iota {dimensions = array<i32: 1>} : vector<8x16xi32>
      %172 = arith.cmpi sle, %171, %170 : vector<8x16xi32>
      %173 = vector.shape_cast %172 : vector<8x16xi1> to vector<1x8x16xi1>
      %cst_55 = arith.constant -1.000000e+30 : f32
      %174 = vector.shape_cast %173 : vector<1x8x16xi1> to vector<1x8x16xi1>
      %175 = vector.broadcast %174 : vector<1x8x16xi1> to vector<4x8x16xi1>
      %176 = vector.broadcast %cst_55 : f32 to vector<4x8x16xf32>
      %177 = arith.select %175, %167, %176 : vector<4x8x16xi1>, vector<4x8x16xf32>
      %cst_56 = arith.constant dense<0xFF800000> : vector<4x8xf32>
      %178 = vector.multi_reduction <maximumf>, %177, %cst_56 [2] : vector<4x8x16xf32> to vector<4x8xf32>
      %179 = vector.shape_cast %178 : vector<4x8xf32> to vector<4x8x1xf32>
      %180 = vector.broadcast %179 : vector<4x8x1xf32> to vector<4x8x16xf32>
      %181 = arith.subf %177, %180 : vector<4x8x16xf32>
      %182 = math.exp %181 : vector<4x8x16xf32>
      %cst_57 = arith.constant dense<0.000000e+00> : vector<4x8xf32>
      %183 = vector.multi_reduction <add>, %182, %cst_57 [2] : vector<4x8x16xf32> to vector<4x8xf32>
      %184 = vector.shape_cast %183 : vector<4x8xf32> to vector<4x8x1xf32>
      %185 = tpu.reciprocal %184 {approx = true} : vector<4x8x1xf32> -> vector<4x8x1xf32>
      %186 = vector.broadcast %185 : vector<4x8x1xf32> to vector<4x8x16xf32>
      %187 = arith.mulf %182, %186 : vector<4x8x16xf32>
      "tpu.trace_start"() <{level = 10 : i32, message = "hlm,hmd->hld"}> : () -> ()
      %cst_58 = arith.constant dense<0.000000e+00> : vector<4x8x32xf32>
      %188 = tpu.matmul %187, %166, %cst_58 {dimension_numbers = #tpu.dot_dimension_numbers<[2], [1], [1], [2], [0, 0, 0, 1, 1, 2], [0], [0]>} : vector<4x8x16xf32>, vector<4x16x32xf32>, vector<4x8x32xf32> -> vector<4x8x32xf32>
      "tpu.trace_stop"() : () -> ()
      %189 = vector.extract_strided_slice %188 {offsets = [0, 0, 0], sizes = [1, 8, 32], strides = [1, 1, 1]} : vector<4x8x32xf32> to vector<1x8x32xf32>
      %190 = vector.shape_cast %189 : vector<1x8x32xf32> to vector<8x32xf32>
      %191 = vector.extract_strided_slice %188 {offsets = [1, 0, 0], sizes = [1, 8, 32], strides = [1, 1, 1]} : vector<4x8x32xf32> to vector<1x8x32xf32>
      %192 = vector.shape_cast %191 : vector<1x8x32xf32> to vector<8x32xf32>
      %193 = vector.extract_strided_slice %188 {offsets = [2, 0, 0], sizes = [1, 8, 32], strides = [1, 1, 1]} : vector<4x8x32xf32> to vector<1x8x32xf32>
      %194 = vector.shape_cast %193 : vector<1x8x32xf32> to vector<8x32xf32>
      %195 = vector.extract_strided_slice %188 {offsets = [3, 0, 0], sizes = [1, 8, 32], strides = [1, 1, 1]} : vector<4x8x32xf32> to vector<1x8x32xf32>
      %196 = vector.shape_cast %195 : vector<1x8x32xf32> to vector<8x32xf32>
      %197 = tpu.concatenate %190, %192, %194, %196 in 1 : vector<8x32xf32>, vector<8x32xf32>, vector<8x32xf32>, vector<8x32xf32> -> vector<8x128xf32>
      %198 = vector.extract_strided_slice %65 {offsets = [8, 0], sizes = [8, 128], strides = [1, 1]} : vector<16x384xf32> to vector<8x128xf32>
      %199 = vector.extract_strided_slice %198 {offsets = [0, 0], sizes = [8, 32], strides = [1, 1]} : vector<8x128xf32> to vector<8x32xf32>
      %200 = vector.extract_strided_slice %198 {offsets = [0, 32], sizes = [8, 32], strides = [1, 1]} : vector<8x128xf32> to vector<8x32xf32>
      %201 = vector.extract_strided_slice %198 {offsets = [0, 64], sizes = [8, 32], strides = [1, 1]} : vector<8x128xf32> to vector<8x32xf32>
      %202 = vector.extract_strided_slice %198 {offsets = [0, 96], sizes = [8, 32], strides = [1, 1]} : vector<8x128xf32> to vector<8x32xf32>
      %203 = vector.shape_cast %199 : vector<8x32xf32> to vector<1x8x32xf32>
      %204 = vector.shape_cast %200 : vector<8x32xf32> to vector<1x8x32xf32>
      %205 = vector.shape_cast %201 : vector<8x32xf32> to vector<1x8x32xf32>
      %206 = vector.shape_cast %202 : vector<8x32xf32> to vector<1x8x32xf32>
      %207 = tpu.concatenate %203, %204, %205, %206 in 0 : vector<1x8x32xf32>, vector<1x8x32xf32>, vector<1x8x32xf32>, vector<1x8x32xf32> -> vector<4x8x32xf32>
      %208 = vector.extract_strided_slice %207 {offsets = [0, 0, 0], sizes = [4, 8, 16], strides = [1, 1, 1]} : vector<4x8x32xf32> to vector<4x8x16xf32>
      %209 = vector.extract_strided_slice %207 {offsets = [0, 0, 16], sizes = [4, 8, 16], strides = [1, 1, 1]} : vector<4x8x32xf32> to vector<4x8x16xf32>
      %210 = vector.extract_strided_slice %208 {offsets = [0, 0, 0], sizes = [4, 8, 8], strides = [1, 1, 1]} : vector<4x8x16xf32> to vector<4x8x8xf32>
      %211 = vector.extract_strided_slice %208 {offsets = [0, 0, 8], sizes = [4, 8, 8], strides = [1, 1, 1]} : vector<4x8x16xf32> to vector<4x8x8xf32>
      %cst_59 = arith.constant 0.000000e+00 : f32
      %212 = vector.broadcast %cst_59 : f32 to vector<4x8x8xf32>
      %213 = arith.subf %212, %211 : vector<4x8x8xf32>
      %214 = tpu.concatenate %213, %210 in 2 : vector<4x8x8xf32>, vector<4x8x8xf32> -> vector<4x8x16xf32>
      %215 = vector.shape_cast %34 : vector<8x16xf32> to vector<1x8x16xf32>
      %216 = vector.broadcast %215 : vector<1x8x16xf32> to vector<4x8x16xf32>
      %217 = arith.mulf %208, %216 : vector<4x8x16xf32>
      %218 = vector.shape_cast %35 : vector<8x16xf32> to vector<1x8x16xf32>
      %219 = vector.broadcast %218 : vector<1x8x16xf32> to vector<4x8x16xf32>
      %220 = arith.mulf %214, %219 : vector<4x8x16xf32>
      %221 = arith.addf %217, %220 : vector<4x8x16xf32>
      %222 = tpu.concatenate %221, %209 in 2 : vector<4x8x16xf32>, vector<4x8x16xf32> -> vector<4x8x32xf32>
      %cst_60 = arith.constant 0.176776692 : f32
      %223 = vector.broadcast %cst_60 : f32 to vector<4x8x32xf32>
      %224 = arith.mulf %222, %223 : vector<4x8x32xf32>
      %225 = vector.extract_strided_slice %65 {offsets = [8, 128], sizes = [8, 128], strides = [1, 1]} : vector<16x384xf32> to vector<8x128xf32>
      %226 = vector.extract_strided_slice %225 {offsets = [0, 0], sizes = [8, 32], strides = [1, 1]} : vector<8x128xf32> to vector<8x32xf32>
      %227 = vector.extract_strided_slice %225 {offsets = [0, 32], sizes = [8, 32], strides = [1, 1]} : vector<8x128xf32> to vector<8x32xf32>
      %228 = vector.extract_strided_slice %225 {offsets = [0, 64], sizes = [8, 32], strides = [1, 1]} : vector<8x128xf32> to vector<8x32xf32>
      %229 = vector.extract_strided_slice %225 {offsets = [0, 96], sizes = [8, 32], strides = [1, 1]} : vector<8x128xf32> to vector<8x32xf32>
      %230 = vector.shape_cast %226 : vector<8x32xf32> to vector<1x8x32xf32>
      %231 = vector.shape_cast %227 : vector<8x32xf32> to vector<1x8x32xf32>
      %232 = vector.shape_cast %228 : vector<8x32xf32> to vector<1x8x32xf32>
      %233 = vector.shape_cast %229 : vector<8x32xf32> to vector<1x8x32xf32>
      %234 = tpu.concatenate %230, %231, %232, %233 in 0 : vector<1x8x32xf32>, vector<1x8x32xf32>, vector<1x8x32xf32>, vector<1x8x32xf32> -> vector<4x8x32xf32>
      %235 = vector.extract_strided_slice %234 {offsets = [0, 0, 0], sizes = [4, 8, 16], strides = [1, 1, 1]} : vector<4x8x32xf32> to vector<4x8x16xf32>
      %236 = vector.extract_strided_slice %234 {offsets = [0, 0, 16], sizes = [4, 8, 16], strides = [1, 1, 1]} : vector<4x8x32xf32> to vector<4x8x16xf32>
      %237 = vector.extract_strided_slice %235 {offsets = [0, 0, 0], sizes = [4, 8, 8], strides = [1, 1, 1]} : vector<4x8x16xf32> to vector<4x8x8xf32>
      %238 = vector.extract_strided_slice %235 {offsets = [0, 0, 8], sizes = [4, 8, 8], strides = [1, 1, 1]} : vector<4x8x16xf32> to vector<4x8x8xf32>
      %cst_61 = arith.constant 0.000000e+00 : f32
      %239 = vector.broadcast %cst_61 : f32 to vector<4x8x8xf32>
      %240 = arith.subf %239, %238 : vector<4x8x8xf32>
      %241 = tpu.concatenate %240, %237 in 2 : vector<4x8x8xf32>, vector<4x8x8xf32> -> vector<4x8x16xf32>
      %242 = vector.shape_cast %34 : vector<8x16xf32> to vector<1x8x16xf32>
      %243 = vector.broadcast %242 : vector<1x8x16xf32> to vector<4x8x16xf32>
      %244 = arith.mulf %235, %243 : vector<4x8x16xf32>
      %245 = vector.shape_cast %35 : vector<8x16xf32> to vector<1x8x16xf32>
      %246 = vector.broadcast %245 : vector<1x8x16xf32> to vector<4x8x16xf32>
      %247 = arith.mulf %241, %246 : vector<4x8x16xf32>
      %248 = arith.addf %244, %247 : vector<4x8x16xf32>
      %249 = tpu.concatenate %248, %236 in 2 : vector<4x8x16xf32>, vector<4x8x16xf32> -> vector<4x8x32xf32>
      %250 = vector.extract_strided_slice %65 {offsets = [8, 256], sizes = [8, 128], strides = [1, 1]} : vector<16x384xf32> to vector<8x128xf32>
      %251 = vector.extract_strided_slice %250 {offsets = [0, 0], sizes = [8, 32], strides = [1, 1]} : vector<8x128xf32> to vector<8x32xf32>
      %252 = vector.extract_strided_slice %250 {offsets = [0, 32], sizes = [8, 32], strides = [1, 1]} : vector<8x128xf32> to vector<8x32xf32>
      %253 = vector.extract_strided_slice %250 {offsets = [0, 64], sizes = [8, 32], strides = [1, 1]} : vector<8x128xf32> to vector<8x32xf32>
      %254 = vector.extract_strided_slice %250 {offsets = [0, 96], sizes = [8, 32], strides = [1, 1]} : vector<8x128xf32> to vector<8x32xf32>
      %255 = vector.shape_cast %251 : vector<8x32xf32> to vector<1x8x32xf32>
      %256 = vector.shape_cast %252 : vector<8x32xf32> to vector<1x8x32xf32>
      %257 = vector.shape_cast %253 : vector<8x32xf32> to vector<1x8x32xf32>
      %258 = vector.shape_cast %254 : vector<8x32xf32> to vector<1x8x32xf32>
      %259 = tpu.concatenate %255, %256, %257, %258 in 0 : vector<1x8x32xf32>, vector<1x8x32xf32>, vector<1x8x32xf32>, vector<1x8x32xf32> -> vector<4x8x32xf32>
      %260 = vector.extract_strided_slice %249 {offsets = [0, 0, 0], sizes = [1, 8, 32], strides = [1, 1, 1]} : vector<4x8x32xf32> to vector<1x8x32xf32>
      %261 = vector.shape_cast %260 : vector<1x8x32xf32> to vector<8x32xf32>
      %262 = vector.extract_strided_slice %249 {offsets = [1, 0, 0], sizes = [1, 8, 32], strides = [1, 1, 1]} : vector<4x8x32xf32> to vector<1x8x32xf32>
      %263 = vector.shape_cast %262 : vector<1x8x32xf32> to vector<8x32xf32>
      %264 = vector.extract_strided_slice %249 {offsets = [2, 0, 0], sizes = [1, 8, 32], strides = [1, 1, 1]} : vector<4x8x32xf32> to vector<1x8x32xf32>
      %265 = vector.shape_cast %264 : vector<1x8x32xf32> to vector<8x32xf32>
      %266 = vector.extract_strided_slice %249 {offsets = [3, 0, 0], sizes = [1, 8, 32], strides = [1, 1, 1]} : vector<4x8x32xf32> to vector<1x8x32xf32>
      %267 = vector.shape_cast %266 : vector<1x8x32xf32> to vector<8x32xf32>
      %268 = tpu.concatenate %261, %263, %265, %267 in 1 : vector<8x32xf32>, vector<8x32xf32>, vector<8x32xf32>, vector<8x32xf32> -> vector<8x128xf32>
      %c1 = arith.constant 1 : index
      %c0_62 = arith.constant 0 : index
      %c0_63 = arith.constant 0 : index
      %269 = vector.load %arg19[%c1, %c0_62, %c0_63] : memref<2x8x128xf32, #tpu.memory_space<vmem>>, vector<1x8x128xf32>
      %270 = vector.shape_cast %269 : vector<1x8x128xf32> to vector<8x128xf32>
      %271 = vector.shape_cast %268 : vector<8x128xf32> to vector<1x8x128xf32>
      tpu.vector_store %arg19[%c1, %c0_62, %c0_63], %271 {strides = array<i32>} : memref<2x8x128xf32, #tpu.memory_space<vmem>>, vector<1x8x128xf32>,
      %c1_64 = arith.constant 1 : index
      %c0_65 = arith.constant 0 : index
      %c0_66 = arith.constant 0 : index
      %272 = vector.load %arg20[%c1_64, %c0_65, %c0_66] : memref<2x8x128xf32, #tpu.memory_space<vmem>>, vector<1x8x128xf32>
      %273 = vector.shape_cast %272 : vector<1x8x128xf32> to vector<8x128xf32>
      %274 = vector.shape_cast %250 : vector<8x128xf32> to vector<1x8x128xf32>
      tpu.vector_store %arg20[%c1_64, %c0_65, %c0_66], %274 {strides = array<i32>} : memref<2x8x128xf32, #tpu.memory_space<vmem>>, vector<1x8x128xf32>,
      %c1_67 = arith.constant 1 : index
      %c0_68 = arith.constant 0 : index
      %c0_69 = arith.constant 0 : index
      %275 = vector.load %arg4[%c1_67, %c0_68, %c0_69] : memref<2x8x128xf32, #tpu.memory_space<vmem>>, vector<1x8x128xf32>
      %276 = vector.shape_cast %275 : vector<1x8x128xf32> to vector<8x128xf32>
      %277 = vector.extract_strided_slice %276 {offsets = [0, 0], sizes = [8, 32], strides = [1, 1]} : vector<8x128xf32> to vector<8x32xf32>
      %278 = vector.extract_strided_slice %276 {offsets = [0, 32], sizes = [8, 32], strides = [1, 1]} : vector<8x128xf32> to vector<8x32xf32>
      %279 = vector.extract_strided_slice %276 {offsets = [0, 64], sizes = [8, 32], strides = [1, 1]} : vector<8x128xf32> to vector<8x32xf32>
      %280 = vector.extract_strided_slice %276 {offsets = [0, 96], sizes = [8, 32], strides = [1, 1]} : vector<8x128xf32> to vector<8x32xf32>
      %281 = vector.shape_cast %277 : vector<8x32xf32> to vector<1x8x32xf32>
      %282 = vector.shape_cast %278 : vector<8x32xf32> to vector<1x8x32xf32>
      %283 = vector.shape_cast %279 : vector<8x32xf32> to vector<1x8x32xf32>
      %284 = vector.shape_cast %280 : vector<8x32xf32> to vector<1x8x32xf32>
      %285 = tpu.concatenate %281, %282, %283, %284 in 0 : vector<1x8x32xf32>, vector<1x8x32xf32>, vector<1x8x32xf32>, vector<1x8x32xf32> -> vector<4x8x32xf32>
      %c1_70 = arith.constant 1 : index
      %c0_71 = arith.constant 0 : index
      %c0_72 = arith.constant 0 : index
      %286 = vector.load %arg5[%c1_70, %c0_71, %c0_72] : memref<2x8x128xf32, #tpu.memory_space<vmem>>, vector<1x8x128xf32>
      %287 = vector.shape_cast %286 : vector<1x8x128xf32> to vector<8x128xf32>
      %288 = vector.extract_strided_slice %287 {offsets = [0, 0], sizes = [8, 32], strides = [1, 1]} : vector<8x128xf32> to vector<8x32xf32>
      %289 = vector.extract_strided_slice %287 {offsets = [0, 32], sizes = [8, 32], strides = [1, 1]} : vector<8x128xf32> to vector<8x32xf32>
      %290 = vector.extract_strided_slice %287 {offsets = [0, 64], sizes = [8, 32], strides = [1, 1]} : vector<8x128xf32> to vector<8x32xf32>
      %291 = vector.extract_strided_slice %287 {offsets = [0, 96], sizes = [8, 32], strides = [1, 1]} : vector<8x128xf32> to vector<8x32xf32>
      %292 = vector.shape_cast %288 : vector<8x32xf32> to vector<1x8x32xf32>
      %293 = vector.shape_cast %289 : vector<8x32xf32> to vector<1x8x32xf32>
      %294 = vector.shape_cast %290 : vector<8x32xf32> to vector<1x8x32xf32>
      %295 = vector.shape_cast %291 : vector<8x32xf32> to vector<1x8x32xf32>
      %296 = tpu.concatenate %292, %293, %294, %295 in 0 : vector<1x8x32xf32>, vector<1x8x32xf32>, vector<1x8x32xf32>, vector<1x8x32xf32> -> vector<4x8x32xf32>
      %297 = tpu.concatenate %285, %249 in 1 : vector<4x8x32xf32>, vector<4x8x32xf32> -> vector<4x16x32xf32>
      %298 = tpu.concatenate %296, %259 in 1 : vector<4x8x32xf32>, vector<4x8x32xf32> -> vector<4x16x32xf32>
      "tpu.trace_start"() <{level = 10 : i32, message = "hld,hmd->hlm"}> : () -> ()
      %cst_73 = arith.constant dense<0.000000e+00> : vector<4x8x16xf32>
      %299 = tpu.matmul %224, %297, %cst_73 {dimension_numbers = #tpu.dot_dimension_numbers<[2], [2], [1], [1], [0, 0, 0, 1, 1, 1], [0], [0]>} : vector<4x8x32xf32>, vector<4x16x32xf32>, vector<4x8x16xf32> -> vector<4x8x16xf32>
      "tpu.trace_stop"() : () -> ()
      %300 = tpu.iota {dimensions = array<i32: 0>} : vector<8x16xi32>
      %c8_i32_74 = arith.constant 8 : i32
      %301 = vector.broadcast %c8_i32_74 : i32 to vector<8x16xi32>
      %302 = arith.addi %301, %300 : vector<8x16xi32>
      %303 = tpu.iota {dimensions = array<i32: 1>} : vector<8x16xi32>
      %304 = arith.cmpi sle, %303, %302 : vector<8x16xi32>
      %305 = vector.shape_cast %304 : vector<8x16xi1> to vector<1x8x16xi1>
      %cst_75 = arith.constant -1.000000e+30 : f32
      %306 = vector.shape_cast %305 : vector<1x8x16xi1> to vector<1x8x16xi1>
      %307 = vector.broadcast %306 : vector<1x8x16xi1> to vector<4x8x16xi1>
      %308 = vector.broadcast %cst_75 : f32 to vector<4x8x16xf32>
      %309 = arith.select %307, %299, %308 : vector<4x8x16xi1>, vector<4x8x16xf32>
      %cst_76 = arith.constant dense<0xFF800000> : vector<4x8xf32>
      %310 = vector.multi_reduction <maximumf>, %309, %cst_76 [2] : vector<4x8x16xf32> to vector<4x8xf32>
      %311 = vector.shape_cast %310 : vector<4x8xf32> to vector<4x8x1xf32>
      %312 = vector.broadcast %311 : vector<4x8x1xf32> to vector<4x8x16xf32>
      %313 = arith.subf %309, %312 : vector<4x8x16xf32>
      %314 = math.exp %313 : vector<4x8x16xf32>
      %cst_77 = arith.constant dense<0.000000e+00> : vector<4x8xf32>
      %315 = vector.multi_reduction <add>, %314, %cst_77 [2] : vector<4x8x16xf32> to vector<4x8xf32>
      %316 = vector.shape_cast %315 : vector<4x8xf32> to vector<4x8x1xf32>
      %317 = tpu.reciprocal %316 {approx = true} : vector<4x8x1xf32> -> vector<4x8x1xf32>
      %318 = vector.broadcast %317 : vector<4x8x1xf32> to vector<4x8x16xf32>
      %319 = arith.mulf %314, %318 : vector<4x8x16xf32>
      "tpu.trace_start"() <{level = 10 : i32, message = "hlm,hmd->hld"}> : () -> ()
      %cst_78 = arith.constant dense<0.000000e+00> : vector<4x8x32xf32>
      %320 = tpu.matmul %319, %298, %cst_78 {dimension_numbers = #tpu.dot_dimension_numbers<[2], [1], [1], [2], [0, 0, 0, 1, 1, 2], [0], [0]>} : vector<4x8x16xf32>, vector<4x16x32xf32>, vector<4x8x32xf32> -> vector<4x8x32xf32>
      "tpu.trace_stop"() : () -> ()
      %321 = vector.extract_strided_slice %320 {offsets = [0, 0, 0], sizes = [1, 8, 32], strides = [1, 1, 1]} : vector<4x8x32xf32> to vector<1x8x32xf32>
      %322 = vector.shape_cast %321 : vector<1x8x32xf32> to vector<8x32xf32>
      %323 = vector.extract_strided_slice %320 {offsets = [1, 0, 0], sizes = [1, 8, 32], strides = [1, 1, 1]} : vector<4x8x32xf32> to vector<1x8x32xf32>
      %324 = vector.shape_cast %323 : vector<1x8x32xf32> to vector<8x32xf32>
      %325 = vector.extract_strided_slice %320 {offsets = [2, 0, 0], sizes = [1, 8, 32], strides = [1, 1, 1]} : vector<4x8x32xf32> to vector<1x8x32xf32>
      %326 = vector.shape_cast %325 : vector<1x8x32xf32> to vector<8x32xf32>
      %327 = vector.extract_strided_slice %320 {offsets = [3, 0, 0], sizes = [1, 8, 32], strides = [1, 1, 1]} : vector<4x8x32xf32> to vector<1x8x32xf32>
      %328 = vector.shape_cast %327 : vector<1x8x32xf32> to vector<8x32xf32>
      %329 = tpu.concatenate %322, %324, %326, %328 in 1 : vector<8x32xf32>, vector<8x32xf32>, vector<8x32xf32>, vector<8x32xf32> -> vector<8x128xf32>
      %330 = tpu.concatenate %197, %329 in 0 : vector<8x128xf32>, vector<8x128xf32> -> vector<16x128xf32>
      %331 = arith.truncf %330 : vector<16x128xf32> to vector<16x128xbf16>
      %c0_79 = arith.constant 0 : index
      %c0_80 = arith.constant 0 : index
      %332 = vector.load %arg10[%c0_79, %c0_80] : memref<128x128xbf16, #tpu.memory_space<vmem>>, vector<128x128xbf16>
      %cst_81 = arith.constant dense<0.000000e+00> : vector<16x128xf32>
      %333 = tpu.matmul %331, %332, %cst_81 {dimension_numbers = #tpu.dot_dimension_numbers<[1], [0], [0], [1], [0, 0, 1, 1], [], []>} : vector<16x128xbf16>, vector<128x128xbf16>, vector<16x128xf32> -> vector<16x128xf32>
      %c0_82 = arith.constant 0 : index
      %c0_83 = arith.constant 0 : index
      %334 = vector.load %arg11[%c0_82, %c0_83] : memref<1x128xf32, #tpu.memory_space<vmem>>, vector<1x128xf32>
      %335 = vector.broadcast %334 : vector<1x128xf32> to vector<16x128xf32>
      %336 = arith.addf %333, %335 : vector<16x128xf32>
      %337 = arith.addf %33, %336 : vector<16x128xf32>
      %c0_84 = arith.constant 0 : index
      %c0_85 = arith.constant 0 : index
      %338 = vector.load %arg17[%c0_84, %c0_85] : memref<1x128xf32, #tpu.memory_space<vmem>>, vector<1x128xf32>
      %339 = vector.broadcast %338 : vector<1x128xf32> to vector<16x128xf32>
      %340 = arith.addf %337, %339 : vector<16x128xf32>
      %c0_86 = arith.constant 0 : index
      %c0_87 = arith.constant 0 : index
      %341 = vector.load %arg21[%c0_86, %c0_87] : memref<16x128xf32, #tpu.memory_space<vmem>>, vector<16x128xf32>
      tpu.vector_store %arg21[%c0_86, %c0_87], %340 {strides = array<i32>} : memref<16x128xf32, #tpu.memory_space<vmem>>, vector<16x128xf32>,
      %cst_88 = arith.constant dense<0.000000e+00> : vector<16xf32>
      %342 = vector.multi_reduction <add>, %33, %cst_88 [1] : vector<16x128xf32> to vector<16xf32>
      %343 = vector.shape_cast %342 : vector<16xf32> to vector<16x1xf32>
      %cst_89 = arith.constant 1.280000e+02 : f32
      %344 = vector.broadcast %cst_89 : f32 to vector<16x1xf32>
      %345 = arith.divf %343, %344 : vector<16x1xf32>
      %346 = vector.broadcast %345 : vector<16x1xf32> to vector<16x128xf32>
      %347 = arith.subf %33, %346 : vector<16x128xf32>
      %348 = arith.mulf %347, %347 : vector<16x128xf32>
      %cst_90 = arith.constant dense<0.000000e+00> : vector<16xf32>
      %349 = vector.multi_reduction <add>, %348, %cst_90 [1] : vector<16x128xf32> to vector<16xf32>
      %350 = vector.shape_cast %349 : vector<16xf32> to vector<16x1xf32>
      %cst_91 = arith.constant 1.280000e+02 : f32
      %351 = vector.broadcast %cst_91 : f32 to vector<16x1xf32>
      %352 = arith.divf %350, %351 : vector<16x1xf32>
      %353 = vector.broadcast %345 : vector<16x1xf32> to vector<16x128xf32>
      %354 = arith.subf %33, %353 : vector<16x128xf32>
      %cst_92 = arith.constant 9.99999974E-6 : f32
      %355 = vector.broadcast %cst_92 : f32 to vector<16x1xf32>
      %356 = arith.addf %352, %355 : vector<16x1xf32>
      %357 = math.rsqrt %356 : vector<16x1xf32>
      %358 = vector.broadcast %357 : vector<16x1xf32> to vector<16x128xf32>
      %359 = arith.mulf %354, %358 : vector<16x128xf32>
      %c0_93 = arith.constant 0 : index
      %c0_94 = arith.constant 0 : index
      %360 = vector.load %arg12[%c0_93, %c0_94] : memref<1x128xf32, #tpu.memory_space<vmem>>, vector<1x128xf32>
      %361 = vector.broadcast %360 : vector<1x128xf32> to vector<16x128xf32>
      %362 = arith.mulf %359, %361 : vector<16x128xf32>
      %c0_95 = arith.constant 0 : index
      %c0_96 = arith.constant 0 : index
      %363 = vector.load %arg13[%c0_95, %c0_96] : memref<1x128xf32, #tpu.memory_space<vmem>>, vector<1x128xf32>
      %364 = vector.broadcast %363 : vector<1x128xf32> to vector<16x128xf32>
      %365 = arith.addf %362, %364 : vector<16x128xf32>
      %c0_97 = arith.constant 0 : index
      %c0_98 = arith.constant 0 : index
      %366 = vector.load %arg22[%c0_97, %c0_98] : memref<16x128xf32, #tpu.memory_space<vmem>>, vector<16x128xf32>
      tpu.vector_store %arg22[%c0_97, %c0_98], %365 {strides = array<i32>} : memref<16x128xf32, #tpu.memory_space<vmem>>, vector<16x128xf32>,
    } else {
    }
    %c0 = arith.constant 0 : index
    %c0_1 = arith.constant 0 : index
    %3 = vector.load %arg22[%c0, %c0_1] : memref<16x128xf32, #tpu.memory_space<vmem>>, vector<16x128xf32>
    %4 = arith.truncf %3 : vector<16x128xf32> to vector<16x128xbf16>
    %c0_2 = arith.constant 0 : index
    %c0_3 = arith.constant 0 : index
    %5 = vector.load %arg14[%c0_2, %c0_3] : memref<128x256xbf16, #tpu.memory_space<vmem>>, vector<128x256xbf16>
    %cst = arith.constant dense<0.000000e+00> : vector<16x256xf32>
    %6 = tpu.matmul %4, %5, %cst {dimension_numbers = #tpu.dot_dimension_numbers<[1], [0], [0], [1], [0, 0, 1, 1], [], []>} : vector<16x128xbf16>, vector<128x256xbf16>, vector<16x256xf32> -> vector<16x256xf32>
    %c0_4 = arith.constant 0 : index
    %c0_5 = arith.constant 0 : index
    %7 = vector.load %arg15[%c0_4, %c0_5] : memref<1x256xf32, #tpu.memory_space<vmem>>, vector<1x256xf32>
    %8 = vector.broadcast %7 : vector<1x256xf32> to vector<16x256xf32>
    %9 = arith.addf %6, %8 : vector<16x256xf32>
    %cst_6 = arith.constant 5.000000e-01 : f32
    %10 = vector.broadcast %cst_6 : f32 to vector<16x256xf32>
    %11 = arith.mulf %10, %9 : vector<16x256xf32>
    %cst_7 = arith.constant 4.471500e-02 : f32
    %12 = vector.broadcast %cst_7 : f32 to vector<16x256xf32>
    %13 = arith.mulf %12, %9 : vector<16x256xf32>
    %14 = arith.mulf %13, %9 : vector<16x256xf32>
    %15 = arith.mulf %14, %9 : vector<16x256xf32>
    %16 = arith.addf %9, %15 : vector<16x256xf32>
    %cst_8 = arith.constant 0.797884583 : f32
    %17 = vector.broadcast %cst_8 : f32 to vector<16x256xf32>
    %18 = arith.mulf %17, %16 : vector<16x256xf32>
    %19 = math.tanh %18 : vector<16x256xf32>
    %cst_9 = arith.constant 1.000000e+00 : f32
    %20 = vector.broadcast %cst_9 : f32 to vector<16x256xf32>
    %21 = arith.addf %20, %19 : vector<16x256xf32>
    %22 = arith.mulf %11, %21 : vector<16x256xf32>
    %c0_10 = arith.constant 0 : index
    %c0_11 = arith.constant 0 : index
    %23 = vector.load %arg21[%c0_10, %c0_11] : memref<16x128xf32, #tpu.memory_space<vmem>>, vector<16x128xf32>
    %24 = arith.truncf %22 : vector<16x256xf32> to vector<16x256xbf16>
    %c0_12 = arith.constant 0 : index
    %c0_13 = arith.constant 0 : index
    %25 = vector.load %arg16[%c0_12, %c0_13] : memref<256x128xbf16, #tpu.memory_space<vmem>>, vector<256x128xbf16>
    %cst_14 = arith.constant dense<0.000000e+00> : vector<16x128xf32>
    %26 = tpu.matmul %24, %25, %cst_14 {dimension_numbers = #tpu.dot_dimension_numbers<[1], [0], [0], [1], [0, 0, 1, 1], [], []>} : vector<16x256xbf16>, vector<256x128xbf16>, vector<16x128xf32> -> vector<16x128xf32>
    %27 = arith.addf %23, %26 : vector<16x128xf32>
    %c0_15 = arith.constant 0 : index
    %c0_16 = arith.constant 0 : index
    %28 = vector.load %arg21[%c0_15, %c0_16] : memref<16x128xf32, #tpu.memory_space<vmem>>, vector<16x128xf32>
    tpu.vector_store %arg21[%c0_15, %c0_16], %27 {strides = array<i32>} : memref<16x128xf32, #tpu.memory_space<vmem>>, vector<16x128xf32>,
    %c1_i32 = arith.constant 1 : i32
    %29 = arith.cmpi eq, %arg0, %c1_i32 : i32
    %30 = arith.extui %29 : i1 to i32
    %c0_i32_17 = arith.constant 0 : i32
    %31 = arith.cmpi ne, %30, %c0_i32_17 : i32
    scf.if %31 {
      %c0_18 = arith.constant 0 : index
      %c0_19 = arith.constant 0 : index
      %32 = vector.load %arg21[%c0_18, %c0_19] : memref<16x128xf32, #tpu.memory_space<vmem>>, vector<16x128xf32>
      %33 = vector.shape_cast %32 : vector<16x128xf32> to vector<2x8x128xf32>
      %c0_20 = arith.constant 0 : index
      %c0_21 = arith.constant 0 : index
      %c0_22 = arith.constant 0 : index
      %34 = vector.load %arg18[%c0_20, %c0_21, %c0_22] : memref<2x8x128xf32, #tpu.memory_space<vmem>>, vector<2x8x128xf32>
      tpu.vector_store %arg18[%c0_20, %c0_21, %c0_22], %33 {strides = array<i32>} : memref<2x8x128xf32, #tpu.memory_space<vmem>>, vector<2x8x128xf32>,
    } else {
    }
    return
  }
  func.func @transform_0(%arg0: i32) -> (i32, i32, i32) {
    %c0_i32 = arith.constant 0 : i32
    %c0_i32_0 = arith.constant 0 : i32
    %c0_i32_1 = arith.constant 0 : i32
    %c0_i32_2 = arith.constant 0 : i32
    return %c0_i32, %c0_i32_0, %c0_i32_1 : i32, i32, i32
  }
  func.func @transform_1(%arg0: i32) -> (i32, i32) {
    %c0_i32 = arith.constant 0 : i32
    %c0_i32_0 = arith.constant 0 : i32
    %c0_i32_1 = arith.constant 0 : i32
    return %c0_i32, %c0_i32_0 : i32, i32
  }
  func.func @transform_2(%arg0: i32) -> (i32, i32) {
    %c0_i32 = arith.constant 0 : i32
    %c0_i32_0 = arith.constant 0 : i32
    %c0_i32_1 = arith.constant 0 : i32
    return %c0_i32, %c0_i32_0 : i32, i32
  }
  func.func @transform_3(%arg0: i32) -> (i32, i32, i32) {
    %c0_i32 = arith.constant 0 : i32
    %c0_i32_0 = arith.constant 0 : i32
    %c0_i32_1 = arith.constant 0 : i32
    %c0_i32_2 = arith.constant 0 : i32
    return %c0_i32, %c0_i32_0, %c0_i32_1 : i32, i32, i32
  }
  func.func @transform_4(%arg0: i32) -> (i32, i32, i32) {
    %c0_i32 = arith.constant 0 : i32
    %c0_i32_0 = arith.constant 0 : i32
    %c0_i32_1 = arith.constant 0 : i32
    %c0_i32_2 = arith.constant 0 : i32
    return %c0_i32, %c0_i32_0, %c0_i32_1 : i32, i32, i32
  }
  func.func @transform_5(%arg0: i32) -> (i32, i32) {
    %c0_i32 = arith.constant 0 : i32
    %c0_i32_0 = arith.constant 0 : i32
    %c0_i32_1 = arith.constant 0 : i32
    return %c0_i32, %c0_i32_0 : i32, i32
  }
  func.func @transform_6(%arg0: i32) -> (i32, i32) {
    %c0_i32 = arith.constant 0 : i32
    %c0_i32_0 = arith.constant 0 : i32
    %c0_i32_1 = arith.constant 0 : i32
    return %c0_i32, %c0_i32_0 : i32, i32
  }
  func.func @transform_7(%arg0: i32) -> (i32, i32) {
    %c0_i32 = arith.constant 0 : i32
    %c0_i32_0 = arith.constant 0 : i32
    %c0_i32_1 = arith.constant 0 : i32
    return %c0_i32, %c0_i32_0 : i32, i32
  }
  func.func @transform_8(%arg0: i32) -> (i32, i32) {
    %c0_i32 = arith.constant 0 : i32
    %c0_i32_0 = arith.constant 0 : i32
    %c0_i32_1 = arith.constant 0 : i32
    return %c0_i32, %c0_i32_0 : i32, i32
  }
  func.func @transform_9(%arg0: i32) -> (i32, i32) {
    %c0_i32 = arith.constant 0 : i32
    %c0_i32_0 = arith.constant 0 : i32
    %c0_i32_1 = arith.constant 0 : i32
    return %c0_i32, %c0_i32_0 : i32, i32
  }
  func.func @transform_10(%arg0: i32) -> (i32, i32) {
    %c0_i32 = arith.constant 0 : i32
    %c0_i32_0 = arith.constant 0 : i32
    %c0_i32_1 = arith.constant 0 : i32
    return %c0_i32, %c0_i32_0 : i32, i32
  }
  func.func @transform_11(%arg0: i32) -> (i32, i32) {
    %c0_i32 = arith.constant 0 : i32
    %c0_i32_0 = arith.constant 0 : i32
    %c0_i32_1 = arith.constant 0 : i32
    return %c0_i32, %c0_i32_0 : i32, i32
  }
  func.func @transform_12(%arg0: i32) -> (i32, i32) {
    %c0_i32 = arith.constant 0 : i32
    %c0_i32_0 = arith.constant 0 : i32
    %c0_i32_1 = arith.constant 0 : i32
    return %c0_i32, %c0_i32_0 : i32, i32
  }
  func.func @transform_13(%arg0: i32) -> (i32, i32) {
    %c0_i32 = arith.constant 0 : i32
    %c0_i32_0 = arith.constant 0 : i32
    return %c0_i32, %arg0 : i32, i32
  }
  func.func @transform_14(%arg0: i32) -> (i32, i32) {
    %c0_i32 = arith.constant 0 : i32
    %c0_i32_0 = arith.constant 0 : i32
    return %c0_i32, %arg0 : i32, i32
  }
  func.func @transform_15(%arg0: i32) -> (i32, i32) {
    %c0_i32 = arith.constant 0 : i32
    %c0_i32_0 = arith.constant 0 : i32
    return %arg0, %c0_i32 : i32, i32
  }
  func.func @transform_16(%arg0: i32) -> (i32, i32) {
    %c0_i32 = arith.constant 0 : i32
    %c0_i32_0 = arith.constant 0 : i32
    %c0_i32_1 = arith.constant 0 : i32
    return %c0_i32, %c0_i32_0 : i32, i32
  }
  func.func @transform_17(%arg0: i32) -> (i32, i32, i32) {
    %c0_i32 = arith.constant 0 : i32
    %c0_i32_0 = arith.constant 0 : i32
    %c0_i32_1 = arith.constant 0 : i32
    %c0_i32_2 = arith.constant 0 : i32
    return %c0_i32, %c0_i32_0, %c0_i32_1 : i32, i32, i32
  }
  func.func @transform_18(%arg0: i32) -> (i32, i32, i32) {
    %c0_i32 = arith.constant 0 : i32
    %c1_i32 = arith.constant 1 : i32
    %c0_i32_0 = arith.constant 0 : i32
    %c0_i32_1 = arith.constant 0 : i32
    return %c0_i32, %c1_i32, %c0_i32_0 : i32, i32, i32
  }
  func.func @transform_19(%arg0: i32) -> (i32, i32, i32) {
    %c0_i32 = arith.constant 0 : i32
    %c1_i32 = arith.constant 1 : i32
    %c0_i32_0 = arith.constant 0 : i32
    %c0_i32_1 = arith.constant 0 : i32
    return %c0_i32, %c1_i32, %c0_i32_0 : i32, i32, i32
  }
}

module attributes {stable_mosaic.version = 11 : i64} {
  func.func @_decoder_block_kernel(%arg0: i32, %arg1: memref<2x8x128xf32, #tpu.memory_space<vmem>>, %arg2: memref<8x16xf32, #tpu.memory_space<vmem>>, %arg3: memref<8x16xf32, #tpu.memory_space<vmem>>, %arg4: memref<2x8x128xf32, #tpu.memory_space<vmem>>, %arg5: memref<2x8x128xf32, #tpu.memory_space<vmem>>, %arg6: memref<1x128xf32, #tpu.memory_space<vmem>>, %arg7: memref<1x128xf32, #tpu.memory_space<vmem>>, %arg8: memref<128x384xbf16, #tpu.memory_space<vmem>>, %arg9: memref<1x384xf32, #tpu.memory_space<vmem>>, %arg10: memref<128x128xbf16, #tpu.memory_space<vmem>>, %arg11: memref<1x128xf32, #tpu.memory_space<vmem>>, %arg12: memref<1x128xf32, #tpu.memory_space<vmem>>, %arg13: memref<1x128xf32, #tpu.memory_space<vmem>>, %arg14: memref<128x256xbf16, #tpu.memory_space<vmem>>, %arg15: memref<1x256xf32, #tpu.memory_space<vmem>>, %arg16: memref<256x128xbf16, #tpu.memory_space<vmem>>, %arg17: memref<1x128xf32, #tpu.memory_space<vmem>>, %arg18: memref<2x8x128xf32, #tpu.memory_space<vmem>>, %arg19: memref<2x8x128xf32, #tpu.memory_space<vmem>>, %arg20: memref<2x8x128xf32, #tpu.memory_space<vmem>>, %arg21: memref<16x128xf32, #tpu.memory_space<vmem>>, %arg22: memref<16x128xf32, #tpu.memory_space<vmem>>) attributes {dimension_semantics = [#tpu.dimension_semantics<arbitrary>], iteration_bounds = array<i64: 2>, scalar_prefetch = 0 : i64, scratch_operands = 2 : i64, tpu.core_type = #tpu.core_type<tc>, window_params = [{pipeline_mode = #tpu.pipeline_mode<synchronous>, transform_indices = @transform_0, window_bounds = array<i64: 2, 8, 128>}, {pipeline_mode = #tpu.pipeline_mode<synchronous>, transform_indices = @transform_1, window_bounds = array<i64: 8, 16>}, {pipeline_mode = #tpu.pipeline_mode<synchronous>, transform_indices = @transform_2, window_bounds = array<i64: 8, 16>}, {transform_indices = @transform_3, window_bounds = array<i64: 2, 8, 128>}, {transform_indices = @transform_4, window_bounds = array<i64: 2, 8, 128>}, {pipeline_mode = #tpu.pipeline_mode<synchronous>, transform_indices = @transform_5, window_bounds = array<i64: 1, 128>}, {pipeline_mode = #tpu.pipeline_mode<synchronous>, transform_indices = @transform_6, window_bounds = array<i64: 1, 128>}, {pipeline_mode = #tpu.pipeline_mode<synchronous>, transform_indices = @transform_7, window_bounds = array<i64: 128, 384>}, {pipeline_mode = #tpu.pipeline_mode<synchronous>, transform_indices = @transform_8, window_bounds = array<i64: 1, 384>}, {pipeline_mode = #tpu.pipeline_mode<synchronous>, transform_indices = @transform_9, window_bounds = array<i64: 128, 128>}, {pipeline_mode = #tpu.pipeline_mode<synchronous>, transform_indices = @transform_10, window_bounds = array<i64: 1, 128>}, {pipeline_mode = #tpu.pipeline_mode<synchronous>, transform_indices = @transform_11, window_bounds = array<i64: 1, 128>}, {pipeline_mode = #tpu.pipeline_mode<synchronous>, transform_indices = @transform_12, window_bounds = array<i64: 1, 128>}, {transform_indices = @transform_13, window_bounds = array<i64: 128, 256>}, {transform_indices = @transform_14, window_bounds = array<i64: 1, 256>}, {transform_indices = @transform_15, window_bounds = array<i64: 256, 128>}, {pipeline_mode = #tpu.pipeline_mode<synchronous>, transform_indices = @transform_16, window_bounds = array<i64: 1, 128>}, {pipeline_mode = #tpu.pipeline_mode<synchronous>, transform_indices = @transform_17, window_bounds = array<i64: 2, 8, 128>}, {transform_indices = @transform_18, window_bounds = array<i64: 2, 8, 128>}, {transform_indices = @transform_19, window_bounds = array<i64: 2, 8, 128>}]} {
    %c0_i32 = arith.constant 0 : i32
    %0 = arith.cmpi eq, %arg0, %c0_i32 : i32
    %1 = arith.extui %0 : i1 to i32
    %c0_i32_0 = arith.constant 0 : i32
    %2 = arith.cmpi ne, %1, %c0_i32_0 : i32
    scf.if %2 {
      %c0_18 = arith.constant 0 : index
      %c0_19 = arith.constant 0 : index
      %c0_20 = arith.constant 0 : index
      %32 = vector.load %arg1[%c0_18, %c0_19, %c0_20] : memref<2x8x128xf32, #tpu.memory_space<vmem>>, vector<2x8x128xf32>
      %33 = vector.shape_cast %32 : vector<2x8x128xf32> to vector<16x128xf32>
      %c0_21 = arith.constant 0 : index
      %c0_22 = arith.constant 0 : index
      %34 = vector.load %arg2[%c0_21, %c0_22] : memref<8x16xf32, #tpu.memory_space<vmem>>, vector<8x16xf32>
      %c0_23 = arith.constant 0 : index
      %c0_24 = arith.constant 0 : index
      %35 = vector.load %arg3[%c0_23, %c0_24] : memref<8x16xf32, #tpu.memory_space<vmem>>, vector<8x16xf32>
      %cst_25 = arith.constant dense<0.000000e+00> : vector<16xf32>
      %36 = vector.multi_reduction <add>, %33, %cst_25 [1] : vector<16x128xf32> to vector<16xf32>
      %37 = vector.shape_cast %36 : vector<16xf32> to vector<16x1xf32>
      %cst_26 = arith.constant 1.280000e+02 : f32
      %38 = vector.broadcast %cst_26 : f32 to vector<16x1xf32>
      %39 = arith.divf %37, %38 : vector<16x1xf32>
      %40 = vector.broadcast %39 : vector<16x1xf32> to vector<16x128xf32>
      %41 = arith.subf %33, %40 : vector<16x128xf32>
      %42 = arith.mulf %41, %41 : vector<16x128xf32>
      %cst_27 = arith.constant dense<0.000000e+00> : vector<16xf32>
      %43 = vector.multi_reduction <add>, %42, %cst_27 [1] : vector<16x128xf32> to vector<16xf32>
      %44 = vector.shape_cast %43 : vector<16xf32> to vector<16x1xf32>
      %cst_28 = arith.constant 1.280000e+02 : f32
      %45 = vector.broadcast %cst_28 : f32 to vector<16x1xf32>
      %46 = arith.divf %44, %45 : vector<16x1xf32>
      %47 = vector.broadcast %39 : vector<16x1xf32> to vector<16x128xf32>
      %48 = arith.subf %33, %47 : vector<16x128xf32>
      %cst_29 = arith.constant 9.99999974E-6 : f32
      %49 = vector.broadcast %cst_29 : f32 to vector<16x1xf32>
      %50 = arith.addf %46, %49 : vector<16x1xf32>
      %51 = math.rsqrt %50 : vector<16x1xf32>
      %52 = vector.broadcast %51 : vector<16x1xf32> to vector<16x128xf32>
      %53 = arith.mulf %48, %52 : vector<16x128xf32>
      %c0_30 = arith.constant 0 : index
      %c0_31 = arith.constant 0 : index
      %54 = vector.load %arg6[%c0_30, %c0_31] : memref<1x128xf32, #tpu.memory_space<vmem>>, vector<1x128xf32>
      %55 = vector.broadcast %54 : vector<1x128xf32> to vector<16x128xf32>
      %56 = arith.mulf %53, %55 : vector<16x128xf32>
      %c0_32 = arith.constant 0 : index
      %c0_33 = arith.constant 0 : index
      %57 = vector.load %arg7[%c0_32, %c0_33] : memref<1x128xf32, #tpu.memory_space<vmem>>, vector<1x128xf32>
      %58 = vector.broadcast %57 : vector<1x128xf32> to vector<16x128xf32>
      %59 = arith.addf %56, %58 : vector<16x128xf32>
      %60 = arith.truncf %59 : vector<16x128xf32> to vector<16x128xbf16>
      %c0_34 = arith.constant 0 : index
      %c0_35 = arith.constant 0 : index
      %61 = vector.load %arg8[%c0_34, %c0_35] : memref<128x384xbf16, #tpu.memory_space<vmem>>, vector<128x384xbf16>
      %cst_36 = arith.constant dense<0.000000e+00> : vector<16x384xf32>
      %62 = tpu.matmul %60, %61, %cst_36 {dimension_numbers = #tpu.dot_dimension_numbers<[1], [0], [0], [1], [0, 0, 1, 1], [], []>} : vector<16x128xbf16>, vector<128x384xbf16>, vector<16x384xf32> -> vector<16x384xf32>
      %c0_37 = arith.constant 0 : index
      %c0_38 = arith.constant 0 : index
      %63 = vector.load %arg9[%c0_37, %c0_38] : memref<1x384xf32, #tpu.memory_space<vmem>>, vector<1x384xf32>
      %64 = vector.broadcast %63 : vector<1x384xf32> to vector<16x384xf32>
      %65 = arith.addf %62, %64 : vector<16x384xf32>
      %66 = vector.extract_strided_slice %65 {offsets = [0, 0], sizes = [8, 128], strides = [1, 1]} : vector<16x384xf32> to vector<8x128xf32>
      %67 = vector.extract_strided_slice %66 {offsets = [0, 0], sizes = [8, 32], strides = [1, 1]} : vector<8x128xf32> to vector<8x32xf32>
      %68 = vector.extract_strided_slice %66 {offsets = [0, 32], sizes = [8, 32], strides = [1, 1]} : vector<8x128xf32> to vector<8x32xf32>
      %69 = vector.extract_strided_slice %66 {offsets = [0, 64], sizes = [8, 32], strides = [1, 1]} : vector<8x128xf32> to vector<8x32xf32>
      %70 = vector.extract_strided_slice %66 {offsets = [0, 96], sizes = [8, 32], strides = [1, 1]} : vector<8x128xf32> to vector<8x32xf32>
      %71 = vector.shape_cast %67 : vector<8x32xf32> to vector<1x8x32xf32>
      %72 = vector.shape_cast %68 : vector<8x32xf32> to vector<1x8x32xf32>
      %73 = vector.shape_cast %69 : vector<8x32xf32> to vector<1x8x32xf32>
      %74 = vector.shape_cast %70 : vector<8x32xf32> to vector<1x8x32xf32>
      %75 = tpu.concatenate %71, %72, %73, %74 in 0 : vector<1x8x32xf32>, vector<1x8x32xf32>, vector<1x8x32xf32>, vector<1x8x32xf32> -> vector<4x8x32xf32>
      %76 = vector.extract_strided_slice %75 {offsets = [0, 0, 0], sizes = [4, 8, 16], strides = [1, 1, 1]} : vector<4x8x32xf32> to vector<4x8x16xf32>
      %77 = vector.extract_strided_slice %75 {offsets = [0, 0, 16], sizes = [4, 8, 16], strides = [1, 1, 1]} : vector<4x8x32xf32> to vector<4x8x16xf32>
      %78 = vector.extract_strided_slice %76 {offsets = [0, 0, 0], sizes = [4, 8, 8], strides = [1, 1, 1]} : vector<4x8x16xf32> to vector<4x8x8xf32>
      %79 = vector.extract_strided_slice %76 {offsets = [0, 0, 8], sizes = [4, 8, 8], strides = [1, 1, 1]} : vector<4x8x16xf32> to vector<4x8x8xf32>
      %cst_39 = arith.constant 0.000000e+00 : f32
      %80 = vector.broadcast %cst_39 : f32 to vector<4x8x8xf32>
      %81 = arith.subf %80, %79 : vector<4x8x8xf32>
      %82 = tpu.concatenate %81, %78 in 2 : vector<4x8x8xf32>, vector<4x8x8xf32> -> vector<4x8x16xf32>
      %83 = vector.shape_cast %34 : vector<8x16xf32> to vector<1x8x16xf32>
      %84 = vector.broadcast %83 : vector<1x8x16xf32> to vector<4x8x16xf32>
      %85 = arith.mulf %76, %84 : vector<4x8x16xf32>
      %86 = vector.shape_cast %35 : vector<8x16xf32> to vector<1x8x16xf32>
      %87 = vector.broadcast %86 : vector<1x8x16xf32> to vector<4x8x16xf32>
      %88 = arith.mulf %82, %87 : vector<4x8x16xf32>
      %89 = arith.addf %85, %88 : vector<4x8x16xf32>
      %90 = tpu.concatenate %89, %77 in 2 : vector<4x8x16xf32>, vector<4x8x16xf32> -> vector<4x8x32xf32>
      %cst_40 = arith.constant 0.176776692 : f32
      %91 = vector.broadcast %cst_40 : f32 to vector<4x8x32xf32>
      %92 = arith.mulf %90, %91 : vector<4x8x32xf32>
      %93 = vector.extract_strided_slice %65 {offsets = [0, 128], sizes = [8, 128], strides = [1, 1]} : vector<16x384xf32> to vector<8x128xf32>
      %94 = vector.extract_strided_slice %93 {offsets = [0, 0], sizes = [8, 32], strides = [1, 1]} : vector<8x128xf32> to vector<8x32xf32>
      %95 = vector.extract_strided_slice %93 {offsets = [0, 32], sizes = [8, 32], strides = [1, 1]} : vector<8x128xf32> to vector<8x32xf32>
      %96 = vector.extract_strided_slice %93 {offsets = [0, 64], sizes = [8, 32], strides = [1, 1]} : vector<8x128xf32> to vector<8x32xf32>
      %97 = vector.extract_strided_slice %93 {offsets = [0, 96], sizes = [8, 32], strides = [1, 1]} : vector<8x128xf32> to vector<8x32xf32>
      %98 = vector.shape_cast %94 : vector<8x32xf32> to vector<1x8x32xf32>
      %99 = vector.shape_cast %95 : vector<8x32xf32> to vector<1x8x32xf32>
      %100 = vector.shape_cast %96 : vector<8x32xf32> to vector<1x8x32xf32>
      %101 = vector.shape_cast %97 : vector<8x32xf32> to vector<1x8x32xf32>
      %102 = tpu.concatenate %98, %99, %100, %101 in 0 : vector<1x8x32xf32>, vector<1x8x32xf32>, vector<1x8x32xf32>, vector<1x8x32xf32> -> vector<4x8x32xf32>
      %103 = vector.extract_strided_slice %102 {offsets = [0, 0, 0], sizes = [4, 8, 16], strides = [1, 1, 1]} : vector<4x8x32xf32> to vector<4x8x16xf32>
      %104 = vector.extract_strided_slice %102 {offsets = [0, 0, 16], sizes = [4, 8, 16], strides = [1, 1, 1]} : vector<4x8x32xf32> to vector<4x8x16xf32>
      %105 = vector.extract_strided_slice %103 {offsets = [0, 0, 0], sizes = [4, 8, 8], strides = [1, 1, 1]} : vector<4x8x16xf32> to vector<4x8x8xf32>
      %106 = vector.extract_strided_slice %103 {offsets = [0, 0, 8], sizes = [4, 8, 8], strides = [1, 1, 1]} : vector<4x8x16xf32> to vector<4x8x8xf32>
      %cst_41 = arith.constant 0.000000e+00 : f32
      %107 = vector.broadcast %cst_41 : f32 to vector<4x8x8xf32>
      %108 = arith.subf %107, %106 : vector<4x8x8xf32>
      %109 = tpu.concatenate %108, %105 in 2 : vector<4x8x8xf32>, vector<4x8x8xf32> -> vector<4x8x16xf32>
      %110 = vector.shape_cast %34 : vector<8x16xf32> to vector<1x8x16xf32>
      %111 = vector.broadcast %110 : vector<1x8x16xf32> to vector<4x8x16xf32>
      %112 = arith.mulf %103, %111 : vector<4x8x16xf32>
      %113 = vector.shape_cast %35 : vector<8x16xf32> to vector<1x8x16xf32>
      %114 = vector.broadcast %113 : vector<1x8x16xf32> to vector<4x8x16xf32>
      %115 = arith.mulf %109, %114 : vector<4x8x16xf32>
      %116 = arith.addf %112, %115 : vector<4x8x16xf32>
      %117 = tpu.concatenate %116, %104 in 2 : vector<4x8x16xf32>, vector<4x8x16xf32> -> vector<4x8x32xf32>
      %118 = vector.extract_strided_slice %65 {offsets = [0, 256], sizes = [8, 128], strides = [1, 1]} : vector<16x384xf32> to vector<8x128xf32>
      %119 = vector.extract_strided_slice %118 {offsets = [0, 0], sizes = [8, 32], strides = [1, 1]} : vector<8x128xf32> to vector<8x32xf32>
      %120 = vector.extract_strided_slice %118 {offsets = [0, 32], sizes = [8, 32], strides = [1, 1]} : vector<8x128xf32> to vector<8x32xf32>
      %121 = vector.extract_strided_slice %118 {offsets = [0, 64], sizes = [8, 32], strides = [1, 1]} : vector<8x128xf32> to vector<8x32xf32>
      %122 = vector.extract_strided_slice %118 {offsets = [0, 96], sizes = [8, 32], strides = [1, 1]} : vector<8x128xf32> to vector<8x32xf32>
      %123 = vector.shape_cast %119 : vector<8x32xf32> to vector<1x8x32xf32>
      %124 = vector.shape_cast %120 : vector<8x32xf32> to vector<1x8x32xf32>
      %125 = vector.shape_cast %121 : vector<8x32xf32> to vector<1x8x32xf32>
      %126 = vector.shape_cast %122 : vector<8x32xf32> to vector<1x8x32xf32>
      %127 = tpu.concatenate %123, %124, %125, %126 in 0 : vector<1x8x32xf32>, vector<1x8x32xf32>, vector<1x8x32xf32>, vector<1x8x32xf32> -> vector<4x8x32xf32>
      %128 = vector.extract_strided_slice %117 {offsets = [0, 0, 0], sizes = [1, 8, 32], strides = [1, 1, 1]} : vector<4x8x32xf32> to vector<1x8x32xf32>
      %129 = vector.shape_cast %128 : vector<1x8x32xf32> to vector<8x32xf32>
      %130 = vector.extract_strided_slice %117 {offsets = [1, 0, 0], sizes = [1, 8, 32], strides = [1, 1, 1]} : vector<4x8x32xf32> to vector<1x8x32xf32>
      %131 = vector.shape_cast %130 : vector<1x8x32xf32> to vector<8x32xf32>
      %132 = vector.extract_strided_slice %117 {offsets = [2, 0, 0], sizes = [1, 8, 32], strides = [1, 1, 1]} : vector<4x8x32xf32> to vector<1x8x32xf32>
      %133 = vector.shape_cast %132 : vector<1x8x32xf32> to vector<8x32xf32>
      %134 = vector.extract_strided_slice %117 {offsets = [3, 0, 0], sizes = [1, 8, 32], strides = [1, 1, 1]} : vector<4x8x32xf32> to vector<1x8x32xf32>
      %135 = vector.shape_cast %134 : vector<1x8x32xf32> to vector<8x32xf32>
      %136 = tpu.concatenate %129, %131, %133, %135 in 1 : vector<8x32xf32>, vector<8x32xf32>, vector<8x32xf32>, vector<8x32xf32> -> vector<8x128xf32>
      %c0_42 = arith.constant 0 : index
      %c0_43 = arith.constant 0 : index
      %c0_44 = arith.constant 0 : index
      %137 = vector.load %arg19[%c0_42, %c0_43, %c0_44] : memref<2x8x128xf32, #tpu.memory_space<vmem>>, vector<1x8x128xf32>
      %138 = vector.shape_cast %137 : vector<1x8x128xf32> to vector<8x128xf32>
      %139 = vector.shape_cast %136 : vector<8x128xf32> to vector<1x8x128xf32>
      tpu.vector_store %arg19[%c0_42, %c0_43, %c0_44], %139 {strides = array<i32>} : memref<2x8x128xf32, #tpu.memory_space<vmem>>, vector<1x8x128xf32>,
      %c0_45 = arith.constant 0 : index
      %c0_46 = arith.constant 0 : index
      %c0_47 = arith.constant 0 : index
      %140 = vector.load %arg20[%c0_45, %c0_46, %c0_47] : memref<2x8x128xf32, #tpu.memory_space<vmem>>, vector<1x8x128xf32>
      %141 = vector.shape_cast %140 : vector<1x8x128xf32> to vector<8x128xf32>
      %142 = vector.shape_cast %118 : vector<8x128xf32> to vector<1x8x128xf32>
      tpu.vector_store %arg20[%c0_45, %c0_46, %c0_47], %142 {strides = array<i32>} : memref<2x8x128xf32, #tpu.memory_space<vmem>>, vector<1x8x128xf32>,
      %c0_48 = arith.constant 0 : index
      %c0_49 = arith.constant 0 : index
      %c0_50 = arith.constant 0 : index
      %143 = vector.load %arg4[%c0_48, %c0_49, %c0_50] : memref<2x8x128xf32, #tpu.memory_space<vmem>>, vector<1x8x128xf32>
      %144 = vector.shape_cast %143 : vector<1x8x128xf32> to vector<8x128xf32>
      %145 = vector.extract_strided_slice %144 {offsets = [0, 0], sizes = [8, 32], strides = [1, 1]} : vector<8x128xf32> to vector<8x32xf32>
      %146 = vector.extract_strided_slice %144 {offsets = [0, 32], sizes = [8, 32], strides = [1, 1]} : vector<8x128xf32> to vector<8x32xf32>
      %147 = vector.extract_strided_slice %144 {offsets = [0, 64], sizes = [8, 32], strides = [1, 1]} : vector<8x128xf32> to vector<8x32xf32>
      %148 = vector.extract_strided_slice %144 {offsets = [0, 96], sizes = [8, 32], strides = [1, 1]} : vector<8x128xf32> to vector<8x32xf32>
      %149 = vector.shape_cast %145 : vector<8x32xf32> to vector<1x8x32xf32>
      %150 = vector.shape_cast %146 : vector<8x32xf32> to vector<1x8x32xf32>
      %151 = vector.shape_cast %147 : vector<8x32xf32> to vector<1x8x32xf32>
      %152 = vector.shape_cast %148 : vector<8x32xf32> to vector<1x8x32xf32>
      %153 = tpu.concatenate %149, %150, %151, %152 in 0 : vector<1x8x32xf32>, vector<1x8x32xf32>, vector<1x8x32xf32>, vector<1x8x32xf32> -> vector<4x8x32xf32>
      %c0_51 = arith.constant 0 : index
      %c0_52 = arith.constant 0 : index
      %c0_53 = arith.constant 0 : index
      %154 = vector.load %arg5[%c0_51, %c0_52, %c0_53] : memref<2x8x128xf32, #tpu.memory_space<vmem>>, vector<1x8x128xf32>
      %155 = vector.shape_cast %154 : vector<1x8x128xf32> to vector<8x128xf32>
      %156 = vector.extract_strided_slice %155 {offsets = [0, 0], sizes = [8, 32], strides = [1, 1]} : vector<8x128xf32> to vector<8x32xf32>
      %157 = vector.extract_strided_slice %155 {offsets = [0, 32], sizes = [8, 32], strides = [1, 1]} : vector<8x128xf32> to vector<8x32xf32>
      %158 = vector.extract_strided_slice %155 {offsets = [0, 64], sizes = [8, 32], strides = [1, 1]} : vector<8x128xf32> to vector<8x32xf32>
      %159 = vector.extract_strided_slice %155 {offsets = [0, 96], sizes = [8, 32], strides = [1, 1]} : vector<8x128xf32> to vector<8x32xf32>
      %160 = vector.shape_cast %156 : vector<8x32xf32> to vector<1x8x32xf32>
      %161 = vector.shape_cast %157 : vector<8x32xf32> to vector<1x8x32xf32>
      %162 = vector.shape_cast %158 : vector<8x32xf32> to vector<1x8x32xf32>
      %163 = vector.shape_cast %159 : vector<8x32xf32> to vector<1x8x32xf32>
      %164 = tpu.concatenate %160, %161, %162, %163 in 0 : vector<1x8x32xf32>, vector<1x8x32xf32>, vector<1x8x32xf32>, vector<1x8x32xf32> -> vector<4x8x32xf32>
      %165 = tpu.concatenate %153, %117 in 1 : vector<4x8x32xf32>, vector<4x8x32xf32> -> vector<4x16x32xf32>
      %166 = tpu.concatenate %164, %127 in 1 : vector<4x8x32xf32>, vector<4x8x32xf32> -> vector<4x16x32xf32>
      "tpu.trace_start"() <{level = 10 : i32, message = "hld,hmd->hlm"}> : () -> ()
      %cst_54 = arith.constant dense<0.000000e+00> : vector<4x8x16xf32>
      %167 = tpu.matmul %92, %165, %cst_54 {dimension_numbers = #tpu.dot_dimension_numbers<[2], [2], [1], [1], [0, 0, 0, 1, 1, 1], [0], [0]>} : vector<4x8x32xf32>, vector<4x16x32xf32>, vector<4x8x16xf32> -> vector<4x8x16xf32>
      "tpu.trace_stop"() : () -> ()
      %168 = tpu.iota {dimensions = array<i32: 0>} : vector<8x16xi32>
      %c8_i32 = arith.constant 8 : i32
      %169 = vector.broadcast %c8_i32 : i32 to vector<8x16xi32>
      %170 = arith.addi %169, %168 : vector<8x16xi32>
      %171 = tpu.iota {dimensions = array<i32: 1>} : vector<8x16xi32>
      %172 = arith.cmpi sle, %171, %170 : vector<8x16xi32>
      %173 = vector.shape_cast %172 : vector<8x16xi1> to vector<1x8x16xi1>
      %cst_55 = arith.constant -1.000000e+30 : f32
      %174 = vector.shape_cast %173 : vector<1x8x16xi1> to vector<1x8x16xi1>
      %175 = vector.broadcast %174 : vector<1x8x16xi1> to vector<4x8x16xi1>
      %176 = vector.broadcast %cst_55 : f32 to vector<4x8x16xf32>
      %177 = arith.select %175, %167, %176 : vector<4x8x16xi1>, vector<4x8x16xf32>
      %cst_56 = arith.constant dense<0xFF800000> : vector<4x8xf32>
      %178 = vector.multi_reduction <maximumf>, %177, %cst_56 [2] : vector<4x8x16xf32> to vector<4x8xf32>
      %179 = vector.shape_cast %178 : vector<4x8xf32> to vector<4x8x1xf32>
      %180 = vector.broadcast %179 : vector<4x8x1xf32> to vector<4x8x16xf32>
      %181 = arith.subf %177, %180 : vector<4x8x16xf32>
      %182 = math.exp %181 : vector<4x8x16xf32>
      %cst_57 = arith.constant dense<0.000000e+00> : vector<4x8xf32>
      %183 = vector.multi_reduction <add>, %182, %cst_57 [2] : vector<4x8x16xf32> to vector<4x8xf32>
      %184 = vector.shape_cast %183 : vector<4x8xf32> to vector<4x8x1xf32>
      %185 = tpu.reciprocal %184 {approx = true} : vector<4x8x1xf32> -> vector<4x8x1xf32>
      %186 = vector.broadcast %185 : vector<4x8x1xf32> to vector<4x8x16xf32>
      %187 = arith.mulf %182, %186 : vector<4x8x16xf32>
      "tpu.trace_start"() <{level = 10 : i32, message = "hlm,hmd->hld"}> : () -> ()
      %cst_58 = arith.constant dense<0.000000e+00> : vector<4x8x32xf32>
      %188 = tpu.matmul %187, %166, %cst_58 {dimension_numbers = #tpu.dot_dimension_numbers<[2], [1], [1], [2], [0, 0, 0, 1, 1, 2], [0], [0]>} : vector<4x8x16xf32>, vector<4x16x32xf32>, vector<4x8x32xf32> -> vector<4x8x32xf32>
      "tpu.trace_stop"() : () -> ()
      %189 = vector.extract_strided_slice %188 {offsets = [0, 0, 0], sizes = [1, 8, 32], strides = [1, 1, 1]} : vector<4x8x32xf32> to vector<1x8x32xf32>
      %190 = vector.shape_cast %189 : vector<1x8x32xf32> to vector<8x32xf32>
      %191 = vector.extract_strided_slice %188 {offsets = [1, 0, 0], sizes = [1, 8, 32], strides = [1, 1, 1]} : vector<4x8x32xf32> to vector<1x8x32xf32>
      %192 = vector.shape_cast %191 : vector<1x8x32xf32> to vector<8x32xf32>
      %193 = vector.extract_strided_slice %188 {offsets = [2, 0, 0], sizes = [1, 8, 32], strides = [1, 1, 1]} : vector<4x8x32xf32> to vector<1x8x32xf32>
      %194 = vector.shape_cast %193 : vector<1x8x32xf32> to vector<8x32xf32>
      %195 = vector.extract_strided_slice %188 {offsets = [3, 0, 0], sizes = [1, 8, 32], strides = [1, 1, 1]} : vector<4x8x32xf32> to vector<1x8x32xf32>
      %196 = vector.shape_cast %195 : vector<1x8x32xf32> to vector<8x32xf32>
      %197 = tpu.concatenate %190, %192, %194, %196 in 1 : vector<8x32xf32>, vector<8x32xf32>, vector<8x32xf32>, vector<8x32xf32> -> vector<8x128xf32>
      %198 = vector.extract_strided_slice %65 {offsets = [8, 0], sizes = [8, 128], strides = [1, 1]} : vector<16x384xf32> to vector<8x128xf32>
      %199 = vector.extract_strided_slice %198 {offsets = [0, 0], sizes = [8, 32], strides = [1, 1]} : vector<8x128xf32> to vector<8x32xf32>
      %200 = vector.extract_strided_slice %198 {offsets = [0, 32], sizes = [8, 32], strides = [1, 1]} : vector<8x128xf32> to vector<8x32xf32>
      %201 = vector.extract_strided_slice %198 {offsets = [0, 64], sizes = [8, 32], strides = [1, 1]} : vector<8x128xf32> to vector<8x32xf32>
      %202 = vector.extract_strided_slice %198 {offsets = [0, 96], sizes = [8, 32], strides = [1, 1]} : vector<8x128xf32> to vector<8x32xf32>
      %203 = vector.shape_cast %199 : vector<8x32xf32> to vector<1x8x32xf32>
      %204 = vector.shape_cast %200 : vector<8x32xf32> to vector<1x8x32xf32>
      %205 = vector.shape_cast %201 : vector<8x32xf32> to vector<1x8x32xf32>
      %206 = vector.shape_cast %202 : vector<8x32xf32> to vector<1x8x32xf32>
      %207 = tpu.concatenate %203, %204, %205, %206 in 0 : vector<1x8x32xf32>, vector<1x8x32xf32>, vector<1x8x32xf32>, vector<1x8x32xf32> -> vector<4x8x32xf32>
      %208 = vector.extract_strided_slice %207 {offsets = [0, 0, 0], sizes = [4, 8, 16], strides = [1, 1, 1]} : vector<4x8x32xf32> to vector<4x8x16xf32>
      %209 = vector.extract_strided_slice %207 {offsets = [0, 0, 16], sizes = [4, 8, 16], strides = [1, 1, 1]} : vector<4x8x32xf32> to vector<4x8x16xf32>
      %210 = vector.extract_strided_slice %208 {offsets = [0, 0, 0], sizes = [4, 8, 8], strides = [1, 1, 1]} : vector<4x8x16xf32> to vector<4x8x8xf32>
      %211 = vector.extract_strided_slice %208 {offsets = [0, 0, 8], sizes = [4, 8, 8], strides = [1, 1, 1]} : vector<4x8x16xf32> to vector<4x8x8xf32>
      %cst_59 = arith.constant 0.000000e+00 : f32
      %212 = vector.broadcast %cst_59 : f32 to vector<4x8x8xf32>
      %213 = arith.subf %212, %211 : vector<4x8x8xf32>
      %214 = tpu.concatenate %213, %210 in 2 : vector<4x8x8xf32>, vector<4x8x8xf32> -> vector<4x8x16xf32>
      %215 = vector.shape_cast %34 : vector<8x16xf32> to vector<1x8x16xf32>
      %216 = vector.broadcast %215 : vector<1x8x16xf32> to vector<4x8x16xf32>
      %217 = arith.mulf %208, %216 : vector<4x8x16xf32>
      %218 = vector.shape_cast %35 : vector<8x16xf32> to vector<1x8x16xf32>
      %219 = vector.broadcast %218 : vector<1x8x16xf32> to vector<4x8x16xf32>
      %220 = arith.mulf %214, %219 : vector<4x8x16xf32>
      %221 = arith.addf %217, %220 : vector<4x8x16xf32>
      %222 = tpu.concatenate %221, %209 in 2 : vector<4x8x16xf32>, vector<4x8x16xf32> -> vector<4x8x32xf32>
      %cst_60 = arith.constant 0.176776692 : f32
      %223 = vector.broadcast %cst_60 : f32 to vector<4x8x32xf32>
      %224 = arith.mulf %222, %223 : vector<4x8x32xf32>
      %225 = vector.extract_strided_slice %65 {offsets = [8, 128], sizes = [8, 128], strides = [1, 1]} : vector<16x384xf32> to vector<8x128xf32>
      %226 = vector.extract_strided_slice %225 {offsets = [0, 0], sizes = [8, 32], strides = [1, 1]} : vector<8x128xf32> to vector<8x32xf32>
      %227 = vector.extract_strided_slice %225 {offsets = [0, 32], sizes = [8, 32], strides = [1, 1]} : vector<8x128xf32> to vector<8x32xf32>
      %228 = vector.extract_strided_slice %225 {offsets = [0, 64], sizes = [8, 32], strides = [1, 1]} : vector<8x128xf32> to vector<8x32xf32>
      %229 = vector.extract_strided_slice %225 {offsets = [0, 96], sizes = [8, 32], strides = [1, 1]} : vector<8x128xf32> to vector<8x32xf32>
      %230 = vector.shape_cast %226 : vector<8x32xf32> to vector<1x8x32xf32>
      %231 = vector.shape_cast %227 : vector<8x32xf32> to vector<1x8x32xf32>
      %232 = vector.shape_cast %228 : vector<8x32xf32> to vector<1x8x32xf32>
      %233 = vector.shape_cast %229 : vector<8x32xf32> to vector<1x8x32xf32>
      %234 = tpu.concatenate %230, %231, %232, %233 in 0 : vector<1x8x32xf32>, vector<1x8x32xf32>, vector<1x8x32xf32>, vector<1x8x32xf32> -> vector<4x8x32xf32>
      %235 = vector.extract_strided_slice %234 {offsets = [0, 0, 0], sizes = [4, 8, 16], strides = [1, 1, 1]} : vector<4x8x32xf32> to vector<4x8x16xf32>
      %236 = vector.extract_strided_slice %234 {offsets = [0, 0, 16], sizes = [4, 8, 16], strides = [1, 1, 1]} : vector<4x8x32xf32> to vector<4x8x16xf32>
      %237 = vector.extract_strided_slice %235 {offsets = [0, 0, 0], sizes = [4, 8, 8], strides = [1, 1, 1]} : vector<4x8x16xf32> to vector<4x8x8xf32>
      %238 = vector.extract_strided_slice %235 {offsets = [0, 0, 8], sizes = [4, 8, 8], strides = [1, 1, 1]} : vector<4x8x16xf32> to vector<4x8x8xf32>
      %cst_61 = arith.constant 0.000000e+00 : f32
      %239 = vector.broadcast %cst_61 : f32 to vector<4x8x8xf32>
      %240 = arith.subf %239, %238 : vector<4x8x8xf32>
      %241 = tpu.concatenate %240, %237 in 2 : vector<4x8x8xf32>, vector<4x8x8xf32> -> vector<4x8x16xf32>
      %242 = vector.shape_cast %34 : vector<8x16xf32> to vector<1x8x16xf32>
      %243 = vector.broadcast %242 : vector<1x8x16xf32> to vector<4x8x16xf32>
      %244 = arith.mulf %235, %243 : vector<4x8x16xf32>
      %245 = vector.shape_cast %35 : vector<8x16xf32> to vector<1x8x16xf32>
      %246 = vector.broadcast %245 : vector<1x8x16xf32> to vector<4x8x16xf32>
      %247 = arith.mulf %241, %246 : vector<4x8x16xf32>
      %248 = arith.addf %244, %247 : vector<4x8x16xf32>
      %249 = tpu.concatenate %248, %236 in 2 : vector<4x8x16xf32>, vector<4x8x16xf32> -> vector<4x8x32xf32>
      %250 = vector.extract_strided_slice %65 {offsets = [8, 256], sizes = [8, 128], strides = [1, 1]} : vector<16x384xf32> to vector<8x128xf32>
      %251 = vector.extract_strided_slice %250 {offsets = [0, 0], sizes = [8, 32], strides = [1, 1]} : vector<8x128xf32> to vector<8x32xf32>
      %252 = vector.extract_strided_slice %250 {offsets = [0, 32], sizes = [8, 32], strides = [1, 1]} : vector<8x128xf32> to vector<8x32xf32>
      %253 = vector.extract_strided_slice %250 {offsets = [0, 64], sizes = [8, 32], strides = [1, 1]} : vector<8x128xf32> to vector<8x32xf32>
      %254 = vector.extract_strided_slice %250 {offsets = [0, 96], sizes = [8, 32], strides = [1, 1]} : vector<8x128xf32> to vector<8x32xf32>
      %255 = vector.shape_cast %251 : vector<8x32xf32> to vector<1x8x32xf32>
      %256 = vector.shape_cast %252 : vector<8x32xf32> to vector<1x8x32xf32>
      %257 = vector.shape_cast %253 : vector<8x32xf32> to vector<1x8x32xf32>
      %258 = vector.shape_cast %254 : vector<8x32xf32> to vector<1x8x32xf32>
      %259 = tpu.concatenate %255, %256, %257, %258 in 0 : vector<1x8x32xf32>, vector<1x8x32xf32>, vector<1x8x32xf32>, vector<1x8x32xf32> -> vector<4x8x32xf32>
      %260 = vector.extract_strided_slice %249 {offsets = [0, 0, 0], sizes = [1, 8, 32], strides = [1, 1, 1]} : vector<4x8x32xf32> to vector<1x8x32xf32>
      %261 = vector.shape_cast %260 : vector<1x8x32xf32> to vector<8x32xf32>
      %262 = vector.extract_strided_slice %249 {offsets = [1, 0, 0], sizes = [1, 8, 32], strides = [1, 1, 1]} : vector<4x8x32xf32> to vector<1x8x32xf32>
      %263 = vector.shape_cast %262 : vector<1x8x32xf32> to vector<8x32xf32>
      %264 = vector.extract_strided_slice %249 {offsets = [2, 0, 0], sizes = [1, 8, 32], strides = [1, 1, 1]} : vector<4x8x32xf32> to vector<1x8x32xf32>
      %265 = vector.shape_cast %264 : vector<1x8x32xf32> to vector<8x32xf32>
      %266 = vector.extract_strided_slice %249 {offsets = [3, 0, 0], sizes = [1, 8, 32], strides = [1, 1, 1]} : vector<4x8x32xf32> to vector<1x8x32xf32>
      %267 = vector.shape_cast %266 : vector<1x8x32xf32> to vector<8x32xf32>
      %268 = tpu.concatenate %261, %263, %265, %267 in 1 : vector<8x32xf32>, vector<8x32xf32>, vector<8x32xf32>, vector<8x32xf32> -> vector<8x128xf32>
      %c1 = arith.constant 1 : index
      %c0_62 = arith.constant 0 : index
      %c0_63 = arith.constant 0 : index
      %269 = vector.load %arg19[%c1, %c0_62, %c0_63] : memref<2x8x128xf32, #tpu.memory_space<vmem>>, vector<1x8x128xf32>
      %270 = vector.shape_cast %269 : vector<1x8x128xf32> to vector<8x128xf32>
      %271 = vector.shape_cast %268 : vector<8x128xf32> to vector<1x8x128xf32>
      tpu.vector_store %arg19[%c1, %c0_62, %c0_63], %271 {strides = array<i32>} : memref<2x8x128xf32, #tpu.memory_space<vmem>>, vector<1x8x128xf32>,
      %c1_64 = arith.constant 1 : index
      %c0_65 = arith.constant 0 : index
      %c0_66 = arith.constant 0 : index
      %272 = vector.load %arg20[%c1_64, %c0_65, %c0_66] : memref<2x8x128xf32, #tpu.memory_space<vmem>>, vector<1x8x128xf32>
      %273 = vector.shape_cast %272 : vector<1x8x128xf32> to vector<8x128xf32>
      %274 = vector.shape_cast %250 : vector<8x128xf32> to vector<1x8x128xf32>
      tpu.vector_store %arg20[%c1_64, %c0_65, %c0_66], %274 {strides = array<i32>} : memref<2x8x128xf32, #tpu.memory_space<vmem>>, vector<1x8x128xf32>,
      %c1_67 = arith.constant 1 : index
      %c0_68 = arith.constant 0 : index
      %c0_69 = arith.constant 0 : index
      %275 = vector.load %arg4[%c1_67, %c0_68, %c0_69] : memref<2x8x128xf32, #tpu.memory_space<vmem>>, vector<1x8x128xf32>
      %276 = vector.shape_cast %275 : vector<1x8x128xf32> to vector<8x128xf32>
      %277 = vector.extract_strided_slice %276 {offsets = [0, 0], sizes = [8, 32], strides = [1, 1]} : vector<8x128xf32> to vector<8x32xf32>
      %278 = vector.extract_strided_slice %276 {offsets = [0, 32], sizes = [8, 32], strides = [1, 1]} : vector<8x128xf32> to vector<8x32xf32>
      %279 = vector.extract_strided_slice %276 {offsets = [0, 64], sizes = [8, 32], strides = [1, 1]} : vector<8x128xf32> to vector<8x32xf32>
      %280 = vector.extract_strided_slice %276 {offsets = [0, 96], sizes = [8, 32], strides = [1, 1]} : vector<8x128xf32> to vector<8x32xf32>
      %281 = vector.shape_cast %277 : vector<8x32xf32> to vector<1x8x32xf32>
      %282 = vector.shape_cast %278 : vector<8x32xf32> to vector<1x8x32xf32>
      %283 = vector.shape_cast %279 : vector<8x32xf32> to vector<1x8x32xf32>
      %284 = vector.shape_cast %280 : vector<8x32xf32> to vector<1x8x32xf32>
      %285 = tpu.concatenate %281, %282, %283, %284 in 0 : vector<1x8x32xf32>, vector<1x8x32xf32>, vector<1x8x32xf32>, vector<1x8x32xf32> -> vector<4x8x32xf32>
      %c1_70 = arith.constant 1 : index
      %c0_71 = arith.constant 0 : index
      %c0_72 = arith.constant 0 : index
      %286 = vector.load %arg5[%c1_70, %c0_71, %c0_72] : memref<2x8x128xf32, #tpu.memory_space<vmem>>, vector<1x8x128xf32>
      %287 = vector.shape_cast %286 : vector<1x8x128xf32> to vector<8x128xf32>
      %288 = vector.extract_strided_slice %287 {offsets = [0, 0], sizes = [8, 32], strides = [1, 1]} : vector<8x128xf32> to vector<8x32xf32>
      %289 = vector.extract_strided_slice %287 {offsets = [0, 32], sizes = [8, 32], strides = [1, 1]} : vector<8x128xf32> to vector<8x32xf32>
      %290 = vector.extract_strided_slice %287 {offsets = [0, 64], sizes = [8, 32], strides = [1, 1]} : vector<8x128xf32> to vector<8x32xf32>
      %291 = vector.extract_strided_slice %287 {offsets = [0, 96], sizes = [8, 32], strides = [1, 1]} : vector<8x128xf32> to vector<8x32xf32>
      %292 = vector.shape_cast %288 : vector<8x32xf32> to vector<1x8x32xf32>
      %293 = vector.shape_cast %289 : vector<8x32xf32> to vector<1x8x32xf32>
      %294 = vector.shape_cast %290 : vector<8x32xf32> to vector<1x8x32xf32>
      %295 = vector.shape_cast %291 : vector<8x32xf32> to vector<1x8x32xf32>
      %296 = tpu.concatenate %292, %293, %294, %295 in 0 : vector<1x8x32xf32>, vector<1x8x32xf32>, vector<1x8x32xf32>, vector<1x8x32xf32> -> vector<4x8x32xf32>
      %297 = tpu.concatenate %285, %249 in 1 : vector<4x8x32xf32>, vector<4x8x32xf32> -> vector<4x16x32xf32>
      %298 = tpu.concatenate %296, %259 in 1 : vector<4x8x32xf32>, vector<4x8x32xf32> -> vector<4x16x32xf32>
      "tpu.trace_start"() <{level = 10 : i32, message = "hld,hmd->hlm"}> : () -> ()
      %cst_73 = arith.constant dense<0.000000e+00> : vector<4x8x16xf32>
      %299 = tpu.matmul %224, %297, %cst_73 {dimension_numbers = #tpu.dot_dimension_numbers<[2], [2], [1], [1], [0, 0, 0, 1, 1, 1], [0], [0]>} : vector<4x8x32xf32>, vector<4x16x32xf32>, vector<4x8x16xf32> -> vector<4x8x16xf32>
      "tpu.trace_stop"() : () -> ()
      %300 = tpu.iota {dimensions = array<i32: 0>} : vector<8x16xi32>
      %c8_i32_74 = arith.constant 8 : i32
      %301 = vector.broadcast %c8_i32_74 : i32 to vector<8x16xi32>
      %302 = arith.addi %301, %300 : vector<8x16xi32>
      %303 = tpu.iota {dimensions = array<i32: 1>} : vector<8x16xi32>
      %304 = arith.cmpi sle, %303, %302 : vector<8x16xi32>
      %305 = vector.shape_cast %304 : vector<8x16xi1> to vector<1x8x16xi1>
      %cst_75 = arith.constant -1.000000e+30 : f32
      %306 = vector.shape_cast %305 : vector<1x8x16xi1> to vector<1x8x16xi1>
      %307 = vector.broadcast %306 : vector<1x8x16xi1> to vector<4x8x16xi1>
      %308 = vector.broadcast %cst_75 : f32 to vector<4x8x16xf32>
      %309 = arith.select %307, %299, %308 : vector<4x8x16xi1>, vector<4x8x16xf32>
      %cst_76 = arith.constant dense<0xFF800000> : vector<4x8xf32>
      %310 = vector.multi_reduction <maximumf>, %309, %cst_76 [2] : vector<4x8x16xf32> to vector<4x8xf32>
      %311 = vector.shape_cast %310 : vector<4x8xf32> to vector<4x8x1xf32>
      %312 = vector.broadcast %311 : vector<4x8x1xf32> to vector<4x8x16xf32>
      %313 = arith.subf %309, %312 : vector<4x8x16xf32>
      %314 = math.exp %313 : vector<4x8x16xf32>
      %cst_77 = arith.constant dense<0.000000e+00> : vector<4x8xf32>
      %315 = vector.multi_reduction <add>, %314, %cst_77 [2] : vector<4x8x16xf32> to vector<4x8xf32>
      %316 = vector.shape_cast %315 : vector<4x8xf32> to vector<4x8x1xf32>
      %317 = tpu.reciprocal %316 {approx = true} : vector<4x8x1xf32> -> vector<4x8x1xf32>
      %318 = vector.broadcast %317 : vector<4x8x1xf32> to vector<4x8x16xf32>
      %319 = arith.mulf %314, %318 : vector<4x8x16xf32>
      "tpu.trace_start"() <{level = 10 : i32, message = "hlm,hmd->hld"}> : () -> ()
      %cst_78 = arith.constant dense<0.000000e+00> : vector<4x8x32xf32>
      %320 = tpu.matmul %319, %298, %cst_78 {dimension_numbers = #tpu.dot_dimension_numbers<[2], [1], [1], [2], [0, 0, 0, 1, 1, 2], [0], [0]>} : vector<4x8x16xf32>, vector<4x16x32xf32>, vector<4x8x32xf32> -> vector<4x8x32xf32>
      "tpu.trace_stop"() : () -> ()
      %321 = vector.extract_strided_slice %320 {offsets = [0, 0, 0], sizes = [1, 8, 32], strides = [1, 1, 1]} : vector<4x8x32xf32> to vector<1x8x32xf32>
      %322 = vector.shape_cast %321 : vector<1x8x32xf32> to vector<8x32xf32>
      %323 = vector.extract_strided_slice %320 {offsets = [1, 0, 0], sizes = [1, 8, 32], strides = [1, 1, 1]} : vector<4x8x32xf32> to vector<1x8x32xf32>
      %324 = vector.shape_cast %323 : vector<1x8x32xf32> to vector<8x32xf32>
      %325 = vector.extract_strided_slice %320 {offsets = [2, 0, 0], sizes = [1, 8, 32], strides = [1, 1, 1]} : vector<4x8x32xf32> to vector<1x8x32xf32>
      %326 = vector.shape_cast %325 : vector<1x8x32xf32> to vector<8x32xf32>
      %327 = vector.extract_strided_slice %320 {offsets = [3, 0, 0], sizes = [1, 8, 32], strides = [1, 1, 1]} : vector<4x8x32xf32> to vector<1x8x32xf32>
      %328 = vector.shape_cast %327 : vector<1x8x32xf32> to vector<8x32xf32>
      %329 = tpu.concatenate %322, %324, %326, %328 in 1 : vector<8x32xf32>, vector<8x32xf32>, vector<8x32xf32>, vector<8x32xf32> -> vector<8x128xf32>
      %330 = tpu.concatenate %197, %329 in 0 : vector<8x128xf32>, vector<8x128xf32> -> vector<16x128xf32>
      %331 = arith.truncf %330 : vector<16x128xf32> to vector<16x128xbf16>
      %c0_79 = arith.constant 0 : index
      %c0_80 = arith.constant 0 : index
      %332 = vector.load %arg10[%c0_79, %c0_80] : memref<128x128xbf16, #tpu.memory_space<vmem>>, vector<128x128xbf16>
      %cst_81 = arith.constant dense<0.000000e+00> : vector<16x128xf32>
      %333 = tpu.matmul %331, %332, %cst_81 {dimension_numbers = #tpu.dot_dimension_numbers<[1], [0], [0], [1], [0, 0, 1, 1], [], []>} : vector<16x128xbf16>, vector<128x128xbf16>, vector<16x128xf32> -> vector<16x128xf32>
      %c0_82 = arith.constant 0 : index
      %c0_83 = arith.constant 0 : index
      %334 = vector.load %arg11[%c0_82, %c0_83] : memref<1x128xf32, #tpu.memory_space<vmem>>, vector<1x128xf32>
      %335 = vector.broadcast %334 : vector<1x128xf32> to vector<16x128xf32>
      %336 = arith.addf %333, %335 : vector<16x128xf32>
      %337 = arith.addf %33, %336 : vector<16x128xf32>
      %c0_84 = arith.constant 0 : index
      %c0_85 = arith.constant 0 : index
      %338 = vector.load %arg17[%c0_84, %c0_85] : memref<1x128xf32, #tpu.memory_space<vmem>>, vector<1x128xf32>
      %339 = vector.broadcast %338 : vector<1x128xf32> to vector<16x128xf32>
      %340 = arith.addf %337, %339 : vector<16x128xf32>
      %c0_86 = arith.constant 0 : index
      %c0_87 = arith.constant 0 : index
      %341 = vector.load %arg21[%c0_86, %c0_87] : memref<16x128xf32, #tpu.memory_space<vmem>>, vector<16x128xf32>
      tpu.vector_store %arg21[%c0_86, %c0_87], %340 {strides = array<i32>} : memref<16x128xf32, #tpu.memory_space<vmem>>, vector<16x128xf32>,
      %cst_88 = arith.constant dense<0.000000e+00> : vector<16xf32>
      %342 = vector.multi_reduction <add>, %33, %cst_88 [1] : vector<16x128xf32> to vector<16xf32>
      %343 = vector.shape_cast %342 : vector<16xf32> to vector<16x1xf32>
      %cst_89 = arith.constant 1.280000e+02 : f32
      %344 = vector.broadcast %cst_89 : f32 to vector<16x1xf32>
      %345 = arith.divf %343, %344 : vector<16x1xf32>
      %346 = vector.broadcast %345 : vector<16x1xf32> to vector<16x128xf32>
      %347 = arith.subf %33, %346 : vector<16x128xf32>
      %348 = arith.mulf %347, %347 : vector<16x128xf32>
      %cst_90 = arith.constant dense<0.000000e+00> : vector<16xf32>
      %349 = vector.multi_reduction <add>, %348, %cst_90 [1] : vector<16x128xf32> to vector<16xf32>
      %350 = vector.shape_cast %349 : vector<16xf32> to vector<16x1xf32>
      %cst_91 = arith.constant 1.280000e+02 : f32
      %351 = vector.broadcast %cst_91 : f32 to vector<16x1xf32>
      %352 = arith.divf %350, %351 : vector<16x1xf32>
      %353 = vector.broadcast %345 : vector<16x1xf32> to vector<16x128xf32>
      %354 = arith.subf %33, %353 : vector<16x128xf32>
      %cst_92 = arith.constant 9.99999974E-6 : f32
      %355 = vector.broadcast %cst_92 : f32 to vector<16x1xf32>
      %356 = arith.addf %352, %355 : vector<16x1xf32>
      %357 = math.rsqrt %356 : vector<16x1xf32>
      %358 = vector.broadcast %357 : vector<16x1xf32> to vector<16x128xf32>
      %359 = arith.mulf %354, %358 : vector<16x128xf32>
      %c0_93 = arith.constant 0 : index
      %c0_94 = arith.constant 0 : index
      %360 = vector.load %arg12[%c0_93, %c0_94] : memref<1x128xf32, #tpu.memory_space<vmem>>, vector<1x128xf32>
      %361 = vector.broadcast %360 : vector<1x128xf32> to vector<16x128xf32>
      %362 = arith.mulf %359, %361 : vector<16x128xf32>
      %c0_95 = arith.constant 0 : index
      %c0_96 = arith.constant 0 : index
      %363 = vector.load %arg13[%c0_95, %c0_96] : memref<1x128xf32, #tpu.memory_space<vmem>>, vector<1x128xf32>
      %364 = vector.broadcast %363 : vector<1x128xf32> to vector<16x128xf32>
      %365 = arith.addf %362, %364 : vector<16x128xf32>
      %c0_97 = arith.constant 0 : index
      %c0_98 = arith.constant 0 : index
      %366 = vector.load %arg22[%c0_97, %c0_98] : memref<16x128xf32, #tpu.memory_space<vmem>>, vector<16x128xf32>
      tpu.vector_store %arg22[%c0_97, %c0_98], %365 {strides = array<i32>} : memref<16x128xf32, #tpu.memory_space<vmem>>, vector<16x128xf32>,
    } else {
    }
    %c0 = arith.constant 0 : index
    %c0_1 = arith.constant 0 : index
    %3 = vector.load %arg22[%c0, %c0_1] : memref<16x128xf32, #tpu.memory_space<vmem>>, vector<16x128xf32>
    %4 = arith.truncf %3 : vector<16x128xf32> to vector<16x128xbf16>
    %c0_2 = arith.constant 0 : index
    %c0_3 = arith.constant 0 : index
    %5 = vector.load %arg14[%c0_2, %c0_3] : memref<128x256xbf16, #tpu.memory_space<vmem>>, vector<128x256xbf16>
    %cst = arith.constant dense<0.000000e+00> : vector<16x256xf32>
    %6 = tpu.matmul %4, %5, %cst {dimension_numbers = #tpu.dot_dimension_numbers<[1], [0], [0], [1], [0, 0, 1, 1], [], []>} : vector<16x128xbf16>, vector<128x256xbf16>, vector<16x256xf32> -> vector<16x256xf32>
    %c0_4 = arith.constant 0 : index
    %c0_5 = arith.constant 0 : index
    %7 = vector.load %arg15[%c0_4, %c0_5] : memref<1x256xf32, #tpu.memory_space<vmem>>, vector<1x256xf32>
    %8 = vector.broadcast %7 : vector<1x256xf32> to vector<16x256xf32>
    %9 = arith.addf %6, %8 : vector<16x256xf32>
    %cst_6 = arith.constant 5.000000e-01 : f32
    %10 = vector.broadcast %cst_6 : f32 to vector<16x256xf32>
    %11 = arith.mulf %10, %9 : vector<16x256xf32>
    %cst_7 = arith.constant 4.471500e-02 : f32
    %12 = vector.broadcast %cst_7 : f32 to vector<16x256xf32>
    %13 = arith.mulf %12, %9 : vector<16x256xf32>
    %14 = arith.mulf %13, %9 : vector<16x256xf32>
    %15 = arith.mulf %14, %9 : vector<16x256xf32>
    %16 = arith.addf %9, %15 : vector<16x256xf32>
    %cst_8 = arith.constant 0.797884583 : f32
    %17 = vector.broadcast %cst_8 : f32 to vector<16x256xf32>
    %18 = arith.mulf %17, %16 : vector<16x256xf32>
    %19 = math.tanh %18 : vector<16x256xf32>
    %cst_9 = arith.constant 1.000000e+00 : f32
    %20 = vector.broadcast %cst_9 : f32 to vector<16x256xf32>
    %21 = arith.addf %20, %19 : vector<16x256xf32>
    %22 = arith.mulf %11, %21 : vector<16x256xf32>
    %c0_10 = arith.constant 0 : index
    %c0_11 = arith.constant 0 : index
    %23 = vector.load %arg21[%c0_10, %c0_11] : memref<16x128xf32, #tpu.memory_space<vmem>>, vector<16x128xf32>
    %24 = arith.truncf %22 : vector<16x256xf32> to vector<16x256xbf16>
    %c0_12 = arith.constant 0 : index
    %c0_13 = arith.constant 0 : index
    %25 = vector.load %arg16[%c0_12, %c0_13] : memref<256x128xbf16, #tpu.memory_space<vmem>>, vector<256x128xbf16>
    %cst_14 = arith.constant dense<0.000000e+00> : vector<16x128xf32>
    %26 = tpu.matmul %24, %25, %cst_14 {dimension_numbers = #tpu.dot_dimension_numbers<[1], [0], [0], [1], [0, 0, 1, 1], [], []>} : vector<16x256xbf16>, vector<256x128xbf16>, vector<16x128xf32> -> vector<16x128xf32>
    %27 = arith.addf %23, %26 : vector<16x128xf32>
    %c0_15 = arith.constant 0 : index
    %c0_16 = arith.constant 0 : index
    %28 = vector.load %arg21[%c0_15, %c0_16] : memref<16x128xf32, #tpu.memory_space<vmem>>, vector<16x128xf32>
    tpu.vector_store %arg21[%c0_15, %c0_16], %27 {strides = array<i32>} : memref<16x128xf32, #tpu.memory_space<vmem>>, vector<16x128xf32>,
    %c1_i32 = arith.constant 1 : i32
    %29 = arith.cmpi eq, %arg0, %c1_i32 : i32
    %30 = arith.extui %29 : i1 to i32
    %c0_i32_17 = arith.constant 0 : i32
    %31 = arith.cmpi ne, %30, %c0_i32_17 : i32
    scf.if %31 {
      %c0_18 = arith.constant 0 : index
      %c0_19 = arith.constant 0 : index
      %32 = vector.load %arg21[%c0_18, %c0_19] : memref<16x128xf32, #tpu.memory_space<vmem>>, vector<16x128xf32>
      %33 = vector.shape_cast %32 : vector<16x128xf32> to vector<2x8x128xf32>
      %c0_20 = arith.constant 0 : index
      %c0_21 = arith.constant 0 : index
      %c0_22 = arith.constant 0 : index
      %34 = vector.load %arg18[%c0_20, %c0_21, %c0_22] : memref<2x8x128xf32, #tpu.memory_space<vmem>>, vector<2x8x128xf32>
      tpu.vector_store %arg18[%c0_20, %c0_21, %c0_22], %33 {strides = array<i32>} : memref<2x8x128xf32, #tpu.memory_space<vmem>>, vector<2x8x128xf32>,
    } else {
    }
    return
  }
  func.func @transform_0(%arg0: i32) -> (i32, i32, i32) {
    %c0_i32 = arith.constant 0 : i32
    %c0_i32_0 = arith.constant 0 : i32
    %c0_i32_1 = arith.constant 0 : i32
    %c0_i32_2 = arith.constant 0 : i32
    return %c0_i32, %c0_i32_0, %c0_i32_1 : i32, i32, i32
  }
  func.func @transform_1(%arg0: i32) -> (i32, i32) {
    %c0_i32 = arith.constant 0 : i32
    %c0_i32_0 = arith.constant 0 : i32
    %c0_i32_1 = arith.constant 0 : i32
    return %c0_i32, %c0_i32_0 : i32, i32
  }
  func.func @transform_2(%arg0: i32) -> (i32, i32) {
    %c0_i32 = arith.constant 0 : i32
    %c0_i32_0 = arith.constant 0 : i32
    %c0_i32_1 = arith.constant 0 : i32
    return %c0_i32, %c0_i32_0 : i32, i32
  }
  func.func @transform_3(%arg0: i32) -> (i32, i32, i32) {
    %c0_i32 = arith.constant 0 : i32
    %c0_i32_0 = arith.constant 0 : i32
    %c0_i32_1 = arith.constant 0 : i32
    %c0_i32_2 = arith.constant 0 : i32
    return %c0_i32, %c0_i32_0, %c0_i32_1 : i32, i32, i32
  }
  func.func @transform_4(%arg0: i32) -> (i32, i32, i32) {
    %c0_i32 = arith.constant 0 : i32
    %c0_i32_0 = arith.constant 0 : i32
    %c0_i32_1 = arith.constant 0 : i32
    %c0_i32_2 = arith.constant 0 : i32
    return %c0_i32, %c0_i32_0, %c0_i32_1 : i32, i32, i32
  }
  func.func @transform_5(%arg0: i32) -> (i32, i32) {
    %c0_i32 = arith.constant 0 : i32
    %c0_i32_0 = arith.constant 0 : i32
    %c0_i32_1 = arith.constant 0 : i32
    return %c0_i32, %c0_i32_0 : i32, i32
  }
  func.func @transform_6(%arg0: i32) -> (i32, i32) {
    %c0_i32 = arith.constant 0 : i32
    %c0_i32_0 = arith.constant 0 : i32
    %c0_i32_1 = arith.constant 0 : i32
    return %c0_i32, %c0_i32_0 : i32, i32
  }
  func.func @transform_7(%arg0: i32) -> (i32, i32) {
    %c0_i32 = arith.constant 0 : i32
    %c0_i32_0 = arith.constant 0 : i32
    %c0_i32_1 = arith.constant 0 : i32
    return %c0_i32, %c0_i32_0 : i32, i32
  }
  func.func @transform_8(%arg0: i32) -> (i32, i32) {
    %c0_i32 = arith.constant 0 : i32
    %c0_i32_0 = arith.constant 0 : i32
    %c0_i32_1 = arith.constant 0 : i32
    return %c0_i32, %c0_i32_0 : i32, i32
  }
  func.func @transform_9(%arg0: i32) -> (i32, i32) {
    %c0_i32 = arith.constant 0 : i32
    %c0_i32_0 = arith.constant 0 : i32
    %c0_i32_1 = arith.constant 0 : i32
    return %c0_i32, %c0_i32_0 : i32, i32
  }
  func.func @transform_10(%arg0: i32) -> (i32, i32) {
    %c0_i32 = arith.constant 0 : i32
    %c0_i32_0 = arith.constant 0 : i32
    %c0_i32_1 = arith.constant 0 : i32
    return %c0_i32, %c0_i32_0 : i32, i32
  }
  func.func @transform_11(%arg0: i32) -> (i32, i32) {
    %c0_i32 = arith.constant 0 : i32
    %c0_i32_0 = arith.constant 0 : i32
    %c0_i32_1 = arith.constant 0 : i32
    return %c0_i32, %c0_i32_0 : i32, i32
  }
  func.func @transform_12(%arg0: i32) -> (i32, i32) {
    %c0_i32 = arith.constant 0 : i32
    %c0_i32_0 = arith.constant 0 : i32
    %c0_i32_1 = arith.constant 0 : i32
    return %c0_i32, %c0_i32_0 : i32, i32
  }
  func.func @transform_13(%arg0: i32) -> (i32, i32) {
    %c0_i32 = arith.constant 0 : i32
    %c0_i32_0 = arith.constant 0 : i32
    return %c0_i32, %arg0 : i32, i32
  }
  func.func @transform_14(%arg0: i32) -> (i32, i32) {
    %c0_i32 = arith.constant 0 : i32
    %c0_i32_0 = arith.constant 0 : i32
    return %c0_i32, %arg0 : i32, i32
  }
  func.func @transform_15(%arg0: i32) -> (i32, i32) {
    %c0_i32 = arith.constant 0 : i32
    %c0_i32_0 = arith.constant 0 : i32
    return %arg0, %c0_i32 : i32, i32
  }
  func.func @transform_16(%arg0: i32) -> (i32, i32) {
    %c0_i32 = arith.constant 0 : i32
    %c0_i32_0 = arith.constant 0 : i32
    %c0_i32_1 = arith.constant 0 : i32
    return %c0_i32, %c0_i32_0 : i32, i32
  }
  func.func @transform_17(%arg0: i32) -> (i32, i32, i32) {
    %c0_i32 = arith.constant 0 : i32
    %c0_i32_0 = arith.constant 0 : i32
    %c0_i32_1 = arith.constant 0 : i32
    %c0_i32_2 = arith.constant 0 : i32
    return %c0_i32, %c0_i32_0, %c0_i32_1 : i32, i32, i32
  }
  func.func @transform_18(%arg0: i32) -> (i32, i32, i32) {
    %c0_i32 = arith.constant 0 : i32
    %c1_i32 = arith.constant 1 : i32
    %c0_i32_0 = arith.constant 0 : i32
    %c0_i32_1 = arith.constant 0 : i32
    return %c0_i32, %c1_i32, %c0_i32_0 : i32, i32, i32
  }
  func.func @transform_19(%arg0: i32) -> (i32, i32, i32) {
    %c0_i32 = arith.constant 0 : i32
    %c1_i32 = arith.constant 1 : i32
    %c0_i32_0 = arith.constant 0 : i32
    %c0_i32_1 = arith.constant 0 : i32
    return %c0_i32, %c1_i32, %c0_i32_0 : i32, i32, i32
  }
}

</mosaic_0001>

<llo_original>
// kernel: tpu_custom_call.1
$region0: #{tpu_custom_call.1}
  #allocation0 [shape = 'u32[]', space=smem, size = 0x4, offset = 0x4, fixed_abs, tag = 'smem constant byte address 0x4 - core index']
  #allocation1 [shape = 'u32[72,128]{1,0:T(1,128)}', space=vmem, size = 0x9000, scoped, tag = 'internal scratch']
  #allocation2 [shape = 'f32[16,128]{1,0:T(8,128)}', space=vmem, size = 0x2000, scoped, tag = 'scratch operand']
  #allocation3 [shape = 'f32[16,128]{1,0:T(8,128)}', space=vmem, size = 0x2000, scoped, tag = 'scratch operand']
  %s0 = inlined_call_operand.vmem [shape: f32[2,8,128], index: 0, kind: input, shape index: {}]
  %s1 = inlined_call_operand.vmem [shape: f32[8,16], index: 1, kind: input, shape index: {}]
  %s2 = inlined_call_operand.vmem [shape: f32[8,16], index: 2, kind: input, shape index: {}]
  %s3 = inlined_call_operand.hbm [shape: f32[2,16,128], index: 3, kind: input, shape index: {}, may-alias: {3,18}]
  %s4 = inlined_call_operand.hbm [shape: f32[2,16,128], index: 4, kind: input, shape index: {}, may-alias: {4,19}]
  %s5 = inlined_call_operand.vmem [shape: f32[1,128], index: 5, kind: input, shape index: {}]
  %s6 = inlined_call_operand.vmem [shape: f32[1,128], index: 6, kind: input, shape index: {}]
  %s7 = inlined_call_operand.hbm [shape: bf16[128,384], index: 7, kind: input, shape index: {}]
  %s8 = inlined_call_operand.vmem [shape: f32[1,384], index: 8, kind: input, shape index: {}]
  %s9 = inlined_call_operand.vmem [shape: bf16[128,128], index: 9, kind: input, shape index: {}]
  %s10 = inlined_call_operand.hbm [shape: f32[1,128], index: 10, kind: input, shape index: {}]
  %s11 = inlined_call_operand.hbm [shape: f32[1,128], index: 11, kind: input, shape index: {}]
  %s12 = inlined_call_operand.hbm [shape: f32[1,128], index: 12, kind: input, shape index: {}]
  %s13 = inlined_call_operand.hbm [shape: bf16[128,512], index: 13, kind: input, shape index: {}]
  %s14 = inlined_call_operand.hbm [shape: f32[1,512], index: 14, kind: input, shape index: {}]
  %s15 = inlined_call_operand.hbm [shape: bf16[512,128], index: 15, kind: input, shape index: {}]
  %s16 = inlined_call_operand.hbm [shape: f32[1,128], index: 16, kind: input, shape index: {}]
  %s17 = inlined_call_operand.hbm [shape: f32[2,8,128], index: 17, kind: output, shape index: {0}]
  %s18 = inlined_call_operand.hbm [shape: f32[2,16,128], index: 18, kind: output, shape index: {1}, may-alias: {3,18}]
  %s19 = inlined_call_operand.hbm [shape: f32[2,16,128], index: 19, kind: output, shape index: {2}, may-alias: {4,19}]
  %20 = xla_tuple %s17, %s18, %s19
  %s21 = sld [smem:[#allocation0]]
  $region165: #{tpu_custom_call.1} parent=0
    _
  %s23 = ssub.s32 1, %s21
  %s24 = scalar_select 0, %s23, %s21
  $region1: #{tpu_custom_call.1} parent=0
    #allocation4 [shape = 'u8[8192]{0}', space=vmem, size = 0x2000, scoped, tag = 'input window, operand 3, single buffered']
    #allocation5 [shape = 's32[2]{0}', space=sflag, size = 0x8, scoped, tag = 'scoped memory for tpu_custom_call.1']
    #allocation6 [shape = 's32[2]{0}', space=sflag, size = 0x8, scoped, tag = 'scoped memory for tpu_custom_call.1']
    #allocation7 [shape = 'u8[8192]{0}', space=vmem, size = 0x2000, scoped, tag = 'input window, operand 4, single buffered']
    #allocation8 [shape = 's32[1]{0}', space=sflag, size = 0x4, scoped, tag = 'scoped memory for tpu_custom_call.1']
    #allocation9 [shape = 'u8[98304]{0}', space=vmem, size = 0x18000, scoped, tag = 'input window, operand 7, single buffered']
    #allocation10 [shape = 'u8[512]{0}', space=vmem, size = 0x400, scoped, tag = 'input window, operand 10, single buffered']
    #allocation11 [shape = 's32[1]{0}', space=sflag, size = 0x4, scoped, tag = 'scoped memory for tpu_custom_call.1']
    #allocation12 [shape = 'u8[512]{0}', space=vmem, size = 0x400, scoped, tag = 'input window, operand 11, single buffered']
    #allocation13 [shape = 'u8[512]{0}', space=vmem, size = 0x400, scoped, tag = 'input window, operand 12, single buffered']
    #allocation14 [shape = 's32[1]{0}', space=sflag, size = 0x4, scoped, tag = 'scoped memory for tpu_custom_call.1']
    #allocation15 [shape = 'u8[131072]{0}', space=vmem, size = 0x20000, scoped, tag = 'input window, operand 13']
    #allocation16 [shape = 'u8[2048]{0}', space=vmem, size = 0x800, scoped, tag = 'input window, operand 14']
    #allocation17 [shape = 'u8[131072]{0}', space=vmem, size = 0x20000, scoped, tag = 'input window, operand 15']
    #allocation18 [shape = 'u8[512]{0}', space=vmem, size = 0x400, scoped, tag = 'input window, operand 16, single buffered']
    #allocation19 [shape = 'u8[8192]{0}', space=vmem, size = 0x2000, scoped, tag = 'output window, operand 0, single buffered']
    #allocation20 [shape = 'u8[8192]{0}', space=vmem, size = 0x2000, scoped, tag = 'output window, operand 1, single buffered']
    #allocation21 [shape = 's32[1]{0}', space=sflag, size = 0x4, scoped, tag = 'scoped memory for tpu_custom_call.1']
    #allocation22 [shape = 'u8[8192]{0}', space=vmem, size = 0x2000, scoped, tag = 'output window, operand 2, single buffered']
    %25 = vsyncpa [#allocation5], 0
    %26 = vsyncpa [#allocation8], 0
    %27 = vsyncpa [#allocation11], 0
    %28 = vsyncpa [#allocation14], 0
    %29 = vsyncpa [#allocation6], 0
    %30 = vsyncpa [#allocation21], 0
    loop: start=0, step=1, limit=4
    $region2: #{tpu_custom_call.1} parent=1 // loop_pre_header
      _
    $region3: #{tpu_custom_call.1} parent=1 // loop_header
      %s32 = sphi 0, %s36
      %p33 = scmp.ge.s32.totalorder %s32, 4
      %s40 = sphi 0, %s40
      %s42 = sphi 0, %s40
      %s43 = sphi 0, %s42
      %s57 = sphi 0, %s43
      %s61 = sphi 0, %s61
      %s63 = sphi 0, %s61
      %s64 = sphi 0, %s63
      %s78 = sphi 0, %s64
      %s82 = sphi 0, %s82
      %s84 = sphi 0, %s82
      %s85 = sphi 0, %s84
      %s99 = sphi 0, %s85
      %s103 = sphi 0, %s103
      %s105 = sphi 0, %s103
      %s106 = sphi 0, %s105
      %s120 = sphi 0, %s106
      %s124 = sphi 0, %s124
      %s126 = sphi 0, %s124
      %s127 = sphi 0, %s126
      %s141 = sphi 0, %s127
      %s145 = sphi 0, %s145
      %s147 = sphi 0, %s145
      %s148 = sphi 0, %s147
      %s162 = sphi 0, %s148
      %s166 = sphi 0, %s166
      %s168 = sphi 0, %s166
      %s169 = sphi 0, %s168
      %s183 = sphi 0, %s169
      %s187 = sphi 0, %s187
      %s189 = sphi 0, %s187
      %s190 = sphi 0, %s189
      %s204 = sphi 0, %s190
      %s208 = sphi 0, %s208
      %s210 = sphi 0, %s208
      %s211 = sphi 0, %s210
      %s225 = sphi 0, %s211
      %s229 = sphi 0, %s229
      %s231 = sphi 0, %s229
      %s232 = sphi 0, %s231
      %s246 = sphi 0, %s232
      %s250 = sphi 0, %s250
      %s252 = sphi 0, %s250
      %s253 = sphi 0, %s252
      %s267 = sphi 0, %s253
      %s271 = sphi 0, %s271
      %s273 = sphi 0, %s271
      %s274 = sphi 0, %s273
      %s288 = sphi 0, %s274
      %s292 = sphi 0, %s292
      %s294 = sphi 0, %s292
      %s295 = sphi 0, %s294
      %s309 = sphi 0, %s295
      %s315 = sphi 0, %s317
      %s318 = sphi 0, %s315
      %s319 = sphi 0, %s318
      %s335 = sphi 0, %s319
      %s341 = sphi 0, %s343
      %s344 = sphi 0, %s341
      %s345 = sphi 0, %s344
      %s361 = sphi 0, %s345
      %s367 = sphi 0, %s369
      %s370 = sphi 0, %s367
      %s371 = sphi 0, %s370
      %s387 = sphi 0, %s371
      %s391 = sphi 0, %s391
      %s393 = sphi 0, %s391
      %s394 = sphi 0, %s393
      %s408 = sphi 0, %s394
      %s412 = sphi 0, %s412
      %s414 = sphi 0, %s412
      %s415 = sphi 0, %s414
      %s429 = sphi 0, %s415
      %s433 = sphi 0, %s433
      %s435 = sphi 0, %s433
      %s436 = sphi 0, %s435
      %s450 = sphi 0, %s436
      %s454 = sphi 0, %s454
      %s456 = sphi 0, %s454
      %s457 = sphi 0, %s456
      %s471 = sphi 0, %s457
    $region4: #{tpu_custom_call.1} parent=1 // loop_header_branch
      %35 = sbr.rel (%p33) target = $region8
    $region5: #{tpu_custom_call.1} parent=1 // loop_body
      %s37 = ssub.s32 %s32, 1
      %s38 = ssub.s32 %s32, 2
      %s39 = sadd.s32 %s32, 1
      %s41 = sadd.s32 %s40, 1
      %p44 = scmp.eq.s32.totalorder %s32, 1
      %p45 = scmp.ne.s32.totalorder %s40, %s42
      %p46 = scmp.eq.s32.totalorder %s32, 0
      %p47 = por %p45, %p46
      %p48 = scmp.ne.s32.totalorder %s40, %s42
      %p49 = scmp.eq.s32.totalorder %s37, 1
      %p50 = por %p48, %p49
      %p51 = scmp.ne.s32.totalorder %s42, %s43
      %p52 = scmp.eq.s32.totalorder %s37, 0
      %p53 = por %p51, %p52
      %p54 = scmp.ne.s32.totalorder %s42, %s43
      %p55 = scmp.eq.s32.totalorder %s38, 1
      %p56 = por %p54, %p55
      %p58 = scmp.ne.s32.totalorder %s43, %s57
      %p59 = scmp.eq.s32.totalorder %s38, 0
      %p60 = por %p58, %p59
      %s62 = sadd.s32 %s61, 1
      %p65 = scmp.eq.s32.totalorder %s32, 1
      %p66 = scmp.ne.s32.totalorder %s61, %s63
      %p67 = scmp.eq.s32.totalorder %s32, 0
      %p68 = por %p66, %p67
      %p69 = scmp.ne.s32.totalorder %s61, %s63
      %p70 = scmp.eq.s32.totalorder %s37, 1
      %p71 = por %p69, %p70
      %p72 = scmp.ne.s32.totalorder %s63, %s64
      %p73 = scmp.eq.s32.totalorder %s37, 0
      %p74 = por %p72, %p73
      %p75 = scmp.ne.s32.totalorder %s63, %s64
      %p76 = scmp.eq.s32.totalorder %s38, 1
      %p77 = por %p75, %p76
      %p79 = scmp.ne.s32.totalorder %s64, %s78
      %p80 = scmp.eq.s32.totalorder %s38, 0
      %p81 = por %p79, %p80
      %s83 = sadd.s32 %s82, 1
      %p86 = scmp.eq.s32.totalorder %s32, 1
      %p87 = scmp.ne.s32.totalorder %s82, %s84
      %p88 = scmp.eq.s32.totalorder %s32, 0
      %p89 = por %p87, %p88
      %p90 = scmp.ne.s32.totalorder %s82, %s84
      %p91 = scmp.eq.s32.totalorder %s37, 1
      %p92 = por %p90, %p91
      %p93 = scmp.ne.s32.totalorder %s84, %s85
      %p94 = scmp.eq.s32.totalorder %s37, 0
      %p95 = por %p93, %p94
      %p96 = scmp.ne.s32.totalorder %s84, %s85
      %p97 = scmp.eq.s32.totalorder %s38, 1
      %p98 = por %p96, %p97
      %p100 = scmp.ne.s32.totalorder %s85, %s99
      %p101 = scmp.eq.s32.totalorder %s38, 0
      %p102 = por %p100, %p101
      %s104 = sadd.s32 %s103, 1
      %p107 = scmp.eq.s32.totalorder %s32, 1
      %p108 = scmp.ne.s32.totalorder %s103, %s105
      %p109 = scmp.eq.s32.totalorder %s32, 0
      %p110 = por %p108, %p109
      %p111 = scmp.ne.s32.totalorder %s103, %s105
      %p112 = scmp.eq.s32.totalorder %s37, 1
      %p113 = por %p111, %p112
      %p114 = scmp.ne.s32.totalorder %s105, %s106
      %p115 = scmp.eq.s32.totalorder %s37, 0
      %p116 = por %p114, %p115
      %p117 = scmp.ne.s32.totalorder %s105, %s106
      %p118 = scmp.eq.s32.totalorder %s38, 1
      %p119 = por %p117, %p118
      %p121 = scmp.ne.s32.totalorder %s106, %s120
      %p122 = scmp.eq.s32.totalorder %s38, 0
      %p123 = por %p121, %p122
      %s125 = sadd.s32 %s124, 1
      %p128 = scmp.eq.s32.totalorder %s32, 1
      %p129 = scmp.ne.s32.totalorder %s124, %s126
      %p130 = scmp.eq.s32.totalorder %s32, 0
      %p131 = por %p129, %p130
      %p132 = scmp.ne.s32.totalorder %s124, %s126
      %p133 = scmp.eq.s32.totalorder %s37, 1
      %p134 = por %p132, %p133
      %p135 = scmp.ne.s32.totalorder %s126, %s127
      %p136 = scmp.eq.s32.totalorder %s37, 0
      %p137 = por %p135, %p136
      %p138 = scmp.ne.s32.totalorder %s126, %s127
      %p139 = scmp.eq.s32.totalorder %s38, 1
      %p140 = por %p138, %p139
      %p142 = scmp.ne.s32.totalorder %s127, %s141
      %p143 = scmp.eq.s32.totalorder %s38, 0
      %p144 = por %p142, %p143
      %s146 = sadd.s32 %s145, 1
      %p149 = scmp.eq.s32.totalorder %s32, 1
      %p150 = scmp.ne.s32.totalorder %s145, %s147
      %p151 = scmp.eq.s32.totalorder %s32, 0
      %p152 = por %p150, %p151
      %p153 = scmp.ne.s32.totalorder %s145, %s147
      %p154 = scmp.eq.s32.totalorder %s37, 1
      %p155 = por %p153, %p154
      %p156 = scmp.ne.s32.totalorder %s147, %s148
      %p157 = scmp.eq.s32.totalorder %s37, 0
      %p158 = por %p156, %p157
      %p159 = scmp.ne.s32.totalorder %s147, %s148
      %p160 = scmp.eq.s32.totalorder %s38, 1
      %p161 = por %p159, %p160
      %p163 = scmp.ne.s32.totalorder %s148, %s162
      %p164 = scmp.eq.s32.totalorder %s38, 0
      %p165 = por %p163, %p164
      %s167 = sadd.s32 %s166, 1
      %p170 = scmp.eq.s32.totalorder %s32, 1
      %p171 = scmp.ne.s32.totalorder %s166, %s168
      %p172 = scmp.eq.s32.totalorder %s32, 0
      %p173 = por %p171, %p172
      %p174 = scmp.ne.s32.totalorder %s166, %s168
      %p175 = scmp.eq.s32.totalorder %s37, 1
      %p176 = por %p174, %p175
      %p177 = scmp.ne.s32.totalorder %s168, %s169
      %p178 = scmp.eq.s32.totalorder %s37, 0
      %p179 = por %p177, %p178
      %p180 = scmp.ne.s32.totalorder %s168, %s169
      %p181 = scmp.eq.s32.totalorder %s38, 1
      %p182 = por %p180, %p181
      %p184 = scmp.ne.s32.totalorder %s169, %s183
      %p185 = scmp.eq.s32.totalorder %s38, 0
      %p186 = por %p184, %p185
      %s188 = sadd.s32 %s187, 1
      %p191 = scmp.eq.s32.totalorder %s32, 1
      %p192 = scmp.ne.s32.totalorder %s187, %s189
      %p193 = scmp.eq.s32.totalorder %s32, 0
      %p194 = por %p192, %p193
      %p195 = scmp.ne.s32.totalorder %s187, %s189
      %p196 = scmp.eq.s32.totalorder %s37, 1
      %p197 = por %p195, %p196
      %p198 = scmp.ne.s32.totalorder %s189, %s190
      %p199 = scmp.eq.s32.totalorder %s37, 0
      %p200 = por %p198, %p199
      %p201 = scmp.ne.s32.totalorder %s189, %s190
      %p202 = scmp.eq.s32.totalorder %s38, 1
      %p203 = por %p201, %p202
      %p205 = scmp.ne.s32.totalorder %s190, %s204
      %p206 = scmp.eq.s32.totalorder %s38, 0
      %p207 = por %p205, %p206
      %s209 = sadd.s32 %s208, 1
      %p212 = scmp.eq.s32.totalorder %s32, 1
      %p213 = scmp.ne.s32.totalorder %s208, %s210
      %p214 = scmp.eq.s32.totalorder %s32, 0
      %p215 = por %p213, %p214
      %p216 = scmp.ne.s32.totalorder %s208, %s210
      %p217 = scmp.eq.s32.totalorder %s37, 1
      %p218 = por %p216, %p217
      %p219 = scmp.ne.s32.totalorder %s210, %s211
      %p220 = scmp.eq.s32.totalorder %s37, 0
      %p221 = por %p219, %p220
      %p222 = scmp.ne.s32.totalorder %s210, %s211
      %p223 = scmp.eq.s32.totalorder %s38, 1
      %p224 = por %p222, %p223
      %p226 = scmp.ne.s32.totalorder %s211, %s225
      %p227 = scmp.eq.s32.totalorder %s38, 0
      %p228 = por %p226, %p227
      %s230 = sadd.s32 %s229, 1
      %p233 = scmp.eq.s32.totalorder %s32, 1
      %p234 = scmp.ne.s32.totalorder %s229, %s231
      %p235 = scmp.eq.s32.totalorder %s32, 0
      %p236 = por %p234, %p235
      %p237 = scmp.ne.s32.totalorder %s229, %s231
      %p238 = scmp.eq.s32.totalorder %s37, 1
      %p239 = por %p237, %p238
      %p240 = scmp.ne.s32.totalorder %s231, %s232
      %p241 = scmp.eq.s32.totalorder %s37, 0
      %p242 = por %p240, %p241
      %p243 = scmp.ne.s32.totalorder %s231, %s232
      %p244 = scmp.eq.s32.totalorder %s38, 1
      %p245 = por %p243, %p244
      %p247 = scmp.ne.s32.totalorder %s232, %s246
      %p248 = scmp.eq.s32.totalorder %s38, 0
      %p249 = por %p247, %p248
      %s251 = sadd.s32 %s250, 1
      %p254 = scmp.eq.s32.totalorder %s32, 1
      %p255 = scmp.ne.s32.totalorder %s250, %s252
      %p256 = scmp.eq.s32.totalorder %s32, 0
      %p257 = por %p255, %p256
      %p258 = scmp.ne.s32.totalorder %s250, %s252
      %p259 = scmp.eq.s32.totalorder %s37, 1
      %p260 = por %p258, %p259
      %p261 = scmp.ne.s32.totalorder %s252, %s253
      %p262 = scmp.eq.s32.totalorder %s37, 0
      %p263 = por %p261, %p262
      %p264 = scmp.ne.s32.totalorder %s252, %s253
      %p265 = scmp.eq.s32.totalorder %s38, 1
      %p266 = por %p264, %p265
      %p268 = scmp.ne.s32.totalorder %s253, %s267
      %p269 = scmp.eq.s32.totalorder %s38, 0
      %p270 = por %p268, %p269
      %s272 = sadd.s32 %s271, 1
      %p275 = scmp.eq.s32.totalorder %s32, 1
      %p276 = scmp.ne.s32.totalorder %s271, %s273
      %p277 = scmp.eq.s32.totalorder %s32, 0
      %p278 = por %p276, %p277
      %p279 = scmp.ne.s32.totalorder %s271, %s273
      %p280 = scmp.eq.s32.totalorder %s37, 1
      %p281 = por %p279, %p280
      %p282 = scmp.ne.s32.totalorder %s273, %s274
      %p283 = scmp.eq.s32.totalorder %s37, 0
      %p284 = por %p282, %p283
      %p285 = scmp.ne.s32.totalorder %s273, %s274
      %p286 = scmp.eq.s32.totalorder %s38, 1
      %p287 = por %p285, %p286
      %p289 = scmp.ne.s32.totalorder %s274, %s288
      %p290 = scmp.eq.s32.totalorder %s38, 0
      %p291 = por %p289, %p290
      %s293 = sadd.s32 %s292, 1
      %p296 = scmp.eq.s32.totalorder %s32, 1
      %p297 = scmp.ne.s32.totalorder %s292, %s294
      %p298 = scmp.eq.s32.totalorder %s32, 0
      %p299 = por %p297, %p298
      %p300 = scmp.ne.s32.totalorder %s292, %s294
      %p301 = scmp.eq.s32.totalorder %s37, 1
      %p302 = por %p300, %p301
      %p303 = scmp.ne.s32.totalorder %s294, %s295
      %p304 = scmp.eq.s32.totalorder %s37, 0
      %p305 = por %p303, %p304
      %p306 = scmp.ne.s32.totalorder %s294, %s295
      %p307 = scmp.eq.s32.totalorder %s38, 1
      %p308 = por %p306, %p307
      %p310 = scmp.ne.s32.totalorder %s295, %s309
      %p311 = scmp.eq.s32.totalorder %s38, 0
      %p312 = por %p310, %p311
      %s313 = ssub.s32 %s32, %s39
      %p314 = scmp.eq.s32.totalorder %s313, 0
      %s316 = sadd.s32 %s315, 1
      %s317 = scalar_select %p314, %s315, %s316
      %p320 = pneg %p314
      %p321 = scmp.eq.s32.totalorder %s32, 1
      %p322 = por %p320, %p321
      %p323 = scmp.ne.s32.totalorder %s315, %s318
      %p324 = scmp.eq.s32.totalorder %s32, 0
      %p325 = por %p323, %p324
      %p326 = scmp.ne.s32.totalorder %s315, %s318
      %p327 = scmp.eq.s32.totalorder %s37, 1
      %p328 = por %p326, %p327
      %p329 = scmp.ne.s32.totalorder %s318, %s319
      %p330 = scmp.eq.s32.totalorder %s37, 0
      %p331 = por %p329, %p330
      %p332 = scmp.ne.s32.totalorder %s318, %s319
      %p333 = scmp.eq.s32.totalorder %s38, 1
      %p334 = por %p332, %p333
      %p336 = scmp.ne.s32.totalorder %s319, %s335
      %p337 = scmp.eq.s32.totalorder %s38, 0
      %p338 = por %p336, %p337
      %s339 = ssub.s32 %s32, %s39
      %p340 = scmp.eq.s32.totalorder %s339, 0
      %s342 = sadd.s32 %s341, 1
      %s343 = scalar_select %p340, %s341, %s342
      %p346 = pneg %p340
      %p347 = scmp.eq.s32.totalorder %s32, 1
      %p348 = por %p346, %p347
      %p349 = scmp.ne.s32.totalorder %s341, %s344
      %p350 = scmp.eq.s32.totalorder %s32, 0
      %p351 = por %p349, %p350
      %p352 = scmp.ne.s32.totalorder %s341, %s344
      %p353 = scmp.eq.s32.totalorder %s37, 1
      %p354 = por %p352, %p353
      %p355 = scmp.ne.s32.totalorder %s344, %s345
      %p356 = scmp.eq.s32.totalorder %s37, 0
      %p357 = por %p355, %p356
      %p358 = scmp.ne.s32.totalorder %s344, %s345
      %p359 = scmp.eq.s32.totalorder %s38, 1
      %p360 = por %p358, %p359
      %p362 = scmp.ne.s32.totalorder %s345, %s361
      %p363 = scmp.eq.s32.totalorder %s38, 0
      %p364 = por %p362, %p363
      %s365 = ssub.s32 %s32, %s39
      %p366 = scmp.eq.s32.totalorder %s365, 0
      %s368 = sadd.s32 %s367, 1
      %s369 = scalar_select %p366, %s367, %s368
      %p372 = pneg %p366
      %p373 = scmp.eq.s32.totalorder %s32, 1
      %p374 = por %p372, %p373
      %p375 = scmp.ne.s32.totalorder %s367, %s370
      %p376 = scmp.eq.s32.totalorder %s32, 0
      %p377 = por %p375, %p376
      %p378 = scmp.ne.s32.totalorder %s367, %s370
      %p379 = scmp.eq.s32.totalorder %s37, 1
      %p380 = por %p378, %p379
      %p381 = scmp.ne.s32.totalorder %s370, %s371
      %p382 = scmp.eq.s32.totalorder %s37, 0
      %p383 = por %p381, %p382
      %p384 = scmp.ne.s32.totalorder %s370, %s371
      %p385 = scmp.eq.s32.totalorder %s38, 1
      %p386 = por %p384, %p385
      %p388 = scmp.ne.s32.totalorder %s371, %s387
      %p389 = scmp.eq.s32.totalorder %s38, 0
      %p390 = por %p388, %p389
      %s392 = sadd.s32 %s391, 1
      %p395 = scmp.eq.s32.totalorder %s32, 1
      %p396 = scmp.ne.s32.totalorder %s391, %s393
      %p397 = scmp.eq.s32.totalorder %s32, 0
      %p398 = por %p396, %p397
      %p399 = scmp.ne.s32.totalorder %s391, %s393
      %p400 = scmp.eq.s32.totalorder %s37, 1
      %p401 = por %p399, %p400
      %p402 = scmp.ne.s32.totalorder %s393, %s394
      %p403 = scmp.eq.s32.totalorder %s37, 0
      %p404 = por %p402, %p403
      %p405 = scmp.ne.s32.totalorder %s393, %s394
      %p406 = scmp.eq.s32.totalorder %s38, 1
      %p407 = por %p405, %p406
      %p409 = scmp.ne.s32.totalorder %s394, %s408
      %p410 = scmp.eq.s32.totalorder %s38, 0
      %p411 = por %p409, %p410
      %s413 = sadd.s32 %s412, 1
      %p416 = scmp.eq.s32.totalorder %s32, 1
      %p417 = scmp.ne.s32.totalorder %s412, %s414
      %p418 = scmp.eq.s32.totalorder %s32, 0
      %p419 = por %p417, %p418
      %p420 = scmp.ne.s32.totalorder %s412, %s414
      %p421 = scmp.eq.s32.totalorder %s37, 1
      %p422 = por %p420, %p421
      %p423 = scmp.ne.s32.totalorder %s414, %s415
      %p424 = scmp.eq.s32.totalorder %s37, 0
      %p425 = por %p423, %p424
      %p426 = scmp.ne.s32.totalorder %s414, %s415
      %p427 = scmp.eq.s32.totalorder %s38, 1
      %p428 = por %p426, %p427
      %p430 = scmp.ne.s32.totalorder %s415, %s429
      %p431 = scmp.eq.s32.totalorder %s38, 0
      %p432 = por %p430, %p431
      %s434 = sadd.s32 %s433, 1
      %p437 = scmp.eq.s32.totalorder %s32, 1
      %p438 = scmp.ne.s32.totalorder %s433, %s435
      %p439 = scmp.eq.s32.totalorder %s32, 0
      %p440 = por %p438, %p439
      %p441 = scmp.ne.s32.totalorder %s433, %s435
      %p442 = scmp.eq.s32.totalorder %s37, 1
      %p443 = por %p441, %p442
      %p444 = scmp.ne.s32.totalorder %s435, %s436
      %p445 = scmp.eq.s32.totalorder %s37, 0
      %p446 = por %p444, %p445
      %p447 = scmp.ne.s32.totalorder %s435, %s436
      %p448 = scmp.eq.s32.totalorder %s38, 1
      %p449 = por %p447, %p448
      %p451 = scmp.ne.s32.totalorder %s436, %s450
      %p452 = scmp.eq.s32.totalorder %s38, 0
      %p453 = por %p451, %p452
      %s455 = sadd.s32 %s454, 1
      %p458 = scmp.eq.s32.totalorder %s32, 1
      %p459 = scmp.ne.s32.totalorder %s454, %s456
      %p460 = scmp.eq.s32.totalorder %s32, 0
      %p461 = por %p459, %p460
      %p462 = scmp.ne.s32.totalorder %s454, %s456
      %p463 = scmp.eq.s32.totalorder %s37, 1
      %p464 = por %p462, %p463
      %p465 = scmp.ne.s32.totalorder %s456, %s457
      %p466 = scmp.eq.s32.totalorder %s37, 0
      %p467 = por %p465, %p466
      %p468 = scmp.ne.s32.totalorder %s456, %s457
      %p469 = scmp.eq.s32.totalorder %s38, 1
      %p470 = por %p468, %p469
      %p472 = scmp.ne.s32.totalorder %s457, %s471
      %p473 = scmp.eq.s32.totalorder %s38, 0
      %p474 = por %p472, %p473
      %p475 = scmp.le.s32.totalorder 1, %s32
      %p476 = scmp.lt.s32.totalorder %s32, 3
      %p477 = pnand %p475, %p476
      %p478 = pneg %p477
      // Predicated region
      $region9: #{tpu_custom_call.1} parent=5 // pred_check
        _
      $region10: #{tpu_custom_call.1} parent=5 // pred_check_branch
        %480 = sbr.rel (%p477) target = $region12
      $region11: #{tpu_custom_call.1} parent=5 // pred_region
        %s481 = ssub.s32 %s32, 1
        // Predicated region
        $region13: #{tpu_custom_call.1} parent=11 // pred_check
          %p482 = pneg %p53
        $region14: #{tpu_custom_call.1} parent=11 // pred_check_branch
          %484 = sbr.rel (%p482) target = $region16
        $region15: #{tpu_custom_call.1} parent=11 // pred_region
          _
        $region16: #{tpu_custom_call.1} parent=11 // pred_fallthru
          _
        // Predicated region
        $region17: #{tpu_custom_call.1} parent=11 // pred_check
          %p485 = pneg %p74
        $region18: #{tpu_custom_call.1} parent=11 // pred_check_branch
          %487 = sbr.rel (%p485) target = $region20
        $region19: #{tpu_custom_call.1} parent=11 // pred_region
          _
        $region20: #{tpu_custom_call.1} parent=11 // pred_fallthru
          _
        // Predicated region
        $region21: #{tpu_custom_call.1} parent=11 // pred_check
          %p488 = pneg %p95
        $region22: #{tpu_custom_call.1} parent=11 // pred_check_branch
          %490 = sbr.rel (%p488) target = $region24
        $region23: #{tpu_custom_call.1} parent=11 // pred_region
          _
        $region24: #{tpu_custom_call.1} parent=11 // pred_fallthru
          _
        // Predicated region
        $region25: #{tpu_custom_call.1} parent=11 // pred_check
          %p491 = pneg %p116
        $region26: #{tpu_custom_call.1} parent=11 // pred_check_branch
          %493 = sbr.rel (%p491) target = $region28
        $region27: #{tpu_custom_call.1} parent=11 // pred_region
          %495 = vsyncadd [#allocation5], 0
          %s496 = sshll.u32 %s3, 4
          %s497 = int_to_ptr.hbm [resolvable:$true] %s496
          %s498 = sshll.u32 [#allocation4], 4
          %s499 = int_to_ptr.vmem [resolvable:$true] %s498
          %504 = dma.hbm_to_vmem [thread:$0]  %s497, 256, %s499, [#allocation5], 256, 128, 8
        $region28: #{tpu_custom_call.1} parent=11 // pred_fallthru
          _
        // Predicated region
        $region29: #{tpu_custom_call.1} parent=11 // pred_check
          %p505 = pneg %p137
        $region30: #{tpu_custom_call.1} parent=11 // pred_check_branch
          %507 = sbr.rel (%p505) target = $region32
        $region31: #{tpu_custom_call.1} parent=11 // pred_region
          %509 = vsyncadd [#allocation8], 0
          %s510 = sshll.u32 %s4, 4
          %s511 = int_to_ptr.hbm [resolvable:$true] %s510
          %s512 = sshll.u32 [#allocation7], 4
          %s513 = int_to_ptr.vmem [resolvable:$true] %s512
          %518 = dma.hbm_to_vmem [thread:$0]  %s511, 256, %s513, [#allocation8], 256, 128, 8
        $region32: #{tpu_custom_call.1} parent=11 // pred_fallthru
          _
        // Predicated region
        $region33: #{tpu_custom_call.1} parent=11 // pred_check
          %p519 = pneg %p158
        $region34: #{tpu_custom_call.1} parent=11 // pred_check_branch
          %521 = sbr.rel (%p519) target = $region36
        $region35: #{tpu_custom_call.1} parent=11 // pred_region
          _
        $region36: #{tpu_custom_call.1} parent=11 // pred_fallthru
          _
        // Predicated region
        $region37: #{tpu_custom_call.1} parent=11 // pred_check
          %p522 = pneg %p179
        $region38: #{tpu_custom_call.1} parent=11 // pred_check_branch
          %524 = sbr.rel (%p522) target = $region40
        $region39: #{tpu_custom_call.1} parent=11 // pred_region
          _
        $region40: #{tpu_custom_call.1} parent=11 // pred_fallthru
          _
        // Predicated region
        $region41: #{tpu_custom_call.1} parent=11 // pred_check
          %p525 = pneg %p200
        $region42: #{tpu_custom_call.1} parent=11 // pred_check_branch
          %527 = sbr.rel (%p525) target = $region44
        $region43: #{tpu_custom_call.1} parent=11 // pred_region
          %529 = vsyncadd [#allocation8], 0
          %s530 = sshll.u32 %s7, 4
          %s531 = int_to_ptr.hbm [resolvable:$true] %s530
          %s532 = sshll.u32 [#allocation9], 4
          %s533 = int_to_ptr.vmem [resolvable:$true] %s532
          %538 = dma.hbm_to_vmem [thread:$0]  %s531, 3072, %s533, [#allocation8], 192, 192, 12
        $region44: #{tpu_custom_call.1} parent=11 // pred_fallthru
          _
        // Predicated region
        $region45: #{tpu_custom_call.1} parent=11 // pred_check
          %p539 = pneg %p221
        $region46: #{tpu_custom_call.1} parent=11 // pred_check_branch
          %541 = sbr.rel (%p539) target = $region48
        $region47: #{tpu_custom_call.1} parent=11 // pred_region
          _
        $region48: #{tpu_custom_call.1} parent=11 // pred_fallthru
          _
        // Predicated region
        $region49: #{tpu_custom_call.1} parent=11 // pred_check
          %p542 = pneg %p242
        $region50: #{tpu_custom_call.1} parent=11 // pred_check_branch
          %544 = sbr.rel (%p542) target = $region52
        $region51: #{tpu_custom_call.1} parent=11 // pred_region
          _
        $region52: #{tpu_custom_call.1} parent=11 // pred_fallthru
          _
        // Predicated region
        $region53: #{tpu_custom_call.1} parent=11 // pred_check
          %p545 = pneg %p263
        $region54: #{tpu_custom_call.1} parent=11 // pred_check_branch
          %547 = sbr.rel (%p545) target = $region56
        $region55: #{tpu_custom_call.1} parent=11 // pred_region
          %549 = vsyncadd [#allocation11], 0
          %s551 = sshll.u32 %s10, 4
          %s552 = int_to_ptr.hbm [resolvable:$true] %s551
          %s553 = sshll.u32 [#allocation10], 4
          %s554 = int_to_ptr.vmem [resolvable:$true] %s553
          %556 = dma.hbm_to_vmem [thread:$0]  %s552, 16, %s554, [#allocation11]
        $region56: #{tpu_custom_call.1} parent=11 // pred_fallthru
          _
        // Predicated region
        $region57: #{tpu_custom_call.1} parent=11 // pred_check
          %p557 = pneg %p284
        $region58: #{tpu_custom_call.1} parent=11 // pred_check_branch
          %559 = sbr.rel (%p557) target = $region60
        $region59: #{tpu_custom_call.1} parent=11 // pred_region
          %561 = vsyncadd [#allocation11], 0
          %s563 = sshll.u32 %s11, 4
          %s564 = int_to_ptr.hbm [resolvable:$true] %s563
          %s565 = sshll.u32 [#allocation12], 4
          %s566 = int_to_ptr.vmem [resolvable:$true] %s565
          %568 = dma.hbm_to_vmem [thread:$0]  %s564, 16, %s566, [#allocation11]
        $region60: #{tpu_custom_call.1} parent=11 // pred_fallthru
          _
        // Predicated region
        $region61: #{tpu_custom_call.1} parent=11 // pred_check
          %p569 = pneg %p305
        $region62: #{tpu_custom_call.1} parent=11 // pred_check_branch
          %571 = sbr.rel (%p569) target = $region64
        $region63: #{tpu_custom_call.1} parent=11 // pred_region
          %573 = vsyncadd [#allocation14], 0
          %s575 = sshll.u32 %s12, 4
          %s576 = int_to_ptr.hbm [resolvable:$true] %s575
          %s577 = sshll.u32 [#allocation13], 4
          %s578 = int_to_ptr.vmem [resolvable:$true] %s577
          %580 = dma.hbm_to_vmem [thread:$0]  %s576, 16, %s578, [#allocation14]
        $region64: #{tpu_custom_call.1} parent=11 // pred_fallthru
          _
        // Predicated region
        $region65: #{tpu_custom_call.1} parent=11 // pred_check
          %p581 = pneg %p404
        $region66: #{tpu_custom_call.1} parent=11 // pred_check_branch
          %583 = sbr.rel (%p581) target = $region68
        $region67: #{tpu_custom_call.1} parent=11 // pred_region
          %585 = vsyncadd [#allocation8], 0
          %s587 = sshll.u32 %s16, 4
          %s588 = int_to_ptr.hbm [resolvable:$true] %s587
          %s589 = sshll.u32 [#allocation18], 4
          %s590 = int_to_ptr.vmem [resolvable:$true] %s589
          %592 = dma.hbm_to_vmem [thread:$0]  %s588, 16, %s590, [#allocation8]
        $region68: #{tpu_custom_call.1} parent=11 // pred_fallthru
          _
      $region12: #{tpu_custom_call.1} parent=5 // pred_fallthru
        _
      %p593 = scmp.lt.s32.totalorder %s32, 2
      // Predicated region
      $region69: #{tpu_custom_call.1} parent=5 // pred_check
        %p594 = pneg %p593
      $region70: #{tpu_custom_call.1} parent=5 // pred_check_branch
        %596 = sbr.rel (%p594) target = $region72
      $region71: #{tpu_custom_call.1} parent=5 // pred_region
        // Predicated region
        $region73: #{tpu_custom_call.1} parent=71 // pred_check
          %p597 = pneg %p325
        $region74: #{tpu_custom_call.1} parent=71 // pred_check_branch
          %599 = sbr.rel (%p597) target = $region76
        $region75: #{tpu_custom_call.1} parent=71 // pred_region
          %s600 = sand.u32 %s32, 1
          %s601 = scalar_lea.sflag [#allocation5], %s600
          %s602 = sand.u32 %s315, 1
          %s603 = smul.addr %s602, 128
          %s604 = scalar_lea.vmem [#allocation15], %s603
          %s605 = smul.u32 2, %s32
          %607 = vsyncadd %s601, 0
          %s608 = smul.addr %s605, 4
          %s609 = scalar_lea.hbm %s13, %s608
          %s610 = sshll.u32 %s609, 4
          %s611 = int_to_ptr.hbm [resolvable:$true] %s610
          %s612 = sshll.u32 %s604, 4
          %s613 = int_to_ptr.vmem [resolvable:$true] %s612
          %618 = dma.hbm_to_vmem [thread:$0]  %s611, 2048, %s613, %s601, 256, 128, 8
        $region76: #{tpu_custom_call.1} parent=71 // pred_fallthru
          _
        // Predicated region
        $region77: #{tpu_custom_call.1} parent=71 // pred_check
          %p619 = pneg %p351
        $region78: #{tpu_custom_call.1} parent=71 // pred_check_branch
          %621 = sbr.rel (%p619) target = $region80
        $region79: #{tpu_custom_call.1} parent=71 // pred_region
          %s622 = sand.u32 %s32, 1
          %s623 = scalar_lea.sflag [#allocation5], %s622
          %s624 = sand.u32 %s341, 1
          %s625 = smul.addr %s624, 2
          %s626 = scalar_lea.vmem [#allocation16], %s625
          %s627 = smul.u32 2, %s32
          %629 = vsyncadd %s623, 0
          %s630 = scalar_lea.hbm %s14, %s627
          %s632 = sshll.u32 %s630, 4
          %s633 = int_to_ptr.hbm [resolvable:$true] %s632
          %s634 = sshll.u32 %s626, 4
          %s635 = int_to_ptr.vmem [resolvable:$true] %s634
          %637 = dma.hbm_to_vmem [thread:$0]  %s633, 32, %s635, %s623
        $region80: #{tpu_custom_call.1} parent=71 // pred_fallthru
          _
        // Predicated region
        $region81: #{tpu_custom_call.1} parent=71 // pred_check
          %p638 = pneg %p377
        $region82: #{tpu_custom_call.1} parent=71 // pred_check_branch
          %640 = sbr.rel (%p638) target = $region84
        $region83: #{tpu_custom_call.1} parent=71 // pred_region
          %s641 = sand.u32 %s32, 1
          %s642 = scalar_lea.sflag [#allocation5], %s641
          %s643 = sand.u32 %s367, 1
          %s644 = smul.addr %s643, 128
          %s645 = scalar_lea.vmem [#allocation17], %s644
          %s646 = smul.u32 32, %s32
          %648 = vsyncadd %s642, 0
          %s649 = smul.addr %s646, 4
          %s650 = scalar_lea.hbm %s15, %s649
          %s651 = sshll.u32 %s650, 4
          %s652 = int_to_ptr.hbm [resolvable:$true] %s651
          %s653 = sshll.u32 %s645, 4
          %s654 = int_to_ptr.vmem [resolvable:$true] %s653
          %659 = dma.hbm_to_vmem [thread:$0]  %s652, 2048, %s654, %s642, 64, 64, 4
        $region84: #{tpu_custom_call.1} parent=71 // pred_fallthru
          _
      $region72: #{tpu_custom_call.1} parent=5 // pred_fallthru
        _
      %p660 = scmp.le.s32.totalorder 1, %s32
      %p661 = scmp.lt.s32.totalorder %s32, 3
      %p662 = pnand %p660, %p661
      %p663 = pneg %p662
      // Predicated region
      $region85: #{tpu_custom_call.1} parent=5 // pred_check
        _
      $region86: #{tpu_custom_call.1} parent=5 // pred_check_branch
        %665 = sbr.rel (%p662) target = $region88
      $region87: #{tpu_custom_call.1} parent=5 // pred_region
        %s666 = ssub.s32 %s32, 1
        // Predicated region
        $region89: #{tpu_custom_call.1} parent=87 // pred_check
          %p667 = pneg %p116
        $region90: #{tpu_custom_call.1} parent=87 // pred_check_branch
          %669 = sbr.rel (%p667) target = $region92
        $region91: #{tpu_custom_call.1} parent=87 // pred_region
          %671 = dma.done [#allocation5], 256
        $region92: #{tpu_custom_call.1} parent=87 // pred_fallthru
          _
        // Predicated region
        $region93: #{tpu_custom_call.1} parent=87 // pred_check
          %p672 = pneg %p137
        $region94: #{tpu_custom_call.1} parent=87 // pred_check_branch
          %674 = sbr.rel (%p672) target = $region96
        $region95: #{tpu_custom_call.1} parent=87 // pred_region
          %676 = dma.done [#allocation8], 256
        $region96: #{tpu_custom_call.1} parent=87 // pred_fallthru
          _
        // Predicated region
        $region97: #{tpu_custom_call.1} parent=87 // pred_check
          %p677 = pneg %p200
        $region98: #{tpu_custom_call.1} parent=87 // pred_check_branch
          %679 = sbr.rel (%p677) target = $region100
        $region99: #{tpu_custom_call.1} parent=87 // pred_region
          %681 = dma.done [#allocation8], 3072
        $region100: #{tpu_custom_call.1} parent=87 // pred_fallthru
          _
        // Predicated region
        $region101: #{tpu_custom_call.1} parent=87 // pred_check
          %p682 = pneg %p263
        $region102: #{tpu_custom_call.1} parent=87 // pred_check_branch
          %684 = sbr.rel (%p682) target = $region104
        $region103: #{tpu_custom_call.1} parent=87 // pred_region
          %686 = dma.done [#allocation11], 16
        $region104: #{tpu_custom_call.1} parent=87 // pred_fallthru
          _
        // Predicated region
        $region105: #{tpu_custom_call.1} parent=87 // pred_check
          %p687 = pneg %p284
        $region106: #{tpu_custom_call.1} parent=87 // pred_check_branch
          %689 = sbr.rel (%p687) target = $region108
        $region107: #{tpu_custom_call.1} parent=87 // pred_region
          %691 = dma.done [#allocation11], 16
        $region108: #{tpu_custom_call.1} parent=87 // pred_fallthru
          _
        // Predicated region
        $region109: #{tpu_custom_call.1} parent=87 // pred_check
          %p692 = pneg %p305
        $region110: #{tpu_custom_call.1} parent=87 // pred_check_branch
          %694 = sbr.rel (%p692) target = $region112
        $region111: #{tpu_custom_call.1} parent=87 // pred_region
          %696 = dma.done [#allocation14], 16
        $region112: #{tpu_custom_call.1} parent=87 // pred_fallthru
          _
        %s697 = sand.u32 %s37, 1
        %s698 = scalar_lea.sflag [#allocation5], %s697
        %s699 = sand.u32 %s318, 1
        %s700 = smul.addr %s699, 128
        %s701 = scalar_lea.vmem [#allocation15], %s700
        // Predicated region
        $region113: #{tpu_custom_call.1} parent=87 // pred_check
          %p702 = pneg %p331
        $region114: #{tpu_custom_call.1} parent=87 // pred_check_branch
          %704 = sbr.rel (%p702) target = $region116
        $region115: #{tpu_custom_call.1} parent=87 // pred_region
          %706 = dma.done %s698, 2048
        $region116: #{tpu_custom_call.1} parent=87 // pred_fallthru
          _
        %s707 = sand.u32 %s37, 1
        %s708 = scalar_lea.sflag [#allocation5], %s707
        %s709 = sand.u32 %s344, 1
        %s710 = smul.addr %s709, 2
        %s711 = scalar_lea.vmem [#allocation16], %s710
        // Predicated region
        $region117: #{tpu_custom_call.1} parent=87 // pred_check
          %p712 = pneg %p357
        $region118: #{tpu_custom_call.1} parent=87 // pred_check_branch
          %714 = sbr.rel (%p712) target = $region120
        $region119: #{tpu_custom_call.1} parent=87 // pred_region
          %716 = dma.done %s708, 32
        $region120: #{tpu_custom_call.1} parent=87 // pred_fallthru
          _
        %s717 = sand.u32 %s37, 1
        %s718 = scalar_lea.sflag [#allocation5], %s717
        %s719 = sand.u32 %s370, 1
        %s720 = smul.addr %s719, 128
        %s721 = scalar_lea.vmem [#allocation17], %s720
        // Predicated region
        $region121: #{tpu_custom_call.1} parent=87 // pred_check
          %p722 = pneg %p383
        $region122: #{tpu_custom_call.1} parent=87 // pred_check_branch
          %724 = sbr.rel (%p722) target = $region124
        $region123: #{tpu_custom_call.1} parent=87 // pred_region
          %726 = dma.done %s718, 2048
        $region124: #{tpu_custom_call.1} parent=87 // pred_fallthru
          _
        // Predicated region
        $region125: #{tpu_custom_call.1} parent=87 // pred_check
          %p727 = pneg %p404
        $region126: #{tpu_custom_call.1} parent=87 // pred_check_branch
          %729 = sbr.rel (%p727) target = $region128
        $region127: #{tpu_custom_call.1} parent=87 // pred_region
          %731 = dma.done [#allocation8], 16
        $region128: #{tpu_custom_call.1} parent=87 // pred_fallthru
          _
        %p732 = pneg %p53
        %p733 = pneg %p50
        %p734 = pneg %p74
        %p735 = pneg %p71
        %p736 = pneg %p95
        %p737 = pneg %p92
        %p738 = pneg %p116
        %p739 = pneg %p113
        %p740 = pneg %p137
        %p741 = pneg %p134
        %p742 = pneg %p158
        %p743 = pneg %p155
        %p744 = pneg %p179
        %p745 = pneg %p176
        %p746 = pneg %p200
        %p747 = pneg %p197
        %p748 = pneg %p221
        %p749 = pneg %p218
        %p750 = pneg %p242
        %p751 = pneg %p239
        %p752 = pneg %p263
        %p753 = pneg %p260
        %p754 = pneg %p284
        %p755 = pneg %p281
        %p756 = pneg %p305
        %p757 = pneg %p302
        %s758 = sand.u32 %s37, 1
        %s759 = scalar_lea.sflag [#allocation5], %s758
        %s760 = sand.u32 %s318, 1
        %s761 = smul.addr %s760, 128
        %s762 = scalar_lea.vmem [#allocation15], %s761
        %p763 = pneg %p331
        %p764 = pneg %p328
        %s765 = sand.u32 %s37, 1
        %s766 = scalar_lea.sflag [#allocation5], %s765
        %s767 = sand.u32 %s344, 1
        %s768 = smul.addr %s767, 2
        %s769 = scalar_lea.vmem [#allocation16], %s768
        %p770 = pneg %p357
        %p771 = pneg %p354
        %s772 = sand.u32 %s37, 1
        %s773 = scalar_lea.sflag [#allocation5], %s772
        %s774 = sand.u32 %s370, 1
        %s775 = smul.addr %s774, 128
        %s776 = scalar_lea.vmem [#allocation17], %s775
        %p777 = pneg %p383
        %p778 = pneg %p380
        %p779 = pneg %p404
        %p780 = pneg %p401
        %p781 = pneg %p425
        %p782 = pneg %p422
        %p783 = pneg %p446
        %p784 = pneg %p443
        %p785 = pneg %p467
        %p786 = pneg %p464
        %s787 = smul.u32 2, %s37
        %s788 = smul.u32 2, %s37
        %s789 = smul.u32 32, %s37
        %p790 = scmp.eq.s32.totalorder %s37, 0
        // Predicated region
        $region129: #{tpu_custom_call.1} parent=87 // pred_check
          %p791 = pneg %p790
        $region130: #{tpu_custom_call.1} parent=87 // pred_check_branch
          %793 = sbr.rel (%p791) target = $region132
        $region131: #{tpu_custom_call.1} parent=87 // pred_region
          %v794 = vld [vmem:[%s0] sm:$0xff]
          %v795 = vld [vmem:[%s0 + $0x8] sm:$0xff]
          %v796 = vld [vmem:[%s1] sm:$0xff]
          %v797 = vld [vmem:[%s2] sm:$0xff]
          %798 = vadd.xlane.f32.xlu0 %v794
          %v799 = vpop.xlane.xlu0 %798
          %800 = vadd.xlane.f32.xlu0 %v795
          %v801 = vpop.xlane.xlu0 %800
          %v802 = vrcp.pop 128.0
          %v803 = vmul.f32 128.0, %v802
          %v804 = vsub.f32 1.0, %v803
          %v805 = vmul.f32 %v802, %v804
          %v806 = vadd.f32 %v802, %v805
          %vm807 = vweird.f32 %v802
          %v808 = vsel %vm807, %v802, %v806
          %v809 = vmul.f32 %v799, %v808
          %v810 = vmul.f32 %v801, %v808
          %v811 = vsub.f32 %v794, %v809
          %v812 = vsub.f32 %v795, %v810
          %v813 = vmul.f32 %v811, %v811
          %v814 = vmul.f32 %v812, %v812
          %815 = vadd.xlane.f32.xlu0 %v813
          %v816 = vpop.xlane.xlu0 %815
          %817 = vadd.xlane.f32.xlu0 %v814
          %v818 = vpop.xlane.xlu0 %817
          %v819 = vmul.f32 %v816, %v808
          %v820 = vmul.f32 %v818, %v808
          %v821 = vadd.f32 %v819, 1e-05
          %v822 = vadd.f32 %v820, 1e-05
          %v823 = vrsqrt.pop %v821
          %v824 = vmul.f32 %v823, %v821
          %v825 = vmul.f32 %v824, %v823
          %v826 = vmul.f32 0.5, %v825
          %v827 = vsub.f32 1.5, %v826
          %v828 = vmul.f32 %v823, %v827
          %vm829 = vweird.f32 %v821
          %vm830 = vweird.f32 %v823
          %vm831 = vmor %vm829, %vm830
          %v832 = vsel %vm831, %v823, %v828
          %v833 = vrsqrt.pop %v822
          %v834 = vmul.f32 %v833, %v822
          %v835 = vmul.f32 %v834, %v833
          %v836 = vmul.f32 0.5, %v835
          %v837 = vsub.f32 1.5, %v836
          %v838 = vmul.f32 %v833, %v837
          %vm839 = vweird.f32 %v822
          %vm840 = vweird.f32 %v833
          %vm841 = vmor %vm839, %vm840
          %v842 = vsel %vm841, %v833, %v838
          %v843 = vmul.f32 %v811, %v832
          %v844 = vmul.f32 %v812, %v842
          %v845 = vld [vmem:[%s5] sm:$0x1]
          %v847 = vperm.slane %v845, 0
          %v849 = vmul.f32 %v843, %v847
          %v850 = vmul.f32 %v844, %v847
          %v851 = vld [vmem:[%s6] sm:$0x1]
          %v853 = vperm.slane %v851, 0
          %v855 = vadd.f32 %v849, %v853
          %v856 = vadd.f32 %v850, %v853
          %v857 = vpack.c.bf16 %v856, %v855
          %v858 = vld [vmem:[#allocation9] sm:$0xff]
          %v859 = vld [vmem:[#allocation9 + $0x8] sm:$0xf]
          %v860 = vld [vmem:[#allocation9 + $0xc] sm:$0xff]
          %v861 = vld [vmem:[#allocation9 + $0x14] sm:$0xf]
          %v862 = vld [vmem:[#allocation9 + $0x18] sm:$0xff]
          %v863 = vld [vmem:[#allocation9 + $0x20] sm:$0xf]
          %v864 = vld [vmem:[#allocation9 + $0x24] sm:$0xff]
          %v865 = vld [vmem:[#allocation9 + $0x2c] sm:$0xf]
          %v866 = vld [vmem:[#allocation9 + $0x30] sm:$0xff]
          %v867 = vld [vmem:[#allocation9 + $0x38] sm:$0xf]
          %v868 = vld [vmem:[#allocation9 + $0x3c] sm:$0xff]
          %v869 = vld [vmem:[#allocation9 + $0x44] sm:$0xf]
          %v870 = vld [vmem:[#allocation9 + $0x48] sm:$0xff]
          %v871 = vld [vmem:[#allocation9 + $0x50] sm:$0xf]
          %v872 = vld [vmem:[#allocation9 + $0x54] sm:$0xff]
          %v873 = vld [vmem:[#allocation9 + $0x5c] sm:$0xf]
          %v874 = vld [vmem:[#allocation9 + $0x60] sm:$0xff]
          %v875 = vld [vmem:[#allocation9 + $0x68] sm:$0xf]
          %v876 = vld [vmem:[#allocation9 + $0x6c] sm:$0xff]
          %v877 = vld [vmem:[#allocation9 + $0x74] sm:$0xf]
          %v878 = vld [vmem:[#allocation9 + $0x78] sm:$0xff]
          %v879 = vld [vmem:[#allocation9 + $0x80] sm:$0xf]
          %v880 = vld [vmem:[#allocation9 + $0x84] sm:$0xff]
          %v881 = vld [vmem:[#allocation9 + $0x8c] sm:$0xf]
          %v882 = vld [vmem:[#allocation9 + $0x90] sm:$0xff]
          %v883 = vld [vmem:[#allocation9 + $0x98] sm:$0xf]
          %v884 = vld [vmem:[#allocation9 + $0x9c] sm:$0xff]
          %v885 = vld [vmem:[#allocation9 + $0xa4] sm:$0xf]
          %v886 = vld [vmem:[#allocation9 + $0xa8] sm:$0xff]
          %v887 = vld [vmem:[#allocation9 + $0xb0] sm:$0xf]
          %v888 = vld [vmem:[#allocation9 + $0xb4] sm:$0xff]
          %v889 = vld [vmem:[#allocation9 + $0xbc] sm:$0xf]
          %v890 = vld [vmem:[%s8] sm:$0x7]
          %v892 = vperm.slane %v890, 0
          %v893 = vperm.slane %v890, 1
          %v894 = vperm.slane %v890, 2
          %v930 = vunpack.c.l.b16 %v858
          %v931 = vunpack.c.h.b16 %v858
          %v932 = vunpack.c.l.b16 %v859
          %v933 = vunpack.c.l.b16 %v860
          %v934 = vunpack.c.h.b16 %v860
          %v935 = vunpack.c.l.b16 %v861
          %v936 = vunpack.c.l.b16 %v862
          %v937 = vunpack.c.h.b16 %v862
          %v938 = vunpack.c.l.b16 %v863
          %v939 = vunpack.c.l.b16 %v864
          %v940 = vunpack.c.h.b16 %v864
          %v941 = vunpack.c.l.b16 %v865
          %v942 = vunpack.c.l.b16 %v866
          %v943 = vunpack.c.h.b16 %v866
          %v944 = vunpack.c.l.b16 %v867
          %v945 = vunpack.c.l.b16 %v868
          %v946 = vunpack.c.h.b16 %v868
          %v947 = vunpack.c.l.b16 %v869
          %v948 = vunpack.c.l.b16 %v870
          %v949 = vunpack.c.h.b16 %v870
          %v950 = vunpack.c.l.b16 %v871
          %v951 = vunpack.c.l.b16 %v872
          %v952 = vunpack.c.h.b16 %v872
          %v953 = vunpack.c.l.b16 %v873
          %v954 = vunpack.c.l.b16 %v874
          %v955 = vunpack.c.h.b16 %v874
          %v956 = vunpack.c.l.b16 %v875
          %v957 = vunpack.c.l.b16 %v876
          %v958 = vunpack.c.h.b16 %v876
          %v959 = vunpack.c.l.b16 %v877
          %v960 = vunpack.c.l.b16 %v878
          %v961 = vunpack.c.h.b16 %v878
          %v962 = vunpack.c.l.b16 %v879
          %v963 = vunpack.c.l.b16 %v880
          %v964 = vunpack.c.h.b16 %v880
          %v965 = vunpack.c.l.b16 %v881
          %v966 = vunpack.c.l.b16 %v882
          %v967 = vunpack.c.h.b16 %v882
          %v968 = vunpack.c.l.b16 %v883
          %v969 = vunpack.c.l.b16 %v884
          %v970 = vunpack.c.h.b16 %v884
          %v971 = vunpack.c.l.b16 %v885
          %v972 = vunpack.c.l.b16 %v886
          %v973 = vunpack.c.h.b16 %v886
          %v974 = vunpack.c.l.b16 %v887
          %v975 = vunpack.c.l.b16 %v888
          %v976 = vunpack.c.h.b16 %v888
          %v977 = vunpack.c.l.b16 %v889
          %v978 = vpack.c.b16 %v933, %v930
          %v979 = vpack.c.b16 %v934, %v931
          %v980 = vpack.c.b16 %v935, %v932
          %v981 = vpack.c.b16 %v939, %v936
          %v982 = vpack.c.b16 %v940, %v937
          %v983 = vpack.c.b16 %v941, %v938
          %v984 = vpack.c.b16 %v945, %v942
          %v985 = vpack.c.b16 %v946, %v943
          %v986 = vpack.c.b16 %v947, %v944
          %v987 = vpack.c.b16 %v951, %v948
          %v988 = vpack.c.b16 %v952, %v949
          %v989 = vpack.c.b16 %v953, %v950
          %v990 = vpack.c.b16 %v957, %v954
          %v991 = vpack.c.b16 %v958, %v955
          %v992 = vpack.c.b16 %v959, %v956
          %v993 = vpack.c.b16 %v963, %v960
          %v994 = vpack.c.b16 %v964, %v961
          %v995 = vpack.c.b16 %v965, %v962
          %v996 = vpack.c.b16 %v969, %v966
          %v997 = vpack.c.b16 %v970, %v967
          %v998 = vpack.c.b16 %v971, %v968
          %v999 = vpack.c.b16 %v975, %v972
          %v1000 = vpack.c.b16 %v976, %v973
          %v1001 = vpack.c.b16 %v977, %v974
          %1026 = vmatpush.bf16.msra.mxu0 %v999
          %1027 = vmatpush.bf16.msra.mxu0 %v996
          %1028 = vmatpush.bf16.msra.mxu0 %v993
          %1029 = vmatpush.bf16.msra.mxu0 %v990
          %1030 = vmatpush.bf16.msra.mxu0 %v987
          %1031 = vmatpush.bf16.msra.mxu0 %v984
          %1032 = vmatpush.bf16.msra.mxu0 %v981
          %1033 = vmatpush.bf16.msra.mxu0 %v978
          %1034 = vmatmul.bf16.gmra.mxu0 %v857
          %v1035 = vpop.f32.mrf.mxu0
          %v1036 = vadd.f32 %v892, %v1035
          %v1037 = vpop.f32.mrf.mxu0
          %v1038 = vadd.f32 %v892, %v1037
          %1039 = vdwg.mxu0
          %1040 = vmatpush.bf16.msra.mxu0 %v1000
          %1041 = vmatpush.bf16.msra.mxu0 %v997
          %1042 = vmatpush.bf16.msra.mxu0 %v994
          %1043 = vmatpush.bf16.msra.mxu0 %v991
          %1044 = vmatpush.bf16.msra.mxu0 %v988
          %1045 = vmatpush.bf16.msra.mxu0 %v985
          %1046 = vmatpush.bf16.msra.mxu0 %v982
          %1047 = vmatpush.bf16.msra.mxu0 %v979
          %1048 = vmatmul.bf16.gmra.mxu0 %v857
          %v1049 = vpop.f32.mrf.mxu0
          %v1050 = vadd.f32 %v893, %v1049
          %v1051 = vpop.f32.mrf.mxu0
          %v1052 = vadd.f32 %v893, %v1051
          %1053 = vdwg.mxu0
          %1054 = vmatpush.bf16.msra.mxu0 %v1001
          %1055 = vmatpush.bf16.msra.mxu0 %v998
          %1056 = vmatpush.bf16.msra.mxu0 %v995
          %1057 = vmatpush.bf16.msra.mxu0 %v992
          %1058 = vmatpush.bf16.msra.mxu0 %v989
          %1059 = vmatpush.bf16.msra.mxu0 %v986
          %1060 = vmatpush.bf16.msra.mxu0 %v983
          %1061 = vmatpush.bf16.msra.mxu0 %v980
          %1062 = vmatmul.bf16.gmra.mxu0 %v857
          %v1063 = vpop.f32.mrf.mxu0
          %v1064 = vadd.f32 %v894, %v1063
          %v1065 = vpop.f32.mrf.mxu0
          %v1066 = vadd.f32 %v894, %v1065
          %1067 = vdwg.mxu0
          %1069 = vrot.lane.b32.xlu0 %v1036, 96
          %v1070 = vpop.permute.xlu0 %1069
          %1072 = vrot.lane.b32.xlu0 %v1036, 64
          %v1073 = vpop.permute.xlu0 %1072
          %1075 = vrot.lane.b32.xlu0 %v1036, 32
          %v1076 = vpop.permute.xlu0 %1075
          %v1078 = vsub.f32 0.0, %v1036
          %v1079 = vsub.f32 0.0, %v1070
          %v1080 = vsub.f32 0.0, %v1073
          %v1081 = vsub.f32 0.0, %v1076
          %1086 = vrot.lane.b32.xlu0 %v1078, 120
          %v1087 = vpop.permute.xlu0 %1086
          %1088 = vrot.lane.b32.xlu0 %v1079, 120
          %v1089 = vpop.permute.xlu0 %1088
          %1090 = vrot.lane.b32.xlu0 %v1080, 120
          %v1091 = vpop.permute.xlu0 %1090
          %1092 = vrot.lane.b32.xlu0 %v1081, 120
          %v1093 = vpop.permute.xlu0 %1092
          %1098 = vrot.lane.b32.xlu0 %v1036, 8
          %v1099 = vpop.permute.xlu0 %1098
          %1100 = vrot.lane.b32.xlu0 %v1070, 8
          %v1101 = vpop.permute.xlu0 %1100
          %1102 = vrot.lane.b32.xlu0 %v1073, 8
          %v1103 = vpop.permute.xlu0 %1102
          %1104 = vrot.lane.b32.xlu0 %v1076, 8
          %v1105 = vpop.permute.xlu0 %1104
          %vm1110 = vcmask 64512
          %v1111 = vsel %vm1110, %v1087, %v1099
          %v1112 = vsel %vm1110, %v1089, %v1101
          %v1113 = vsel %vm1110, %v1091, %v1103
          %v1114 = vsel %vm1110, %v1093, %v1105
          %v1115 = vmul.f32 %v1036, %v796
          %v1116 = vmul.f32 %v1070, %v796
          %v1117 = vmul.f32 %v1073, %v796
          %v1118 = vmul.f32 %v1076, %v796
          %v1119 = vmul.f32 %v1111, %v797
          %v1120 = vmul.f32 %v1112, %v797
          %v1121 = vmul.f32 %v1113, %v797
          %v1122 = vmul.f32 %v1114, %v797
          %v1123 = vadd.f32 %v1115, %v1119
          %v1124 = vadd.f32 %v1116, %v1120
          %v1125 = vadd.f32 %v1117, %v1121
          %v1126 = vadd.f32 %v1118, %v1122
          %vm1127 = vcmask 130048
          %v1128 = vsel %vm1127, %v1123, %v1036
          %v1129 = vsel %vm1127, %v1124, %v1070
          %v1130 = vsel %vm1127, %v1125, %v1073
          %v1131 = vsel %vm1127, %v1126, %v1076
          %v1132 = vmul.f32 %v1128, 0.17677669
          %v1133 = vmul.f32 %v1129, 0.17677669
          %v1134 = vmul.f32 %v1130, 0.17677669
          %v1135 = vmul.f32 %v1131, 0.17677669
          %1137 = vrot.lane.b32.xlu0 %v1050, 96
          %v1138 = vpop.permute.xlu0 %1137
          %1140 = vrot.lane.b32.xlu0 %v1050, 64
          %v1141 = vpop.permute.xlu0 %1140
          %1143 = vrot.lane.b32.xlu0 %v1050, 32
          %v1144 = vpop.permute.xlu0 %1143
          %v1146 = vsub.f32 0.0, %v1050
          %v1147 = vsub.f32 0.0, %v1138
          %v1148 = vsub.f32 0.0, %v1141
          %v1149 = vsub.f32 0.0, %v1144
          %1154 = vrot.lane.b32.xlu0 %v1146, 120
          %v1155 = vpop.permute.xlu0 %1154
          %1156 = vrot.lane.b32.xlu0 %v1147, 120
          %v1157 = vpop.permute.xlu0 %1156
          %1158 = vrot.lane.b32.xlu0 %v1148, 120
          %v1159 = vpop.permute.xlu0 %1158
          %1160 = vrot.lane.b32.xlu0 %v1149, 120
          %v1161 = vpop.permute.xlu0 %1160
          %1166 = vrot.lane.b32.xlu0 %v1050, 8
          %v1167 = vpop.permute.xlu0 %1166
          %1168 = vrot.lane.b32.xlu0 %v1138, 8
          %v1169 = vpop.permute.xlu0 %1168
          %1170 = vrot.lane.b32.xlu0 %v1141, 8
          %v1171 = vpop.permute.xlu0 %1170
          %1172 = vrot.lane.b32.xlu0 %v1144, 8
          %v1173 = vpop.permute.xlu0 %1172
          %v1178 = vsel %vm1110, %v1155, %v1167
          %v1179 = vsel %vm1110, %v1157, %v1169
          %v1180 = vsel %vm1110, %v1159, %v1171
          %v1181 = vsel %vm1110, %v1161, %v1173
          %v1182 = vmul.f32 %v1050, %v796
          %v1183 = vmul.f32 %v1138, %v796
          %v1184 = vmul.f32 %v1141, %v796
          %v1185 = vmul.f32 %v1144, %v796
          %v1186 = vmul.f32 %v1178, %v797
          %v1187 = vmul.f32 %v1179, %v797
          %v1188 = vmul.f32 %v1180, %v797
          %v1189 = vmul.f32 %v1181, %v797
          %v1190 = vadd.f32 %v1182, %v1186
          %v1191 = vadd.f32 %v1183, %v1187
          %v1192 = vadd.f32 %v1184, %v1188
          %v1193 = vadd.f32 %v1185, %v1189
          %v1194 = vsel %vm1127, %v1190, %v1050
          %v1195 = vsel %vm1127, %v1191, %v1138
          %v1196 = vsel %vm1127, %v1192, %v1141
          %v1197 = vsel %vm1127, %v1193, %v1144
          %1199 = vrot.lane.b32.xlu0 %v1064, 96
          %v1200 = vpop.permute.xlu0 %1199
          %1202 = vrot.lane.b32.xlu0 %v1064, 64
          %v1203 = vpop.permute.xlu0 %1202
          %1205 = vrot.lane.b32.xlu0 %v1064, 32
          %v1206 = vpop.permute.xlu0 %1205
          %1209 = vrot.lane.b32.xlu0 %v1195, 32
          %v1210 = vpop.permute.xlu0 %1209
          %1213 = vrot.lane.b32.xlu0 %v1196, 64
          %v1214 = vpop.permute.xlu0 %1213
          %1217 = vrot.lane.b32.xlu0 %v1197, 96
          %v1218 = vpop.permute.xlu0 %1217
          %vm1220 = vcmask 261120
          %v1221 = vsel %vm1220, %v1194, %v1210
          %vm1222 = vcmask 523264
          %v1223 = vsel %vm1222, %v1221, %v1214
          %vm1224 = vcmask 785408
          %v1225 = vsel %vm1224, %v1223, %v1218
          %1226 = vst [vmem:[#allocation20] sm:$0xff] %v1225
          %1227 = vst [vmem:[#allocation22] sm:$0xff] %v1064
          %v1228 = vld [vmem:[#allocation4] sm:$0xff]
          %1230 = vrot.lane.b32.xlu0 %v1228, 96
          %v1231 = vpop.permute.xlu0 %1230
          %1232 = vrot.lane.b32.xlu0 %v1228, 64
          %v1233 = vpop.permute.xlu0 %1232
          %1234 = vrot.lane.b32.xlu0 %v1228, 32
          %v1235 = vpop.permute.xlu0 %1234
          %v1236 = vld [vmem:[#allocation7] sm:$0xff]
          %1238 = vrot.lane.b32.xlu0 %v1236, 96
          %v1239 = vpop.permute.xlu0 %1238
          %1241 = vrot.lane.b32.xlu0 %v1236, 64
          %v1242 = vpop.permute.xlu0 %1241
          %1244 = vrot.lane.b32.xlu0 %v1236, 32
          %v1245 = vpop.permute.xlu0 %1244
          %v1248 = vsel %vm1220, %v1132, 0
          %v1250 = vsel %vm1220, %v1228, 0
          %v1253 = vsel %vm1220, %v1194, 0
          %1255 = vmatpush.xpose.msra.mxu0 0.0
          %1256 = vmatpush.xpose.msra.mxu0 0.0
          %1257 = vmatpush.xpose.msra.mxu0 0.0
          %1258 = vmatpush.xpose.msra.mxu0 0.0
          %1259 = vmatpush.xpose.msra.mxu0 0.0
          %1260 = vmatpush.xpose.msra.mxu0 0.0
          %1261 = vmatpush.xpose.msra.mxu0 0.0
          %1262 = vmatpush.xpose.msra.mxu0 0.0
          %1263 = vmatpush.xpose.msra.mxu0 0.0
          %1264 = vmatpush.xpose.msra.mxu0 0.0
          %1265 = vmatpush.xpose.msra.mxu0 0.0
          %1266 = vmatpush.xpose.msra.mxu0 0.0
          %1267 = vmatpush.xpose.msra.mxu0 0.0
          %1268 = vmatpush.xpose.msra.mxu0 0.0
          %1269 = vmatpush.xpose.msra.mxu0 %v1253
          %1270 = vmatpush.xpose.msra.mxu0 %v1250
          %1271 = vmatmul.f32.gmra.mxu0 %v1248
          %v1272 = vpop.f32.mrf.mxu0
          %v1273 = vadd.f32 0.0, %v1272
          %1274 = vdwg.mxu0
          %v1276 = vsel %vm1220, %v1133, 0
          %v1278 = vsel %vm1220, %v1231, 0
          %v1280 = vsel %vm1220, %v1195, 0
          %1282 = vmatpush.xpose.msra.mxu0 0.0
          %1283 = vmatpush.xpose.msra.mxu0 0.0
          %1284 = vmatpush.xpose.msra.mxu0 0.0
          %1285 = vmatpush.xpose.msra.mxu0 0.0
          %1286 = vmatpush.xpose.msra.mxu0 0.0
          %1287 = vmatpush.xpose.msra.mxu0 0.0
          %1288 = vmatpush.xpose.msra.mxu0 0.0
          %1289 = vmatpush.xpose.msra.mxu0 0.0
          %1290 = vmatpush.xpose.msra.mxu0 0.0
          %1291 = vmatpush.xpose.msra.mxu0 0.0
          %1292 = vmatpush.xpose.msra.mxu0 0.0
          %1293 = vmatpush.xpose.msra.mxu0 0.0
          %1294 = vmatpush.xpose.msra.mxu0 0.0
          %1295 = vmatpush.xpose.msra.mxu0 0.0
          %1296 = vmatpush.xpose.msra.mxu0 %v1280
          %1297 = vmatpush.xpose.msra.mxu0 %v1278
          %1298 = vmatmul.f32.gmra.mxu0 %v1276
          %v1299 = vpop.f32.mrf.mxu0
          %v1300 = vadd.f32 0.0, %v1299
          %1301 = vdwg.mxu0
          %v1303 = vsel %vm1220, %v1134, 0
          %v1305 = vsel %vm1220, %v1233, 0
          %v1307 = vsel %vm1220, %v1196, 0
          %1309 = vmatpush.xpose.msra.mxu0 0.0
          %1310 = vmatpush.xpose.msra.mxu0 0.0
          %1311 = vmatpush.xpose.msra.mxu0 0.0
          %1312 = vmatpush.xpose.msra.mxu0 0.0
          %1313 = vmatpush.xpose.msra.mxu0 0.0
          %1314 = vmatpush.xpose.msra.mxu0 0.0
          %1315 = vmatpush.xpose.msra.mxu0 0.0
          %1316 = vmatpush.xpose.msra.mxu0 0.0
          %1317 = vmatpush.xpose.msra.mxu0 0.0
          %1318 = vmatpush.xpose.msra.mxu0 0.0
          %1319 = vmatpush.xpose.msra.mxu0 0.0
          %1320 = vmatpush.xpose.msra.mxu0 0.0
          %1321 = vmatpush.xpose.msra.mxu0 0.0
          %1322 = vmatpush.xpose.msra.mxu0 0.0
          %1323 = vmatpush.xpose.msra.mxu0 %v1307
          %1324 = vmatpush.xpose.msra.mxu0 %v1305
          %1325 = vmatmul.f32.gmra.mxu0 %v1303
          %v1326 = vpop.f32.mrf.mxu0
          %v1327 = vadd.f32 0.0, %v1326
          %1328 = vdwg.mxu0
          %v1330 = vsel %vm1220, %v1135, 0
          %v1332 = vsel %vm1220, %v1235, 0
          %v1334 = vsel %vm1220, %v1197, 0
          %1336 = vmatpush.xpose.msra.mxu0 0.0
          %1337 = vmatpush.xpose.msra.mxu0 0.0
          %1338 = vmatpush.xpose.msra.mxu0 0.0
          %1339 = vmatpush.xpose.msra.mxu0 0.0
          %1340 = vmatpush.xpose.msra.mxu0 0.0
          %1341 = vmatpush.xpose.msra.mxu0 0.0
          %1342 = vmatpush.xpose.msra.mxu0 0.0
          %1343 = vmatpush.xpose.msra.mxu0 0.0
          %1344 = vmatpush.xpose.msra.mxu0 0.0
          %1345 = vmatpush.xpose.msra.mxu0 0.0
          %1346 = vmatpush.xpose.msra.mxu0 0.0
          %1347 = vmatpush.xpose.msra.mxu0 0.0
          %1348 = vmatpush.xpose.msra.mxu0 0.0
          %1349 = vmatpush.xpose.msra.mxu0 0.0
          %1350 = vmatpush.xpose.msra.mxu0 %v1334
          %1351 = vmatpush.xpose.msra.mxu0 %v1332
          %1352 = vmatmul.f32.gmra.mxu0 %v1330
          %v1353 = vpop.f32.mrf.mxu0
          %v1354 = vadd.f32 0.0, %v1353
          %1355 = vdwg.mxu0
          %v1356 = vlaneseq
          %v1357 = vshrl.u32 %v1356, 7
          %v1358 = vadd.s32 %v1357, 8
          %v1359 = vlaneseq
          %v1360 = vand.u32 %v1359, 127
          %vm1361 = vcmp.le.s32.totalorder %v1360, %v1358
          %v1362 = vsel %vm1361, 1, 0
          %vm1363 = vcmp.eq.s32.totalorder %v1362, 1
          %v1364 = vsel %vm1363, %v1273, -1e+30
          %v1365 = vsel %vm1363, %v1300, -1e+30
          %v1366 = vsel %vm1363, %v1327, -1e+30
          %v1367 = vsel %vm1363, %v1354, -1e+30
          %v1368 = vsel %vm1127, %v1364, -inf
          %1369 = vmax.xlane.f32.xlu0 %v1368
          %v1370 = vpop.xlane.xlu0 %1369
          %v1371 = vsel %vm1127, %v1365, -inf
          %1372 = vmax.xlane.f32.xlu0 %v1371
          %v1373 = vpop.xlane.xlu0 %1372
          %v1374 = vsel %vm1127, %v1366, -inf
          %1375 = vmax.xlane.f32.xlu0 %v1374
          %v1376 = vpop.xlane.xlu0 %1375
          %v1377 = vsel %vm1127, %v1367, -inf
          %1378 = vmax.xlane.f32.xlu0 %v1377
          %v1379 = vpop.xlane.xlu0 %1378
          %v1380 = vsub.f32 %v1364, %v1370
          %v1381 = vsub.f32 %v1365, %v1373
          %v1382 = vsub.f32 %v1366, %v1376
          %v1383 = vsub.f32 %v1367, %v1379
          %v1384 = vmul.f32 %v1380, 1.442695
          %v1385 = vpow.pop %v1384
          %v1386 = vmul.f32 %v1381, 1.442695
          %v1387 = vpow.pop %v1386
          %v1388 = vmul.f32 %v1382, 1.442695
          %v1389 = vpow.pop %v1388
          %v1390 = vmul.f32 %v1383, 1.442695
          %v1391 = vpow.pop %v1390
          %v1392 = vsel %vm1127, %v1385, 0.0
          %1393 = vadd.xlane.f32.xlu0 %v1392
          %v1394 = vpop.xlane.xlu0 %1393
          %v1395 = vsel %vm1127, %v1387, 0.0
          %1396 = vadd.xlane.f32.xlu0 %v1395
          %v1397 = vpop.xlane.xlu0 %1396
          %v1398 = vsel %vm1127, %v1389, 0.0
          %1399 = vadd.xlane.f32.xlu0 %v1398
          %v1400 = vpop.xlane.xlu0 %1399
          %v1401 = vsel %vm1127, %v1391, 0.0
          %1402 = vadd.xlane.f32.xlu0 %v1401
          %v1403 = vpop.xlane.xlu0 %1402
          %v1404 = vrcp.pop %v1394
          %v1405 = vrcp.pop %v1397
          %v1406 = vrcp.pop %v1400
          %v1407 = vrcp.pop %v1403
          %v1408 = vmul.f32 %v1385, %v1404
          %v1409 = vmul.f32 %v1387, %v1405
          %v1410 = vmul.f32 %v1389, %v1406
          %v1411 = vmul.f32 %v1391, %v1407
          %v1413 = vsel %vm1127, %v1408, 0
          %1415 = vmatpush.msra.mxu0 0.0
          %1416 = vmatpush.msra.mxu0 0.0
          %1417 = vmatpush.msra.mxu0 0.0
          %1418 = vmatpush.msra.mxu0 0.0
          %1419 = vmatpush.msra.mxu0 0.0
          %1420 = vmatpush.msra.mxu0 0.0
          %1421 = vmatpush.msra.mxu0 0.0
          %1422 = vmatpush.msra.mxu0 0.0
          %1423 = vmatpush.msra.mxu0 0.0
          %1424 = vmatpush.msra.mxu0 0.0
          %1425 = vmatpush.msra.mxu0 0.0
          %1426 = vmatpush.msra.mxu0 0.0
          %1427 = vmatpush.msra.mxu0 0.0
          %1428 = vmatpush.msra.mxu0 0.0
          %1429 = vmatpush.msra.mxu0 %v1064
          %1430 = vmatpush.msra.mxu0 %v1236
          %1431 = vmatmul.f32.gmra.mxu0 %v1413
          %v1432 = vpop.f32.mrf.mxu0
          %v1433 = vadd.f32 0.0, %v1432
          %1434 = vdwg.mxu0
          %v1436 = vsel %vm1127, %v1409, 0
          %1438 = vmatpush.msra.mxu0 0.0
          %1439 = vmatpush.msra.mxu0 0.0
          %1440 = vmatpush.msra.mxu0 0.0
          %1441 = vmatpush.msra.mxu0 0.0
          %1442 = vmatpush.msra.mxu0 0.0
          %1443 = vmatpush.msra.mxu0 0.0
          %1444 = vmatpush.msra.mxu0 0.0
          %1445 = vmatpush.msra.mxu0 0.0
          %1446 = vmatpush.msra.mxu0 0.0
          %1447 = vmatpush.msra.mxu0 0.0
          %1448 = vmatpush.msra.mxu0 0.0
          %1449 = vmatpush.msra.mxu0 0.0
          %1450 = vmatpush.msra.mxu0 0.0
          %1451 = vmatpush.msra.mxu0 0.0
          %1452 = vmatpush.msra.mxu0 %v1200
          %1453 = vmatpush.msra.mxu0 %v1239
          %1454 = vmatmul.f32.gmra.mxu0 %v1436
          %v1455 = vpop.f32.mrf.mxu0
          %v1456 = vadd.f32 0.0, %v1455
          %1457 = vdwg.mxu0
          %v1459 = vsel %vm1127, %v1410, 0
          %1461 = vmatpush.msra.mxu0 0.0
          %1462 = vmatpush.msra.mxu0 0.0
          %1463 = vmatpush.msra.mxu0 0.0
          %1464 = vmatpush.msra.mxu0 0.0
          %1465 = vmatpush.msra.mxu0 0.0
          %1466 = vmatpush.msra.mxu0 0.0
          %1467 = vmatpush.msra.mxu0 0.0
          %1468 = vmatpush.msra.mxu0 0.0
          %1469 = vmatpush.msra.mxu0 0.0
          %1470 = vmatpush.msra.mxu0 0.0
          %1471 = vmatpush.msra.mxu0 0.0
          %1472 = vmatpush.msra.mxu0 0.0
          %1473 = vmatpush.msra.mxu0 0.0
          %1474 = vmatpush.msra.mxu0 0.0
          %1475 = vmatpush.msra.mxu0 %v1203
          %1476 = vmatpush.msra.mxu0 %v1242
          %1477 = vmatmul.f32.gmra.mxu0 %v1459
          %v1478 = vpop.f32.mrf.mxu0
          %v1479 = vadd.f32 0.0, %v1478
          %1480 = vdwg.mxu0
          %v1482 = vsel %vm1127, %v1411, 0
          %1484 = vmatpush.msra.mxu0 0.0
          %1485 = vmatpush.msra.mxu0 0.0
          %1486 = vmatpush.msra.mxu0 0.0
          %1487 = vmatpush.msra.mxu0 0.0
          %1488 = vmatpush.msra.mxu0 0.0
          %1489 = vmatpush.msra.mxu0 0.0
          %1490 = vmatpush.msra.mxu0 0.0
          %1491 = vmatpush.msra.mxu0 0.0
          %1492 = vmatpush.msra.mxu0 0.0
          %1493 = vmatpush.msra.mxu0 0.0
          %1494 = vmatpush.msra.mxu0 0.0
          %1495 = vmatpush.msra.mxu0 0.0
          %1496 = vmatpush.msra.mxu0 0.0
          %1497 = vmatpush.msra.mxu0 0.0
          %1498 = vmatpush.msra.mxu0 %v1206
          %1499 = vmatpush.msra.mxu0 %v1245
          %1500 = vmatmul.f32.gmra.mxu0 %v1482
          %v1501 = vpop.f32.mrf.mxu0
          %v1502 = vadd.f32 0.0, %v1501
          %1503 = vdwg.mxu0
          %1505 = vrot.lane.b32.xlu0 %v1456, 32
          %v1506 = vpop.permute.xlu0 %1505
          %1509 = vrot.lane.b32.xlu0 %v1479, 64
          %v1510 = vpop.permute.xlu0 %1509
          %1513 = vrot.lane.b32.xlu0 %v1502, 96
          %v1514 = vpop.permute.xlu0 %1513
          %v1516 = vsel %vm1220, %v1433, %v1506
          %v1517 = vsel %vm1222, %v1516, %v1510
          %v1518 = vsel %vm1224, %v1517, %v1514
          %1520 = vrot.lane.b32.xlu0 %v1038, 96
          %v1521 = vpop.permute.xlu0 %1520
          %1523 = vrot.lane.b32.xlu0 %v1038, 64
          %v1524 = vpop.permute.xlu0 %1523
          %1526 = vrot.lane.b32.xlu0 %v1038, 32
          %v1527 = vpop.permute.xlu0 %1526
          %v1529 = vsub.f32 0.0, %v1038
          %v1530 = vsub.f32 0.0, %v1521
          %v1531 = vsub.f32 0.0, %v1524
          %v1532 = vsub.f32 0.0, %v1527
          %1537 = vrot.lane.b32.xlu0 %v1529, 120
          %v1538 = vpop.permute.xlu0 %1537
          %1539 = vrot.lane.b32.xlu0 %v1530, 120
          %v1540 = vpop.permute.xlu0 %1539
          %1541 = vrot.lane.b32.xlu0 %v1531, 120
          %v1542 = vpop.permute.xlu0 %1541
          %1543 = vrot.lane.b32.xlu0 %v1532, 120
          %v1544 = vpop.permute.xlu0 %1543
          %1549 = vrot.lane.b32.xlu0 %v1038, 8
          %v1550 = vpop.permute.xlu0 %1549
          %1551 = vrot.lane.b32.xlu0 %v1521, 8
          %v1552 = vpop.permute.xlu0 %1551
          %1553 = vrot.lane.b32.xlu0 %v1524, 8
          %v1554 = vpop.permute.xlu0 %1553
          %1555 = vrot.lane.b32.xlu0 %v1527, 8
          %v1556 = vpop.permute.xlu0 %1555
          %v1561 = vsel %vm1110, %v1538, %v1550
          %v1562 = vsel %vm1110, %v1540, %v1552
          %v1563 = vsel %vm1110, %v1542, %v1554
          %v1564 = vsel %vm1110, %v1544, %v1556
          %v1565 = vmul.f32 %v1038, %v796
          %v1566 = vmul.f32 %v1521, %v796
          %v1567 = vmul.f32 %v1524, %v796
          %v1568 = vmul.f32 %v1527, %v796
          %v1569 = vmul.f32 %v1561, %v797
          %v1570 = vmul.f32 %v1562, %v797
          %v1571 = vmul.f32 %v1563, %v797
          %v1572 = vmul.f32 %v1564, %v797
          %v1573 = vadd.f32 %v1565, %v1569
          %v1574 = vadd.f32 %v1566, %v1570
          %v1575 = vadd.f32 %v1567, %v1571
          %v1576 = vadd.f32 %v1568, %v1572
          %v1577 = vsel %vm1127, %v1573, %v1038
          %v1578 = vsel %vm1127, %v1574, %v1521
          %v1579 = vsel %vm1127, %v1575, %v1524
          %v1580 = vsel %vm1127, %v1576, %v1527
          %v1581 = vmul.f32 %v1577, 0.17677669
          %v1582 = vmul.f32 %v1578, 0.17677669
          %v1583 = vmul.f32 %v1579, 0.17677669
          %v1584 = vmul.f32 %v1580, 0.17677669
          %1586 = vrot.lane.b32.xlu0 %v1052, 96
          %v1587 = vpop.permute.xlu0 %1586
          %1589 = vrot.lane.b32.xlu0 %v1052, 64
          %v1590 = vpop.permute.xlu0 %1589
          %1592 = vrot.lane.b32.xlu0 %v1052, 32
          %v1593 = vpop.permute.xlu0 %1592
          %v1595 = vsub.f32 0.0, %v1052
          %v1596 = vsub.f32 0.0, %v1587
          %v1597 = vsub.f32 0.0, %v1590
          %v1598 = vsub.f32 0.0, %v1593
          %1603 = vrot.lane.b32.xlu0 %v1595, 120
          %v1604 = vpop.permute.xlu0 %1603
          %1605 = vrot.lane.b32.xlu0 %v1596, 120
          %v1606 = vpop.permute.xlu0 %1605
          %1607 = vrot.lane.b32.xlu0 %v1597, 120
          %v1608 = vpop.permute.xlu0 %1607
          %1609 = vrot.lane.b32.xlu0 %v1598, 120
          %v1610 = vpop.permute.xlu0 %1609
          %1615 = vrot.lane.b32.xlu0 %v1052, 8
          %v1616 = vpop.permute.xlu0 %1615
          %1617 = vrot.lane.b32.xlu0 %v1587, 8
          %v1618 = vpop.permute.xlu0 %1617
          %1619 = vrot.lane.b32.xlu0 %v1590, 8
          %v1620 = vpop.permute.xlu0 %1619
          %1621 = vrot.lane.b32.xlu0 %v1593, 8
          %v1622 = vpop.permute.xlu0 %1621
          %v1627 = vsel %vm1110, %v1604, %v1616
          %v1628 = vsel %vm1110, %v1606, %v1618
          %v1629 = vsel %vm1110, %v1608, %v1620
          %v1630 = vsel %vm1110, %v1610, %v1622
          %v1631 = vmul.f32 %v1052, %v796
          %v1632 = vmul.f32 %v1587, %v796
          %v1633 = vmul.f32 %v1590, %v796
          %v1634 = vmul.f32 %v1593, %v796
          %v1635 = vmul.f32 %v1627, %v797
          %v1636 = vmul.f32 %v1628, %v797
          %v1637 = vmul.f32 %v1629, %v797
          %v1638 = vmul.f32 %v1630, %v797
          %v1639 = vadd.f32 %v1631, %v1635
          %v1640 = vadd.f32 %v1632, %v1636
          %v1641 = vadd.f32 %v1633, %v1637
          %v1642 = vadd.f32 %v1634, %v1638
          %v1643 = vsel %vm1127, %v1639, %v1052
          %v1644 = vsel %vm1127, %v1640, %v1587
          %v1645 = vsel %vm1127, %v1641, %v1590
          %v1646 = vsel %vm1127, %v1642, %v1593
          %1648 = vrot.lane.b32.xlu0 %v1066, 96
          %v1649 = vpop.permute.xlu0 %1648
          %1651 = vrot.lane.b32.xlu0 %v1066, 64
          %v1652 = vpop.permute.xlu0 %1651
          %1654 = vrot.lane.b32.xlu0 %v1066, 32
          %v1655 = vpop.permute.xlu0 %1654
          %1658 = vrot.lane.b32.xlu0 %v1644, 32
          %v1659 = vpop.permute.xlu0 %1658
          %1662 = vrot.lane.b32.xlu0 %v1645, 64
          %v1663 = vpop.permute.xlu0 %1662
          %1666 = vrot.lane.b32.xlu0 %v1646, 96
          %v1667 = vpop.permute.xlu0 %1666
          %v1669 = vsel %vm1220, %v1643, %v1659
          %v1670 = vsel %vm1222, %v1669, %v1663
          %v1671 = vsel %vm1224, %v1670, %v1667
          %s1672 = scalar_lea.vmem [#allocation20], 8
          %1673 = vst [vmem:[%s1672] sm:$0xff] %v1671
          %s1674 = scalar_lea.vmem [#allocation22], 8
          %1675 = vst [vmem:[%s1674] sm:$0xff] %v1066
          %s1676 = scalar_lea.vmem [#allocation4], 8
          %v1677 = vld [vmem:[%s1676] sm:$0xff]
          %1679 = vrot.lane.b32.xlu0 %v1677, 96
          %v1680 = vpop.permute.xlu0 %1679
          %1681 = vrot.lane.b32.xlu0 %v1677, 64
          %v1682 = vpop.permute.xlu0 %1681
          %1683 = vrot.lane.b32.xlu0 %v1677, 32
          %v1684 = vpop.permute.xlu0 %1683
          %s1685 = scalar_lea.vmem [#allocation7], 8
          %v1686 = vld [vmem:[%s1685] sm:$0xff]
          %1688 = vrot.lane.b32.xlu0 %v1686, 96
          %v1689 = vpop.permute.xlu0 %1688
          %1691 = vrot.lane.b32.xlu0 %v1686, 64
          %v1692 = vpop.permute.xlu0 %1691
          %1694 = vrot.lane.b32.xlu0 %v1686, 32
          %v1695 = vpop.permute.xlu0 %1694
          %v1698 = vsel %vm1220, %v1581, 0
          %v1700 = vsel %vm1220, %v1677, 0
          %v1703 = vsel %vm1220, %v1643, 0
          %1705 = vmatpush.xpose.msra.mxu0 0.0
          %1706 = vmatpush.xpose.msra.mxu0 0.0
          %1707 = vmatpush.xpose.msra.mxu0 0.0
          %1708 = vmatpush.xpose.msra.mxu0 0.0
          %1709 = vmatpush.xpose.msra.mxu0 0.0
          %1710 = vmatpush.xpose.msra.mxu0 0.0
          %1711 = vmatpush.xpose.msra.mxu0 0.0
          %1712 = vmatpush.xpose.msra.mxu0 0.0
          %1713 = vmatpush.xpose.msra.mxu0 0.0
          %1714 = vmatpush.xpose.msra.mxu0 0.0
          %1715 = vmatpush.xpose.msra.mxu0 0.0
          %1716 = vmatpush.xpose.msra.mxu0 0.0
          %1717 = vmatpush.xpose.msra.mxu0 0.0
          %1718 = vmatpush.xpose.msra.mxu0 0.0
          %1719 = vmatpush.xpose.msra.mxu0 %v1703
          %1720 = vmatpush.xpose.msra.mxu0 %v1700
          %1721 = vmatmul.f32.gmra.mxu0 %v1698
          %v1722 = vpop.f32.mrf.mxu0
          %v1723 = vadd.f32 0.0, %v1722
          %1724 = vdwg.mxu0
          %v1726 = vsel %vm1220, %v1582, 0
          %v1728 = vsel %vm1220, %v1680, 0
          %v1730 = vsel %vm1220, %v1644, 0
          %1732 = vmatpush.xpose.msra.mxu0 0.0
          %1733 = vmatpush.xpose.msra.mxu0 0.0
          %1734 = vmatpush.xpose.msra.mxu0 0.0
          %1735 = vmatpush.xpose.msra.mxu0 0.0
          %1736 = vmatpush.xpose.msra.mxu0 0.0
          %1737 = vmatpush.xpose.msra.mxu0 0.0
          %1738 = vmatpush.xpose.msra.mxu0 0.0
          %1739 = vmatpush.xpose.msra.mxu0 0.0
          %1740 = vmatpush.xpose.msra.mxu0 0.0
          %1741 = vmatpush.xpose.msra.mxu0 0.0
          %1742 = vmatpush.xpose.msra.mxu0 0.0
          %1743 = vmatpush.xpose.msra.mxu0 0.0
          %1744 = vmatpush.xpose.msra.mxu0 0.0
          %1745 = vmatpush.xpose.msra.mxu0 0.0
          %1746 = vmatpush.xpose.msra.mxu0 %v1730
          %1747 = vmatpush.xpose.msra.mxu0 %v1728
          %1748 = vmatmul.f32.gmra.mxu0 %v1726
          %v1749 = vpop.f32.mrf.mxu0
          %v1750 = vadd.f32 0.0, %v1749
          %1751 = vdwg.mxu0
          %v1753 = vsel %vm1220, %v1583, 0
          %v1755 = vsel %vm1220, %v1682, 0
          %v1757 = vsel %vm1220, %v1645, 0
          %1759 = vmatpush.xpose.msra.mxu0 0.0
          %1760 = vmatpush.xpose.msra.mxu0 0.0
          %1761 = vmatpush.xpose.msra.mxu0 0.0
          %1762 = vmatpush.xpose.msra.mxu0 0.0
          %1763 = vmatpush.xpose.msra.mxu0 0.0
          %1764 = vmatpush.xpose.msra.mxu0 0.0
          %1765 = vmatpush.xpose.msra.mxu0 0.0
          %1766 = vmatpush.xpose.msra.mxu0 0.0
          %1767 = vmatpush.xpose.msra.mxu0 0.0
          %1768 = vmatpush.xpose.msra.mxu0 0.0
          %1769 = vmatpush.xpose.msra.mxu0 0.0
          %1770 = vmatpush.xpose.msra.mxu0 0.0
          %1771 = vmatpush.xpose.msra.mxu0 0.0
          %1772 = vmatpush.xpose.msra.mxu0 0.0
          %1773 = vmatpush.xpose.msra.mxu0 %v1757
          %1774 = vmatpush.xpose.msra.mxu0 %v1755
          %1775 = vmatmul.f32.gmra.mxu0 %v1753
          %v1776 = vpop.f32.mrf.mxu0
          %v1777 = vadd.f32 0.0, %v1776
          %1778 = vdwg.mxu0
          %v1780 = vsel %vm1220, %v1584, 0
          %v1782 = vsel %vm1220, %v1684, 0
          %v1784 = vsel %vm1220, %v1646, 0
          %1786 = vmatpush.xpose.msra.mxu0 0.0
          %1787 = vmatpush.xpose.msra.mxu0 0.0
          %1788 = vmatpush.xpose.msra.mxu0 0.0
          %1789 = vmatpush.xpose.msra.mxu0 0.0
          %1790 = vmatpush.xpose.msra.mxu0 0.0
          %1791 = vmatpush.xpose.msra.mxu0 0.0
          %1792 = vmatpush.xpose.msra.mxu0 0.0
          %1793 = vmatpush.xpose.msra.mxu0 0.0
          %1794 = vmatpush.xpose.msra.mxu0 0.0
          %1795 = vmatpush.xpose.msra.mxu0 0.0
          %1796 = vmatpush.xpose.msra.mxu0 0.0
          %1797 = vmatpush.xpose.msra.mxu0 0.0
          %1798 = vmatpush.xpose.msra.mxu0 0.0
          %1799 = vmatpush.xpose.msra.mxu0 0.0
          %1800 = vmatpush.xpose.msra.mxu0 %v1784
          %1801 = vmatpush.xpose.msra.mxu0 %v1782
          %1802 = vmatmul.f32.gmra.mxu0 %v1780
          %v1803 = vpop.f32.mrf.mxu0
          %v1804 = vadd.f32 0.0, %v1803
          %1805 = vdwg.mxu0
          %v1806 = vsel %vm1363, %v1723, -1e+30
          %v1807 = vsel %vm1363, %v1750, -1e+30
          %v1808 = vsel %vm1363, %v1777, -1e+30
          %v1809 = vsel %vm1363, %v1804, -1e+30
          %v1810 = vsel %vm1127, %v1806, -inf
          %1811 = vmax.xlane.f32.xlu0 %v1810
          %v1812 = vpop.xlane.xlu0 %1811
          %v1813 = vsel %vm1127, %v1807, -inf
          %1814 = vmax.xlane.f32.xlu0 %v1813
          %v1815 = vpop.xlane.xlu0 %1814
          %v1816 = vsel %vm1127, %v1808, -inf
          %1817 = vmax.xlane.f32.xlu0 %v1816
          %v1818 = vpop.xlane.xlu0 %1817
          %v1819 = vsel %vm1127, %v1809, -inf
          %1820 = vmax.xlane.f32.xlu0 %v1819
          %v1821 = vpop.xlane.xlu0 %1820
          %v1822 = vsub.f32 %v1806, %v1812
          %v1823 = vsub.f32 %v1807, %v1815
          %v1824 = vsub.f32 %v1808, %v1818
          %v1825 = vsub.f32 %v1809, %v1821
          %v1826 = vmul.f32 %v1822, 1.442695
          %v1827 = vpow.pop %v1826
          %v1828 = vmul.f32 %v1823, 1.442695
          %v1829 = vpow.pop %v1828
          %v1830 = vmul.f32 %v1824, 1.442695
          %v1831 = vpow.pop %v1830
          %v1832 = vmul.f32 %v1825, 1.442695
          %v1833 = vpow.pop %v1832
          %v1834 = vsel %vm1127, %v1827, 0.0
          %1835 = vadd.xlane.f32.xlu0 %v1834
          %v1836 = vpop.xlane.xlu0 %1835
          %v1837 = vsel %vm1127, %v1829, 0.0
          %1838 = vadd.xlane.f32.xlu0 %v1837
          %v1839 = vpop.xlane.xlu0 %1838
          %v1840 = vsel %vm1127, %v1831, 0.0
          %1841 = vadd.xlane.f32.xlu0 %v1840
          %v1842 = vpop.xlane.xlu0 %1841
          %v1843 = vsel %vm1127, %v1833, 0.0
          %1844 = vadd.xlane.f32.xlu0 %v1843
          %v1845 = vpop.xlane.xlu0 %1844
          %v1846 = vrcp.pop %v1836
          %v1847 = vrcp.pop %v1839
          %v1848 = vrcp.pop %v1842
          %v1849 = vrcp.pop %v1845
          %v1850 = vmul.f32 %v1827, %v1846
          %v1851 = vmul.f32 %v1829, %v1847
          %v1852 = vmul.f32 %v1831, %v1848
          %v1853 = vmul.f32 %v1833, %v1849
          %v1855 = vsel %vm1127, %v1850, 0
          %1857 = vmatpush.msra.mxu0 0.0
          %1858 = vmatpush.msra.mxu0 0.0
          %1859 = vmatpush.msra.mxu0 0.0
          %1860 = vmatpush.msra.mxu0 0.0
          %1861 = vmatpush.msra.mxu0 0.0
          %1862 = vmatpush.msra.mxu0 0.0
          %1863 = vmatpush.msra.mxu0 0.0
          %1864 = vmatpush.msra.mxu0 0.0
          %1865 = vmatpush.msra.mxu0 0.0
          %1866 = vmatpush.msra.mxu0 0.0
          %1867 = vmatpush.msra.mxu0 0.0
          %1868 = vmatpush.msra.mxu0 0.0
          %1869 = vmatpush.msra.mxu0 0.0
          %1870 = vmatpush.msra.mxu0 0.0
          %1871 = vmatpush.msra.mxu0 %v1066
          %1872 = vmatpush.msra.mxu0 %v1686
          %1873 = vmatmul.f32.gmra.mxu0 %v1855
          %v1874 = vpop.f32.mrf.mxu0
          %v1875 = vadd.f32 0.0, %v1874
          %1876 = vdwg.mxu0
          %v1878 = vsel %vm1127, %v1851, 0
          %1880 = vmatpush.msra.mxu0 0.0
          %1881 = vmatpush.msra.mxu0 0.0
          %1882 = vmatpush.msra.mxu0 0.0
          %1883 = vmatpush.msra.mxu0 0.0
          %1884 = vmatpush.msra.mxu0 0.0
          %1885 = vmatpush.msra.mxu0 0.0
          %1886 = vmatpush.msra.mxu0 0.0
          %1887 = vmatpush.msra.mxu0 0.0
          %1888 = vmatpush.msra.mxu0 0.0
          %1889 = vmatpush.msra.mxu0 0.0
          %1890 = vmatpush.msra.mxu0 0.0
          %1891 = vmatpush.msra.mxu0 0.0
          %1892 = vmatpush.msra.mxu0 0.0
          %1893 = vmatpush.msra.mxu0 0.0
          %1894 = vmatpush.msra.mxu0 %v1649
          %1895 = vmatpush.msra.mxu0 %v1689
          %1896 = vmatmul.f32.gmra.mxu0 %v1878
          %v1897 = vpop.f32.mrf.mxu0
          %v1898 = vadd.f32 0.0, %v1897
          %1899 = vdwg.mxu0
          %v1901 = vsel %vm1127, %v1852, 0
          %1903 = vmatpush.msra.mxu0 0.0
          %1904 = vmatpush.msra.mxu0 0.0
          %1905 = vmatpush.msra.mxu0 0.0
          %1906 = vmatpush.msra.mxu0 0.0
          %1907 = vmatpush.msra.mxu0 0.0
          %1908 = vmatpush.msra.mxu0 0.0
          %1909 = vmatpush.msra.mxu0 0.0
          %1910 = vmatpush.msra.mxu0 0.0
          %1911 = vmatpush.msra.mxu0 0.0
          %1912 = vmatpush.msra.mxu0 0.0
          %1913 = vmatpush.msra.mxu0 0.0
          %1914 = vmatpush.msra.mxu0 0.0
          %1915 = vmatpush.msra.mxu0 0.0
          %1916 = vmatpush.msra.mxu0 0.0
          %1917 = vmatpush.msra.mxu0 %v1652
          %1918 = vmatpush.msra.mxu0 %v1692
          %1919 = vmatmul.f32.gmra.mxu0 %v1901
          %v1920 = vpop.f32.mrf.mxu0
          %v1921 = vadd.f32 0.0, %v1920
          %1922 = vdwg.mxu0
          %v1924 = vsel %vm1127, %v1853, 0
          %1926 = vmatpush.msra.mxu0 0.0
          %1927 = vmatpush.msra.mxu0 0.0
          %1928 = vmatpush.msra.mxu0 0.0
          %1929 = vmatpush.msra.mxu0 0.0
          %1930 = vmatpush.msra.mxu0 0.0
          %1931 = vmatpush.msra.mxu0 0.0
          %1932 = vmatpush.msra.mxu0 0.0
          %1933 = vmatpush.msra.mxu0 0.0
          %1934 = vmatpush.msra.mxu0 0.0
          %1935 = vmatpush.msra.mxu0 0.0
          %1936 = vmatpush.msra.mxu0 0.0
          %1937 = vmatpush.msra.mxu0 0.0
          %1938 = vmatpush.msra.mxu0 0.0
          %1939 = vmatpush.msra.mxu0 0.0
          %1940 = vmatpush.msra.mxu0 %v1655
          %1941 = vmatpush.msra.mxu0 %v1695
          %1942 = vmatmul.f32.gmra.mxu0 %v1924
          %v1943 = vpop.f32.mrf.mxu0
          %v1944 = vadd.f32 0.0, %v1943
          %1945 = vdwg.mxu0
          %1947 = vrot.lane.b32.xlu0 %v1898, 32
          %v1948 = vpop.permute.xlu0 %1947
          %1951 = vrot.lane.b32.xlu0 %v1921, 64
          %v1952 = vpop.permute.xlu0 %1951
          %1955 = vrot.lane.b32.xlu0 %v1944, 96
          %v1956 = vpop.permute.xlu0 %1955
          %v1958 = vsel %vm1220, %v1875, %v1948
          %v1959 = vsel %vm1222, %v1958, %v1952
          %v1960 = vsel %vm1224, %v1959, %v1956
          %v1961 = vpack.c.bf16 %v1960, %v1518
          %v1962 = vld [vmem:[%s9] sm:$0xf]
          %v1963 = vld [vmem:[%s9 + $0x4] sm:$0xf]
          %v1964 = vld [vmem:[%s9 + $0x8] sm:$0xf]
          %v1965 = vld [vmem:[%s9 + $0xc] sm:$0xf]
          %v1966 = vld [vmem:[%s9 + $0x10] sm:$0xf]
          %v1967 = vld [vmem:[%s9 + $0x14] sm:$0xf]
          %v1968 = vld [vmem:[%s9 + $0x18] sm:$0xf]
          %v1969 = vld [vmem:[%s9 + $0x1c] sm:$0xf]
          %v1970 = vld [vmem:[%s9 + $0x20] sm:$0xf]
          %v1971 = vld [vmem:[%s9 + $0x24] sm:$0xf]
          %v1972 = vld [vmem:[%s9 + $0x28] sm:$0xf]
          %v1973 = vld [vmem:[%s9 + $0x2c] sm:$0xf]
          %v1974 = vld [vmem:[%s9 + $0x30] sm:$0xf]
          %v1975 = vld [vmem:[%s9 + $0x34] sm:$0xf]
          %v1976 = vld [vmem:[%s9 + $0x38] sm:$0xf]
          %v1977 = vld [vmem:[%s9 + $0x3c] sm:$0xf]
          %v1978 = vld [vmem:[#allocation10] sm:$0x1]
          %v1980 = vperm.slane %v1978, 0
          %v1998 = vunpack.c.l.b16 %v1962
          %v1999 = vunpack.c.l.b16 %v1963
          %v2000 = vunpack.c.l.b16 %v1964
          %v2001 = vunpack.c.l.b16 %v1965
          %v2002 = vunpack.c.l.b16 %v1966
          %v2003 = vunpack.c.l.b16 %v1967
          %v2004 = vunpack.c.l.b16 %v1968
          %v2005 = vunpack.c.l.b16 %v1969
          %v2006 = vunpack.c.l.b16 %v1970
          %v2007 = vunpack.c.l.b16 %v1971
          %v2008 = vunpack.c.l.b16 %v1972
          %v2009 = vunpack.c.l.b16 %v1973
          %v2010 = vunpack.c.l.b16 %v1974
          %v2011 = vunpack.c.l.b16 %v1975
          %v2012 = vunpack.c.l.b16 %v1976
          %v2013 = vunpack.c.l.b16 %v1977
          %v2014 = vpack.c.b16 %v1999, %v1998
          %v2015 = vpack.c.b16 %v2001, %v2000
          %v2016 = vpack.c.b16 %v2003, %v2002
          %v2017 = vpack.c.b16 %v2005, %v2004
          %v2018 = vpack.c.b16 %v2007, %v2006
          %v2019 = vpack.c.b16 %v2009, %v2008
          %v2020 = vpack.c.b16 %v2011, %v2010
          %v2021 = vpack.c.b16 %v2013, %v2012
          %2030 = vmatpush.bf16.msra.mxu0 %v2021
          %2031 = vmatpush.bf16.msra.mxu0 %v2020
          %2032 = vmatpush.bf16.msra.mxu0 %v2019
          %2033 = vmatpush.bf16.msra.mxu0 %v2018
          %2034 = vmatpush.bf16.msra.mxu0 %v2017
          %2035 = vmatpush.bf16.msra.mxu0 %v2016
          %2036 = vmatpush.bf16.msra.mxu0 %v2015
          %2037 = vmatpush.bf16.msra.mxu0 %v2014
          %2038 = vmatmul.bf16.gmra.mxu0 %v1961
          %v2039 = vpop.f32.mrf.mxu0
          %v2040 = vadd.f32 %v1980, %v2039
          %v2041 = vpop.f32.mrf.mxu0
          %v2042 = vadd.f32 %v1980, %v2041
          %2043 = vdwg.mxu0
          %v2044 = vadd.f32 %v794, %v2040
          %v2045 = vadd.f32 %v795, %v2042
          %v2046 = vld [vmem:[#allocation18] sm:$0x1]
          %v2048 = vperm.slane %v2046, 0
          %v2050 = vadd.f32 %v2044, %v2048
          %v2051 = vadd.f32 %v2045, %v2048
          %2052 = vst [vmem:[#allocation2] sm:$0xff] %v2050
          %2053 = vst [vmem:[#allocation2 + $0x8] sm:$0xff] %v2051
          %v2054 = vld [vmem:[#allocation12] sm:$0x1]
          %v2056 = vperm.slane %v2054, 0
          %v2058 = vmul.f32 %v843, %v2056
          %v2059 = vmul.f32 %v844, %v2056
          %v2060 = vld [vmem:[#allocation13] sm:$0x1]
          %v2062 = vperm.slane %v2060, 0
          %v2064 = vadd.f32 %v2058, %v2062
          %v2065 = vadd.f32 %v2059, %v2062
          %2066 = vst [vmem:[#allocation3] sm:$0xff] %v2064
          %2067 = vst [vmem:[#allocation3 + $0x8] sm:$0xff] %v2065
        $region132: #{tpu_custom_call.1} parent=87 // pred_fallthru
          _
        %v2068 = vld [vmem:[#allocation3] sm:$0xff]
        %v2069 = vld [vmem:[#allocation3 + $0x8] sm:$0xff]
        %v2070 = vpack.c.bf16 %v2069, %v2068
        %v2071 = vld [vmem:[%s701] sm:$0xff]
        %v2072 = vld [vmem:[%s701 + $0x8] sm:$0xff]
        %v2073 = vld [vmem:[%s701 + $0x10] sm:$0xff]
        %v2074 = vld [vmem:[%s701 + $0x18] sm:$0xff]
        %v2075 = vld [vmem:[%s701 + $0x20] sm:$0xff]
        %v2076 = vld [vmem:[%s701 + $0x28] sm:$0xff]
        %v2077 = vld [vmem:[%s701 + $0x30] sm:$0xff]
        %v2078 = vld [vmem:[%s701 + $0x38] sm:$0xff]
        %v2079 = vld [vmem:[%s701 + $0x40] sm:$0xff]
        %v2080 = vld [vmem:[%s701 + $0x48] sm:$0xff]
        %v2081 = vld [vmem:[%s701 + $0x50] sm:$0xff]
        %v2082 = vld [vmem:[%s701 + $0x58] sm:$0xff]
        %v2083 = vld [vmem:[%s701 + $0x60] sm:$0xff]
        %v2084 = vld [vmem:[%s701 + $0x68] sm:$0xff]
        %v2085 = vld [vmem:[%s701 + $0x70] sm:$0xff]
        %v2086 = vld [vmem:[%s701 + $0x78] sm:$0xff]
        %v2087 = vld [vmem:[%s711] sm:$0x3]
        %v2089 = vperm.slane %v2087, 0
        %v2090 = vperm.slane %v2087, 1
        %v2109 = vunpack.c.l.b16 %v2071
        %v2110 = vunpack.c.h.b16 %v2071
        %v2111 = vunpack.c.l.b16 %v2072
        %v2112 = vunpack.c.h.b16 %v2072
        %v2113 = vunpack.c.l.b16 %v2073
        %v2114 = vunpack.c.h.b16 %v2073
        %v2115 = vunpack.c.l.b16 %v2074
        %v2116 = vunpack.c.h.b16 %v2074
        %v2117 = vunpack.c.l.b16 %v2075
        %v2118 = vunpack.c.h.b16 %v2075
        %v2119 = vunpack.c.l.b16 %v2076
        %v2120 = vunpack.c.h.b16 %v2076
        %v2121 = vunpack.c.l.b16 %v2077
        %v2122 = vunpack.c.h.b16 %v2077
        %v2123 = vunpack.c.l.b16 %v2078
        %v2124 = vunpack.c.h.b16 %v2078
        %v2125 = vunpack.c.l.b16 %v2079
        %v2126 = vunpack.c.h.b16 %v2079
        %v2127 = vunpack.c.l.b16 %v2080
        %v2128 = vunpack.c.h.b16 %v2080
        %v2129 = vunpack.c.l.b16 %v2081
        %v2130 = vunpack.c.h.b16 %v2081
        %v2131 = vunpack.c.l.b16 %v2082
        %v2132 = vunpack.c.h.b16 %v2082
        %v2133 = vunpack.c.l.b16 %v2083
        %v2134 = vunpack.c.h.b16 %v2083
        %v2135 = vunpack.c.l.b16 %v2084
        %v2136 = vunpack.c.h.b16 %v2084
        %v2137 = vunpack.c.l.b16 %v2085
        %v2138 = vunpack.c.h.b16 %v2085
        %v2139 = vunpack.c.l.b16 %v2086
        %v2140 = vunpack.c.h.b16 %v2086
        %v2141 = vpack.c.b16 %v2111, %v2109
        %v2142 = vpack.c.b16 %v2112, %v2110
        %v2143 = vpack.c.b16 %v2115, %v2113
        %v2144 = vpack.c.b16 %v2116, %v2114
        %v2145 = vpack.c.b16 %v2119, %v2117
        %v2146 = vpack.c.b16 %v2120, %v2118
        %v2147 = vpack.c.b16 %v2123, %v2121
        %v2148 = vpack.c.b16 %v2124, %v2122
        %v2149 = vpack.c.b16 %v2127, %v2125
        %v2150 = vpack.c.b16 %v2128, %v2126
        %v2151 = vpack.c.b16 %v2131, %v2129
        %v2152 = vpack.c.b16 %v2132, %v2130
        %v2153 = vpack.c.b16 %v2135, %v2133
        %v2154 = vpack.c.b16 %v2136, %v2134
        %v2155 = vpack.c.b16 %v2139, %v2137
        %v2156 = vpack.c.b16 %v2140, %v2138
        %2173 = vmatpush.bf16.msra.mxu0 %v2155
        %2174 = vmatpush.bf16.msra.mxu0 %v2153
        %2175 = vmatpush.bf16.msra.mxu0 %v2151
        %2176 = vmatpush.bf16.msra.mxu0 %v2149
        %2177 = vmatpush.bf16.msra.mxu0 %v2147
        %2178 = vmatpush.bf16.msra.mxu0 %v2145
        %2179 = vmatpush.bf16.msra.mxu0 %v2143
        %2180 = vmatpush.bf16.msra.mxu0 %v2141
        %2181 = vmatmul.bf16.gmra.mxu0 %v2070
        %v2182 = vpop.f32.mrf.mxu0
        %v2183 = vadd.f32 %v2089, %v2182
        %v2184 = vpop.f32.mrf.mxu0
        %v2185 = vadd.f32 %v2089, %v2184
        %2186 = vdwg.mxu0
        %2187 = vmatpush.bf16.msra.mxu0 %v2156
        %2188 = vmatpush.bf16.msra.mxu0 %v2154
        %2189 = vmatpush.bf16.msra.mxu0 %v2152
        %2190 = vmatpush.bf16.msra.mxu0 %v2150
        %2191 = vmatpush.bf16.msra.mxu0 %v2148
        %2192 = vmatpush.bf16.msra.mxu0 %v2146
        %2193 = vmatpush.bf16.msra.mxu0 %v2144
        %2194 = vmatpush.bf16.msra.mxu0 %v2142
        %2195 = vmatmul.bf16.gmra.mxu0 %v2070
        %v2196 = vpop.f32.mrf.mxu0
        %v2197 = vadd.f32 %v2090, %v2196
        %v2198 = vpop.f32.mrf.mxu0
        %v2199 = vadd.f32 %v2090, %v2198
        %2200 = vdwg.mxu0
        %v2201 = vmul.f32 %v2183, 0.5
        %v2202 = vmul.f32 %v2197, 0.5
        %v2203 = vmul.f32 %v2185, 0.5
        %v2204 = vmul.f32 %v2199, 0.5
        %v2205 = vmul.f32 %v2183, 0.044715
        %v2206 = vmul.f32 %v2197, 0.044715
        %v2207 = vmul.f32 %v2185, 0.044715
        %v2208 = vmul.f32 %v2199, 0.044715
        %v2209 = vmul.f32 %v2205, %v2183
        %v2210 = vmul.f32 %v2206, %v2197
        %v2211 = vmul.f32 %v2207, %v2185
        %v2212 = vmul.f32 %v2208, %v2199
        %v2213 = vmul.f32 %v2209, %v2183
        %v2214 = vmul.f32 %v2210, %v2197
        %v2215 = vmul.f32 %v2211, %v2185
        %v2216 = vmul.f32 %v2212, %v2199
        %v2217 = vadd.f32 %v2183, %v2213
        %v2218 = vadd.f32 %v2197, %v2214
        %v2219 = vadd.f32 %v2185, %v2215
        %v2220 = vadd.f32 %v2199, %v2216
        %v2221 = vmul.f32 %v2217, 0.7978846
        %v2222 = vmul.f32 %v2218, 0.7978846
        %v2223 = vmul.f32 %v2219, 0.7978846
        %v2224 = vmul.f32 %v2220, 0.7978846
        %v2225 = vtanh.pop %v2221
        %v2226 = vtanh.pop %v2222
        %v2227 = vtanh.pop %v2223
        %v2228 = vtanh.pop %v2224
        %v2229 = vadd.f32 %v2225, 1.0
        %v2230 = vadd.f32 %v2226, 1.0
        %v2231 = vadd.f32 %v2227, 1.0
        %v2232 = vadd.f32 %v2228, 1.0
        %v2233 = vmul.f32 %v2201, %v2229
        %v2234 = vmul.f32 %v2202, %v2230
        %v2235 = vmul.f32 %v2203, %v2231
        %v2236 = vmul.f32 %v2204, %v2232
        %v2237 = vld [vmem:[#allocation2] sm:$0xff]
        %v2238 = vld [vmem:[#allocation2 + $0x8] sm:$0xff]
        %v2239 = vpack.c.bf16 %v2235, %v2233
        %v2240 = vpack.c.bf16 %v2236, %v2234
        %v2241 = vld [vmem:[%s721] sm:$0xf]
        %v2242 = vld [vmem:[%s721 + $0x4] sm:$0xf]
        %v2243 = vld [vmem:[%s721 + $0x8] sm:$0xf]
        %v2244 = vld [vmem:[%s721 + $0xc] sm:$0xf]
        %v2245 = vld [vmem:[%s721 + $0x10] sm:$0xf]
        %v2246 = vld [vmem:[%s721 + $0x14] sm:$0xf]
        %v2247 = vld [vmem:[%s721 + $0x18] sm:$0xf]
        %v2248 = vld [vmem:[%s721 + $0x1c] sm:$0xf]
        %v2249 = vld [vmem:[%s721 + $0x20] sm:$0xf]
        %v2250 = vld [vmem:[%s721 + $0x24] sm:$0xf]
        %v2251 = vld [vmem:[%s721 + $0x28] sm:$0xf]
        %v2252 = vld [vmem:[%s721 + $0x2c] sm:$0xf]
        %v2253 = vld [vmem:[%s721 + $0x30] sm:$0xf]
        %v2254 = vld [vmem:[%s721 + $0x34] sm:$0xf]
        %v2255 = vld [vmem:[%s721 + $0x38] sm:$0xf]
        %v2256 = vld [vmem:[%s721 + $0x3c] sm:$0xf]
        %v2257 = vld [vmem:[%s721 + $0x40] sm:$0xf]
        %v2258 = vld [vmem:[%s721 + $0x44] sm:$0xf]
        %v2259 = vld [vmem:[%s721 + $0x48] sm:$0xf]
        %v2260 = vld [vmem:[%s721 + $0x4c] sm:$0xf]
        %v2261 = vld [vmem:[%s721 + $0x50] sm:$0xf]
        %v2262 = vld [vmem:[%s721 + $0x54] sm:$0xf]
        %v2263 = vld [vmem:[%s721 + $0x58] sm:$0xf]
        %v2264 = vld [vmem:[%s721 + $0x5c] sm:$0xf]
        %v2265 = vld [vmem:[%s721 + $0x60] sm:$0xf]
        %v2266 = vld [vmem:[%s721 + $0x64] sm:$0xf]
        %v2267 = vld [vmem:[%s721 + $0x68] sm:$0xf]
        %v2268 = vld [vmem:[%s721 + $0x6c] sm:$0xf]
        %v2269 = vld [vmem:[%s721 + $0x70] sm:$0xf]
        %v2270 = vld [vmem:[%s721 + $0x74] sm:$0xf]
        %v2271 = vld [vmem:[%s721 + $0x78] sm:$0xf]
        %v2272 = vld [vmem:[%s721 + $0x7c] sm:$0xf]
        %v2305 = vunpack.c.l.b16 %v2241
        %v2306 = vunpack.c.l.b16 %v2242
        %v2307 = vunpack.c.l.b16 %v2243
        %v2308 = vunpack.c.l.b16 %v2244
        %v2309 = vunpack.c.l.b16 %v2245
        %v2310 = vunpack.c.l.b16 %v2246
        %v2311 = vunpack.c.l.b16 %v2247
        %v2312 = vunpack.c.l.b16 %v2248
        %v2313 = vunpack.c.l.b16 %v2249
        %v2314 = vunpack.c.l.b16 %v2250
        %v2315 = vunpack.c.l.b16 %v2251
        %v2316 = vunpack.c.l.b16 %v2252
        %v2317 = vunpack.c.l.b16 %v2253
        %v2318 = vunpack.c.l.b16 %v2254
        %v2319 = vunpack.c.l.b16 %v2255
        %v2320 = vunpack.c.l.b16 %v2256
        %v2321 = vunpack.c.l.b16 %v2257
        %v2322 = vunpack.c.l.b16 %v2258
        %v2323 = vunpack.c.l.b16 %v2259
        %v2324 = vunpack.c.l.b16 %v2260
        %v2325 = vunpack.c.l.b16 %v2261
        %v2326 = vunpack.c.l.b16 %v2262
        %v2327 = vunpack.c.l.b16 %v2263
        %v2328 = vunpack.c.l.b16 %v2264
        %v2329 = vunpack.c.l.b16 %v2265
        %v2330 = vunpack.c.l.b16 %v2266
        %v2331 = vunpack.c.l.b16 %v2267
        %v2332 = vunpack.c.l.b16 %v2268
        %v2333 = vunpack.c.l.b16 %v2269
        %v2334 = vunpack.c.l.b16 %v2270
        %v2335 = vunpack.c.l.b16 %v2271
        %v2336 = vunpack.c.l.b16 %v2272
        %v2337 = vpack.c.b16 %v2306, %v2305
        %v2338 = vpack.c.b16 %v2308, %v2307
        %v2339 = vpack.c.b16 %v2310, %v2309
        %v2340 = vpack.c.b16 %v2312, %v2311
        %v2341 = vpack.c.b16 %v2314, %v2313
        %v2342 = vpack.c.b16 %v2316, %v2315
        %v2343 = vpack.c.b16 %v2318, %v2317
        %v2344 = vpack.c.b16 %v2320, %v2319
        %v2345 = vpack.c.b16 %v2322, %v2321
        %v2346 = vpack.c.b16 %v2324, %v2323
        %v2347 = vpack.c.b16 %v2326, %v2325
        %v2348 = vpack.c.b16 %v2328, %v2327
        %v2349 = vpack.c.b16 %v2330, %v2329
        %v2350 = vpack.c.b16 %v2332, %v2331
        %v2351 = vpack.c.b16 %v2334, %v2333
        %v2352 = vpack.c.b16 %v2336, %v2335
        %2369 = vmatpush.bf16.msra.mxu0 %v2344
        %2370 = vmatpush.bf16.msra.mxu0 %v2343
        %2371 = vmatpush.bf16.msra.mxu0 %v2342
        %2372 = vmatpush.bf16.msra.mxu0 %v2341
        %2373 = vmatpush.bf16.msra.mxu0 %v2340
        %2374 = vmatpush.bf16.msra.mxu0 %v2339
        %2375 = vmatpush.bf16.msra.mxu0 %v2338
        %2376 = vmatpush.bf16.msra.mxu0 %v2337
        %2377 = vmatmul.bf16.gmra.mxu0 %v2239
        %v2378 = vpop.f32.mrf.mxu0
        %v2379 = vadd.f32 0.0, %v2378
        %v2380 = vpop.f32.mrf.mxu0
        %v2381 = vadd.f32 0.0, %v2380
        %2382 = vdwg.mxu0
        %2383 = vmatpush.bf16.msra.mxu0 %v2352
        %2384 = vmatpush.bf16.msra.mxu0 %v2351
        %2385 = vmatpush.bf16.msra.mxu0 %v2350
        %2386 = vmatpush.bf16.msra.mxu0 %v2349
        %2387 = vmatpush.bf16.msra.mxu0 %v2348
        %2388 = vmatpush.bf16.msra.mxu0 %v2347
        %2389 = vmatpush.bf16.msra.mxu0 %v2346
        %2390 = vmatpush.bf16.msra.mxu0 %v2345
        %2391 = vmatmul.bf16.gmra.mxu0 %v2240
        %v2392 = vpop.f32.mrf.mxu0
        %v2393 = vadd.f32 %v2379, %v2392
        %v2394 = vpop.f32.mrf.mxu0
        %v2395 = vadd.f32 %v2381, %v2394
        %2396 = vdwg.mxu0
        %v2397 = vadd.f32 %v2237, %v2393
        %v2398 = vadd.f32 %v2238, %v2395
        %2399 = vst [vmem:[#allocation2] sm:$0xff] %v2397
        %2400 = vst [vmem:[#allocation2 + $0x8] sm:$0xff] %v2398
        %p2401 = scmp.eq.s32.totalorder %s37, 1
        // Predicated region
        $region133: #{tpu_custom_call.1} parent=87 // pred_check
          %p2402 = pneg %p2401
        $region134: #{tpu_custom_call.1} parent=87 // pred_check_branch
          %2404 = sbr.rel (%p2402) target = $region136
        $region135: #{tpu_custom_call.1} parent=87 // pred_region
          %v2405 = vld [vmem:[#allocation2] sm:$0xff]
          %v2406 = vld [vmem:[#allocation2 + $0x8] sm:$0xff]
          %2407 = vst [vmem:[#allocation19] sm:$0xff] %v2405
          %2408 = vst [vmem:[#allocation19 + $0x8] sm:$0xff] %v2406
        $region136: #{tpu_custom_call.1} parent=87 // pred_fallthru
          _
        // Predicated region
        $region137: #{tpu_custom_call.1} parent=87 // pred_check
          %p2409 = pneg %p422
        $region138: #{tpu_custom_call.1} parent=87 // pred_check_branch
          %2411 = sbr.rel (%p2409) target = $region140
        $region139: #{tpu_custom_call.1} parent=87 // pred_region
          %2413 = vsyncadd [#allocation6], 0
          %s2414 = sshll.u32 [#allocation19], 4
          %s2415 = int_to_ptr.vmem [resolvable:$true] %s2414
          %s2416 = sshll.u32 %s17, 4
          %s2417 = int_to_ptr.hbm [resolvable:$true] %s2416
          %2422 = dma.vmem_to_hbm [thread:$0]  %s2415, 256, %s2417, [#allocation6], 128, 128, 8
        $region140: #{tpu_custom_call.1} parent=87 // pred_fallthru
          _
        // Predicated region
        $region141: #{tpu_custom_call.1} parent=87 // pred_check
          %p2423 = pneg %p443
        $region142: #{tpu_custom_call.1} parent=87 // pred_check_branch
          %2425 = sbr.rel (%p2423) target = $region144
        $region143: #{tpu_custom_call.1} parent=87 // pred_region
          %2427 = vsyncadd [#allocation21], 0
          %s2428 = scalar_lea.hbm %s18, 8
          %s2429 = sshll.u32 [#allocation20], 4
          %s2430 = int_to_ptr.vmem [resolvable:$true] %s2429
          %s2431 = sshll.u32 %s2428, 4
          %s2432 = int_to_ptr.hbm [resolvable:$true] %s2431
          %2437 = dma.vmem_to_hbm [thread:$0]  %s2430, 256, %s2432, [#allocation21], 128, 256, 8
        $region144: #{tpu_custom_call.1} parent=87 // pred_fallthru
          _
        // Predicated region
        $region145: #{tpu_custom_call.1} parent=87 // pred_check
          %p2438 = pneg %p464
        $region146: #{tpu_custom_call.1} parent=87 // pred_check_branch
          %2440 = sbr.rel (%p2438) target = $region148
        $region147: #{tpu_custom_call.1} parent=87 // pred_region
          %2442 = vsyncadd [#allocation21], 0
          %s2443 = scalar_lea.hbm %s19, 8
          %s2444 = sshll.u32 [#allocation22], 4
          %s2445 = int_to_ptr.vmem [resolvable:$true] %s2444
          %s2446 = sshll.u32 %s2443, 4
          %s2447 = int_to_ptr.hbm [resolvable:$true] %s2446
          %2452 = dma.vmem_to_hbm [thread:$0]  %s2445, 256, %s2447, [#allocation21], 128, 256, 8
        $region148: #{tpu_custom_call.1} parent=87 // pred_fallthru
          _
        // Predicated region
        $region149: #{tpu_custom_call.1} parent=87 // pred_check
          %p2453 = pneg %p422
        $region150: #{tpu_custom_call.1} parent=87 // pred_check_branch
          %2455 = sbr.rel (%p2453) target = $region152
        $region151: #{tpu_custom_call.1} parent=87 // pred_region
          %2457 = dma.done [#allocation6], 256
        $region152: #{tpu_custom_call.1} parent=87 // pred_fallthru
          _
        // Predicated region
        $region153: #{tpu_custom_call.1} parent=87 // pred_check
          %p2458 = pneg %p443
        $region154: #{tpu_custom_call.1} parent=87 // pred_check_branch
          %2460 = sbr.rel (%p2458) target = $region156
        $region155: #{tpu_custom_call.1} parent=87 // pred_region
          %2462 = dma.done [#allocation21], 256
        $region156: #{tpu_custom_call.1} parent=87 // pred_fallthru
          _
        // Predicated region
        $region157: #{tpu_custom_call.1} parent=87 // pred_check
          %p2463 = pneg %p464
        $region158: #{tpu_custom_call.1} parent=87 // pred_check_branch
          %2465 = sbr.rel (%p2463) target = $region160
        $region159: #{tpu_custom_call.1} parent=87 // pred_region
          %2467 = dma.done [#allocation21], 256
        $region160: #{tpu_custom_call.1} parent=87 // pred_fallthru
          _
      $region88: #{tpu_custom_call.1} parent=5 // pred_fallthru
        _
      %p2468 = scmp.le.s32.totalorder 2, %s32
      // Predicated region
      $region161: #{tpu_custom_call.1} parent=5 // pred_check
        %p2469 = pneg %p2468
      $region162: #{tpu_custom_call.1} parent=5 // pred_check_branch
        %2471 = sbr.rel (%p2469) target = $region164
      $region163: #{tpu_custom_call.1} parent=5 // pred_region
        %s2472 = ssub.s32 %s32, 2
      $region164: #{tpu_custom_call.1} parent=5 // pred_fallthru
        _
    $region6: #{tpu_custom_call.1} parent=1 // loop_footer
      %s36 = sadd.s32 1, %s32
    $region7: #{tpu_custom_call.1} parent=1 // loop_footer_branch
      %31 = sbr.rel target = $region3
    $region8: #{tpu_custom_call.1} parent=1 // loop_exit
      _
    %2473 = vsyncpa [#allocation5], 1
    %s2474 = scalar_lea.sflag [#allocation5], 1
    %2475 = vsyncpa %s2474, 1
    %2476 = vsyncpa [#allocation8], 1
    %2477 = vsyncpa [#allocation11], 1
    %2478 = vsyncpa [#allocation14], 1
    %2479 = vsyncpa [#allocation6], 1
    %s2480 = scalar_lea.sflag [#allocation6], 1
    %2481 = vsyncpa %s2480, 1
    %2482 = vsyncpa [#allocation21], 1

// kernel: tpu_custom_call.1
$region0: #{tpu_custom_call.1}
  #allocation0 [shape = 'u32[]', space=smem, size = 0x4, offset = 0x4, fixed_abs, tag = 'smem constant byte address 0x4 - core index']
  #allocation1 [shape = 'u32[72,128]{1,0:T(1,128)}', space=vmem, size = 0x9000, scoped, tag = 'internal scratch']
  #allocation2 [shape = 'f32[16,128]{1,0:T(8,128)}', space=vmem, size = 0x2000, scoped, tag = 'scratch operand']
  #allocation3 [shape = 'f32[16,128]{1,0:T(8,128)}', space=vmem, size = 0x2000, scoped, tag = 'scratch operand']
  %s0 = inlined_call_operand.vmem [shape: f32[2,8,128], index: 0, kind: input, shape index: {}]
  %s1 = inlined_call_operand.vmem [shape: f32[8,16], index: 1, kind: input, shape index: {}]
  %s2 = inlined_call_operand.vmem [shape: f32[8,16], index: 2, kind: input, shape index: {}]
  %s3 = inlined_call_operand.hbm [shape: f32[2,16,128], index: 3, kind: input, shape index: {}, may-alias: {3,18}]
  %s4 = inlined_call_operand.hbm [shape: f32[2,16,128], index: 4, kind: input, shape index: {}, may-alias: {4,19}]
  %s5 = inlined_call_operand.vmem [shape: f32[1,128], index: 5, kind: input, shape index: {}]
  %s6 = inlined_call_operand.vmem [shape: f32[1,128], index: 6, kind: input, shape index: {}]
  %s7 = inlined_call_operand.hbm [shape: bf16[128,384], index: 7, kind: input, shape index: {}]
  %s8 = inlined_call_operand.vmem [shape: f32[1,384], index: 8, kind: input, shape index: {}]
  %s9 = inlined_call_operand.vmem [shape: bf16[128,128], index: 9, kind: input, shape index: {}]
  %s10 = inlined_call_operand.hbm [shape: f32[1,128], index: 10, kind: input, shape index: {}]
  %s11 = inlined_call_operand.hbm [shape: f32[1,128], index: 11, kind: input, shape index: {}]
  %s12 = inlined_call_operand.hbm [shape: f32[1,128], index: 12, kind: input, shape index: {}]
  %s13 = inlined_call_operand.hbm [shape: bf16[128,512], index: 13, kind: input, shape index: {}]
  %s14 = inlined_call_operand.hbm [shape: f32[1,512], index: 14, kind: input, shape index: {}]
  %s15 = inlined_call_operand.hbm [shape: bf16[512,128], index: 15, kind: input, shape index: {}]
  %s16 = inlined_call_operand.hbm [shape: f32[1,128], index: 16, kind: input, shape index: {}]
  %s17 = inlined_call_operand.hbm [shape: f32[2,8,128], index: 17, kind: output, shape index: {0}]
  %s18 = inlined_call_operand.hbm [shape: f32[2,16,128], index: 18, kind: output, shape index: {1}, may-alias: {3,18}]
  %s19 = inlined_call_operand.hbm [shape: f32[2,16,128], index: 19, kind: output, shape index: {2}, may-alias: {4,19}]
  %20 = xla_tuple %s17, %s18, %s19
  %s21 = sld [smem:[#allocation0]]
  $region165: #{tpu_custom_call.1} parent=0
    _
  %s23 = ssub.s32 1, %s21
  %s24 = scalar_select 0, %s23, %s21
  $region1: #{tpu_custom_call.1} parent=0
    #allocation4 [shape = 'u8[8192]{0}', space=vmem, size = 0x2000, scoped, tag = 'input window, operand 3, single buffered']
    #allocation5 [shape = 's32[2]{0}', space=sflag, size = 0x8, scoped, tag = 'scoped memory for tpu_custom_call.1']
    #allocation6 [shape = 's32[2]{0}', space=sflag, size = 0x8, scoped, tag = 'scoped memory for tpu_custom_call.1']
    #allocation7 [shape = 'u8[8192]{0}', space=vmem, size = 0x2000, scoped, tag = 'input window, operand 4, single buffered']
    #allocation8 [shape = 's32[1]{0}', space=sflag, size = 0x4, scoped, tag = 'scoped memory for tpu_custom_call.1']
    #allocation9 [shape = 'u8[98304]{0}', space=vmem, size = 0x18000, scoped, tag = 'input window, operand 7, single buffered']
    #allocation10 [shape = 'u8[512]{0}', space=vmem, size = 0x400, scoped, tag = 'input window, operand 10, single buffered']
    #allocation11 [shape = 's32[1]{0}', space=sflag, size = 0x4, scoped, tag = 'scoped memory for tpu_custom_call.1']
    #allocation12 [shape = 'u8[512]{0}', space=vmem, size = 0x400, scoped, tag = 'input window, operand 11, single buffered']
    #allocation13 [shape = 'u8[512]{0}', space=vmem, size = 0x400, scoped, tag = 'input window, operand 12, single buffered']
    #allocation14 [shape = 's32[1]{0}', space=sflag, size = 0x4, scoped, tag = 'scoped memory for tpu_custom_call.1']
    #allocation15 [shape = 'u8[131072]{0}', space=vmem, size = 0x20000, scoped, tag = 'input window, operand 13']
    #allocation16 [shape = 'u8[2048]{0}', space=vmem, size = 0x800, scoped, tag = 'input window, operand 14']
    #allocation17 [shape = 'u8[131072]{0}', space=vmem, size = 0x20000, scoped, tag = 'input window, operand 15']
    #allocation18 [shape = 'u8[512]{0}', space=vmem, size = 0x400, scoped, tag = 'input window, operand 16, single buffered']
    #allocation19 [shape = 'u8[8192]{0}', space=vmem, size = 0x2000, scoped, tag = 'output window, operand 0, single buffered']
    #allocation20 [shape = 'u8[8192]{0}', space=vmem, size = 0x2000, scoped, tag = 'output window, operand 1, single buffered']
    #allocation21 [shape = 's32[1]{0}', space=sflag, size = 0x4, scoped, tag = 'scoped memory for tpu_custom_call.1']
    #allocation22 [shape = 'u8[8192]{0}', space=vmem, size = 0x2000, scoped, tag = 'output window, operand 2, single buffered']
    %25 = vsyncpa [#allocation5], 0
    %26 = vsyncpa [#allocation8], 0
    %27 = vsyncpa [#allocation11], 0
    %28 = vsyncpa [#allocation14], 0
    %29 = vsyncpa [#allocation6], 0
    %30 = vsyncpa [#allocation21], 0
    loop: start=0, step=1, limit=4
    $region2: #{tpu_custom_call.1} parent=1 // loop_pre_header
      _
    $region3: #{tpu_custom_call.1} parent=1 // loop_header
      %s32 = sphi 0, %s36
      %p33 = scmp.ge.s32.totalorder %s32, 4
      %s40 = sphi 0, %s40
      %s42 = sphi 0, %s40
      %s43 = sphi 0, %s42
      %s57 = sphi 0, %s43
      %s61 = sphi 0, %s61
      %s63 = sphi 0, %s61
      %s64 = sphi 0, %s63
      %s78 = sphi 0, %s64
      %s82 = sphi 0, %s82
      %s84 = sphi 0, %s82
      %s85 = sphi 0, %s84
      %s99 = sphi 0, %s85
      %s103 = sphi 0, %s103
      %s105 = sphi 0, %s103
      %s106 = sphi 0, %s105
      %s120 = sphi 0, %s106
      %s124 = sphi 0, %s124
      %s126 = sphi 0, %s124
      %s127 = sphi 0, %s126
      %s141 = sphi 0, %s127
      %s145 = sphi 0, %s145
      %s147 = sphi 0, %s145
      %s148 = sphi 0, %s147
      %s162 = sphi 0, %s148
      %s166 = sphi 0, %s166
      %s168 = sphi 0, %s166
      %s169 = sphi 0, %s168
      %s183 = sphi 0, %s169
      %s187 = sphi 0, %s187
      %s189 = sphi 0, %s187
      %s190 = sphi 0, %s189
      %s204 = sphi 0, %s190
      %s208 = sphi 0, %s208
      %s210 = sphi 0, %s208
      %s211 = sphi 0, %s210
      %s225 = sphi 0, %s211
      %s229 = sphi 0, %s229
      %s231 = sphi 0, %s229
      %s232 = sphi 0, %s231
      %s246 = sphi 0, %s232
      %s250 = sphi 0, %s250
      %s252 = sphi 0, %s250
      %s253 = sphi 0, %s252
      %s267 = sphi 0, %s253
      %s271 = sphi 0, %s271
      %s273 = sphi 0, %s271
      %s274 = sphi 0, %s273
      %s288 = sphi 0, %s274
      %s292 = sphi 0, %s292
      %s294 = sphi 0, %s292
      %s295 = sphi 0, %s294
      %s309 = sphi 0, %s295
      %s315 = sphi 0, %s317
      %s318 = sphi 0, %s315
      %s319 = sphi 0, %s318
      %s335 = sphi 0, %s319
      %s341 = sphi 0, %s343
      %s344 = sphi 0, %s341
      %s345 = sphi 0, %s344
      %s361 = sphi 0, %s345
      %s367 = sphi 0, %s369
      %s370 = sphi 0, %s367
      %s371 = sphi 0, %s370
      %s387 = sphi 0, %s371
      %s391 = sphi 0, %s391
      %s393 = sphi 0, %s391
      %s394 = sphi 0, %s393
      %s408 = sphi 0, %s394
      %s412 = sphi 0, %s412
      %s414 = sphi 0, %s412
      %s415 = sphi 0, %s414
      %s429 = sphi 0, %s415
      %s433 = sphi 0, %s433
      %s435 = sphi 0, %s433
      %s436 = sphi 0, %s435
      %s450 = sphi 0, %s436
      %s454 = sphi 0, %s454
      %s456 = sphi 0, %s454
      %s457 = sphi 0, %s456
      %s471 = sphi 0, %s457
    $region4: #{tpu_custom_call.1} parent=1 // loop_header_branch
      %35 = sbr.rel (%p33) target = $region8
    $region5: #{tpu_custom_call.1} parent=1 // loop_body
      %s37 = ssub.s32 %s32, 1
      %s38 = ssub.s32 %s32, 2
      %s39 = sadd.s32 %s32, 1
      %s41 = sadd.s32 %s40, 1
      %p44 = scmp.eq.s32.totalorder %s32, 1
      %p45 = scmp.ne.s32.totalorder %s40, %s42
      %p46 = scmp.eq.s32.totalorder %s32, 0
      %p47 = por %p45, %p46
      %p48 = scmp.ne.s32.totalorder %s40, %s42
      %p49 = scmp.eq.s32.totalorder %s37, 1
      %p50 = por %p48, %p49
      %p51 = scmp.ne.s32.totalorder %s42, %s43
      %p52 = scmp.eq.s32.totalorder %s37, 0
      %p53 = por %p51, %p52
      %p54 = scmp.ne.s32.totalorder %s42, %s43
      %p55 = scmp.eq.s32.totalorder %s38, 1
      %p56 = por %p54, %p55
      %p58 = scmp.ne.s32.totalorder %s43, %s57
      %p59 = scmp.eq.s32.totalorder %s38, 0
      %p60 = por %p58, %p59
      %s62 = sadd.s32 %s61, 1
      %p65 = scmp.eq.s32.totalorder %s32, 1
      %p66 = scmp.ne.s32.totalorder %s61, %s63
      %p67 = scmp.eq.s32.totalorder %s32, 0
      %p68 = por %p66, %p67
      %p69 = scmp.ne.s32.totalorder %s61, %s63
      %p70 = scmp.eq.s32.totalorder %s37, 1
      %p71 = por %p69, %p70
      %p72 = scmp.ne.s32.totalorder %s63, %s64
      %p73 = scmp.eq.s32.totalorder %s37, 0
      %p74 = por %p72, %p73
      %p75 = scmp.ne.s32.totalorder %s63, %s64
      %p76 = scmp.eq.s32.totalorder %s38, 1
      %p77 = por %p75, %p76
      %p79 = scmp.ne.s32.totalorder %s64, %s78
      %p80 = scmp.eq.s32.totalorder %s38, 0
      %p81 = por %p79, %p80
      %s83 = sadd.s32 %s82, 1
      %p86 = scmp.eq.s32.totalorder %s32, 1
      %p87 = scmp.ne.s32.totalorder %s82, %s84
      %p88 = scmp.eq.s32.totalorder %s32, 0
      %p89 = por %p87, %p88
      %p90 = scmp.ne.s32.totalorder %s82, %s84
      %p91 = scmp.eq.s32.totalorder %s37, 1
      %p92 = por %p90, %p91
      %p93 = scmp.ne.s32.totalorder %s84, %s85
      %p94 = scmp.eq.s32.totalorder %s37, 0
      %p95 = por %p93, %p94
      %p96 = scmp.ne.s32.totalorder %s84, %s85
      %p97 = scmp.eq.s32.totalorder %s38, 1
      %p98 = por %p96, %p97
      %p100 = scmp.ne.s32.totalorder %s85, %s99
      %p101 = scmp.eq.s32.totalorder %s38, 0
      %p102 = por %p100, %p101
      %s104 = sadd.s32 %s103, 1
      %p107 = scmp.eq.s32.totalorder %s32, 1
      %p108 = scmp.ne.s32.totalorder %s103, %s105
      %p109 = scmp.eq.s32.totalorder %s32, 0
      %p110 = por %p108, %p109
      %p111 = scmp.ne.s32.totalorder %s103, %s105
      %p112 = scmp.eq.s32.totalorder %s37, 1
      %p113 = por %p111, %p112
      %p114 = scmp.ne.s32.totalorder %s105, %s106
      %p115 = scmp.eq.s32.totalorder %s37, 0
      %p116 = por %p114, %p115
      %p117 = scmp.ne.s32.totalorder %s105, %s106
      %p118 = scmp.eq.s32.totalorder %s38, 1
      %p119 = por %p117, %p118
      %p121 = scmp.ne.s32.totalorder %s106, %s120
      %p122 = scmp.eq.s32.totalorder %s38, 0
      %p123 = por %p121, %p122
      %s125 = sadd.s32 %s124, 1
      %p128 = scmp.eq.s32.totalorder %s32, 1
      %p129 = scmp.ne.s32.totalorder %s124, %s126
      %p130 = scmp.eq.s32.totalorder %s32, 0
      %p131 = por %p129, %p130
      %p132 = scmp.ne.s32.totalorder %s124, %s126
      %p133 = scmp.eq.s32.totalorder %s37, 1
      %p134 = por %p132, %p133
      %p135 = scmp.ne.s32.totalorder %s126, %s127
      %p136 = scmp.eq.s32.totalorder %s37, 0
      %p137 = por %p135, %p136
      %p138 = scmp.ne.s32.totalorder %s126, %s127
      %p139 = scmp.eq.s32.totalorder %s38, 1
      %p140 = por %p138, %p139
      %p142 = scmp.ne.s32.totalorder %s127, %s141
      %p143 = scmp.eq.s32.totalorder %s38, 0
      %p144 = por %p142, %p143
      %s146 = sadd.s32 %s145, 1
      %p149 = scmp.eq.s32.totalorder %s32, 1
      %p150 = scmp.ne.s32.totalorder %s145, %s147
      %p151 = scmp.eq.s32.totalorder %s32, 0
      %p152 = por %p150, %p151
      %p153 = scmp.ne.s32.totalorder %s145, %s147
      %p154 = scmp.eq.s32.totalorder %s37, 1
      %p155 = por %p153, %p154
      %p156 = scmp.ne.s32.totalorder %s147, %s148
      %p157 = scmp.eq.s32.totalorder %s37, 0
      %p158 = por %p156, %p157
      %p159 = scmp.ne.s32.totalorder %s147, %s148
      %p160 = scmp.eq.s32.totalorder %s38, 1
      %p161 = por %p159, %p160
      %p163 = scmp.ne.s32.totalorder %s148, %s162
      %p164 = scmp.eq.s32.totalorder %s38, 0
      %p165 = por %p163, %p164
      %s167 = sadd.s32 %s166, 1
      %p170 = scmp.eq.s32.totalorder %s32, 1
      %p171 = scmp.ne.s32.totalorder %s166, %s168
      %p172 = scmp.eq.s32.totalorder %s32, 0
      %p173 = por %p171, %p172
      %p174 = scmp.ne.s32.totalorder %s166, %s168
      %p175 = scmp.eq.s32.totalorder %s37, 1
      %p176 = por %p174, %p175
      %p177 = scmp.ne.s32.totalorder %s168, %s169
      %p178 = scmp.eq.s32.totalorder %s37, 0
      %p179 = por %p177, %p178
      %p180 = scmp.ne.s32.totalorder %s168, %s169
      %p181 = scmp.eq.s32.totalorder %s38, 1
      %p182 = por %p180, %p181
      %p184 = scmp.ne.s32.totalorder %s169, %s183
      %p185 = scmp.eq.s32.totalorder %s38, 0
      %p186 = por %p184, %p185
      %s188 = sadd.s32 %s187, 1
      %p191 = scmp.eq.s32.totalorder %s32, 1
      %p192 = scmp.ne.s32.totalorder %s187, %s189
      %p193 = scmp.eq.s32.totalorder %s32, 0
      %p194 = por %p192, %p193
      %p195 = scmp.ne.s32.totalorder %s187, %s189
      %p196 = scmp.eq.s32.totalorder %s37, 1
      %p197 = por %p195, %p196
      %p198 = scmp.ne.s32.totalorder %s189, %s190
      %p199 = scmp.eq.s32.totalorder %s37, 0
      %p200 = por %p198, %p199
      %p201 = scmp.ne.s32.totalorder %s189, %s190
      %p202 = scmp.eq.s32.totalorder %s38, 1
      %p203 = por %p201, %p202
      %p205 = scmp.ne.s32.totalorder %s190, %s204
      %p206 = scmp.eq.s32.totalorder %s38, 0
      %p207 = por %p205, %p206
      %s209 = sadd.s32 %s208, 1
      %p212 = scmp.eq.s32.totalorder %s32, 1
      %p213 = scmp.ne.s32.totalorder %s208, %s210
      %p214 = scmp.eq.s32.totalorder %s32, 0
      %p215 = por %p213, %p214
      %p216 = scmp.ne.s32.totalorder %s208, %s210
      %p217 = scmp.eq.s32.totalorder %s37, 1
      %p218 = por %p216, %p217
      %p219 = scmp.ne.s32.totalorder %s210, %s211
      %p220 = scmp.eq.s32.totalorder %s37, 0
      %p221 = por %p219, %p220
      %p222 = scmp.ne.s32.totalorder %s210, %s211
      %p223 = scmp.eq.s32.totalorder %s38, 1
      %p224 = por %p222, %p223
      %p226 = scmp.ne.s32.totalorder %s211, %s225
      %p227 = scmp.eq.s32.totalorder %s38, 0
      %p228 = por %p226, %p227
      %s230 = sadd.s32 %s229, 1
      %p233 = scmp.eq.s32.totalorder %s32, 1
      %p234 = scmp.ne.s32.totalorder %s229, %s231
      %p235 = scmp.eq.s32.totalorder %s32, 0
      %p236 = por %p234, %p235
      %p237 = scmp.ne.s32.totalorder %s229, %s231
      %p238 = scmp.eq.s32.totalorder %s37, 1
      %p239 = por %p237, %p238
      %p240 = scmp.ne.s32.totalorder %s231, %s232
      %p241 = scmp.eq.s32.totalorder %s37, 0
      %p242 = por %p240, %p241
      %p243 = scmp.ne.s32.totalorder %s231, %s232
      %p244 = scmp.eq.s32.totalorder %s38, 1
      %p245 = por %p243, %p244
      %p247 = scmp.ne.s32.totalorder %s232, %s246
      %p248 = scmp.eq.s32.totalorder %s38, 0
      %p249 = por %p247, %p248
      %s251 = sadd.s32 %s250, 1
      %p254 = scmp.eq.s32.totalorder %s32, 1
      %p255 = scmp.ne.s32.totalorder %s250, %s252
      %p256 = scmp.eq.s32.totalorder %s32, 0
      %p257 = por %p255, %p256
      %p258 = scmp.ne.s32.totalorder %s250, %s252
      %p259 = scmp.eq.s32.totalorder %s37, 1
      %p260 = por %p258, %p259
      %p261 = scmp.ne.s32.totalorder %s252, %s253
      %p262 = scmp.eq.s32.totalorder %s37, 0
      %p263 = por %p261, %p262
      %p264 = scmp.ne.s32.totalorder %s252, %s253
      %p265 = scmp.eq.s32.totalorder %s38, 1
      %p266 = por %p264, %p265
      %p268 = scmp.ne.s32.totalorder %s253, %s267
      %p269 = scmp.eq.s32.totalorder %s38, 0
      %p270 = por %p268, %p269
      %s272 = sadd.s32 %s271, 1
      %p275 = scmp.eq.s32.totalorder %s32, 1
      %p276 = scmp.ne.s32.totalorder %s271, %s273
      %p277 = scmp.eq.s32.totalorder %s32, 0
      %p278 = por %p276, %p277
      %p279 = scmp.ne.s32.totalorder %s271, %s273
      %p280 = scmp.eq.s32.totalorder %s37, 1
      %p281 = por %p279, %p280
      %p282 = scmp.ne.s32.totalorder %s273, %s274
      %p283 = scmp.eq.s32.totalorder %s37, 0
      %p284 = por %p282, %p283
      %p285 = scmp.ne.s32.totalorder %s273, %s274
      %p286 = scmp.eq.s32.totalorder %s38, 1
      %p287 = por %p285, %p286
      %p289 = scmp.ne.s32.totalorder %s274, %s288
      %p290 = scmp.eq.s32.totalorder %s38, 0
      %p291 = por %p289, %p290
      %s293 = sadd.s32 %s292, 1
      %p296 = scmp.eq.s32.totalorder %s32, 1
      %p297 = scmp.ne.s32.totalorder %s292, %s294
      %p298 = scmp.eq.s32.totalorder %s32, 0
      %p299 = por %p297, %p298
      %p300 = scmp.ne.s32.totalorder %s292, %s294
      %p301 = scmp.eq.s32.totalorder %s37, 1
      %p302 = por %p300, %p301
      %p303 = scmp.ne.s32.totalorder %s294, %s295
      %p304 = scmp.eq.s32.totalorder %s37, 0
      %p305 = por %p303, %p304
      %p306 = scmp.ne.s32.totalorder %s294, %s295
      %p307 = scmp.eq.s32.totalorder %s38, 1
      %p308 = por %p306, %p307
      %p310 = scmp.ne.s32.totalorder %s295, %s309
      %p311 = scmp.eq.s32.totalorder %s38, 0
      %p312 = por %p310, %p311
      %s313 = ssub.s32 %s32, %s39
      %p314 = scmp.eq.s32.totalorder %s313, 0
      %s316 = sadd.s32 %s315, 1
      %s317 = scalar_select %p314, %s315, %s316
      %p320 = pneg %p314
      %p321 = scmp.eq.s32.totalorder %s32, 1
      %p322 = por %p320, %p321
      %p323 = scmp.ne.s32.totalorder %s315, %s318
      %p324 = scmp.eq.s32.totalorder %s32, 0
      %p325 = por %p323, %p324
      %p326 = scmp.ne.s32.totalorder %s315, %s318
      %p327 = scmp.eq.s32.totalorder %s37, 1
      %p328 = por %p326, %p327
      %p329 = scmp.ne.s32.totalorder %s318, %s319
      %p330 = scmp.eq.s32.totalorder %s37, 0
      %p331 = por %p329, %p330
      %p332 = scmp.ne.s32.totalorder %s318, %s319
      %p333 = scmp.eq.s32.totalorder %s38, 1
      %p334 = por %p332, %p333
      %p336 = scmp.ne.s32.totalorder %s319, %s335
      %p337 = scmp.eq.s32.totalorder %s38, 0
      %p338 = por %p336, %p337
      %s339 = ssub.s32 %s32, %s39
      %p340 = scmp.eq.s32.totalorder %s339, 0
      %s342 = sadd.s32 %s341, 1
      %s343 = scalar_select %p340, %s341, %s342
      %p346 = pneg %p340
      %p347 = scmp.eq.s32.totalorder %s32, 1
      %p348 = por %p346, %p347
      %p349 = scmp.ne.s32.totalorder %s341, %s344
      %p350 = scmp.eq.s32.totalorder %s32, 0
      %p351 = por %p349, %p350
      %p352 = scmp.ne.s32.totalorder %s341, %s344
      %p353 = scmp.eq.s32.totalorder %s37, 1
      %p354 = por %p352, %p353
      %p355 = scmp.ne.s32.totalorder %s344, %s345
      %p356 = scmp.eq.s32.totalorder %s37, 0
      %p357 = por %p355, %p356
      %p358 = scmp.ne.s32.totalorder %s344, %s345
      %p359 = scmp.eq.s32.totalorder %s38, 1
      %p360 = por %p358, %p359
      %p362 = scmp.ne.s32.totalorder %s345, %s361
      %p363 = scmp.eq.s32.totalorder %s38, 0
      %p364 = por %p362, %p363
      %s365 = ssub.s32 %s32, %s39
      %p366 = scmp.eq.s32.totalorder %s365, 0
      %s368 = sadd.s32 %s367, 1
      %s369 = scalar_select %p366, %s367, %s368
      %p372 = pneg %p366
      %p373 = scmp.eq.s32.totalorder %s32, 1
      %p374 = por %p372, %p373
      %p375 = scmp.ne.s32.totalorder %s367, %s370
      %p376 = scmp.eq.s32.totalorder %s32, 0
      %p377 = por %p375, %p376
      %p378 = scmp.ne.s32.totalorder %s367, %s370
      %p379 = scmp.eq.s32.totalorder %s37, 1
      %p380 = por %p378, %p379
      %p381 = scmp.ne.s32.totalorder %s370, %s371
      %p382 = scmp.eq.s32.totalorder %s37, 0
      %p383 = por %p381, %p382
      %p384 = scmp.ne.s32.totalorder %s370, %s371
      %p385 = scmp.eq.s32.totalorder %s38, 1
      %p386 = por %p384, %p385
      %p388 = scmp.ne.s32.totalorder %s371, %s387
      %p389 = scmp.eq.s32.totalorder %s38, 0
      %p390 = por %p388, %p389
      %s392 = sadd.s32 %s391, 1
      %p395 = scmp.eq.s32.totalorder %s32, 1
      %p396 = scmp.ne.s32.totalorder %s391, %s393
      %p397 = scmp.eq.s32.totalorder %s32, 0
      %p398 = por %p396, %p397
      %p399 = scmp.ne.s32.totalorder %s391, %s393
      %p400 = scmp.eq.s32.totalorder %s37, 1
      %p401 = por %p399, %p400
      %p402 = scmp.ne.s32.totalorder %s393, %s394
      %p403 = scmp.eq.s32.totalorder %s37, 0
      %p404 = por %p402, %p403
      %p405 = scmp.ne.s32.totalorder %s393, %s394
      %p406 = scmp.eq.s32.totalorder %s38, 1
      %p407 = por %p405, %p406
      %p409 = scmp.ne.s32.totalorder %s394, %s408
      %p410 = scmp.eq.s32.totalorder %s38, 0
      %p411 = por %p409, %p410
      %s413 = sadd.s32 %s412, 1
      %p416 = scmp.eq.s32.totalorder %s32, 1
      %p417 = scmp.ne.s32.totalorder %s412, %s414
      %p418 = scmp.eq.s32.totalorder %s32, 0
      %p419 = por %p417, %p418
      %p420 = scmp.ne.s32.totalorder %s412, %s414
      %p421 = scmp.eq.s32.totalorder %s37, 1
      %p422 = por %p420, %p421
      %p423 = scmp.ne.s32.totalorder %s414, %s415
      %p424 = scmp.eq.s32.totalorder %s37, 0
      %p425 = por %p423, %p424
      %p426 = scmp.ne.s32.totalorder %s414, %s415
      %p427 = scmp.eq.s32.totalorder %s38, 1
      %p428 = por %p426, %p427
      %p430 = scmp.ne.s32.totalorder %s415, %s429
      %p431 = scmp.eq.s32.totalorder %s38, 0
      %p432 = por %p430, %p431
      %s434 = sadd.s32 %s433, 1
      %p437 = scmp.eq.s32.totalorder %s32, 1
      %p438 = scmp.ne.s32.totalorder %s433, %s435
      %p439 = scmp.eq.s32.totalorder %s32, 0
      %p440 = por %p438, %p439
      %p441 = scmp.ne.s32.totalorder %s433, %s435
      %p442 = scmp.eq.s32.totalorder %s37, 1
      %p443 = por %p441, %p442
      %p444 = scmp.ne.s32.totalorder %s435, %s436
      %p445 = scmp.eq.s32.totalorder %s37, 0
      %p446 = por %p444, %p445
      %p447 = scmp.ne.s32.totalorder %s435, %s436
      %p448 = scmp.eq.s32.totalorder %s38, 1
      %p449 = por %p447, %p448
      %p451 = scmp.ne.s32.totalorder %s436, %s450
      %p452 = scmp.eq.s32.totalorder %s38, 0
      %p453 = por %p451, %p452
      %s455 = sadd.s32 %s454, 1
      %p458 = scmp.eq.s32.totalorder %s32, 1
      %p459 = scmp.ne.s32.totalorder %s454, %s456
      %p460 = scmp.eq.s32.totalorder %s32, 0
      %p461 = por %p459, %p460
      %p462 = scmp.ne.s32.totalorder %s454, %s456
      %p463 = scmp.eq.s32.totalorder %s37, 1
      %p464 = por %p462, %p463
      %p465 = scmp.ne.s32.totalorder %s456, %s457
      %p466 = scmp.eq.s32.totalorder %s37, 0
      %p467 = por %p465, %p466
      %p468 = scmp.ne.s32.totalorder %s456, %s457
      %p469 = scmp.eq.s32.totalorder %s38, 1
      %p470 = por %p468, %p469
      %p472 = scmp.ne.s32.totalorder %s457, %s471
      %p473 = scmp.eq.s32.totalorder %s38, 0
      %p474 = por %p472, %p473
      %p475 = scmp.le.s32.totalorder 1, %s32
      %p476 = scmp.lt.s32.totalorder %s32, 3
      %p477 = pnand %p475, %p476
      %p478 = pneg %p477
      // Predicated region
      $region9: #{tpu_custom_call.1} parent=5 // pred_check
        _
      $region10: #{tpu_custom_call.1} parent=5 // pred_check_branch
        %480 = sbr.rel (%p477) target = $region12
      $region11: #{tpu_custom_call.1} parent=5 // pred_region
        %s481 = ssub.s32 %s32, 1
        // Predicated region
        $region13: #{tpu_custom_call.1} parent=11 // pred_check
          %p482 = pneg %p53
        $region14: #{tpu_custom_call.1} parent=11 // pred_check_branch
          %484 = sbr.rel (%p482) target = $region16
        $region15: #{tpu_custom_call.1} parent=11 // pred_region
          _
        $region16: #{tpu_custom_call.1} parent=11 // pred_fallthru
          _
        // Predicated region
        $region17: #{tpu_custom_call.1} parent=11 // pred_check
          %p485 = pneg %p74
        $region18: #{tpu_custom_call.1} parent=11 // pred_check_branch
          %487 = sbr.rel (%p485) target = $region20
        $region19: #{tpu_custom_call.1} parent=11 // pred_region
          _
        $region20: #{tpu_custom_call.1} parent=11 // pred_fallthru
          _
        // Predicated region
        $region21: #{tpu_custom_call.1} parent=11 // pred_check
          %p488 = pneg %p95
        $region22: #{tpu_custom_call.1} parent=11 // pred_check_branch
          %490 = sbr.rel (%p488) target = $region24
        $region23: #{tpu_custom_call.1} parent=11 // pred_region
          _
        $region24: #{tpu_custom_call.1} parent=11 // pred_fallthru
          _
        // Predicated region
        $region25: #{tpu_custom_call.1} parent=11 // pred_check
          %p491 = pneg %p116
        $region26: #{tpu_custom_call.1} parent=11 // pred_check_branch
          %493 = sbr.rel (%p491) target = $region28
        $region27: #{tpu_custom_call.1} parent=11 // pred_region
          %495 = vsyncadd [#allocation5], 0
          %s496 = sshll.u32 %s3, 4
          %s497 = int_to_ptr.hbm [resolvable:$true] %s496
          %s498 = sshll.u32 [#allocation4], 4
          %s499 = int_to_ptr.vmem [resolvable:$true] %s498
          %504 = dma.hbm_to_vmem [thread:$0]  %s497, 256, %s499, [#allocation5], 256, 128, 8
        $region28: #{tpu_custom_call.1} parent=11 // pred_fallthru
          _
        // Predicated region
        $region29: #{tpu_custom_call.1} parent=11 // pred_check
          %p505 = pneg %p137
        $region30: #{tpu_custom_call.1} parent=11 // pred_check_branch
          %507 = sbr.rel (%p505) target = $region32
        $region31: #{tpu_custom_call.1} parent=11 // pred_region
          %509 = vsyncadd [#allocation8], 0
          %s510 = sshll.u32 %s4, 4
          %s511 = int_to_ptr.hbm [resolvable:$true] %s510
          %s512 = sshll.u32 [#allocation7], 4
          %s513 = int_to_ptr.vmem [resolvable:$true] %s512
          %518 = dma.hbm_to_vmem [thread:$0]  %s511, 256, %s513, [#allocation8], 256, 128, 8
        $region32: #{tpu_custom_call.1} parent=11 // pred_fallthru
          _
        // Predicated region
        $region33: #{tpu_custom_call.1} parent=11 // pred_check
          %p519 = pneg %p158
        $region34: #{tpu_custom_call.1} parent=11 // pred_check_branch
          %521 = sbr.rel (%p519) target = $region36
        $region35: #{tpu_custom_call.1} parent=11 // pred_region
          _
        $region36: #{tpu_custom_call.1} parent=11 // pred_fallthru
          _
        // Predicated region
        $region37: #{tpu_custom_call.1} parent=11 // pred_check
          %p522 = pneg %p179
        $region38: #{tpu_custom_call.1} parent=11 // pred_check_branch
          %524 = sbr.rel (%p522) target = $region40
        $region39: #{tpu_custom_call.1} parent=11 // pred_region
          _
        $region40: #{tpu_custom_call.1} parent=11 // pred_fallthru
          _
        // Predicated region
        $region41: #{tpu_custom_call.1} parent=11 // pred_check
          %p525 = pneg %p200
        $region42: #{tpu_custom_call.1} parent=11 // pred_check_branch
          %527 = sbr.rel (%p525) target = $region44
        $region43: #{tpu_custom_call.1} parent=11 // pred_region
          %529 = vsyncadd [#allocation8], 0
          %s530 = sshll.u32 %s7, 4
          %s531 = int_to_ptr.hbm [resolvable:$true] %s530
          %s532 = sshll.u32 [#allocation9], 4
          %s533 = int_to_ptr.vmem [resolvable:$true] %s532
          %538 = dma.hbm_to_vmem [thread:$0]  %s531, 3072, %s533, [#allocation8], 192, 192, 12
        $region44: #{tpu_custom_call.1} parent=11 // pred_fallthru
          _
        // Predicated region
        $region45: #{tpu_custom_call.1} parent=11 // pred_check
          %p539 = pneg %p221
        $region46: #{tpu_custom_call.1} parent=11 // pred_check_branch
          %541 = sbr.rel (%p539) target = $region48
        $region47: #{tpu_custom_call.1} parent=11 // pred_region
          _
        $region48: #{tpu_custom_call.1} parent=11 // pred_fallthru
          _
        // Predicated region
        $region49: #{tpu_custom_call.1} parent=11 // pred_check
          %p542 = pneg %p242
        $region50: #{tpu_custom_call.1} parent=11 // pred_check_branch
          %544 = sbr.rel (%p542) target = $region52
        $region51: #{tpu_custom_call.1} parent=11 // pred_region
          _
        $region52: #{tpu_custom_call.1} parent=11 // pred_fallthru
          _
        // Predicated region
        $region53: #{tpu_custom_call.1} parent=11 // pred_check
          %p545 = pneg %p263
        $region54: #{tpu_custom_call.1} parent=11 // pred_check_branch
          %547 = sbr.rel (%p545) target = $region56
        $region55: #{tpu_custom_call.1} parent=11 // pred_region
          %549 = vsyncadd [#allocation11], 0
          %s551 = sshll.u32 %s10, 4
          %s552 = int_to_ptr.hbm [resolvable:$true] %s551
          %s553 = sshll.u32 [#allocation10], 4
          %s554 = int_to_ptr.vmem [resolvable:$true] %s553
          %556 = dma.hbm_to_vmem [thread:$0]  %s552, 16, %s554, [#allocation11]
        $region56: #{tpu_custom_call.1} parent=11 // pred_fallthru
          _
        // Predicated region
        $region57: #{tpu_custom_call.1} parent=11 // pred_check
          %p557 = pneg %p284
        $region58: #{tpu_custom_call.1} parent=11 // pred_check_branch
          %559 = sbr.rel (%p557) target = $region60
        $region59: #{tpu_custom_call.1} parent=11 // pred_region
          %561 = vsyncadd [#allocation11], 0
          %s563 = sshll.u32 %s11, 4
          %s564 = int_to_ptr.hbm [resolvable:$true] %s563
          %s565 = sshll.u32 [#allocation12], 4
          %s566 = int_to_ptr.vmem [resolvable:$true] %s565
          %568 = dma.hbm_to_vmem [thread:$0]  %s564, 16, %s566, [#allocation11]
        $region60: #{tpu_custom_call.1} parent=11 // pred_fallthru
          _
        // Predicated region
        $region61: #{tpu_custom_call.1} parent=11 // pred_check
          %p569 = pneg %p305
        $region62: #{tpu_custom_call.1} parent=11 // pred_check_branch
          %571 = sbr.rel (%p569) target = $region64
        $region63: #{tpu_custom_call.1} parent=11 // pred_region
          %573 = vsyncadd [#allocation14], 0
          %s575 = sshll.u32 %s12, 4
          %s576 = int_to_ptr.hbm [resolvable:$true] %s575
          %s577 = sshll.u32 [#allocation13], 4
          %s578 = int_to_ptr.vmem [resolvable:$true] %s577
          %580 = dma.hbm_to_vmem [thread:$0]  %s576, 16, %s578, [#allocation14]
        $region64: #{tpu_custom_call.1} parent=11 // pred_fallthru
          _
        // Predicated region
        $region65: #{tpu_custom_call.1} parent=11 // pred_check
          %p581 = pneg %p404
        $region66: #{tpu_custom_call.1} parent=11 // pred_check_branch
          %583 = sbr.rel (%p581) target = $region68
        $region67: #{tpu_custom_call.1} parent=11 // pred_region
          %585 = vsyncadd [#allocation8], 0
          %s587 = sshll.u32 %s16, 4
          %s588 = int_to_ptr.hbm [resolvable:$true] %s587
          %s589 = sshll.u32 [#allocation18], 4
          %s590 = int_to_ptr.vmem [resolvable:$true] %s589
          %592 = dma.hbm_to_vmem [thread:$0]  %s588, 16, %s590, [#allocation8]
        $region68: #{tpu_custom_call.1} parent=11 // pred_fallthru
          _
      $region12: #{tpu_custom_call.1} parent=5 // pred_fallthru
        _
      %p593 = scmp.lt.s32.totalorder %s32, 2
      // Predicated region
      $region69: #{tpu_custom_call.1} parent=5 // pred_check
        %p594 = pneg %p593
      $region70: #{tpu_custom_call.1} parent=5 // pred_check_branch
        %596 = sbr.rel (%p594) target = $region72
      $region71: #{tpu_custom_call.1} parent=5 // pred_region
        // Predicated region
        $region73: #{tpu_custom_call.1} parent=71 // pred_check
          %p597 = pneg %p325
        $region74: #{tpu_custom_call.1} parent=71 // pred_check_branch
          %599 = sbr.rel (%p597) target = $region76
        $region75: #{tpu_custom_call.1} parent=71 // pred_region
          %s600 = sand.u32 %s32, 1
          %s601 = scalar_lea.sflag [#allocation5], %s600
          %s602 = sand.u32 %s315, 1
          %s603 = smul.addr %s602, 128
          %s604 = scalar_lea.vmem [#allocation15], %s603
          %s605 = smul.u32 2, %s32
          %607 = vsyncadd %s601, 0
          %s608 = smul.addr %s605, 4
          %s609 = scalar_lea.hbm %s13, %s608
          %s610 = sshll.u32 %s609, 4
          %s611 = int_to_ptr.hbm [resolvable:$true] %s610
          %s612 = sshll.u32 %s604, 4
          %s613 = int_to_ptr.vmem [resolvable:$true] %s612
          %618 = dma.hbm_to_vmem [thread:$0]  %s611, 2048, %s613, %s601, 256, 128, 8
        $region76: #{tpu_custom_call.1} parent=71 // pred_fallthru
          _
        // Predicated region
        $region77: #{tpu_custom_call.1} parent=71 // pred_check
          %p619 = pneg %p351
        $region78: #{tpu_custom_call.1} parent=71 // pred_check_branch
          %621 = sbr.rel (%p619) target = $region80
        $region79: #{tpu_custom_call.1} parent=71 // pred_region
          %s622 = sand.u32 %s32, 1
          %s623 = scalar_lea.sflag [#allocation5], %s622
          %s624 = sand.u32 %s341, 1
          %s625 = smul.addr %s624, 2
          %s626 = scalar_lea.vmem [#allocation16], %s625
          %s627 = smul.u32 2, %s32
          %629 = vsyncadd %s623, 0
          %s630 = scalar_lea.hbm %s14, %s627
          %s632 = sshll.u32 %s630, 4
          %s633 = int_to_ptr.hbm [resolvable:$true] %s632
          %s634 = sshll.u32 %s626, 4
          %s635 = int_to_ptr.vmem [resolvable:$true] %s634
          %637 = dma.hbm_to_vmem [thread:$0]  %s633, 32, %s635, %s623
        $region80: #{tpu_custom_call.1} parent=71 // pred_fallthru
          _
        // Predicated region
        $region81: #{tpu_custom_call.1} parent=71 // pred_check
          %p638 = pneg %p377
        $region82: #{tpu_custom_call.1} parent=71 // pred_check_branch
          %640 = sbr.rel (%p638) target = $region84
        $region83: #{tpu_custom_call.1} parent=71 // pred_region
          %s641 = sand.u32 %s32, 1
          %s642 = scalar_lea.sflag [#allocation5], %s641
          %s643 = sand.u32 %s367, 1
          %s644 = smul.addr %s643, 128
          %s645 = scalar_lea.vmem [#allocation17], %s644
          %s646 = smul.u32 32, %s32
          %648 = vsyncadd %s642, 0
          %s649 = smul.addr %s646, 4
          %s650 = scalar_lea.hbm %s15, %s649
          %s651 = sshll.u32 %s650, 4
          %s652 = int_to_ptr.hbm [resolvable:$true] %s651
          %s653 = sshll.u32 %s645, 4
          %s654 = int_to_ptr.vmem [resolvable:$true] %s653
          %659 = dma.hbm_to_vmem [thread:$0]  %s652, 2048, %s654, %s642, 64, 64, 4
        $region84: #{tpu_custom_call.1} parent=71 // pred_fallthru
          _
      $region72: #{tpu_custom_call.1} parent=5 // pred_fallthru
        _
      %p660 = scmp.le.s32.totalorder 1, %s32
      %p661 = scmp.lt.s32.totalorder %s32, 3
      %p662 = pnand %p660, %p661
      %p663 = pneg %p662
      // Predicated region
      $region85: #{tpu_custom_call.1} parent=5 // pred_check
        _
      $region86: #{tpu_custom_call.1} parent=5 // pred_check_branch
        %665 = sbr.rel (%p662) target = $region88
      $region87: #{tpu_custom_call.1} parent=5 // pred_region
        %s666 = ssub.s32 %s32, 1
        // Predicated region
        $region89: #{tpu_custom_call.1} parent=87 // pred_check
          %p667 = pneg %p116
        $region90: #{tpu_custom_call.1} parent=87 // pred_check_branch
          %669 = sbr.rel (%p667) target = $region92
        $region91: #{tpu_custom_call.1} parent=87 // pred_region
          %671 = dma.done [#allocation5], 256
        $region92: #{tpu_custom_call.1} parent=87 // pred_fallthru
          _
        // Predicated region
        $region93: #{tpu_custom_call.1} parent=87 // pred_check
          %p672 = pneg %p137
        $region94: #{tpu_custom_call.1} parent=87 // pred_check_branch
          %674 = sbr.rel (%p672) target = $region96
        $region95: #{tpu_custom_call.1} parent=87 // pred_region
          %676 = dma.done [#allocation8], 256
        $region96: #{tpu_custom_call.1} parent=87 // pred_fallthru
          _
        // Predicated region
        $region97: #{tpu_custom_call.1} parent=87 // pred_check
          %p677 = pneg %p200
        $region98: #{tpu_custom_call.1} parent=87 // pred_check_branch
          %679 = sbr.rel (%p677) target = $region100
        $region99: #{tpu_custom_call.1} parent=87 // pred_region
          %681 = dma.done [#allocation8], 3072
        $region100: #{tpu_custom_call.1} parent=87 // pred_fallthru
          _
        // Predicated region
        $region101: #{tpu_custom_call.1} parent=87 // pred_check
          %p682 = pneg %p263
        $region102: #{tpu_custom_call.1} parent=87 // pred_check_branch
          %684 = sbr.rel (%p682) target = $region104
        $region103: #{tpu_custom_call.1} parent=87 // pred_region
          %686 = dma.done [#allocation11], 16
        $region104: #{tpu_custom_call.1} parent=87 // pred_fallthru
          _
        // Predicated region
        $region105: #{tpu_custom_call.1} parent=87 // pred_check
          %p687 = pneg %p284
        $region106: #{tpu_custom_call.1} parent=87 // pred_check_branch
          %689 = sbr.rel (%p687) target = $region108
        $region107: #{tpu_custom_call.1} parent=87 // pred_region
          %691 = dma.done [#allocation11], 16
        $region108: #{tpu_custom_call.1} parent=87 // pred_fallthru
          _
        // Predicated region
        $region109: #{tpu_custom_call.1} parent=87 // pred_check
          %p692 = pneg %p305
        $region110: #{tpu_custom_call.1} parent=87 // pred_check_branch
          %694 = sbr.rel (%p692) target = $region112
        $region111: #{tpu_custom_call.1} parent=87 // pred_region
          %696 = dma.done [#allocation14], 16
        $region112: #{tpu_custom_call.1} parent=87 // pred_fallthru
          _
        %s697 = sand.u32 %s37, 1
        %s698 = scalar_lea.sflag [#allocation5], %s697
        %s699 = sand.u32 %s318, 1
        %s700 = smul.addr %s699, 128
        %s701 = scalar_lea.vmem [#allocation15], %s700
        // Predicated region
        $region113: #{tpu_custom_call.1} parent=87 // pred_check
          %p702 = pneg %p331
        $region114: #{tpu_custom_call.1} parent=87 // pred_check_branch
          %704 = sbr.rel (%p702) target = $region116
        $region115: #{tpu_custom_call.1} parent=87 // pred_region
          %706 = dma.done %s698, 2048
        $region116: #{tpu_custom_call.1} parent=87 // pred_fallthru
          _
        %s707 = sand.u32 %s37, 1
        %s708 = scalar_lea.sflag [#allocation5], %s707
        %s709 = sand.u32 %s344, 1
        %s710 = smul.addr %s709, 2
        %s711 = scalar_lea.vmem [#allocation16], %s710
        // Predicated region
        $region117: #{tpu_custom_call.1} parent=87 // pred_check
          %p712 = pneg %p357
        $region118: #{tpu_custom_call.1} parent=87 // pred_check_branch
          %714 = sbr.rel (%p712) target = $region120
        $region119: #{tpu_custom_call.1} parent=87 // pred_region
          %716 = dma.done %s708, 32
        $region120: #{tpu_custom_call.1} parent=87 // pred_fallthru
          _
        %s717 = sand.u32 %s37, 1
        %s718 = scalar_lea.sflag [#allocation5], %s717
        %s719 = sand.u32 %s370, 1
        %s720 = smul.addr %s719, 128
        %s721 = scalar_lea.vmem [#allocation17], %s720
        // Predicated region
        $region121: #{tpu_custom_call.1} parent=87 // pred_check
          %p722 = pneg %p383
        $region122: #{tpu_custom_call.1} parent=87 // pred_check_branch
          %724 = sbr.rel (%p722) target = $region124
        $region123: #{tpu_custom_call.1} parent=87 // pred_region
          %726 = dma.done %s718, 2048
        $region124: #{tpu_custom_call.1} parent=87 // pred_fallthru
          _
        // Predicated region
        $region125: #{tpu_custom_call.1} parent=87 // pred_check
          %p727 = pneg %p404
        $region126: #{tpu_custom_call.1} parent=87 // pred_check_branch
          %729 = sbr.rel (%p727) target = $region128
        $region127: #{tpu_custom_call.1} parent=87 // pred_region
          %731 = dma.done [#allocation8], 16
        $region128: #{tpu_custom_call.1} parent=87 // pred_fallthru
          _
        %p732 = pneg %p53
        %p733 = pneg %p50
        %p734 = pneg %p74
        %p735 = pneg %p71
        %p736 = pneg %p95
        %p737 = pneg %p92
        %p738 = pneg %p116
        %p739 = pneg %p113
        %p740 = pneg %p137
        %p741 = pneg %p134
        %p742 = pneg %p158
        %p743 = pneg %p155
        %p744 = pneg %p179
        %p745 = pneg %p176
        %p746 = pneg %p200
        %p747 = pneg %p197
        %p748 = pneg %p221
        %p749 = pneg %p218
        %p750 = pneg %p242
        %p751 = pneg %p239
        %p752 = pneg %p263
        %p753 = pneg %p260
        %p754 = pneg %p284
        %p755 = pneg %p281
        %p756 = pneg %p305
        %p757 = pneg %p302
        %s758 = sand.u32 %s37, 1
        %s759 = scalar_lea.sflag [#allocation5], %s758
        %s760 = sand.u32 %s318, 1
        %s761 = smul.addr %s760, 128
        %s762 = scalar_lea.vmem [#allocation15], %s761
        %p763 = pneg %p331
        %p764 = pneg %p328
        %s765 = sand.u32 %s37, 1
        %s766 = scalar_lea.sflag [#allocation5], %s765
        %s767 = sand.u32 %s344, 1
        %s768 = smul.addr %s767, 2
        %s769 = scalar_lea.vmem [#allocation16], %s768
        %p770 = pneg %p357
        %p771 = pneg %p354
        %s772 = sand.u32 %s37, 1
        %s773 = scalar_lea.sflag [#allocation5], %s772
        %s774 = sand.u32 %s370, 1
        %s775 = smul.addr %s774, 128
        %s776 = scalar_lea.vmem [#allocation17], %s775
        %p777 = pneg %p383
        %p778 = pneg %p380
        %p779 = pneg %p404
        %p780 = pneg %p401
        %p781 = pneg %p425
        %p782 = pneg %p422
        %p783 = pneg %p446
        %p784 = pneg %p443
        %p785 = pneg %p467
        %p786 = pneg %p464
        %s787 = smul.u32 2, %s37
        %s788 = smul.u32 2, %s37
        %s789 = smul.u32 32, %s37
        %p790 = scmp.eq.s32.totalorder %s37, 0
        // Predicated region
        $region129: #{tpu_custom_call.1} parent=87 // pred_check
          %p791 = pneg %p790
        $region130: #{tpu_custom_call.1} parent=87 // pred_check_branch
          %793 = sbr.rel (%p791) target = $region132
        $region131: #{tpu_custom_call.1} parent=87 // pred_region
          %v794 = vld [vmem:[%s0] sm:$0xff]
          %v795 = vld [vmem:[%s0 + $0x8] sm:$0xff]
          %v796 = vld [vmem:[%s1] sm:$0xff]
          %v797 = vld [vmem:[%s2] sm:$0xff]
          %798 = vadd.xlane.f32.xlu0 %v794
          %v799 = vpop.xlane.xlu0 %798
          %800 = vadd.xlane.f32.xlu0 %v795
          %v801 = vpop.xlane.xlu0 %800
          %v802 = vrcp.pop 128.0
          %v803 = vmul.f32 128.0, %v802
          %v804 = vsub.f32 1.0, %v803
          %v805 = vmul.f32 %v802, %v804
          %v806 = vadd.f32 %v802, %v805
          %vm807 = vweird.f32 %v802
          %v808 = vsel %vm807, %v802, %v806
          %v809 = vmul.f32 %v799, %v808
          %v810 = vmul.f32 %v801, %v808
          %v811 = vsub.f32 %v794, %v809
          %v812 = vsub.f32 %v795, %v810
          %v813 = vmul.f32 %v811, %v811
          %v814 = vmul.f32 %v812, %v812
          %815 = vadd.xlane.f32.xlu0 %v813
          %v816 = vpop.xlane.xlu0 %815
          %817 = vadd.xlane.f32.xlu0 %v814
          %v818 = vpop.xlane.xlu0 %817
          %v819 = vmul.f32 %v816, %v808
          %v820 = vmul.f32 %v818, %v808
          %v821 = vadd.f32 %v819, 1e-05
          %v822 = vadd.f32 %v820, 1e-05
          %v823 = vrsqrt.pop %v821
          %v824 = vmul.f32 %v823, %v821
          %v825 = vmul.f32 %v824, %v823
          %v826 = vmul.f32 0.5, %v825
          %v827 = vsub.f32 1.5, %v826
          %v828 = vmul.f32 %v823, %v827
          %vm829 = vweird.f32 %v821
          %vm830 = vweird.f32 %v823
          %vm831 = vmor %vm829, %vm830
          %v832 = vsel %vm831, %v823, %v828
          %v833 = vrsqrt.pop %v822
          %v834 = vmul.f32 %v833, %v822
          %v835 = vmul.f32 %v834, %v833
          %v836 = vmul.f32 0.5, %v835
          %v837 = vsub.f32 1.5, %v836
          %v838 = vmul.f32 %v833, %v837
          %vm839 = vweird.f32 %v822
          %vm840 = vweird.f32 %v833
          %vm841 = vmor %vm839, %vm840
          %v842 = vsel %vm841, %v833, %v838
          %v843 = vmul.f32 %v811, %v832
          %v844 = vmul.f32 %v812, %v842
          %v845 = vld [vmem:[%s5] sm:$0x1]
          %v847 = vperm.slane %v845, 0
          %v849 = vmul.f32 %v843, %v847
          %v850 = vmul.f32 %v844, %v847
          %v851 = vld [vmem:[%s6] sm:$0x1]
          %v853 = vperm.slane %v851, 0
          %v855 = vadd.f32 %v849, %v853
          %v856 = vadd.f32 %v850, %v853
          %v857 = vpack.c.bf16 %v856, %v855
          %v858 = vld [vmem:[#allocation9] sm:$0xff]
          %v859 = vld [vmem:[#allocation9 + $0x8] sm:$0xf]
          %v860 = vld [vmem:[#allocation9 + $0xc] sm:$0xff]
          %v861 = vld [vmem:[#allocation9 + $0x14] sm:$0xf]
          %v862 = vld [vmem:[#allocation9 + $0x18] sm:$0xff]
          %v863 = vld [vmem:[#allocation9 + $0x20] sm:$0xf]
          %v864 = vld [vmem:[#allocation9 + $0x24] sm:$0xff]
          %v865 = vld [vmem:[#allocation9 + $0x2c] sm:$0xf]
          %v866 = vld [vmem:[#allocation9 + $0x30] sm:$0xff]
          %v867 = vld [vmem:[#allocation9 + $0x38] sm:$0xf]
          %v868 = vld [vmem:[#allocation9 + $0x3c] sm:$0xff]
          %v869 = vld [vmem:[#allocation9 + $0x44] sm:$0xf]
          %v870 = vld [vmem:[#allocation9 + $0x48] sm:$0xff]
          %v871 = vld [vmem:[#allocation9 + $0x50] sm:$0xf]
          %v872 = vld [vmem:[#allocation9 + $0x54] sm:$0xff]
          %v873 = vld [vmem:[#allocation9 + $0x5c] sm:$0xf]
          %v874 = vld [vmem:[#allocation9 + $0x60] sm:$0xff]
          %v875 = vld [vmem:[#allocation9 + $0x68] sm:$0xf]
          %v876 = vld [vmem:[#allocation9 + $0x6c] sm:$0xff]
          %v877 = vld [vmem:[#allocation9 + $0x74] sm:$0xf]
          %v878 = vld [vmem:[#allocation9 + $0x78] sm:$0xff]
          %v879 = vld [vmem:[#allocation9 + $0x80] sm:$0xf]
          %v880 = vld [vmem:[#allocation9 + $0x84] sm:$0xff]
          %v881 = vld [vmem:[#allocation9 + $0x8c] sm:$0xf]
          %v882 = vld [vmem:[#allocation9 + $0x90] sm:$0xff]
          %v883 = vld [vmem:[#allocation9 + $0x98] sm:$0xf]
          %v884 = vld [vmem:[#allocation9 + $0x9c] sm:$0xff]
          %v885 = vld [vmem:[#allocation9 + $0xa4] sm:$0xf]
          %v886 = vld [vmem:[#allocation9 + $0xa8] sm:$0xff]
          %v887 = vld [vmem:[#allocation9 + $0xb0] sm:$0xf]
          %v888 = vld [vmem:[#allocation9 + $0xb4] sm:$0xff]
          %v889 = vld [vmem:[#allocation9 + $0xbc] sm:$0xf]
          %v890 = vld [vmem:[%s8] sm:$0x7]
          %v892 = vperm.slane %v890, 0
          %v893 = vperm.slane %v890, 1
          %v894 = vperm.slane %v890, 2
          %v930 = vunpack.c.l.b16 %v858
          %v931 = vunpack.c.h.b16 %v858
          %v932 = vunpack.c.l.b16 %v859
          %v933 = vunpack.c.l.b16 %v860
          %v934 = vunpack.c.h.b16 %v860
          %v935 = vunpack.c.l.b16 %v861
          %v936 = vunpack.c.l.b16 %v862
          %v937 = vunpack.c.h.b16 %v862
          %v938 = vunpack.c.l.b16 %v863
          %v939 = vunpack.c.l.b16 %v864
          %v940 = vunpack.c.h.b16 %v864
          %v941 = vunpack.c.l.b16 %v865
          %v942 = vunpack.c.l.b16 %v866
          %v943 = vunpack.c.h.b16 %v866
          %v944 = vunpack.c.l.b16 %v867
          %v945 = vunpack.c.l.b16 %v868
          %v946 = vunpack.c.h.b16 %v868
          %v947 = vunpack.c.l.b16 %v869
          %v948 = vunpack.c.l.b16 %v870
          %v949 = vunpack.c.h.b16 %v870
          %v950 = vunpack.c.l.b16 %v871
          %v951 = vunpack.c.l.b16 %v872
          %v952 = vunpack.c.h.b16 %v872
          %v953 = vunpack.c.l.b16 %v873
          %v954 = vunpack.c.l.b16 %v874
          %v955 = vunpack.c.h.b16 %v874
          %v956 = vunpack.c.l.b16 %v875
          %v957 = vunpack.c.l.b16 %v876
          %v958 = vunpack.c.h.b16 %v876
          %v959 = vunpack.c.l.b16 %v877
          %v960 = vunpack.c.l.b16 %v878
          %v961 = vunpack.c.h.b16 %v878
          %v962 = vunpack.c.l.b16 %v879
          %v963 = vunpack.c.l.b16 %v880
          %v964 = vunpack.c.h.b16 %v880
          %v965 = vunpack.c.l.b16 %v881
          %v966 = vunpack.c.l.b16 %v882
          %v967 = vunpack.c.h.b16 %v882
          %v968 = vunpack.c.l.b16 %v883
          %v969 = vunpack.c.l.b16 %v884
          %v970 = vunpack.c.h.b16 %v884
          %v971 = vunpack.c.l.b16 %v885
          %v972 = vunpack.c.l.b16 %v886
          %v973 = vunpack.c.h.b16 %v886
          %v974 = vunpack.c.l.b16 %v887
          %v975 = vunpack.c.l.b16 %v888
          %v976 = vunpack.c.h.b16 %v888
          %v977 = vunpack.c.l.b16 %v889
          %v978 = vpack.c.b16 %v933, %v930
          %v979 = vpack.c.b16 %v934, %v931
          %v980 = vpack.c.b16 %v935, %v932
          %v981 = vpack.c.b16 %v939, %v936
          %v982 = vpack.c.b16 %v940, %v937
          %v983 = vpack.c.b16 %v941, %v938
          %v984 = vpack.c.b16 %v945, %v942
          %v985 = vpack.c.b16 %v946, %v943
          %v986 = vpack.c.b16 %v947, %v944
          %v987 = vpack.c.b16 %v951, %v948
          %v988 = vpack.c.b16 %v952, %v949
          %v989 = vpack.c.b16 %v953, %v950
          %v990 = vpack.c.b16 %v957, %v954
          %v991 = vpack.c.b16 %v958, %v955
          %v992 = vpack.c.b16 %v959, %v956
          %v993 = vpack.c.b16 %v963, %v960
          %v994 = vpack.c.b16 %v964, %v961
          %v995 = vpack.c.b16 %v965, %v962
          %v996 = vpack.c.b16 %v969, %v966
          %v997 = vpack.c.b16 %v970, %v967
          %v998 = vpack.c.b16 %v971, %v968
          %v999 = vpack.c.b16 %v975, %v972
          %v1000 = vpack.c.b16 %v976, %v973
          %v1001 = vpack.c.b16 %v977, %v974
          %1026 = vmatpush.bf16.msra.mxu0 %v999
          %1027 = vmatpush.bf16.msra.mxu0 %v996
          %1028 = vmatpush.bf16.msra.mxu0 %v993
          %1029 = vmatpush.bf16.msra.mxu0 %v990
          %1030 = vmatpush.bf16.msra.mxu0 %v987
          %1031 = vmatpush.bf16.msra.mxu0 %v984
          %1032 = vmatpush.bf16.msra.mxu0 %v981
          %1033 = vmatpush.bf16.msra.mxu0 %v978
          %1034 = vmatmul.bf16.gmra.mxu0 %v857
          %v1035 = vpop.f32.mrf.mxu0
          %v1036 = vadd.f32 %v892, %v1035
          %v1037 = vpop.f32.mrf.mxu0
          %v1038 = vadd.f32 %v892, %v1037
          %1039 = vdwg.mxu0
          %1040 = vmatpush.bf16.msra.mxu0 %v1000
          %1041 = vmatpush.bf16.msra.mxu0 %v997
          %1042 = vmatpush.bf16.msra.mxu0 %v994
          %1043 = vmatpush.bf16.msra.mxu0 %v991
          %1044 = vmatpush.bf16.msra.mxu0 %v988
          %1045 = vmatpush.bf16.msra.mxu0 %v985
          %1046 = vmatpush.bf16.msra.mxu0 %v982
          %1047 = vmatpush.bf16.msra.mxu0 %v979
          %1048 = vmatmul.bf16.gmra.mxu0 %v857
          %v1049 = vpop.f32.mrf.mxu0
          %v1050 = vadd.f32 %v893, %v1049
          %v1051 = vpop.f32.mrf.mxu0
          %v1052 = vadd.f32 %v893, %v1051
          %1053 = vdwg.mxu0
          %1054 = vmatpush.bf16.msra.mxu0 %v1001
          %1055 = vmatpush.bf16.msra.mxu0 %v998
          %1056 = vmatpush.bf16.msra.mxu0 %v995
          %1057 = vmatpush.bf16.msra.mxu0 %v992
          %1058 = vmatpush.bf16.msra.mxu0 %v989
          %1059 = vmatpush.bf16.msra.mxu0 %v986
          %1060 = vmatpush.bf16.msra.mxu0 %v983
          %1061 = vmatpush.bf16.msra.mxu0 %v980
          %1062 = vmatmul.bf16.gmra.mxu0 %v857
          %v1063 = vpop.f32.mrf.mxu0
          %v1064 = vadd.f32 %v894, %v1063
          %v1065 = vpop.f32.mrf.mxu0
          %v1066 = vadd.f32 %v894, %v1065
          %1067 = vdwg.mxu0
          %1069 = vrot.lane.b32.xlu0 %v1036, 96
          %v1070 = vpop.permute.xlu0 %1069
          %1072 = vrot.lane.b32.xlu0 %v1036, 64
          %v1073 = vpop.permute.xlu0 %1072
          %1075 = vrot.lane.b32.xlu0 %v1036, 32
          %v1076 = vpop.permute.xlu0 %1075
          %v1078 = vsub.f32 0.0, %v1036
          %v1079 = vsub.f32 0.0, %v1070
          %v1080 = vsub.f32 0.0, %v1073
          %v1081 = vsub.f32 0.0, %v1076
          %1086 = vrot.lane.b32.xlu0 %v1078, 120
          %v1087 = vpop.permute.xlu0 %1086
          %1088 = vrot.lane.b32.xlu0 %v1079, 120
          %v1089 = vpop.permute.xlu0 %1088
          %1090 = vrot.lane.b32.xlu0 %v1080, 120
          %v1091 = vpop.permute.xlu0 %1090
          %1092 = vrot.lane.b32.xlu0 %v1081, 120
          %v1093 = vpop.permute.xlu0 %1092
          %1098 = vrot.lane.b32.xlu0 %v1036, 8
          %v1099 = vpop.permute.xlu0 %1098
          %1100 = vrot.lane.b32.xlu0 %v1070, 8
          %v1101 = vpop.permute.xlu0 %1100
          %1102 = vrot.lane.b32.xlu0 %v1073, 8
          %v1103 = vpop.permute.xlu0 %1102
          %1104 = vrot.lane.b32.xlu0 %v1076, 8
          %v1105 = vpop.permute.xlu0 %1104
          %vm1110 = vcmask 64512
          %v1111 = vsel %vm1110, %v1087, %v1099
          %v1112 = vsel %vm1110, %v1089, %v1101
          %v1113 = vsel %vm1110, %v1091, %v1103
          %v1114 = vsel %vm1110, %v1093, %v1105
          %v1115 = vmul.f32 %v1036, %v796
          %v1116 = vmul.f32 %v1070, %v796
          %v1117 = vmul.f32 %v1073, %v796
          %v1118 = vmul.f32 %v1076, %v796
          %v1119 = vmul.f32 %v1111, %v797
          %v1120 = vmul.f32 %v1112, %v797
          %v1121 = vmul.f32 %v1113, %v797
          %v1122 = vmul.f32 %v1114, %v797
          %v1123 = vadd.f32 %v1115, %v1119
          %v1124 = vadd.f32 %v1116, %v1120
          %v1125 = vadd.f32 %v1117, %v1121
          %v1126 = vadd.f32 %v1118, %v1122
          %vm1127 = vcmask 130048
          %v1128 = vsel %vm1127, %v1123, %v1036
          %v1129 = vsel %vm1127, %v1124, %v1070
          %v1130 = vsel %vm1127, %v1125, %v1073
          %v1131 = vsel %vm1127, %v1126, %v1076
          %v1132 = vmul.f32 %v1128, 0.17677669
          %v1133 = vmul.f32 %v1129, 0.17677669
          %v1134 = vmul.f32 %v1130, 0.17677669
          %v1135 = vmul.f32 %v1131, 0.17677669
          %1137 = vrot.lane.b32.xlu0 %v1050, 96
          %v1138 = vpop.permute.xlu0 %1137
          %1140 = vrot.lane.b32.xlu0 %v1050, 64
          %v1141 = vpop.permute.xlu0 %1140
          %1143 = vrot.lane.b32.xlu0 %v1050, 32
          %v1144 = vpop.permute.xlu0 %1143
          %v1146 = vsub.f32 0.0, %v1050
          %v1147 = vsub.f32 0.0, %v1138
          %v1148 = vsub.f32 0.0, %v1141
          %v1149 = vsub.f32 0.0, %v1144
          %1154 = vrot.lane.b32.xlu0 %v1146, 120
          %v1155 = vpop.permute.xlu0 %1154
          %1156 = vrot.lane.b32.xlu0 %v1147, 120
          %v1157 = vpop.permute.xlu0 %1156
          %1158 = vrot.lane.b32.xlu0 %v1148, 120
          %v1159 = vpop.permute.xlu0 %1158
          %1160 = vrot.lane.b32.xlu0 %v1149, 120
          %v1161 = vpop.permute.xlu0 %1160
          %1166 = vrot.lane.b32.xlu0 %v1050, 8
          %v1167 = vpop.permute.xlu0 %1166
          %1168 = vrot.lane.b32.xlu0 %v1138, 8
          %v1169 = vpop.permute.xlu0 %1168
          %1170 = vrot.lane.b32.xlu0 %v1141, 8
          %v1171 = vpop.permute.xlu0 %1170
          %1172 = vrot.lane.b32.xlu0 %v1144, 8
          %v1173 = vpop.permute.xlu0 %1172
          %v1178 = vsel %vm1110, %v1155, %v1167
          %v1179 = vsel %vm1110, %v1157, %v1169
          %v1180 = vsel %vm1110, %v1159, %v1171
          %v1181 = vsel %vm1110, %v1161, %v1173
          %v1182 = vmul.f32 %v1050, %v796
          %v1183 = vmul.f32 %v1138, %v796
          %v1184 = vmul.f32 %v1141, %v796
          %v1185 = vmul.f32 %v1144, %v796
          %v1186 = vmul.f32 %v1178, %v797
          %v1187 = vmul.f32 %v1179, %v797
          %v1188 = vmul.f32 %v1180, %v797
          %v1189 = vmul.f32 %v1181, %v797
          %v1190 = vadd.f32 %v1182, %v1186
          %v1191 = vadd.f32 %v1183, %v1187
          %v1192 = vadd.f32 %v1184, %v1188
          %v1193 = vadd.f32 %v1185, %v1189
          %v1194 = vsel %vm1127, %v1190, %v1050
          %v1195 = vsel %vm1127, %v1191, %v1138
          %v1196 = vsel %vm1127, %v1192, %v1141
          %v1197 = vsel %vm1127, %v1193, %v1144
          %1199 = vrot.lane.b32.xlu0 %v1064, 96
          %v1200 = vpop.permute.xlu0 %1199
          %1202 = vrot.lane.b32.xlu0 %v1064, 64
          %v1203 = vpop.permute.xlu0 %1202
          %1205 = vrot.lane.b32.xlu0 %v1064, 32
          %v1206 = vpop.permute.xlu0 %1205
          %1209 = vrot.lane.b32.xlu0 %v1195, 32
          %v1210 = vpop.permute.xlu0 %1209
          %1213 = vrot.lane.b32.xlu0 %v1196, 64
          %v1214 = vpop.permute.xlu0 %1213
          %1217 = vrot.lane.b32.xlu0 %v1197, 96
          %v1218 = vpop.permute.xlu0 %1217
          %vm1220 = vcmask 261120
          %v1221 = vsel %vm1220, %v1194, %v1210
          %vm1222 = vcmask 523264
          %v1223 = vsel %vm1222, %v1221, %v1214
          %vm1224 = vcmask 785408
          %v1225 = vsel %vm1224, %v1223, %v1218
          %1226 = vst [vmem:[#allocation20] sm:$0xff] %v1225
          %1227 = vst [vmem:[#allocation22] sm:$0xff] %v1064
          %v1228 = vld [vmem:[#allocation4] sm:$0xff]
          %1230 = vrot.lane.b32.xlu0 %v1228, 96
          %v1231 = vpop.permute.xlu0 %1230
          %1232 = vrot.lane.b32.xlu0 %v1228, 64
          %v1233 = vpop.permute.xlu0 %1232
          %1234 = vrot.lane.b32.xlu0 %v1228, 32
          %v1235 = vpop.permute.xlu0 %1234
          %v1236 = vld [vmem:[#allocation7] sm:$0xff]
          %1238 = vrot.lane.b32.xlu0 %v1236, 96
          %v1239 = vpop.permute.xlu0 %1238
          %1241 = vrot.lane.b32.xlu0 %v1236, 64
          %v1242 = vpop.permute.xlu0 %1241
          %1244 = vrot.lane.b32.xlu0 %v1236, 32
          %v1245 = vpop.permute.xlu0 %1244
          %v1248 = vsel %vm1220, %v1132, 0
          %v1250 = vsel %vm1220, %v1228, 0
          %v1253 = vsel %vm1220, %v1194, 0
          %1255 = vmatpush.xpose.msra.mxu0 0.0
          %1256 = vmatpush.xpose.msra.mxu0 0.0
          %1257 = vmatpush.xpose.msra.mxu0 0.0
          %1258 = vmatpush.xpose.msra.mxu0 0.0
          %1259 = vmatpush.xpose.msra.mxu0 0.0
          %1260 = vmatpush.xpose.msra.mxu0 0.0
          %1261 = vmatpush.xpose.msra.mxu0 0.0
          %1262 = vmatpush.xpose.msra.mxu0 0.0
          %1263 = vmatpush.xpose.msra.mxu0 0.0
          %1264 = vmatpush.xpose.msra.mxu0 0.0
          %1265 = vmatpush.xpose.msra.mxu0 0.0
          %1266 = vmatpush.xpose.msra.mxu0 0.0
          %1267 = vmatpush.xpose.msra.mxu0 0.0
          %1268 = vmatpush.xpose.msra.mxu0 0.0
          %1269 = vmatpush.xpose.msra.mxu0 %v1253
          %1270 = vmatpush.xpose.msra.mxu0 %v1250
          %1271 = vmatmul.f32.gmra.mxu0 %v1248
          %v1272 = vpop.f32.mrf.mxu0
          %v1273 = vadd.f32 0.0, %v1272
          %1274 = vdwg.mxu0
          %v1276 = vsel %vm1220, %v1133, 0
          %v1278 = vsel %vm1220, %v1231, 0
          %v1280 = vsel %vm1220, %v1195, 0
          %1282 = vmatpush.xpose.msra.mxu0 0.0
          %1283 = vmatpush.xpose.msra.mxu0 0.0
          %1284 = vmatpush.xpose.msra.mxu0 0.0
          %1285 = vmatpush.xpose.msra.mxu0 0.0
          %1286 = vmatpush.xpose.msra.mxu0 0.0
          %1287 = vmatpush.xpose.msra.mxu0 0.0
          %1288 = vmatpush.xpose.msra.mxu0 0.0
          %1289 = vmatpush.xpose.msra.mxu0 0.0
          %1290 = vmatpush.xpose.msra.mxu0 0.0
          %1291 = vmatpush.xpose.msra.mxu0 0.0
          %1292 = vmatpush.xpose.msra.mxu0 0.0
          %1293 = vmatpush.xpose.msra.mxu0 0.0
          %1294 = vmatpush.xpose.msra.mxu0 0.0
          %1295 = vmatpush.xpose.msra.mxu0 0.0
          %1296 = vmatpush.xpose.msra.mxu0 %v1280
          %1297 = vmatpush.xpose.msra.mxu0 %v1278
          %1298 = vmatmul.f32.gmra.mxu0 %v1276
          %v1299 = vpop.f32.mrf.mxu0
          %v1300 = vadd.f32 0.0, %v1299
          %1301 = vdwg.mxu0
          %v1303 = vsel %vm1220, %v1134, 0
          %v1305 = vsel %vm1220, %v1233, 0
          %v1307 = vsel %vm1220, %v1196, 0
          %1309 = vmatpush.xpose.msra.mxu0 0.0
          %1310 = vmatpush.xpose.msra.mxu0 0.0
          %1311 = vmatpush.xpose.msra.mxu0 0.0
          %1312 = vmatpush.xpose.msra.mxu0 0.0
          %1313 = vmatpush.xpose.msra.mxu0 0.0
          %1314 = vmatpush.xpose.msra.mxu0 0.0
          %1315 = vmatpush.xpose.msra.mxu0 0.0
          %1316 = vmatpush.xpose.msra.mxu0 0.0
          %1317 = vmatpush.xpose.msra.mxu0 0.0
          %1318 = vmatpush.xpose.msra.mxu0 0.0
          %1319 = vmatpush.xpose.msra.mxu0 0.0
          %1320 = vmatpush.xpose.msra.mxu0 0.0
          %1321 = vmatpush.xpose.msra.mxu0 0.0
          %1322 = vmatpush.xpose.msra.mxu0 0.0
          %1323 = vmatpush.xpose.msra.mxu0 %v1307
          %1324 = vmatpush.xpose.msra.mxu0 %v1305
          %1325 = vmatmul.f32.gmra.mxu0 %v1303
          %v1326 = vpop.f32.mrf.mxu0
          %v1327 = vadd.f32 0.0, %v1326
          %1328 = vdwg.mxu0
          %v1330 = vsel %vm1220, %v1135, 0
          %v1332 = vsel %vm1220, %v1235, 0
          %v1334 = vsel %vm1220, %v1197, 0
          %1336 = vmatpush.xpose.msra.mxu0 0.0
          %1337 = vmatpush.xpose.msra.mxu0 0.0
          %1338 = vmatpush.xpose.msra.mxu0 0.0
          %1339 = vmatpush.xpose.msra.mxu0 0.0
          %1340 = vmatpush.xpose.msra.mxu0 0.0
          %1341 = vmatpush.xpose.msra.mxu0 0.0
          %1342 = vmatpush.xpose.msra.mxu0 0.0
          %1343 = vmatpush.xpose.msra.mxu0 0.0
          %1344 = vmatpush.xpose.msra.mxu0 0.0
          %1345 = vmatpush.xpose.msra.mxu0 0.0
          %1346 = vmatpush.xpose.msra.mxu0 0.0
          %1347 = vmatpush.xpose.msra.mxu0 0.0
          %1348 = vmatpush.xpose.msra.mxu0 0.0
          %1349 = vmatpush.xpose.msra.mxu0 0.0
          %1350 = vmatpush.xpose.msra.mxu0 %v1334
          %1351 = vmatpush.xpose.msra.mxu0 %v1332
          %1352 = vmatmul.f32.gmra.mxu0 %v1330
          %v1353 = vpop.f32.mrf.mxu0
          %v1354 = vadd.f32 0.0, %v1353
          %1355 = vdwg.mxu0
          %v1356 = vlaneseq
          %v1357 = vshrl.u32 %v1356, 7
          %v1358 = vadd.s32 %v1357, 8
          %v1359 = vlaneseq
          %v1360 = vand.u32 %v1359, 127
          %vm1361 = vcmp.le.s32.totalorder %v1360, %v1358
          %v1362 = vsel %vm1361, 1, 0
          %vm1363 = vcmp.eq.s32.totalorder %v1362, 1
          %v1364 = vsel %vm1363, %v1273, -1e+30
          %v1365 = vsel %vm1363, %v1300, -1e+30
          %v1366 = vsel %vm1363, %v1327, -1e+30
          %v1367 = vsel %vm1363, %v1354, -1e+30
          %v1368 = vsel %vm1127, %v1364, -inf
          %1369 = vmax.xlane.f32.xlu0 %v1368
          %v1370 = vpop.xlane.xlu0 %1369
          %v1371 = vsel %vm1127, %v1365, -inf
          %1372 = vmax.xlane.f32.xlu0 %v1371
          %v1373 = vpop.xlane.xlu0 %1372
          %v1374 = vsel %vm1127, %v1366, -inf
          %1375 = vmax.xlane.f32.xlu0 %v1374
          %v1376 = vpop.xlane.xlu0 %1375
          %v1377 = vsel %vm1127, %v1367, -inf
          %1378 = vmax.xlane.f32.xlu0 %v1377
          %v1379 = vpop.xlane.xlu0 %1378
          %v1380 = vsub.f32 %v1364, %v1370
          %v1381 = vsub.f32 %v1365, %v1373
          %v1382 = vsub.f32 %v1366, %v1376
          %v1383 = vsub.f32 %v1367, %v1379
          %v1384 = vmul.f32 %v1380, 1.442695
          %v1385 = vpow.pop %v1384
          %v1386 = vmul.f32 %v1381, 1.442695
          %v1387 = vpow.pop %v1386
          %v1388 = vmul.f32 %v1382, 1.442695
          %v1389 = vpow.pop %v1388
          %v1390 = vmul.f32 %v1383, 1.442695
          %v1391 = vpow.pop %v1390
          %v1392 = vsel %vm1127, %v1385, 0.0
          %1393 = vadd.xlane.f32.xlu0 %v1392
          %v1394 = vpop.xlane.xlu0 %1393
          %v1395 = vsel %vm1127, %v1387, 0.0
          %1396 = vadd.xlane.f32.xlu0 %v1395
          %v1397 = vpop.xlane.xlu0 %1396
          %v1398 = vsel %vm1127, %v1389, 0.0
          %1399 = vadd.xlane.f32.xlu0 %v1398
          %v1400 = vpop.xlane.xlu0 %1399
          %v1401 = vsel %vm1127, %v1391, 0.0
          %1402 = vadd.xlane.f32.xlu0 %v1401
          %v1403 = vpop.xlane.xlu0 %1402
          %v1404 = vrcp.pop %v1394
          %v1405 = vrcp.pop %v1397
          %v1406 = vrcp.pop %v1400
          %v1407 = vrcp.pop %v1403
          %v1408 = vmul.f32 %v1385, %v1404
          %v1409 = vmul.f32 %v1387, %v1405
          %v1410 = vmul.f32 %v1389, %v1406
          %v1411 = vmul.f32 %v1391, %v1407
          %v1413 = vsel %vm1127, %v1408, 0
          %1415 = vmatpush.msra.mxu0 0.0
          %1416 = vmatpush.msra.mxu0 0.0
          %1417 = vmatpush.msra.mxu0 0.0
          %1418 = vmatpush.msra.mxu0 0.0
          %1419 = vmatpush.msra.mxu0 0.0
          %1420 = vmatpush.msra.mxu0 0.0
          %1421 = vmatpush.msra.mxu0 0.0
          %1422 = vmatpush.msra.mxu0 0.0
          %1423 = vmatpush.msra.mxu0 0.0
          %1424 = vmatpush.msra.mxu0 0.0
          %1425 = vmatpush.msra.mxu0 0.0
          %1426 = vmatpush.msra.mxu0 0.0
          %1427 = vmatpush.msra.mxu0 0.0
          %1428 = vmatpush.msra.mxu0 0.0
          %1429 = vmatpush.msra.mxu0 %v1064
          %1430 = vmatpush.msra.mxu0 %v1236
          %1431 = vmatmul.f32.gmra.mxu0 %v1413
          %v1432 = vpop.f32.mrf.mxu0
          %v1433 = vadd.f32 0.0, %v1432
          %1434 = vdwg.mxu0
          %v1436 = vsel %vm1127, %v1409, 0
          %1438 = vmatpush.msra.mxu0 0.0
          %1439 = vmatpush.msra.mxu0 0.0
          %1440 = vmatpush.msra.mxu0 0.0
          %1441 = vmatpush.msra.mxu0 0.0
          %1442 = vmatpush.msra.mxu0 0.0
          %1443 = vmatpush.msra.mxu0 0.0
          %1444 = vmatpush.msra.mxu0 0.0
          %1445 = vmatpush.msra.mxu0 0.0
          %1446 = vmatpush.msra.mxu0 0.0
          %1447 = vmatpush.msra.mxu0 0.0
          %1448 = vmatpush.msra.mxu0 0.0
          %1449 = vmatpush.msra.mxu0 0.0
          %1450 = vmatpush.msra.mxu0 0.0
          %1451 = vmatpush.msra.mxu0 0.0
          %1452 = vmatpush.msra.mxu0 %v1200
          %1453 = vmatpush.msra.mxu0 %v1239
          %1454 = vmatmul.f32.gmra.mxu0 %v1436
          %v1455 = vpop.f32.mrf.mxu0
          %v1456 = vadd.f32 0.0, %v1455
          %1457 = vdwg.mxu0
          %v1459 = vsel %vm1127, %v1410, 0
          %1461 = vmatpush.msra.mxu0 0.0
          %1462 = vmatpush.msra.mxu0 0.0
          %1463 = vmatpush.msra.mxu0 0.0
          %1464 = vmatpush.msra.mxu0 0.0
          %1465 = vmatpush.msra.mxu0 0.0
          %1466 = vmatpush.msra.mxu0 0.0
          %1467 = vmatpush.msra.mxu0 0.0
          %1468 = vmatpush.msra.mxu0 0.0
          %1469 = vmatpush.msra.mxu0 0.0
          %1470 = vmatpush.msra.mxu0 0.0
          %1471 = vmatpush.msra.mxu0 0.0
          %1472 = vmatpush.msra.mxu0 0.0
          %1473 = vmatpush.msra.mxu0 0.0
          %1474 = vmatpush.msra.mxu0 0.0
          %1475 = vmatpush.msra.mxu0 %v1203
          %1476 = vmatpush.msra.mxu0 %v1242
          %1477 = vmatmul.f32.gmra.mxu0 %v1459
          %v1478 = vpop.f32.mrf.mxu0
          %v1479 = vadd.f32 0.0, %v1478
          %1480 = vdwg.mxu0
          %v1482 = vsel %vm1127, %v1411, 0
          %1484 = vmatpush.msra.mxu0 0.0
          %1485 = vmatpush.msra.mxu0 0.0
          %1486 = vmatpush.msra.mxu0 0.0
          %1487 = vmatpush.msra.mxu0 0.0
          %1488 = vmatpush.msra.mxu0 0.0
          %1489 = vmatpush.msra.mxu0 0.0
          %1490 = vmatpush.msra.mxu0 0.0
          %1491 = vmatpush.msra.mxu0 0.0
          %1492 = vmatpush.msra.mxu0 0.0
          %1493 = vmatpush.msra.mxu0 0.0
          %1494 = vmatpush.msra.mxu0 0.0
          %1495 = vmatpush.msra.mxu0 0.0
          %1496 = vmatpush.msra.mxu0 0.0
          %1497 = vmatpush.msra.mxu0 0.0
          %1498 = vmatpush.msra.mxu0 %v1206
          %1499 = vmatpush.msra.mxu0 %v1245
          %1500 = vmatmul.f32.gmra.mxu0 %v1482
          %v1501 = vpop.f32.mrf.mxu0
          %v1502 = vadd.f32 0.0, %v1501
          %1503 = vdwg.mxu0
          %1505 = vrot.lane.b32.xlu0 %v1456, 32
          %v1506 = vpop.permute.xlu0 %1505
          %1509 = vrot.lane.b32.xlu0 %v1479, 64
          %v1510 = vpop.permute.xlu0 %1509
          %1513 = vrot.lane.b32.xlu0 %v1502, 96
          %v1514 = vpop.permute.xlu0 %1513
          %v1516 = vsel %vm1220, %v1433, %v1506
          %v1517 = vsel %vm1222, %v1516, %v1510
          %v1518 = vsel %vm1224, %v1517, %v1514
          %1520 = vrot.lane.b32.xlu0 %v1038, 96
          %v1521 = vpop.permute.xlu0 %1520
          %1523 = vrot.lane.b32.xlu0 %v1038, 64
          %v1524 = vpop.permute.xlu0 %1523
          %1526 = vrot.lane.b32.xlu0 %v1038, 32
          %v1527 = vpop.permute.xlu0 %1526
          %v1529 = vsub.f32 0.0, %v1038
          %v1530 = vsub.f32 0.0, %v1521
          %v1531 = vsub.f32 0.0, %v1524
          %v1532 = vsub.f32 0.0, %v1527
          %1537 = vrot.lane.b32.xlu0 %v1529, 120
          %v1538 = vpop.permute.xlu0 %1537
          %1539 = vrot.lane.b32.xlu0 %v1530, 120
          %v1540 = vpop.permute.xlu0 %1539
          %1541 = vrot.lane.b32.xlu0 %v1531, 120
          %v1542 = vpop.permute.xlu0 %1541
          %1543 = vrot.lane.b32.xlu0 %v1532, 120
          %v1544 = vpop.permute.xlu0 %1543
          %1549 = vrot.lane.b32.xlu0 %v1038, 8
          %v1550 = vpop.permute.xlu0 %1549
          %1551 = vrot.lane.b32.xlu0 %v1521, 8
          %v1552 = vpop.permute.xlu0 %1551
          %1553 = vrot.lane.b32.xlu0 %v1524, 8
          %v1554 = vpop.permute.xlu0 %1553
          %1555 = vrot.lane.b32.xlu0 %v1527, 8
          %v1556 = vpop.permute.xlu0 %1555
          %v1561 = vsel %vm1110, %v1538, %v1550
          %v1562 = vsel %vm1110, %v1540, %v1552
          %v1563 = vsel %vm1110, %v1542, %v1554
          %v1564 = vsel %vm1110, %v1544, %v1556
          %v1565 = vmul.f32 %v1038, %v796
          %v1566 = vmul.f32 %v1521, %v796
          %v1567 = vmul.f32 %v1524, %v796
          %v1568 = vmul.f32 %v1527, %v796
          %v1569 = vmul.f32 %v1561, %v797
          %v1570 = vmul.f32 %v1562, %v797
          %v1571 = vmul.f32 %v1563, %v797
          %v1572 = vmul.f32 %v1564, %v797
          %v1573 = vadd.f32 %v1565, %v1569
          %v1574 = vadd.f32 %v1566, %v1570
          %v1575 = vadd.f32 %v1567, %v1571
          %v1576 = vadd.f32 %v1568, %v1572
          %v1577 = vsel %vm1127, %v1573, %v1038
          %v1578 = vsel %vm1127, %v1574, %v1521
          %v1579 = vsel %vm1127, %v1575, %v1524
          %v1580 = vsel %vm1127, %v1576, %v1527
          %v1581 = vmul.f32 %v1577, 0.17677669
          %v1582 = vmul.f32 %v1578, 0.17677669
          %v1583 = vmul.f32 %v1579, 0.17677669
          %v1584 = vmul.f32 %v1580, 0.17677669
          %1586 = vrot.lane.b32.xlu0 %v1052, 96
          %v1587 = vpop.permute.xlu0 %1586
          %1589 = vrot.lane.b32.xlu0 %v1052, 64
          %v1590 = vpop.permute.xlu0 %1589
          %1592 = vrot.lane.b32.xlu0 %v1052, 32
          %v1593 = vpop.permute.xlu0 %1592
          %v1595 = vsub.f32 0.0, %v1052
          %v1596 = vsub.f32 0.0, %v1587
          %v1597 = vsub.f32 0.0, %v1590
          %v1598 = vsub.f32 0.0, %v1593
          %1603 = vrot.lane.b32.xlu0 %v1595, 120
          %v1604 = vpop.permute.xlu0 %1603
          %1605 = vrot.lane.b32.xlu0 %v1596, 120
          %v1606 = vpop.permute.xlu0 %1605
          %1607 = vrot.lane.b32.xlu0 %v1597, 120
          %v1608 = vpop.permute.xlu0 %1607
          %1609 = vrot.lane.b32.xlu0 %v1598, 120
          %v1610 = vpop.permute.xlu0 %1609
          %1615 = vrot.lane.b32.xlu0 %v1052, 8
          %v1616 = vpop.permute.xlu0 %1615
          %1617 = vrot.lane.b32.xlu0 %v1587, 8
          %v1618 = vpop.permute.xlu0 %1617
          %1619 = vrot.lane.b32.xlu0 %v1590, 8
          %v1620 = vpop.permute.xlu0 %1619
          %1621 = vrot.lane.b32.xlu0 %v1593, 8
          %v1622 = vpop.permute.xlu0 %1621
          %v1627 = vsel %vm1110, %v1604, %v1616
          %v1628 = vsel %vm1110, %v1606, %v1618
          %v1629 = vsel %vm1110, %v1608, %v1620
          %v1630 = vsel %vm1110, %v1610, %v1622
          %v1631 = vmul.f32 %v1052, %v796
          %v1632 = vmul.f32 %v1587, %v796
          %v1633 = vmul.f32 %v1590, %v796
          %v1634 = vmul.f32 %v1593, %v796
          %v1635 = vmul.f32 %v1627, %v797
          %v1636 = vmul.f32 %v1628, %v797
          %v1637 = vmul.f32 %v1629, %v797
          %v1638 = vmul.f32 %v1630, %v797
          %v1639 = vadd.f32 %v1631, %v1635
          %v1640 = vadd.f32 %v1632, %v1636
          %v1641 = vadd.f32 %v1633, %v1637
          %v1642 = vadd.f32 %v1634, %v1638
          %v1643 = vsel %vm1127, %v1639, %v1052
          %v1644 = vsel %vm1127, %v1640, %v1587
          %v1645 = vsel %vm1127, %v1641, %v1590
          %v1646 = vsel %vm1127, %v1642, %v1593
          %1648 = vrot.lane.b32.xlu0 %v1066, 96
          %v1649 = vpop.permute.xlu0 %1648
          %1651 = vrot.lane.b32.xlu0 %v1066, 64
          %v1652 = vpop.permute.xlu0 %1651
          %1654 = vrot.lane.b32.xlu0 %v1066, 32
          %v1655 = vpop.permute.xlu0 %1654
          %1658 = vrot.lane.b32.xlu0 %v1644, 32
          %v1659 = vpop.permute.xlu0 %1658
          %1662 = vrot.lane.b32.xlu0 %v1645, 64
          %v1663 = vpop.permute.xlu0 %1662
          %1666 = vrot.lane.b32.xlu0 %v1646, 96
          %v1667 = vpop.permute.xlu0 %1666
          %v1669 = vsel %vm1220, %v1643, %v1659
          %v1670 = vsel %vm1222, %v1669, %v1663
          %v1671 = vsel %vm1224, %v1670, %v1667
          %s1672 = scalar_lea.vmem [#allocation20], 8
          %1673 = vst [vmem:[%s1672] sm:$0xff] %v1671
          %s1674 = scalar_lea.vmem [#allocation22], 8
          %1675 = vst [vmem:[%s1674] sm:$0xff] %v1066
          %s1676 = scalar_lea.vmem [#allocation4], 8
          %v1677 = vld [vmem:[%s1676] sm:$0xff]
          %1679 = vrot.lane.b32.xlu0 %v1677, 96
          %v1680 = vpop.permute.xlu0 %1679
          %1681 = vrot.lane.b32.xlu0 %v1677, 64
          %v1682 = vpop.permute.xlu0 %1681
          %1683 = vrot.lane.b32.xlu0 %v1677, 32
          %v1684 = vpop.permute.xlu0 %1683
          %s1685 = scalar_lea.vmem [#allocation7], 8
          %v1686 = vld [vmem:[%s1685] sm:$0xff]
          %1688 = vrot.lane.b32.xlu0 %v1686, 96
          %v1689 = vpop.permute.xlu0 %1688
          %1691 = vrot.lane.b32.xlu0 %v1686, 64
          %v1692 = vpop.permute.xlu0 %1691
          %1694 = vrot.lane.b32.xlu0 %v1686, 32
          %v1695 = vpop.permute.xlu0 %1694
          %v1698 = vsel %vm1220, %v1581, 0
          %v1700 = vsel %vm1220, %v1677, 0
          %v1703 = vsel %vm1220, %v1643, 0
          %1705 = vmatpush.xpose.msra.mxu0 0.0
          %1706 = vmatpush.xpose.msra.mxu0 0.0
          %1707 = vmatpush.xpose.msra.mxu0 0.0
          %1708 = vmatpush.xpose.msra.mxu0 0.0
          %1709 = vmatpush.xpose.msra.mxu0 0.0
          %1710 = vmatpush.xpose.msra.mxu0 0.0
          %1711 = vmatpush.xpose.msra.mxu0 0.0
          %1712 = vmatpush.xpose.msra.mxu0 0.0
          %1713 = vmatpush.xpose.msra.mxu0 0.0
          %1714 = vmatpush.xpose.msra.mxu0 0.0
          %1715 = vmatpush.xpose.msra.mxu0 0.0
          %1716 = vmatpush.xpose.msra.mxu0 0.0
          %1717 = vmatpush.xpose.msra.mxu0 0.0
          %1718 = vmatpush.xpose.msra.mxu0 0.0
          %1719 = vmatpush.xpose.msra.mxu0 %v1703
          %1720 = vmatpush.xpose.msra.mxu0 %v1700
          %1721 = vmatmul.f32.gmra.mxu0 %v1698
          %v1722 = vpop.f32.mrf.mxu0
          %v1723 = vadd.f32 0.0, %v1722
          %1724 = vdwg.mxu0
          %v1726 = vsel %vm1220, %v1582, 0
          %v1728 = vsel %vm1220, %v1680, 0
          %v1730 = vsel %vm1220, %v1644, 0
          %1732 = vmatpush.xpose.msra.mxu0 0.0
          %1733 = vmatpush.xpose.msra.mxu0 0.0
          %1734 = vmatpush.xpose.msra.mxu0 0.0
          %1735 = vmatpush.xpose.msra.mxu0 0.0
          %1736 = vmatpush.xpose.msra.mxu0 0.0
          %1737 = vmatpush.xpose.msra.mxu0 0.0
          %1738 = vmatpush.xpose.msra.mxu0 0.0
          %1739 = vmatpush.xpose.msra.mxu0 0.0
          %1740 = vmatpush.xpose.msra.mxu0 0.0
          %1741 = vmatpush.xpose.msra.mxu0 0.0
          %1742 = vmatpush.xpose.msra.mxu0 0.0
          %1743 = vmatpush.xpose.msra.mxu0 0.0
          %1744 = vmatpush.xpose.msra.mxu0 0.0
          %1745 = vmatpush.xpose.msra.mxu0 0.0
          %1746 = vmatpush.xpose.msra.mxu0 %v1730
          %1747 = vmatpush.xpose.msra.mxu0 %v1728
          %1748 = vmatmul.f32.gmra.mxu0 %v1726
          %v1749 = vpop.f32.mrf.mxu0
          %v1750 = vadd.f32 0.0, %v1749
          %1751 = vdwg.mxu0
          %v1753 = vsel %vm1220, %v1583, 0
          %v1755 = vsel %vm1220, %v1682, 0
          %v1757 = vsel %vm1220, %v1645, 0
          %1759 = vmatpush.xpose.msra.mxu0 0.0
          %1760 = vmatpush.xpose.msra.mxu0 0.0
          %1761 = vmatpush.xpose.msra.mxu0 0.0
          %1762 = vmatpush.xpose.msra.mxu0 0.0
          %1763 = vmatpush.xpose.msra.mxu0 0.0
          %1764 = vmatpush.xpose.msra.mxu0 0.0
          %1765 = vmatpush.xpose.msra.mxu0 0.0
          %1766 = vmatpush.xpose.msra.mxu0 0.0
          %1767 = vmatpush.xpose.msra.mxu0 0.0
          %1768 = vmatpush.xpose.msra.mxu0 0.0
          %1769 = vmatpush.xpose.msra.mxu0 0.0
          %1770 = vmatpush.xpose.msra.mxu0 0.0
          %1771 = vmatpush.xpose.msra.mxu0 0.0
          %1772 = vmatpush.xpose.msra.mxu0 0.0
          %1773 = vmatpush.xpose.msra.mxu0 %v1757
          %1774 = vmatpush.xpose.msra.mxu0 %v1755
          %1775 = vmatmul.f32.gmra.mxu0 %v1753
          %v1776 = vpop.f32.mrf.mxu0
          %v1777 = vadd.f32 0.0, %v1776
          %1778 = vdwg.mxu0
          %v1780 = vsel %vm1220, %v1584, 0
          %v1782 = vsel %vm1220, %v1684, 0
          %v1784 = vsel %vm1220, %v1646, 0
          %1786 = vmatpush.xpose.msra.mxu0 0.0
          %1787 = vmatpush.xpose.msra.mxu0 0.0
          %1788 = vmatpush.xpose.msra.mxu0 0.0
          %1789 = vmatpush.xpose.msra.mxu0 0.0
          %1790 = vmatpush.xpose.msra.mxu0 0.0
          %1791 = vmatpush.xpose.msra.mxu0 0.0
          %1792 = vmatpush.xpose.msra.mxu0 0.0
          %1793 = vmatpush.xpose.msra.mxu0 0.0
          %1794 = vmatpush.xpose.msra.mxu0 0.0
          %1795 = vmatpush.xpose.msra.mxu0 0.0
          %1796 = vmatpush.xpose.msra.mxu0 0.0
          %1797 = vmatpush.xpose.msra.mxu0 0.0
          %1798 = vmatpush.xpose.msra.mxu0 0.0
          %1799 = vmatpush.xpose.msra.mxu0 0.0
          %1800 = vmatpush.xpose.msra.mxu0 %v1784
          %1801 = vmatpush.xpose.msra.mxu0 %v1782
          %1802 = vmatmul.f32.gmra.mxu0 %v1780
          %v1803 = vpop.f32.mrf.mxu0
          %v1804 = vadd.f32 0.0, %v1803
          %1805 = vdwg.mxu0
          %v1806 = vsel %vm1363, %v1723, -1e+30
          %v1807 = vsel %vm1363, %v1750, -1e+30
          %v1808 = vsel %vm1363, %v1777, -1e+30
          %v1809 = vsel %vm1363, %v1804, -1e+30
          %v1810 = vsel %vm1127, %v1806, -inf
          %1811 = vmax.xlane.f32.xlu0 %v1810
          %v1812 = vpop.xlane.xlu0 %1811
          %v1813 = vsel %vm1127, %v1807, -inf
          %1814 = vmax.xlane.f32.xlu0 %v1813
          %v1815 = vpop.xlane.xlu0 %1814
          %v1816 = vsel %vm1127, %v1808, -inf
          %1817 = vmax.xlane.f32.xlu0 %v1816
          %v1818 = vpop.xlane.xlu0 %1817
          %v1819 = vsel %vm1127, %v1809, -inf
          %1820 = vmax.xlane.f32.xlu0 %v1819
          %v1821 = vpop.xlane.xlu0 %1820
          %v1822 = vsub.f32 %v1806, %v1812
          %v1823 = vsub.f32 %v1807, %v1815
          %v1824 = vsub.f32 %v1808, %v1818
          %v1825 = vsub.f32 %v1809, %v1821
          %v1826 = vmul.f32 %v1822, 1.442695
          %v1827 = vpow.pop %v1826
          %v1828 = vmul.f32 %v1823, 1.442695
          %v1829 = vpow.pop %v1828
          %v1830 = vmul.f32 %v1824, 1.442695
          %v1831 = vpow.pop %v1830
          %v1832 = vmul.f32 %v1825, 1.442695
          %v1833 = vpow.pop %v1832
          %v1834 = vsel %vm1127, %v1827, 0.0
          %1835 = vadd.xlane.f32.xlu0 %v1834
          %v1836 = vpop.xlane.xlu0 %1835
          %v1837 = vsel %vm1127, %v1829, 0.0
          %1838 = vadd.xlane.f32.xlu0 %v1837
          %v1839 = vpop.xlane.xlu0 %1838
          %v1840 = vsel %vm1127, %v1831, 0.0
          %1841 = vadd.xlane.f32.xlu0 %v1840
          %v1842 = vpop.xlane.xlu0 %1841
          %v1843 = vsel %vm1127, %v1833, 0.0
          %1844 = vadd.xlane.f32.xlu0 %v1843
          %v1845 = vpop.xlane.xlu0 %1844
          %v1846 = vrcp.pop %v1836
          %v1847 = vrcp.pop %v1839
          %v1848 = vrcp.pop %v1842
          %v1849 = vrcp.pop %v1845
          %v1850 = vmul.f32 %v1827, %v1846
          %v1851 = vmul.f32 %v1829, %v1847
          %v1852 = vmul.f32 %v1831, %v1848
          %v1853 = vmul.f32 %v1833, %v1849
          %v1855 = vsel %vm1127, %v1850, 0
          %1857 = vmatpush.msra.mxu0 0.0
          %1858 = vmatpush.msra.mxu0 0.0
          %1859 = vmatpush.msra.mxu0 0.0
          %1860 = vmatpush.msra.mxu0 0.0
          %1861 = vmatpush.msra.mxu0 0.0
          %1862 = vmatpush.msra.mxu0 0.0
          %1863 = vmatpush.msra.mxu0 0.0
          %1864 = vmatpush.msra.mxu0 0.0
          %1865 = vmatpush.msra.mxu0 0.0
          %1866 = vmatpush.msra.mxu0 0.0
          %1867 = vmatpush.msra.mxu0 0.0
          %1868 = vmatpush.msra.mxu0 0.0
          %1869 = vmatpush.msra.mxu0 0.0
          %1870 = vmatpush.msra.mxu0 0.0
          %1871 = vmatpush.msra.mxu0 %v1066
          %1872 = vmatpush.msra.mxu0 %v1686
          %1873 = vmatmul.f32.gmra.mxu0 %v1855
          %v1874 = vpop.f32.mrf.mxu0
          %v1875 = vadd.f32 0.0, %v1874
          %1876 = vdwg.mxu0
          %v1878 = vsel %vm1127, %v1851, 0
          %1880 = vmatpush.msra.mxu0 0.0
          %1881 = vmatpush.msra.mxu0 0.0
          %1882 = vmatpush.msra.mxu0 0.0
          %1883 = vmatpush.msra.mxu0 0.0
          %1884 = vmatpush.msra.mxu0 0.0
          %1885 = vmatpush.msra.mxu0 0.0
          %1886 = vmatpush.msra.mxu0 0.0
          %1887 = vmatpush.msra.mxu0 0.0
          %1888 = vmatpush.msra.mxu0 0.0
          %1889 = vmatpush.msra.mxu0 0.0
          %1890 = vmatpush.msra.mxu0 0.0
          %1891 = vmatpush.msra.mxu0 0.0
          %1892 = vmatpush.msra.mxu0 0.0
          %1893 = vmatpush.msra.mxu0 0.0
          %1894 = vmatpush.msra.mxu0 %v1649
          %1895 = vmatpush.msra.mxu0 %v1689
          %1896 = vmatmul.f32.gmra.mxu0 %v1878
          %v1897 = vpop.f32.mrf.mxu0
          %v1898 = vadd.f32 0.0, %v1897
          %1899 = vdwg.mxu0
          %v1901 = vsel %vm1127, %v1852, 0
          %1903 = vmatpush.msra.mxu0 0.0
          %1904 = vmatpush.msra.mxu0 0.0
          %1905 = vmatpush.msra.mxu0 0.0
          %1906 = vmatpush.msra.mxu0 0.0
          %1907 = vmatpush.msra.mxu0 0.0
          %1908 = vmatpush.msra.mxu0 0.0
          %1909 = vmatpush.msra.mxu0 0.0
          %1910 = vmatpush.msra.mxu0 0.0
          %1911 = vmatpush.msra.mxu0 0.0
          %1912 = vmatpush.msra.mxu0 0.0
          %1913 = vmatpush.msra.mxu0 0.0
          %1914 = vmatpush.msra.mxu0 0.0
          %1915 = vmatpush.msra.mxu0 0.0
          %1916 = vmatpush.msra.mxu0 0.0
          %1917 = vmatpush.msra.mxu0 %v1652
          %1918 = vmatpush.msra.mxu0 %v1692
          %1919 = vmatmul.f32.gmra.mxu0 %v1901
          %v1920 = vpop.f32.mrf.mxu0
          %v1921 = vadd.f32 0.0, %v1920
          %1922 = vdwg.mxu0
          %v1924 = vsel %vm1127, %v1853, 0
          %1926 = vmatpush.msra.mxu0 0.0
          %1927 = vmatpush.msra.mxu0 0.0
          %1928 = vmatpush.msra.mxu0 0.0
          %1929 = vmatpush.msra.mxu0 0.0
          %1930 = vmatpush.msra.mxu0 0.0
          %1931 = vmatpush.msra.mxu0 0.0
          %1932 = vmatpush.msra.mxu0 0.0
          %1933 = vmatpush.msra.mxu0 0.0
          %1934 = vmatpush.msra.mxu0 0.0
          %1935 = vmatpush.msra.mxu0 0.0
          %1936 = vmatpush.msra.mxu0 0.0
          %1937 = vmatpush.msra.mxu0 0.0
          %1938 = vmatpush.msra.mxu0 0.0
          %1939 = vmatpush.msra.mxu0 0.0
          %1940 = vmatpush.msra.mxu0 %v1655
          %1941 = vmatpush.msra.mxu0 %v1695
          %1942 = vmatmul.f32.gmra.mxu0 %v1924
          %v1943 = vpop.f32.mrf.mxu0
          %v1944 = vadd.f32 0.0, %v1943
          %1945 = vdwg.mxu0
          %1947 = vrot.lane.b32.xlu0 %v1898, 32
          %v1948 = vpop.permute.xlu0 %1947
          %1951 = vrot.lane.b32.xlu0 %v1921, 64
          %v1952 = vpop.permute.xlu0 %1951
          %1955 = vrot.lane.b32.xlu0 %v1944, 96
          %v1956 = vpop.permute.xlu0 %1955
          %v1958 = vsel %vm1220, %v1875, %v1948
          %v1959 = vsel %vm1222, %v1958, %v1952
          %v1960 = vsel %vm1224, %v1959, %v1956
          %v1961 = vpack.c.bf16 %v1960, %v1518
          %v1962 = vld [vmem:[%s9] sm:$0xf]
          %v1963 = vld [vmem:[%s9 + $0x4] sm:$0xf]
          %v1964 = vld [vmem:[%s9 + $0x8] sm:$0xf]
          %v1965 = vld [vmem:[%s9 + $0xc] sm:$0xf]
          %v1966 = vld [vmem:[%s9 + $0x10] sm:$0xf]
          %v1967 = vld [vmem:[%s9 + $0x14] sm:$0xf]
          %v1968 = vld [vmem:[%s9 + $0x18] sm:$0xf]
          %v1969 = vld [vmem:[%s9 + $0x1c] sm:$0xf]
          %v1970 = vld [vmem:[%s9 + $0x20] sm:$0xf]
          %v1971 = vld [vmem:[%s9 + $0x24] sm:$0xf]
          %v1972 = vld [vmem:[%s9 + $0x28] sm:$0xf]
          %v1973 = vld [vmem:[%s9 + $0x2c] sm:$0xf]
          %v1974 = vld [vmem:[%s9 + $0x30] sm:$0xf]
          %v1975 = vld [vmem:[%s9 + $0x34] sm:$0xf]
          %v1976 = vld [vmem:[%s9 + $0x38] sm:$0xf]
          %v1977 = vld [vmem:[%s9 + $0x3c] sm:$0xf]
          %v1978 = vld [vmem:[#allocation10] sm:$0x1]
          %v1980 = vperm.slane %v1978, 0
          %v1998 = vunpack.c.l.b16 %v1962
          %v1999 = vunpack.c.l.b16 %v1963
          %v2000 = vunpack.c.l.b16 %v1964
          %v2001 = vunpack.c.l.b16 %v1965
          %v2002 = vunpack.c.l.b16 %v1966
          %v2003 = vunpack.c.l.b16 %v1967
          %v2004 = vunpack.c.l.b16 %v1968
          %v2005 = vunpack.c.l.b16 %v1969
          %v2006 = vunpack.c.l.b16 %v1970
          %v2007 = vunpack.c.l.b16 %v1971
          %v2008 = vunpack.c.l.b16 %v1972
          %v2009 = vunpack.c.l.b16 %v1973
          %v2010 = vunpack.c.l.b16 %v1974
          %v2011 = vunpack.c.l.b16 %v1975
          %v2012 = vunpack.c.l.b16 %v1976
          %v2013 = vunpack.c.l.b16 %v1977
          %v2014 = vpack.c.b16 %v1999, %v1998
          %v2015 = vpack.c.b16 %v2001, %v2000
          %v2016 = vpack.c.b16 %v2003, %v2002
          %v2017 = vpack.c.b16 %v2005, %v2004
          %v2018 = vpack.c.b16 %v2007, %v2006
          %v2019 = vpack.c.b16 %v2009, %v2008
          %v2020 = vpack.c.b16 %v2011, %v2010
          %v2021 = vpack.c.b16 %v2013, %v2012
          %2030 = vmatpush.bf16.msra.mxu0 %v2021
          %2031 = vmatpush.bf16.msra.mxu0 %v2020
          %2032 = vmatpush.bf16.msra.mxu0 %v2019
          %2033 = vmatpush.bf16.msra.mxu0 %v2018
          %2034 = vmatpush.bf16.msra.mxu0 %v2017
          %2035 = vmatpush.bf16.msra.mxu0 %v2016
          %2036 = vmatpush.bf16.msra.mxu0 %v2015
          %2037 = vmatpush.bf16.msra.mxu0 %v2014
          %2038 = vmatmul.bf16.gmra.mxu0 %v1961
          %v2039 = vpop.f32.mrf.mxu0
          %v2040 = vadd.f32 %v1980, %v2039
          %v2041 = vpop.f32.mrf.mxu0
          %v2042 = vadd.f32 %v1980, %v2041
          %2043 = vdwg.mxu0
          %v2044 = vadd.f32 %v794, %v2040
          %v2045 = vadd.f32 %v795, %v2042
          %v2046 = vld [vmem:[#allocation18] sm:$0x1]
          %v2048 = vperm.slane %v2046, 0
          %v2050 = vadd.f32 %v2044, %v2048
          %v2051 = vadd.f32 %v2045, %v2048
          %2052 = vst [vmem:[#allocation2] sm:$0xff] %v2050
          %2053 = vst [vmem:[#allocation2 + $0x8] sm:$0xff] %v2051
          %v2054 = vld [vmem:[#allocation12] sm:$0x1]
          %v2056 = vperm.slane %v2054, 0
          %v2058 = vmul.f32 %v843, %v2056
          %v2059 = vmul.f32 %v844, %v2056
          %v2060 = vld [vmem:[#allocation13] sm:$0x1]
          %v2062 = vperm.slane %v2060, 0
          %v2064 = vadd.f32 %v2058, %v2062
          %v2065 = vadd.f32 %v2059, %v2062
          %2066 = vst [vmem:[#allocation3] sm:$0xff] %v2064
          %2067 = vst [vmem:[#allocation3 + $0x8] sm:$0xff] %v2065
        $region132: #{tpu_custom_call.1} parent=87 // pred_fallthru
          _
        %v2068 = vld [vmem:[#allocation3] sm:$0xff]
        %v2069 = vld [vmem:[#allocation3 + $0x8] sm:$0xff]
        %v2070 = vpack.c.bf16 %v2069, %v2068
        %v2071 = vld [vmem:[%s701] sm:$0xff]
        %v2072 = vld [vmem:[%s701 + $0x8] sm:$0xff]
        %v2073 = vld [vmem:[%s701 + $0x10] sm:$0xff]
        %v2074 = vld [vmem:[%s701 + $0x18] sm:$0xff]
        %v2075 = vld [vmem:[%s701 + $0x20] sm:$0xff]
        %v2076 = vld [vmem:[%s701 + $0x28] sm:$0xff]
        %v2077 = vld [vmem:[%s701 + $0x30] sm:$0xff]
        %v2078 = vld [vmem:[%s701 + $0x38] sm:$0xff]
        %v2079 = vld [vmem:[%s701 + $0x40] sm:$0xff]
        %v2080 = vld [vmem:[%s701 + $0x48] sm:$0xff]
        %v2081 = vld [vmem:[%s701 + $0x50] sm:$0xff]
        %v2082 = vld [vmem:[%s701 + $0x58] sm:$0xff]
        %v2083 = vld [vmem:[%s701 + $0x60] sm:$0xff]
        %v2084 = vld [vmem:[%s701 + $0x68] sm:$0xff]
        %v2085 = vld [vmem:[%s701 + $0x70] sm:$0xff]
        %v2086 = vld [vmem:[%s701 + $0x78] sm:$0xff]
        %v2087 = vld [vmem:[%s711] sm:$0x3]
        %v2089 = vperm.slane %v2087, 0
        %v2090 = vperm.slane %v2087, 1
        %v2109 = vunpack.c.l.b16 %v2071
        %v2110 = vunpack.c.h.b16 %v2071
        %v2111 = vunpack.c.l.b16 %v2072
        %v2112 = vunpack.c.h.b16 %v2072
        %v2113 = vunpack.c.l.b16 %v2073
        %v2114 = vunpack.c.h.b16 %v2073
        %v2115 = vunpack.c.l.b16 %v2074
        %v2116 = vunpack.c.h.b16 %v2074
        %v2117 = vunpack.c.l.b16 %v2075
        %v2118 = vunpack.c.h.b16 %v2075
        %v2119 = vunpack.c.l.b16 %v2076
        %v2120 = vunpack.c.h.b16 %v2076
        %v2121 = vunpack.c.l.b16 %v2077
        %v2122 = vunpack.c.h.b16 %v2077
        %v2123 = vunpack.c.l.b16 %v2078
        %v2124 = vunpack.c.h.b16 %v2078
        %v2125 = vunpack.c.l.b16 %v2079
        %v2126 = vunpack.c.h.b16 %v2079
        %v2127 = vunpack.c.l.b16 %v2080
        %v2128 = vunpack.c.h.b16 %v2080
        %v2129 = vunpack.c.l.b16 %v2081
        %v2130 = vunpack.c.h.b16 %v2081
        %v2131 = vunpack.c.l.b16 %v2082
        %v2132 = vunpack.c.h.b16 %v2082
        %v2133 = vunpack.c.l.b16 %v2083
        %v2134 = vunpack.c.h.b16 %v2083
        %v2135 = vunpack.c.l.b16 %v2084
        %v2136 = vunpack.c.h.b16 %v2084
        %v2137 = vunpack.c.l.b16 %v2085
        %v2138 = vunpack.c.h.b16 %v2085
        %v2139 = vunpack.c.l.b16 %v2086
        %v2140 = vunpack.c.h.b16 %v2086
        %v2141 = vpack.c.b16 %v2111, %v2109
        %v2142 = vpack.c.b16 %v2112, %v2110
        %v2143 = vpack.c.b16 %v2115, %v2113
        %v2144 = vpack.c.b16 %v2116, %v2114
        %v2145 = vpack.c.b16 %v2119, %v2117
        %v2146 = vpack.c.b16 %v2120, %v2118
        %v2147 = vpack.c.b16 %v2123, %v2121
        %v2148 = vpack.c.b16 %v2124, %v2122
        %v2149 = vpack.c.b16 %v2127, %v2125
        %v2150 = vpack.c.b16 %v2128, %v2126
        %v2151 = vpack.c.b16 %v2131, %v2129
        %v2152 = vpack.c.b16 %v2132, %v2130
        %v2153 = vpack.c.b16 %v2135, %v2133
        %v2154 = vpack.c.b16 %v2136, %v2134
        %v2155 = vpack.c.b16 %v2139, %v2137
        %v2156 = vpack.c.b16 %v2140, %v2138
        %2173 = vmatpush.bf16.msra.mxu0 %v2155
        %2174 = vmatpush.bf16.msra.mxu0 %v2153
        %2175 = vmatpush.bf16.msra.mxu0 %v2151
        %2176 = vmatpush.bf16.msra.mxu0 %v2149
        %2177 = vmatpush.bf16.msra.mxu0 %v2147
        %2178 = vmatpush.bf16.msra.mxu0 %v2145
        %2179 = vmatpush.bf16.msra.mxu0 %v2143
        %2180 = vmatpush.bf16.msra.mxu0 %v2141
        %2181 = vmatmul.bf16.gmra.mxu0 %v2070
        %v2182 = vpop.f32.mrf.mxu0
        %v2183 = vadd.f32 %v2089, %v2182
        %v2184 = vpop.f32.mrf.mxu0
        %v2185 = vadd.f32 %v2089, %v2184
        %2186 = vdwg.mxu0
        %2187 = vmatpush.bf16.msra.mxu0 %v2156
        %2188 = vmatpush.bf16.msra.mxu0 %v2154
        %2189 = vmatpush.bf16.msra.mxu0 %v2152
        %2190 = vmatpush.bf16.msra.mxu0 %v2150
        %2191 = vmatpush.bf16.msra.mxu0 %v2148
        %2192 = vmatpush.bf16.msra.mxu0 %v2146
        %2193 = vmatpush.bf16.msra.mxu0 %v2144
        %2194 = vmatpush.bf16.msra.mxu0 %v2142
        %2195 = vmatmul.bf16.gmra.mxu0 %v2070
        %v2196 = vpop.f32.mrf.mxu0
        %v2197 = vadd.f32 %v2090, %v2196
        %v2198 = vpop.f32.mrf.mxu0
        %v2199 = vadd.f32 %v2090, %v2198
        %2200 = vdwg.mxu0
        %v2201 = vmul.f32 %v2183, 0.5
        %v2202 = vmul.f32 %v2197, 0.5
        %v2203 = vmul.f32 %v2185, 0.5
        %v2204 = vmul.f32 %v2199, 0.5
        %v2205 = vmul.f32 %v2183, 0.044715
        %v2206 = vmul.f32 %v2197, 0.044715
        %v2207 = vmul.f32 %v2185, 0.044715
        %v2208 = vmul.f32 %v2199, 0.044715
        %v2209 = vmul.f32 %v2205, %v2183
        %v2210 = vmul.f32 %v2206, %v2197
        %v2211 = vmul.f32 %v2207, %v2185
        %v2212 = vmul.f32 %v2208, %v2199
        %v2213 = vmul.f32 %v2209, %v2183
        %v2214 = vmul.f32 %v2210, %v2197
        %v2215 = vmul.f32 %v2211, %v2185
        %v2216 = vmul.f32 %v2212, %v2199
        %v2217 = vadd.f32 %v2183, %v2213
        %v2218 = vadd.f32 %v2197, %v2214
        %v2219 = vadd.f32 %v2185, %v2215
        %v2220 = vadd.f32 %v2199, %v2216
        %v2221 = vmul.f32 %v2217, 0.7978846
        %v2222 = vmul.f32 %v2218, 0.7978846
        %v2223 = vmul.f32 %v2219, 0.7978846
        %v2224 = vmul.f32 %v2220, 0.7978846
        %v2225 = vtanh.pop %v2221
        %v2226 = vtanh.pop %v2222
        %v2227 = vtanh.pop %v2223
        %v2228 = vtanh.pop %v2224
        %v2229 = vadd.f32 %v2225, 1.0
        %v2230 = vadd.f32 %v2226, 1.0
        %v2231 = vadd.f32 %v2227, 1.0
        %v2232 = vadd.f32 %v2228, 1.0
        %v2233 = vmul.f32 %v2201, %v2229
        %v2234 = vmul.f32 %v2202, %v2230
        %v2235 = vmul.f32 %v2203, %v2231
        %v2236 = vmul.f32 %v2204, %v2232
        %v2237 = vld [vmem:[#allocation2] sm:$0xff]
        %v2238 = vld [vmem:[#allocation2 + $0x8] sm:$0xff]
        %v2239 = vpack.c.bf16 %v2235, %v2233
        %v2240 = vpack.c.bf16 %v2236, %v2234
        %v2241 = vld [vmem:[%s721] sm:$0xf]
        %v2242 = vld [vmem:[%s721 + $0x4] sm:$0xf]
        %v2243 = vld [vmem:[%s721 + $0x8] sm:$0xf]
        %v2244 = vld [vmem:[%s721 + $0xc] sm:$0xf]
        %v2245 = vld [vmem:[%s721 + $0x10] sm:$0xf]
        %v2246 = vld [vmem:[%s721 + $0x14] sm:$0xf]
        %v2247 = vld [vmem:[%s721 + $0x18] sm:$0xf]
        %v2248 = vld [vmem:[%s721 + $0x1c] sm:$0xf]
        %v2249 = vld [vmem:[%s721 + $0x20] sm:$0xf]
        %v2250 = vld [vmem:[%s721 + $0x24] sm:$0xf]
        %v2251 = vld [vmem:[%s721 + $0x28] sm:$0xf]
        %v2252 = vld [vmem:[%s721 + $0x2c] sm:$0xf]
        %v2253 = vld [vmem:[%s721 + $0x30] sm:$0xf]
        %v2254 = vld [vmem:[%s721 + $0x34] sm:$0xf]
        %v2255 = vld [vmem:[%s721 + $0x38] sm:$0xf]
        %v2256 = vld [vmem:[%s721 + $0x3c] sm:$0xf]
        %v2257 = vld [vmem:[%s721 + $0x40] sm:$0xf]
        %v2258 = vld [vmem:[%s721 + $0x44] sm:$0xf]
        %v2259 = vld [vmem:[%s721 + $0x48] sm:$0xf]
        %v2260 = vld [vmem:[%s721 + $0x4c] sm:$0xf]
        %v2261 = vld [vmem:[%s721 + $0x50] sm:$0xf]
        %v2262 = vld [vmem:[%s721 + $0x54] sm:$0xf]
        %v2263 = vld [vmem:[%s721 + $0x58] sm:$0xf]
        %v2264 = vld [vmem:[%s721 + $0x5c] sm:$0xf]
        %v2265 = vld [vmem:[%s721 + $0x60] sm:$0xf]
        %v2266 = vld [vmem:[%s721 + $0x64] sm:$0xf]
        %v2267 = vld [vmem:[%s721 + $0x68] sm:$0xf]
        %v2268 = vld [vmem:[%s721 + $0x6c] sm:$0xf]
        %v2269 = vld [vmem:[%s721 + $0x70] sm:$0xf]
        %v2270 = vld [vmem:[%s721 + $0x74] sm:$0xf]
        %v2271 = vld [vmem:[%s721 + $0x78] sm:$0xf]
        %v2272 = vld [vmem:[%s721 + $0x7c] sm:$0xf]
        %v2305 = vunpack.c.l.b16 %v2241
        %v2306 = vunpack.c.l.b16 %v2242
        %v2307 = vunpack.c.l.b16 %v2243
        %v2308 = vunpack.c.l.b16 %v2244
        %v2309 = vunpack.c.l.b16 %v2245
        %v2310 = vunpack.c.l.b16 %v2246
        %v2311 = vunpack.c.l.b16 %v2247
        %v2312 = vunpack.c.l.b16 %v2248
        %v2313 = vunpack.c.l.b16 %v2249
        %v2314 = vunpack.c.l.b16 %v2250
        %v2315 = vunpack.c.l.b16 %v2251
        %v2316 = vunpack.c.l.b16 %v2252
        %v2317 = vunpack.c.l.b16 %v2253
        %v2318 = vunpack.c.l.b16 %v2254
        %v2319 = vunpack.c.l.b16 %v2255
        %v2320 = vunpack.c.l.b16 %v2256
        %v2321 = vunpack.c.l.b16 %v2257
        %v2322 = vunpack.c.l.b16 %v2258
        %v2323 = vunpack.c.l.b16 %v2259
        %v2324 = vunpack.c.l.b16 %v2260
        %v2325 = vunpack.c.l.b16 %v2261
        %v2326 = vunpack.c.l.b16 %v2262
        %v2327 = vunpack.c.l.b16 %v2263
        %v2328 = vunpack.c.l.b16 %v2264
        %v2329 = vunpack.c.l.b16 %v2265
        %v2330 = vunpack.c.l.b16 %v2266
        %v2331 = vunpack.c.l.b16 %v2267
        %v2332 = vunpack.c.l.b16 %v2268
        %v2333 = vunpack.c.l.b16 %v2269
        %v2334 = vunpack.c.l.b16 %v2270
        %v2335 = vunpack.c.l.b16 %v2271
        %v2336 = vunpack.c.l.b16 %v2272
        %v2337 = vpack.c.b16 %v2306, %v2305
        %v2338 = vpack.c.b16 %v2308, %v2307
        %v2339 = vpack.c.b16 %v2310, %v2309
        %v2340 = vpack.c.b16 %v2312, %v2311
        %v2341 = vpack.c.b16 %v2314, %v2313
        %v2342 = vpack.c.b16 %v2316, %v2315
        %v2343 = vpack.c.b16 %v2318, %v2317
        %v2344 = vpack.c.b16 %v2320, %v2319
        %v2345 = vpack.c.b16 %v2322, %v2321
        %v2346 = vpack.c.b16 %v2324, %v2323
        %v2347 = vpack.c.b16 %v2326, %v2325
        %v2348 = vpack.c.b16 %v2328, %v2327
        %v2349 = vpack.c.b16 %v2330, %v2329
        %v2350 = vpack.c.b16 %v2332, %v2331
        %v2351 = vpack.c.b16 %v2334, %v2333
        %v2352 = vpack.c.b16 %v2336, %v2335
        %2369 = vmatpush.bf16.msra.mxu0 %v2344
        %2370 = vmatpush.bf16.msra.mxu0 %v2343
        %2371 = vmatpush.bf16.msra.mxu0 %v2342
        %2372 = vmatpush.bf16.msra.mxu0 %v2341
        %2373 = vmatpush.bf16.msra.mxu0 %v2340
        %2374 = vmatpush.bf16.msra.mxu0 %v2339
        %2375 = vmatpush.bf16.msra.mxu0 %v2338
        %2376 = vmatpush.bf16.msra.mxu0 %v2337
        %2377 = vmatmul.bf16.gmra.mxu0 %v2239
        %v2378 = vpop.f32.mrf.mxu0
        %v2379 = vadd.f32 0.0, %v2378
        %v2380 = vpop.f32.mrf.mxu0
        %v2381 = vadd.f32 0.0, %v2380
        %2382 = vdwg.mxu0
        %2383 = vmatpush.bf16.msra.mxu0 %v2352
        %2384 = vmatpush.bf16.msra.mxu0 %v2351
        %2385 = vmatpush.bf16.msra.mxu0 %v2350
        %2386 = vmatpush.bf16.msra.mxu0 %v2349
        %2387 = vmatpush.bf16.msra.mxu0 %v2348
        %2388 = vmatpush.bf16.msra.mxu0 %v2347
        %2389 = vmatpush.bf16.msra.mxu0 %v2346
        %2390 = vmatpush.bf16.msra.mxu0 %v2345
        %2391 = vmatmul.bf16.gmra.mxu0 %v2240
        %v2392 = vpop.f32.mrf.mxu0
        %v2393 = vadd.f32 %v2379, %v2392
        %v2394 = vpop.f32.mrf.mxu0
        %v2395 = vadd.f32 %v2381, %v2394
        %2396 = vdwg.mxu0
        %v2397 = vadd.f32 %v2237, %v2393
        %v2398 = vadd.f32 %v2238, %v2395
        %2399 = vst [vmem:[#allocation2] sm:$0xff] %v2397
        %2400 = vst [vmem:[#allocation2 + $0x8] sm:$0xff] %v2398
        %p2401 = scmp.eq.s32.totalorder %s37, 1
        // Predicated region
        $region133: #{tpu_custom_call.1} parent=87 // pred_check
          %p2402 = pneg %p2401
        $region134: #{tpu_custom_call.1} parent=87 // pred_check_branch
          %2404 = sbr.rel (%p2402) target = $region136
        $region135: #{tpu_custom_call.1} parent=87 // pred_region
          %v2405 = vld [vmem:[#allocation2] sm:$0xff]
          %v2406 = vld [vmem:[#allocation2 + $0x8] sm:$0xff]
          %2407 = vst [vmem:[#allocation19] sm:$0xff] %v2405
          %2408 = vst [vmem:[#allocation19 + $0x8] sm:$0xff] %v2406
        $region136: #{tpu_custom_call.1} parent=87 // pred_fallthru
          _
        // Predicated region
        $region137: #{tpu_custom_call.1} parent=87 // pred_check
          %p2409 = pneg %p422
        $region138: #{tpu_custom_call.1} parent=87 // pred_check_branch
          %2411 = sbr.rel (%p2409) target = $region140
        $region139: #{tpu_custom_call.1} parent=87 // pred_region
          %2413 = vsyncadd [#allocation6], 0
          %s2414 = sshll.u32 [#allocation19], 4
          %s2415 = int_to_ptr.vmem [resolvable:$true] %s2414
          %s2416 = sshll.u32 %s17, 4
          %s2417 = int_to_ptr.hbm [resolvable:$true] %s2416
          %2422 = dma.vmem_to_hbm [thread:$0]  %s2415, 256, %s2417, [#allocation6], 128, 128, 8
        $region140: #{tpu_custom_call.1} parent=87 // pred_fallthru
          _
        // Predicated region
        $region141: #{tpu_custom_call.1} parent=87 // pred_check
          %p2423 = pneg %p443
        $region142: #{tpu_custom_call.1} parent=87 // pred_check_branch
          %2425 = sbr.rel (%p2423) target = $region144
        $region143: #{tpu_custom_call.1} parent=87 // pred_region
          %2427 = vsyncadd [#allocation21], 0
          %s2428 = scalar_lea.hbm %s18, 8
          %s2429 = sshll.u32 [#allocation20], 4
          %s2430 = int_to_ptr.vmem [resolvable:$true] %s2429
          %s2431 = sshll.u32 %s2428, 4
          %s2432 = int_to_ptr.hbm [resolvable:$true] %s2431
          %2437 = dma.vmem_to_hbm [thread:$0]  %s2430, 256, %s2432, [#allocation21], 128, 256, 8
        $region144: #{tpu_custom_call.1} parent=87 // pred_fallthru
          _
        // Predicated region
        $region145: #{tpu_custom_call.1} parent=87 // pred_check
          %p2438 = pneg %p464
        $region146: #{tpu_custom_call.1} parent=87 // pred_check_branch
          %2440 = sbr.rel (%p2438) target = $region148
        $region147: #{tpu_custom_call.1} parent=87 // pred_region
          %2442 = vsyncadd [#allocation21], 0
          %s2443 = scalar_lea.hbm %s19, 8
          %s2444 = sshll.u32 [#allocation22], 4
          %s2445 = int_to_ptr.vmem [resolvable:$true] %s2444
          %s2446 = sshll.u32 %s2443, 4
          %s2447 = int_to_ptr.hbm [resolvable:$true] %s2446
          %2452 = dma.vmem_to_hbm [thread:$0]  %s2445, 256, %s2447, [#allocation21], 128, 256, 8
        $region148: #{tpu_custom_call.1} parent=87 // pred_fallthru
          _
        // Predicated region
        $region149: #{tpu_custom_call.1} parent=87 // pred_check
          %p2453 = pneg %p422
        $region150: #{tpu_custom_call.1} parent=87 // pred_check_branch
          %2455 = sbr.rel (%p2453) target = $region152
        $region151: #{tpu_custom_call.1} parent=87 // pred_region
          %2457 = dma.done [#allocation6], 256
        $region152: #{tpu_custom_call.1} parent=87 // pred_fallthru
          _
        // Predicated region
        $region153: #{tpu_custom_call.1} parent=87 // pred_check
          %p2458 = pneg %p443
        $region154: #{tpu_custom_call.1} parent=87 // pred_check_branch
          %2460 = sbr.rel (%p2458) target = $region156
        $region155: #{tpu_custom_call.1} parent=87 // pred_region
          %2462 = dma.done [#allocation21], 256
        $region156: #{tpu_custom_call.1} parent=87 // pred_fallthru
          _
        // Predicated region
        $region157: #{tpu_custom_call.1} parent=87 // pred_check
          %p2463 = pneg %p464
        $region158: #{tpu_custom_call.1} parent=87 // pred_check_branch
          %2465 = sbr.rel (%p2463) target = $region160
        $region159: #{tpu_custom_call.1} parent=87 // pred_region
          %2467 = dma.done [#allocation21], 256
        $region160: #{tpu_custom_call.1} parent=87 // pred_fallthru
          _
      $region88: #{tpu_custom_call.1} parent=5 // pred_fallthru
        _
      %p2468 = scmp.le.s32.totalorder 2, %s32
      // Predicated region
      $region161: #{tpu_custom_call.1} parent=5 // pred_check
        %p2469 = pneg %p2468
      $region162: #{tpu_custom_call.1} parent=5 // pred_check_branch
        %2471 = sbr.rel (%p2469) target = $region164
      $region163: #{tpu_custom_call.1} parent=5 // pred_region
        %s2472 = ssub.s32 %s32, 2
      $region164: #{tpu_custom_call.1} parent=5 // pred_fallthru
        _
    $region6: #{tpu_custom_call.1} parent=1 // loop_footer
      %s36 = sadd.s32 1, %s32
    $region7: #{tpu_custom_call.1} parent=1 // loop_footer_branch
      %31 = sbr.rel target = $region3
    $region8: #{tpu_custom_call.1} parent=1 // loop_exit
      _
    %2473 = vsyncpa [#allocation5], 1
    %s2474 = scalar_lea.sflag [#allocation5], 1
    %2475 = vsyncpa %s2474, 1
    %2476 = vsyncpa [#allocation8], 1
    %2477 = vsyncpa [#allocation11], 1
    %2478 = vsyncpa [#allocation14], 1
    %2479 = vsyncpa [#allocation6], 1
    %s2480 = scalar_lea.sflag [#allocation6], 1
    %2481 = vsyncpa %s2480, 1
    %2482 = vsyncpa [#allocation21], 1

</llo_original>
